<compile_context>
chip_gen: v7x
topology: tpu7x:2x2x1
jax: 0.10.0
libtpu: 0.0.40
codegen_flags: <defaults>
</compile_context>

<pallas_src>
import jax
import jax.numpy as jnp
from jax import lax
from jax.experimental import pallas as pl
from jax.experimental.pallas import tpu as pltpu

_VMEM_LIMIT = 32 * 1024 * 1024  # explicit scoped-VMEM budget (safe on v5e/v6e/v7x)
_BN_EPS = 1e-5


def _vmem_spec():
    return pl.BlockSpec(memory_space=pltpu.MemorySpace.VMEM)


# ---------------------------------------------------------------------------
# Pallas kernels
# ---------------------------------------------------------------------------
def conv_bn_relu_kernel(p_ref, w_ref, gamma_ref, beta_ref, o_ref):
    """Fused conv-as-matmul + training-mode BatchNorm + ReLU (single tile).

    p_ref:     (M, K)     bf16 im2col patches for the whole layer
    w_ref:     (K, Cout)  bf16 matmul-ready conv weight (HWIO rows)
    gamma_ref: (1, Cout)  f32 BN weight
    beta_ref:  (1, Cout)  f32 BN bias
    o_ref:     (M, Cout)  bf16 post-BN/ReLU activations
    """
    y = jnp.dot(p_ref[...], w_ref[...], preferred_element_type=jnp.float32)
    m = y.shape[0]
    inv_m = jnp.float32(1.0 / m)
    mean = jnp.sum(y, axis=0, keepdims=True) * inv_m
    var = jnp.maximum(jnp.sum(y * y, axis=0, keepdims=True) * inv_m - mean * mean, 0.0)
    scale = gamma_ref[...] * lax.rsqrt(var + _BN_EPS)          # (1, Cout)
    shift = beta_ref[...] - mean * scale                        # (1, Cout)
    o_ref[...] = jnp.maximum(y * scale + shift, 0.0).astype(o_ref.dtype)


def mlp_head_kernel(feat_ref, wf_ref, tag_ref, wt_ref, b1_ref, w2_ref, b2_ref,
                    o_ref, acc_ref):
    """Fused dense1 -> ReLU -> dense2 -> sigmoid, K-tiled over the feature dim.

    feat_ref: (N, tk)     bf16 K-tile of NHWC-flattened conv4 features
    wf_ref:   (tk, 512)   bf16 K-tile of dense1 feature rows (pre-permuted)
    tag_ref:  (N, T)      bf16 (grid-invariant)
    wt_ref:   (T, 512)    bf16 dense1 tag rows
    b1_ref:   (1, 512)    f32
    w2_ref:   (1, 512)    f32 dense2 weight as a row (VPU lane reduction)
    b2_ref:   (1, 1)      f32
    o_ref:    (N, 1)      f32 (written at the last K step only)
    acc_ref:  (N, 512)    f32 VMEM accumulator (resident across the grid)
    """
    k = pl.program_id(0)

    @pl.when(k == 0)
    def _():
        acc_ref[...] = (jnp.dot(tag_ref[...], wt_ref[...],
                                preferred_element_type=jnp.float32) + b1_ref[...])

    acc_ref[...] += jnp.dot(feat_ref[...], wf_ref[...],
                            preferred_element_type=jnp.float32)

    @pl.when(k == pl.num_programs(0) - 1)
    def _():
        h = jnp.maximum(acc_ref[...], 0.0)
        # 512 -> 1 as broadcast-multiply + lane reduction (no 1-wide MXU matmul).
        y = jnp.sum(h * w2_ref[...], axis=-1, keepdims=True) + b2_ref[...]
        o_ref[...] = jax.nn.sigmoid(y)


# ---------------------------------------------------------------------------
# Plain-JAX glue
# ---------------------------------------------------------------------------
def _im2col(x, k=4, s=2, p=1):
    """x: (N, H, W, C) bf16 -> (N*OH*OW, k*k*C) bf16, feature order (kh, kw, c)."""
    n, h, w, c = x.shape
    xp = jnp.pad(x, ((0, 0), (p, p), (p, p), (0, 0)))
    oh = (h + 2 * p - k) // s + 1
    ow = (w + 2 * p - k) // s + 1
    pieces = []
    for kh in range(k):
        for kw in range(k):
            pieces.append(xp[:, kh:kh + oh * s:s, kw:kw + ow * s:s, :])
    patches = jnp.stack(pieces, axis=-2)              # (N, OH, OW, k*k, C)
    return patches.reshape(n * oh * ow, k * k * c), (n, oh, ow)


def _conv_bn_relu(x, wmat, gamma, beta, *, k=4, s=2, p=1):
    """One conv(4,2,1,bias=False) + BatchNorm(train) + ReLU layer, fully fused."""
    cout = wmat.shape[-1]
    patches, (n, oh, ow) = _im2col(x, k, s, p)
    m, _ = patches.shape
    out = pl.pallas_call(
        conv_bn_relu_kernel,
        out_shape=jax.ShapeDtypeStruct((m, cout), jnp.bfloat16),
        in_specs=[_vmem_spec()] * 4,
        out_specs=_vmem_spec(),
        compiler_params=pltpu.CompilerParams(vmem_limit_bytes=_VMEM_LIMIT),
    )(patches, wmat, gamma, beta)
    return out.reshape(n, oh, ow, cout)


def _dense_head(feat, tag, params, *, tk=512):
    n, kdim = feat.shape
    t = tag.shape[1]
    hid = params["bd1"].shape[1]
    if kdim % tk != 0:
        tk = kdim
    grid = (kdim // tk,)
    return pl.pallas_call(
        mlp_head_kernel,
        out_shape=jax.ShapeDtypeStruct((n, 1), jnp.float32),
        grid_spec=pltpu.PrefetchScalarGridSpec(
            num_scalar_prefetch=0,
            grid=grid,
            in_specs=[pl.BlockSpec((n, tk), lambda k: (0, k)),
                      pl.BlockSpec((tk, hid), lambda k: (k, 0)),
                      pl.BlockSpec((n, t), lambda k: (0, 0)),
                      pl.BlockSpec((t, hid), lambda k: (0, 0)),
                      pl.BlockSpec((1, hid), lambda k: (0, 0)),
                      pl.BlockSpec((1, hid), lambda k: (0, 0)),
                      pl.BlockSpec((1, 1), lambda k: (0, 0))],
            out_specs=pl.BlockSpec((n, 1), lambda k: (0, 0)),
            scratch_shapes=[pltpu.VMEM((n, hid), jnp.float32)]),
        compiler_params=pltpu.CompilerParams(
            dimension_semantics=("arbitrary",),
            vmem_limit_bytes=_VMEM_LIMIT),
    )(feat, params["wd1_feat"], tag.astype(jnp.bfloat16), params["wd1_tag"],
      params["bd1"], params["wd2_row"], params["bd2"])


def discriminator_forward(params, image, tag):
    """image: (N, H, W, 3) f32, tag: (N, tag_dim) f32 -> (N, 1) f32 in (0, 1)."""
    n = image.shape[0]
    # torch: image.transpose(1, 3) -> (N, C, W, H).  NHWC equivalent: (N, W, H, C).
    x = jnp.transpose(image, (0, 2, 1, 3)).astype(jnp.bfloat16)
    x = _conv_bn_relu(x, params["w1"], params["g1"], params["b1"])
    x = _conv_bn_relu(x, params["w2"], params["g2"], params["b2"])
    x = _conv_bn_relu(x, params["w3"], params["g3"], params["b3"])
    x = _conv_bn_relu(x, params["w4"], params["g4"], params["b4"])
    # NHWC flatten; wd1_feat rows were permuted at init to match torch's
    # channel-major conv4.view(batch, -1) ordering -> no runtime transpose.
    feat = x.reshape(n, -1)
    return _dense_head(feat, tag, params)


# ---------------------------------------------------------------------------
# Deterministic parameter init (mirrors weights_init: conv ~ N(0, .02),
# BN gamma ~ N(1, .02) / beta = 0, Linear w ~ N(0, .02) / bias = 0).
# Weights are stored matmul-ready (bf16, reshaped/permuted) so the per-call
# XLA glue is just the im2col expansions.
# TODO(synk): BatchNorm running_mean/running_var buffers are not tracked
# (forward here reproduces training-mode batch statistics only).
# ---------------------------------------------------------------------------
def init_params(key, tag_dim):
    ks = jax.random.split(key, 10)
    conv_shapes = [(4, 4, 3, 32), (4, 4, 32, 64), (4, 4, 64, 128), (4, 4, 128, 128)]
    params = {}
    for i, shp in enumerate(conv_shapes, start=1):
        cout = shp[-1]
        w_hwio = 0.02 * jax.random.normal(ks[i - 1], shp, jnp.float32)
        params[f"w{i}"] = w_hwio.reshape(-1, cout).astype(jnp.bfloat16)   # (k*k*Cin, Cout)
        params[f"g{i}"] = (1.0 + 0.02 * jax.random.normal(ks[3 + i], (1, cout), jnp.float32))
        params[f"b{i}"] = jnp.zeros((1, cout), jnp.float32)

    feat_dim = 128 * 4 * 4
    wd1 = 0.02 * jax.random.normal(ks[8], (feat_dim + tag_dim, 512), jnp.float32)
    # One-time row permutation: torch flattens conv4 channel-major (c, h, w);
    # our conv output flattens NHWC (h, w, c).  Reordering wd1's feature rows
    # here removes the runtime NHWC->NCHW transpose before the dense head.
    hh = jnp.arange(4).reshape(4, 1, 1)
    ww = jnp.arange(4).reshape(1, 4, 1)
    cc = jnp.arange(128).reshape(1, 1, 128)
    perm = (cc * 16 + hh * 4 + ww).reshape(-1)
    params["wd1_feat"] = wd1[:feat_dim][perm].astype(jnp.bfloat16)   # (2048, 512)
    params["wd1_tag"] = wd1[feat_dim:].astype(jnp.bfloat16)          # (tag_dim, 512)
    params["bd1"] = jnp.zeros((1, 512), jnp.float32)

    wd2 = 0.02 * jax.random.normal(ks[9], (512, 1), jnp.float32)
    params["wd2_row"] = wd2.T                                        # (1, 512) VPU row
    params["bd2"] = jnp.zeros((1, 1), jnp.float32)
    return params


if __name__ == "__main__":
    key = jax.random.PRNGKey(0)
    k_img, k_tag, k_par = jax.random.split(key, 3)

    batch, tag_dim = 2, 16
    # Spatial must be 64x64: four stride-2 convs -> 4x4 to match Linear(128*4*4+tag_dim).
    image = jax.random.normal(k_img, (batch, 64, 64, 3), jnp.float32)
    tag = jax.random.normal(k_tag, (batch, tag_dim), jnp.float32)
    params = init_params(k_par, tag_dim)

    fwd = jax.jit(discriminator_forward)
    out = fwd(params, image, tag)
    out = jax.block_until_ready(out)

    assert out.shape == (batch, 1)
    assert bool(jnp.all(jnp.isfinite(out)))
    assert bool(jnp.all((out > 0.0) & (out < 1.0)))
    print("KERNEL_OK")
</pallas_src>

<mosaic_0001>
module attributes {stable_mosaic.version = 11 : i64} {
  func.func @conv_bn_relu_kernel(%arg0: memref<2048x48xbf16, #tpu.memory_space<vmem>>, %arg1: memref<48x32xbf16, #tpu.memory_space<vmem>>, %arg2: memref<1x32xf32, #tpu.memory_space<vmem>>, %arg3: memref<1x32xf32, #tpu.memory_space<vmem>>, %arg4: memref<2048x32xbf16, #tpu.memory_space<vmem>>) attributes {dimension_semantics = [], scalar_prefetch = 0 : i64, scratch_operands = 0 : i64, tpu.core_type = #tpu.core_type<tc>} {
    %c0 = arith.constant 0 : index
    %c0_0 = arith.constant 0 : index
    %0 = vector.load %arg0[%c0, %c0_0] : memref<2048x48xbf16, #tpu.memory_space<vmem>>, vector<2048x48xbf16>
    %c0_1 = arith.constant 0 : index
    %c0_2 = arith.constant 0 : index
    %1 = vector.load %arg1[%c0_1, %c0_2] : memref<48x32xbf16, #tpu.memory_space<vmem>>, vector<48x32xbf16>
    %cst = arith.constant dense<0.000000e+00> : vector<2048x32xf32>
    %2 = tpu.matmul %0, %1, %cst {dimension_numbers = #tpu.dot_dimension_numbers<[1], [0], [0], [1], [0, 0, 1, 1], [], []>} : vector<2048x48xbf16>, vector<48x32xbf16>, vector<2048x32xf32> -> vector<2048x32xf32>
    %cst_3 = arith.constant dense<0.000000e+00> : vector<32xf32>
    %3 = vector.multi_reduction <add>, %2, %cst_3 [0] : vector<2048x32xf32> to vector<32xf32>
    %4 = vector.shape_cast %3 : vector<32xf32> to vector<1x32xf32>
    %cst_4 = arith.constant 4.8828125E-4 : f32
    %5 = vector.broadcast %cst_4 : f32 to vector<1x32xf32>
    %6 = arith.mulf %4, %5 : vector<1x32xf32>
    %7 = arith.mulf %2, %2 : vector<2048x32xf32>
    %cst_5 = arith.constant dense<0.000000e+00> : vector<32xf32>
    %8 = vector.multi_reduction <add>, %7, %cst_5 [0] : vector<2048x32xf32> to vector<32xf32>
    %9 = vector.shape_cast %8 : vector<32xf32> to vector<1x32xf32>
    %cst_6 = arith.constant 4.8828125E-4 : f32
    %10 = vector.broadcast %cst_6 : f32 to vector<1x32xf32>
    %11 = arith.mulf %9, %10 : vector<1x32xf32>
    %12 = arith.mulf %6, %6 : vector<1x32xf32>
    %13 = arith.subf %11, %12 : vector<1x32xf32>
    %cst_7 = arith.constant 0.000000e+00 : f32
    %14 = vector.broadcast %cst_7 : f32 to vector<1x32xf32>
    %15 = arith.maximumf %13, %14 : vector<1x32xf32>
    %c0_8 = arith.constant 0 : index
    %c0_9 = arith.constant 0 : index
    %16 = vector.load %arg2[%c0_8, %c0_9] : memref<1x32xf32, #tpu.memory_space<vmem>>, vector<1x32xf32>
    %cst_10 = arith.constant 9.99999974E-6 : f32
    %17 = vector.broadcast %cst_10 : f32 to vector<1x32xf32>
    %18 = arith.addf %15, %17 : vector<1x32xf32>
    %19 = math.rsqrt %18 : vector<1x32xf32>
    %20 = arith.mulf %16, %19 : vector<1x32xf32>
    %c0_11 = arith.constant 0 : index
    %c0_12 = arith.constant 0 : index
    %21 = vector.load %arg3[%c0_11, %c0_12] : memref<1x32xf32, #tpu.memory_space<vmem>>, vector<1x32xf32>
    %22 = arith.mulf %6, %20 : vector<1x32xf32>
    %23 = arith.subf %21, %22 : vector<1x32xf32>
    %24 = vector.broadcast %20 : vector<1x32xf32> to vector<2048x32xf32>
    %25 = arith.mulf %2, %24 : vector<2048x32xf32>
    %26 = vector.broadcast %23 : vector<1x32xf32> to vector<2048x32xf32>
    %27 = arith.addf %25, %26 : vector<2048x32xf32>
    %cst_13 = arith.constant 0.000000e+00 : f32
    %28 = vector.broadcast %cst_13 : f32 to vector<2048x32xf32>
    %29 = arith.maximumf %27, %28 : vector<2048x32xf32>
    %30 = arith.truncf %29 : vector<2048x32xf32> to vector<2048x32xbf16>
    %c0_14 = arith.constant 0 : index
    %c0_15 = arith.constant 0 : index
    %31 = vector.load %arg4[%c0_14, %c0_15] : memref<2048x32xbf16, #tpu.memory_space<vmem>>, vector<2048x32xbf16>
    tpu.vector_store %arg4[%c0_14, %c0_15], %30 {strides = array<i32>} : memref<2048x32xbf16, #tpu.memory_space<vmem>>, vector<2048x32xbf16>,
    return
  }
}

module attributes {stable_mosaic.version = 11 : i64} {
  func.func @conv_bn_relu_kernel(%arg0: memref<512x512xbf16, #tpu.memory_space<vmem>>, %arg1: memref<512x64xbf16, #tpu.memory_space<vmem>>, %arg2: memref<1x64xf32, #tpu.memory_space<vmem>>, %arg3: memref<1x64xf32, #tpu.memory_space<vmem>>, %arg4: memref<512x64xbf16, #tpu.memory_space<vmem>>) attributes {dimension_semantics = [], scalar_prefetch = 0 : i64, scratch_operands = 0 : i64, tpu.core_type = #tpu.core_type<tc>} {
    %c0 = arith.constant 0 : index
    %c0_0 = arith.constant 0 : index
    %0 = vector.load %arg0[%c0, %c0_0] : memref<512x512xbf16, #tpu.memory_space<vmem>>, vector<512x512xbf16>
    %c0_1 = arith.constant 0 : index
    %c0_2 = arith.constant 0 : index
    %1 = vector.load %arg1[%c0_1, %c0_2] : memref<512x64xbf16, #tpu.memory_space<vmem>>, vector<512x64xbf16>
    %cst = arith.constant dense<0.000000e+00> : vector<512x64xf32>
    %2 = tpu.matmul %0, %1, %cst {dimension_numbers = #tpu.dot_dimension_numbers<[1], [0], [0], [1], [0, 0, 1, 1], [], []>} : vector<512x512xbf16>, vector<512x64xbf16>, vector<512x64xf32> -> vector<512x64xf32>
    %cst_3 = arith.constant dense<0.000000e+00> : vector<64xf32>
    %3 = vector.multi_reduction <add>, %2, %cst_3 [0] : vector<512x64xf32> to vector<64xf32>
    %4 = vector.shape_cast %3 : vector<64xf32> to vector<1x64xf32>
    %cst_4 = arith.constant 0.001953125 : f32
    %5 = vector.broadcast %cst_4 : f32 to vector<1x64xf32>
    %6 = arith.mulf %4, %5 : vector<1x64xf32>
    %7 = arith.mulf %2, %2 : vector<512x64xf32>
    %cst_5 = arith.constant dense<0.000000e+00> : vector<64xf32>
    %8 = vector.multi_reduction <add>, %7, %cst_5 [0] : vector<512x64xf32> to vector<64xf32>
    %9 = vector.shape_cast %8 : vector<64xf32> to vector<1x64xf32>
    %cst_6 = arith.constant 0.001953125 : f32
    %10 = vector.broadcast %cst_6 : f32 to vector<1x64xf32>
    %11 = arith.mulf %9, %10 : vector<1x64xf32>
    %12 = arith.mulf %6, %6 : vector<1x64xf32>
    %13 = arith.subf %11, %12 : vector<1x64xf32>
    %cst_7 = arith.constant 0.000000e+00 : f32
    %14 = vector.broadcast %cst_7 : f32 to vector<1x64xf32>
    %15 = arith.maximumf %13, %14 : vector<1x64xf32>
    %c0_8 = arith.constant 0 : index
    %c0_9 = arith.constant 0 : index
    %16 = vector.load %arg2[%c0_8, %c0_9] : memref<1x64xf32, #tpu.memory_space<vmem>>, vector<1x64xf32>
    %cst_10 = arith.constant 9.99999974E-6 : f32
    %17 = vector.broadcast %cst_10 : f32 to vector<1x64xf32>
    %18 = arith.addf %15, %17 : vector<1x64xf32>
    %19 = math.rsqrt %18 : vector<1x64xf32>
    %20 = arith.mulf %16, %19 : vector<1x64xf32>
    %c0_11 = arith.constant 0 : index
    %c0_12 = arith.constant 0 : index
    %21 = vector.load %arg3[%c0_11, %c0_12] : memref<1x64xf32, #tpu.memory_space<vmem>>, vector<1x64xf32>
    %22 = arith.mulf %6, %20 : vector<1x64xf32>
    %23 = arith.subf %21, %22 : vector<1x64xf32>
    %24 = vector.broadcast %20 : vector<1x64xf32> to vector<512x64xf32>
    %25 = arith.mulf %2, %24 : vector<512x64xf32>
    %26 = vector.broadcast %23 : vector<1x64xf32> to vector<512x64xf32>
    %27 = arith.addf %25, %26 : vector<512x64xf32>
    %cst_13 = arith.constant 0.000000e+00 : f32
    %28 = vector.broadcast %cst_13 : f32 to vector<512x64xf32>
    %29 = arith.maximumf %27, %28 : vector<512x64xf32>
    %30 = arith.truncf %29 : vector<512x64xf32> to vector<512x64xbf16>
    %c0_14 = arith.constant 0 : index
    %c0_15 = arith.constant 0 : index
    %31 = vector.load %arg4[%c0_14, %c0_15] : memref<512x64xbf16, #tpu.memory_space<vmem>>, vector<512x64xbf16>
    tpu.vector_store %arg4[%c0_14, %c0_15], %30 {strides = array<i32>} : memref<512x64xbf16, #tpu.memory_space<vmem>>, vector<512x64xbf16>,
    return
  }
}

module attributes {stable_mosaic.version = 11 : i64} {
  func.func @conv_bn_relu_kernel(%arg0: memref<128x1024xbf16, #tpu.memory_space<vmem>>, %arg1: memref<1024x128xbf16, #tpu.memory_space<vmem>>, %arg2: memref<1x128xf32, #tpu.memory_space<vmem>>, %arg3: memref<1x128xf32, #tpu.memory_space<vmem>>, %arg4: memref<128x128xbf16, #tpu.memory_space<vmem>>) attributes {dimension_semantics = [], scalar_prefetch = 0 : i64, scratch_operands = 0 : i64, tpu.core_type = #tpu.core_type<tc>} {
    %c0 = arith.constant 0 : index
    %c0_0 = arith.constant 0 : index
    %0 = vector.load %arg0[%c0, %c0_0] : memref<128x1024xbf16, #tpu.memory_space<vmem>>, vector<128x1024xbf16>
    %c0_1 = arith.constant 0 : index
    %c0_2 = arith.constant 0 : index
    %1 = vector.load %arg1[%c0_1, %c0_2] : memref<1024x128xbf16, #tpu.memory_space<vmem>>, vector<1024x128xbf16>
    %cst = arith.constant dense<0.000000e+00> : vector<128x128xf32>
    %2 = tpu.matmul %0, %1, %cst {dimension_numbers = #tpu.dot_dimension_numbers<[1], [0], [0], [1], [0, 0, 1, 1], [], []>} : vector<128x1024xbf16>, vector<1024x128xbf16>, vector<128x128xf32> -> vector<128x128xf32>
    %cst_3 = arith.constant dense<0.000000e+00> : vector<128xf32>
    %3 = vector.multi_reduction <add>, %2, %cst_3 [0] : vector<128x128xf32> to vector<128xf32>
    %4 = vector.shape_cast %3 : vector<128xf32> to vector<1x128xf32>
    %cst_4 = arith.constant 7.812500e-03 : f32
    %5 = vector.broadcast %cst_4 : f32 to vector<1x128xf32>
    %6 = arith.mulf %4, %5 : vector<1x128xf32>
    %7 = arith.mulf %2, %2 : vector<128x128xf32>
    %cst_5 = arith.constant dense<0.000000e+00> : vector<128xf32>
    %8 = vector.multi_reduction <add>, %7, %cst_5 [0] : vector<128x128xf32> to vector<128xf32>
    %9 = vector.shape_cast %8 : vector<128xf32> to vector<1x128xf32>
    %cst_6 = arith.constant 7.812500e-03 : f32
    %10 = vector.broadcast %cst_6 : f32 to vector<1x128xf32>
    %11 = arith.mulf %9, %10 : vector<1x128xf32>
    %12 = arith.mulf %6, %6 : vector<1x128xf32>
    %13 = arith.subf %11, %12 : vector<1x128xf32>
    %cst_7 = arith.constant 0.000000e+00 : f32
    %14 = vector.broadcast %cst_7 : f32 to vector<1x128xf32>
    %15 = arith.maximumf %13, %14 : vector<1x128xf32>
    %c0_8 = arith.constant 0 : index
    %c0_9 = arith.constant 0 : index
    %16 = vector.load %arg2[%c0_8, %c0_9] : memref<1x128xf32, #tpu.memory_space<vmem>>, vector<1x128xf32>
    %cst_10 = arith.constant 9.99999974E-6 : f32
    %17 = vector.broadcast %cst_10 : f32 to vector<1x128xf32>
    %18 = arith.addf %15, %17 : vector<1x128xf32>
    %19 = math.rsqrt %18 : vector<1x128xf32>
    %20 = arith.mulf %16, %19 : vector<1x128xf32>
    %c0_11 = arith.constant 0 : index
    %c0_12 = arith.constant 0 : index
    %21 = vector.load %arg3[%c0_11, %c0_12] : memref<1x128xf32, #tpu.memory_space<vmem>>, vector<1x128xf32>
    %22 = arith.mulf %6, %20 : vector<1x128xf32>
    %23 = arith.subf %21, %22 : vector<1x128xf32>
    %24 = vector.broadcast %20 : vector<1x128xf32> to vector<128x128xf32>
    %25 = arith.mulf %2, %24 : vector<128x128xf32>
    %26 = vector.broadcast %23 : vector<1x128xf32> to vector<128x128xf32>
    %27 = arith.addf %25, %26 : vector<128x128xf32>
    %cst_13 = arith.constant 0.000000e+00 : f32
    %28 = vector.broadcast %cst_13 : f32 to vector<128x128xf32>
    %29 = arith.maximumf %27, %28 : vector<128x128xf32>
    %30 = arith.truncf %29 : vector<128x128xf32> to vector<128x128xbf16>
    %c0_14 = arith.constant 0 : index
    %c0_15 = arith.constant 0 : index
    %31 = vector.load %arg4[%c0_14, %c0_15] : memref<128x128xbf16, #tpu.memory_space<vmem>>, vector<128x128xbf16>
    tpu.vector_store %arg4[%c0_14, %c0_15], %30 {strides = array<i32>} : memref<128x128xbf16, #tpu.memory_space<vmem>>, vector<128x128xbf16>,
    return
  }
}

module attributes {stable_mosaic.version = 11 : i64} {
  func.func @conv_bn_relu_kernel(%arg0: memref<32x2048xbf16, #tpu.memory_space<vmem>>, %arg1: memref<2048x128xbf16, #tpu.memory_space<vmem>>, %arg2: memref<1x128xf32, #tpu.memory_space<vmem>>, %arg3: memref<1x128xf32, #tpu.memory_space<vmem>>, %arg4: memref<32x128xbf16, #tpu.memory_space<vmem>>) attributes {dimension_semantics = [], scalar_prefetch = 0 : i64, scratch_operands = 0 : i64, tpu.core_type = #tpu.core_type<tc>} {
    %c0 = arith.constant 0 : index
    %c0_0 = arith.constant 0 : index
    %0 = vector.load %arg0[%c0, %c0_0] : memref<32x2048xbf16, #tpu.memory_space<vmem>>, vector<32x2048xbf16>
    %c0_1 = arith.constant 0 : index
    %c0_2 = arith.constant 0 : index
    %1 = vector.load %arg1[%c0_1, %c0_2] : memref<2048x128xbf16, #tpu.memory_space<vmem>>, vector<2048x128xbf16>
    %cst = arith.constant dense<0.000000e+00> : vector<32x128xf32>
    %2 = tpu.matmul %0, %1, %cst {dimension_numbers = #tpu.dot_dimension_numbers<[1], [0], [0], [1], [0, 0, 1, 1], [], []>} : vector<32x2048xbf16>, vector<2048x128xbf16>, vector<32x128xf32> -> vector<32x128xf32>
    %cst_3 = arith.constant dense<0.000000e+00> : vector<128xf32>
    %3 = vector.multi_reduction <add>, %2, %cst_3 [0] : vector<32x128xf32> to vector<128xf32>
    %4 = vector.shape_cast %3 : vector<128xf32> to vector<1x128xf32>
    %cst_4 = arith.constant 3.125000e-02 : f32
    %5 = vector.broadcast %cst_4 : f32 to vector<1x128xf32>
    %6 = arith.mulf %4, %5 : vector<1x128xf32>
    %7 = arith.mulf %2, %2 : vector<32x128xf32>
    %cst_5 = arith.constant dense<0.000000e+00> : vector<128xf32>
    %8 = vector.multi_reduction <add>, %7, %cst_5 [0] : vector<32x128xf32> to vector<128xf32>
    %9 = vector.shape_cast %8 : vector<128xf32> to vector<1x128xf32>
    %cst_6 = arith.constant 3.125000e-02 : f32
    %10 = vector.broadcast %cst_6 : f32 to vector<1x128xf32>
    %11 = arith.mulf %9, %10 : vector<1x128xf32>
    %12 = arith.mulf %6, %6 : vector<1x128xf32>
    %13 = arith.subf %11, %12 : vector<1x128xf32>
    %cst_7 = arith.constant 0.000000e+00 : f32
    %14 = vector.broadcast %cst_7 : f32 to vector<1x128xf32>
    %15 = arith.maximumf %13, %14 : vector<1x128xf32>
    %c0_8 = arith.constant 0 : index
    %c0_9 = arith.constant 0 : index
    %16 = vector.load %arg2[%c0_8, %c0_9] : memref<1x128xf32, #tpu.memory_space<vmem>>, vector<1x128xf32>
    %cst_10 = arith.constant 9.99999974E-6 : f32
    %17 = vector.broadcast %cst_10 : f32 to vector<1x128xf32>
    %18 = arith.addf %15, %17 : vector<1x128xf32>
    %19 = math.rsqrt %18 : vector<1x128xf32>
    %20 = arith.mulf %16, %19 : vector<1x128xf32>
    %c0_11 = arith.constant 0 : index
    %c0_12 = arith.constant 0 : index
    %21 = vector.load %arg3[%c0_11, %c0_12] : memref<1x128xf32, #tpu.memory_space<vmem>>, vector<1x128xf32>
    %22 = arith.mulf %6, %20 : vector<1x128xf32>
    %23 = arith.subf %21, %22 : vector<1x128xf32>
    %24 = vector.broadcast %20 : vector<1x128xf32> to vector<32x128xf32>
    %25 = arith.mulf %2, %24 : vector<32x128xf32>
    %26 = vector.broadcast %23 : vector<1x128xf32> to vector<32x128xf32>
    %27 = arith.addf %25, %26 : vector<32x128xf32>
    %cst_13 = arith.constant 0.000000e+00 : f32
    %28 = vector.broadcast %cst_13 : f32 to vector<32x128xf32>
    %29 = arith.maximumf %27, %28 : vector<32x128xf32>
    %30 = arith.truncf %29 : vector<32x128xf32> to vector<32x128xbf16>
    %c0_14 = arith.constant 0 : index
    %c0_15 = arith.constant 0 : index
    %31 = vector.load %arg4[%c0_14, %c0_15] : memref<32x128xbf16, #tpu.memory_space<vmem>>, vector<32x128xbf16>
    tpu.vector_store %arg4[%c0_14, %c0_15], %30 {strides = array<i32>} : memref<32x128xbf16, #tpu.memory_space<vmem>>, vector<32x128xbf16>,
    return
  }
}

module attributes {stable_mosaic.version = 11 : i64} {
  func.func @mlp_head_kernel(%arg0: i32, %arg1: memref<2x512xbf16, #tpu.memory_space<vmem>>, %arg2: memref<512x512xbf16, #tpu.memory_space<vmem>>, %arg3: memref<2x16xbf16, #tpu.memory_space<vmem>>, %arg4: memref<16x512xbf16, #tpu.memory_space<vmem>>, %arg5: memref<1x512xf32, #tpu.memory_space<vmem>>, %arg6: memref<1x512xf32, #tpu.memory_space<vmem>>, %arg7: memref<1x1xf32, #tpu.memory_space<vmem>>, %arg8: memref<2x1xf32, #tpu.memory_space<vmem>>, %arg9: memref<2x512xf32, #tpu.memory_space<vmem>>) attributes {dimension_semantics = [#tpu.dimension_semantics<arbitrary>], iteration_bounds = array<i64: 4>, scalar_prefetch = 0 : i64, scratch_operands = 1 : i64, tpu.core_type = #tpu.core_type<tc>, window_params = [{transform_indices = @transform_0, window_bounds = array<i64: 2, 512>}, {transform_indices = @transform_1, window_bounds = array<i64: 512, 512>}, {pipeline_mode = #tpu.pipeline_mode<synchronous>, transform_indices = @transform_2, window_bounds = array<i64: 2, 16>}, {pipeline_mode = #tpu.pipeline_mode<synchronous>, transform_indices = @transform_3, window_bounds = array<i64: 16, 512>}, {pipeline_mode = #tpu.pipeline_mode<synchronous>, transform_indices = @transform_4, window_bounds = array<i64: 1, 512>}, {pipeline_mode = #tpu.pipeline_mode<synchronous>, transform_indices = @transform_5, window_bounds = array<i64: 1, 512>}, {pipeline_mode = #tpu.pipeline_mode<synchronous>, transform_indices = @transform_6, window_bounds = array<i64: 1, 1>}, {pipeline_mode = #tpu.pipeline_mode<synchronous>, transform_indices = @transform_7, window_bounds = array<i64: 2, 1>}]} {
    %c0_i32 = arith.constant 0 : i32
    %0 = arith.cmpi eq, %arg0, %c0_i32 : i32
    %1 = arith.extui %0 : i1 to i32
    %c0_i32_0 = arith.constant 0 : i32
    %2 = arith.cmpi ne, %1, %c0_i32_0 : i32
    scf.if %2 {
      %c0_9 = arith.constant 0 : index
      %c0_10 = arith.constant 0 : index
      %12 = vector.load %arg3[%c0_9, %c0_10] : memref<2x16xbf16, #tpu.memory_space<vmem>>, vector<2x16xbf16>
      %c0_11 = arith.constant 0 : index
      %c0_12 = arith.constant 0 : index
      %13 = vector.load %arg4[%c0_11, %c0_12] : memref<16x512xbf16, #tpu.memory_space<vmem>>, vector<16x512xbf16>
      %cst_13 = arith.constant dense<0.000000e+00> : vector<2x512xf32>
      %14 = tpu.matmul %12, %13, %cst_13 {dimension_numbers = #tpu.dot_dimension_numbers<[1], [0], [0], [1], [0, 0, 1, 1], [], []>} : vector<2x16xbf16>, vector<16x512xbf16>, vector<2x512xf32> -> vector<2x512xf32>
      %c0_14 = arith.constant 0 : index
      %c0_15 = arith.constant 0 : index
      %15 = vector.load %arg5[%c0_14, %c0_15] : memref<1x512xf32, #tpu.memory_space<vmem>>, vector<1x512xf32>
      %16 = vector.broadcast %15 : vector<1x512xf32> to vector<2x512xf32>
      %17 = arith.addf %14, %16 : vector<2x512xf32>
      %c0_16 = arith.constant 0 : index
      %c0_17 = arith.constant 0 : index
      %18 = vector.load %arg9[%c0_16, %c0_17] : memref<2x512xf32, #tpu.memory_space<vmem>>, vector<2x512xf32>
      tpu.vector_store %arg9[%c0_16, %c0_17], %17 {strides = array<i32>} : memref<2x512xf32, #tpu.memory_space<vmem>>, vector<2x512xf32>,
    } else {
    }
    %c0 = arith.constant 0 : index
    %c0_1 = arith.constant 0 : index
    %3 = vector.load %arg9[%c0, %c0_1] : memref<2x512xf32, #tpu.memory_space<vmem>>, vector<2x512xf32>
    %c0_2 = arith.constant 0 : index
    %c0_3 = arith.constant 0 : index
    %4 = vector.load %arg1[%c0_2, %c0_3] : memref<2x512xbf16, #tpu.memory_space<vmem>>, vector<2x512xbf16>
    %c0_4 = arith.constant 0 : index
    %c0_5 = arith.constant 0 : index
    %5 = vector.load %arg2[%c0_4, %c0_5] : memref<512x512xbf16, #tpu.memory_space<vmem>>, vector<512x512xbf16>
    %cst = arith.constant dense<0.000000e+00> : vector<2x512xf32>
    %6 = tpu.matmul %4, %5, %cst {dimension_numbers = #tpu.dot_dimension_numbers<[1], [0], [0], [1], [0, 0, 1, 1], [], []>} : vector<2x512xbf16>, vector<512x512xbf16>, vector<2x512xf32> -> vector<2x512xf32>
    %7 = arith.addf %3, %6 : vector<2x512xf32>
    %c0_6 = arith.constant 0 : index
    %c0_7 = arith.constant 0 : index
    %8 = vector.load %arg9[%c0_6, %c0_7] : memref<2x512xf32, #tpu.memory_space<vmem>>, vector<2x512xf32>
    tpu.vector_store %arg9[%c0_6, %c0_7], %7 {strides = array<i32>} : memref<2x512xf32, #tpu.memory_space<vmem>>, vector<2x512xf32>,
    %c3_i32 = arith.constant 3 : i32
    %9 = arith.cmpi eq, %arg0, %c3_i32 : i32
    %10 = arith.extui %9 : i1 to i32
    %c0_i32_8 = arith.constant 0 : i32
    %11 = arith.cmpi ne, %10, %c0_i32_8 : i32
    scf.if %11 {
      %c0_9 = arith.constant 0 : index
      %c0_10 = arith.constant 0 : index
      %12 = vector.load %arg9[%c0_9, %c0_10] : memref<2x512xf32, #tpu.memory_space<vmem>>, vector<2x512xf32>
      %cst_11 = arith.constant 0.000000e+00 : f32
      %13 = vector.broadcast %cst_11 : f32 to vector<2x512xf32>
      %14 = arith.maximumf %12, %13 : vector<2x512xf32>
      %c0_12 = arith.constant 0 : index
      %c0_13 = arith.constant 0 : index
      %15 = vector.load %arg6[%c0_12, %c0_13] : memref<1x512xf32, #tpu.memory_space<vmem>>, vector<1x512xf32>
      %16 = vector.broadcast %15 : vector<1x512xf32> to vector<2x512xf32>
      %17 = arith.mulf %14, %16 : vector<2x512xf32>
      %cst_14 = arith.constant dense<0.000000e+00> : vector<2xf32>
      %18 = vector.multi_reduction <add>, %17, %cst_14 [1] : vector<2x512xf32> to vector<2xf32>
      %19 = vector.shape_cast %18 : vector<2xf32> to vector<2x1xf32>
      %c0_15 = arith.constant 0 : index
      %c0_16 = arith.constant 0 : index
      %20 = vector.load %arg7[%c0_15, %c0_16] : memref<1x1xf32, #tpu.memory_space<vmem>>, vector<1x1xf32>
      %21 = vector.broadcast %20 : vector<1x1xf32> to vector<2x1xf32>
      %22 = arith.addf %19, %21 : vector<2x1xf32>
      %23 = arith.negf %22 : vector<2x1xf32>
      %24 = math.exp %23 : vector<2x1xf32>
      %cst_17 = arith.constant 1.000000e+00 : f32
      %25 = vector.broadcast %cst_17 : f32 to vector<2x1xf32>
      %26 = arith.addf %25, %24 : vector<2x1xf32>
      %27 = arith.divf %25, %26 : vector<2x1xf32>
      %c0_18 = arith.constant 0 : index
      %c0_19 = arith.constant 0 : index
      %28 = vector.load %arg8[%c0_18, %c0_19] : memref<2x1xf32, #tpu.memory_space<vmem>>, vector<2x1xf32>
      tpu.vector_store %arg8[%c0_18, %c0_19], %27 {strides = array<i32>} : memref<2x1xf32, #tpu.memory_space<vmem>>, vector<2x1xf32>,
    } else {
    }
    return
  }
  func.func @transform_0(%arg0: i32) -> (i32, i32) {
    %c0_i32 = arith.constant 0 : i32
    %c0_i32_0 = arith.constant 0 : i32
    return %c0_i32, %arg0 : i32, i32
  }
  func.func @transform_1(%arg0: i32) -> (i32, i32) {
    %c0_i32 = arith.constant 0 : i32
    %c0_i32_0 = arith.constant 0 : i32
    return %arg0, %c0_i32 : i32, i32
  }
  func.func @transform_2(%arg0: i32) -> (i32, i32) {
    %c0_i32 = arith.constant 0 : i32
    %c0_i32_0 = arith.constant 0 : i32
    %c0_i32_1 = arith.constant 0 : i32
    return %c0_i32, %c0_i32_0 : i32, i32
  }
  func.func @transform_3(%arg0: i32) -> (i32, i32) {
    %c0_i32 = arith.constant 0 : i32
    %c0_i32_0 = arith.constant 0 : i32
    %c0_i32_1 = arith.constant 0 : i32
    return %c0_i32, %c0_i32_0 : i32, i32
  }
  func.func @transform_4(%arg0: i32) -> (i32, i32) {
    %c0_i32 = arith.constant 0 : i32
    %c0_i32_0 = arith.constant 0 : i32
    %c0_i32_1 = arith.constant 0 : i32
    return %c0_i32, %c0_i32_0 : i32, i32
  }
  func.func @transform_5(%arg0: i32) -> (i32, i32) {
    %c0_i32 = arith.constant 0 : i32
    %c0_i32_0 = arith.constant 0 : i32
    %c0_i32_1 = arith.constant 0 : i32
    return %c0_i32, %c0_i32_0 : i32, i32
  }
  func.func @transform_6(%arg0: i32) -> (i32, i32) {
    %c0_i32 = arith.constant 0 : i32
    %c0_i32_0 = arith.constant 0 : i32
    %c0_i32_1 = arith.constant 0 : i32
    return %c0_i32, %c0_i32_0 : i32, i32
  }
  func.func @transform_7(%arg0: i32) -> (i32, i32) {
    %c0_i32 = arith.constant 0 : i32
    %c0_i32_0 = arith.constant 0 : i32
    %c0_i32_1 = arith.constant 0 : i32
    return %c0_i32, %c0_i32_0 : i32, i32
  }
}

</mosaic_0001>

<llo_original>
// kernel: discriminator_forward.5
$region0: #{discriminator_forward.5}
  #allocation0 [shape = 'u32[]', space=smem, size = 0x4, offset = 0x4, fixed_abs, tag = 'smem constant byte address 0x4 - core index']
  #allocation1 [shape = 'u32[144,128]{1,0:T(1,128)}', space=vmem, size = 0x12000, scoped, tag = 'internal scratch']
  %s0 = inlined_call_operand.vmem [shape: bf16[2048,48], index: 0, kind: input, shape index: {}]
  %s1 = inlined_call_operand.vmem [shape: bf16[48,32], index: 1, kind: input, shape index: {}]
  %s2 = inlined_call_operand.vmem [shape: f32[1,32], index: 2, kind: input, shape index: {}]
  %s3 = inlined_call_operand.vmem [shape: f32[1,32], index: 3, kind: input, shape index: {}]
  %s4 = inlined_call_operand.vmem [shape: bf16[2048,32], index: 4, kind: output, shape index: {}]
  %s5 = sld [smem:[#allocation0]]
  $region26: #{discriminator_forward.5} parent=0
    _
  %s7 = ssub.s32 1, %s5
  %s8 = scalar_select 0, %s7, %s5
  // Predicated region
  $region2: #{discriminator_forward.5} parent=0 // pred_check
    _
  $region3: #{discriminator_forward.5} parent=0 // pred_check_branch
    %10 = sbr.rel (0) target = $region5
  $region4: #{discriminator_forward.5} parent=0 // pred_region
    _
  $region5: #{discriminator_forward.5} parent=0 // pred_fallthru
    _
  // Predicated region
  $region6: #{discriminator_forward.5} parent=0 // pred_check
    _
  $region7: #{discriminator_forward.5} parent=0 // pred_check_branch
    %12 = sbr.rel (0) target = $region9
  $region8: #{discriminator_forward.5} parent=0 // pred_region
    _
  $region9: #{discriminator_forward.5} parent=0 // pred_fallthru
    _
  // Predicated region
  $region10: #{discriminator_forward.5} parent=0 // pred_check
    _
  $region11: #{discriminator_forward.5} parent=0 // pred_check_branch
    %14 = sbr.rel (0) target = $region13
  $region12: #{discriminator_forward.5} parent=0 // pred_region
    _
  $region13: #{discriminator_forward.5} parent=0 // pred_fallthru
    _
  // Predicated region
  $region14: #{discriminator_forward.5} parent=0 // pred_check
    _
  $region15: #{discriminator_forward.5} parent=0 // pred_check_branch
    %16 = sbr.rel (0) target = $region17
  $region16: #{discriminator_forward.5} parent=0 // pred_region
    _
  $region17: #{discriminator_forward.5} parent=0 // pred_fallthru
    _
  %v18 = vld [vmem:[%s0] sm:$0xf]
  %v19 = vld [vmem:[%s0 + $0x4] sm:$0xf]
  %v20 = vld [vmem:[%s0 + $0x8] sm:$0xf]
  %v21 = vld [vmem:[%s0 + $0xc] sm:$0xf]
  %v22 = vld [vmem:[%s0 + $0x10] sm:$0xf]
  %v23 = vld [vmem:[%s0 + $0x14] sm:$0xf]
  %v24 = vld [vmem:[%s0 + $0x18] sm:$0xf]
  %v25 = vld [vmem:[%s0 + $0x1c] sm:$0xf]
  %v26 = vld [vmem:[%s0 + $0x20] sm:$0xf]
  %v27 = vld [vmem:[%s0 + $0x24] sm:$0xf]
  %v28 = vld [vmem:[%s0 + $0x28] sm:$0xf]
  %v29 = vld [vmem:[%s0 + $0x2c] sm:$0xf]
  %v30 = vld [vmem:[%s0 + $0x30] sm:$0xf]
  %v31 = vld [vmem:[%s0 + $0x34] sm:$0xf]
  %v32 = vld [vmem:[%s0 + $0x38] sm:$0xf]
  %v33 = vld [vmem:[%s0 + $0x3c] sm:$0xf]
  %v34 = vld [vmem:[%s0 + $0x40] sm:$0xf]
  %v35 = vld [vmem:[%s0 + $0x44] sm:$0xf]
  %v36 = vld [vmem:[%s0 + $0x48] sm:$0xf]
  %v37 = vld [vmem:[%s0 + $0x4c] sm:$0xf]
  %v38 = vld [vmem:[%s0 + $0x50] sm:$0xf]
  %v39 = vld [vmem:[%s0 + $0x54] sm:$0xf]
  %v40 = vld [vmem:[%s0 + $0x58] sm:$0xf]
  %v41 = vld [vmem:[%s0 + $0x5c] sm:$0xf]
  %v42 = vld [vmem:[%s0 + $0x60] sm:$0xf]
  %v43 = vld [vmem:[%s0 + $0x64] sm:$0xf]
  %v44 = vld [vmem:[%s0 + $0x68] sm:$0xf]
  %v45 = vld [vmem:[%s0 + $0x6c] sm:$0xf]
  %v46 = vld [vmem:[%s0 + $0x70] sm:$0xf]
  %v47 = vld [vmem:[%s0 + $0x74] sm:$0xf]
  %v48 = vld [vmem:[%s0 + $0x78] sm:$0xf]
  %v49 = vld [vmem:[%s0 + $0x7c] sm:$0xf]
  %v50 = vld [vmem:[%s0 + $0x80] sm:$0xf]
  %v51 = vld [vmem:[%s0 + $0x84] sm:$0xf]
  %v52 = vld [vmem:[%s0 + $0x88] sm:$0xf]
  %v53 = vld [vmem:[%s0 + $0x8c] sm:$0xf]
  %v54 = vld [vmem:[%s0 + $0x90] sm:$0xf]
  %v55 = vld [vmem:[%s0 + $0x94] sm:$0xf]
  %v56 = vld [vmem:[%s0 + $0x98] sm:$0xf]
  %v57 = vld [vmem:[%s0 + $0x9c] sm:$0xf]
  %v58 = vld [vmem:[%s0 + $0xa0] sm:$0xf]
  %v59 = vld [vmem:[%s0 + $0xa4] sm:$0xf]
  %v60 = vld [vmem:[%s0 + $0xa8] sm:$0xf]
  %v61 = vld [vmem:[%s0 + $0xac] sm:$0xf]
  %v62 = vld [vmem:[%s0 + $0xb0] sm:$0xf]
  %v63 = vld [vmem:[%s0 + $0xb4] sm:$0xf]
  %v64 = vld [vmem:[%s0 + $0xb8] sm:$0xf]
  %v65 = vld [vmem:[%s0 + $0xbc] sm:$0xf]
  %v66 = vld [vmem:[%s0 + $0xc0] sm:$0xf]
  %v67 = vld [vmem:[%s0 + $0xc4] sm:$0xf]
  %v68 = vld [vmem:[%s0 + $0xc8] sm:$0xf]
  %v69 = vld [vmem:[%s0 + $0xcc] sm:$0xf]
  %v70 = vld [vmem:[%s0 + $0xd0] sm:$0xf]
  %v71 = vld [vmem:[%s0 + $0xd4] sm:$0xf]
  %v72 = vld [vmem:[%s0 + $0xd8] sm:$0xf]
  %v73 = vld [vmem:[%s0 + $0xdc] sm:$0xf]
  %v74 = vld [vmem:[%s0 + $0xe0] sm:$0xf]
  %v75 = vld [vmem:[%s0 + $0xe4] sm:$0xf]
  %v76 = vld [vmem:[%s0 + $0xe8] sm:$0xf]
  %v77 = vld [vmem:[%s0 + $0xec] sm:$0xf]
  %v78 = vld [vmem:[%s0 + $0xf0] sm:$0xf]
  %v79 = vld [vmem:[%s0 + $0xf4] sm:$0xf]
  %v80 = vld [vmem:[%s0 + $0xf8] sm:$0xf]
  %v81 = vld [vmem:[%s0 + $0xfc] sm:$0xf]
  %v82 = vld [vmem:[%s0 + $0x100] sm:$0xf]
  %v83 = vld [vmem:[%s0 + $0x104] sm:$0xf]
  %v84 = vld [vmem:[%s0 + $0x108] sm:$0xf]
  %v85 = vld [vmem:[%s0 + $0x10c] sm:$0xf]
  %v86 = vld [vmem:[%s0 + $0x110] sm:$0xf]
  %v87 = vld [vmem:[%s0 + $0x114] sm:$0xf]
  %v88 = vld [vmem:[%s0 + $0x118] sm:$0xf]
  %v89 = vld [vmem:[%s0 + $0x11c] sm:$0xf]
  %v90 = vld [vmem:[%s0 + $0x120] sm:$0xf]
  %v91 = vld [vmem:[%s0 + $0x124] sm:$0xf]
  %v92 = vld [vmem:[%s0 + $0x128] sm:$0xf]
  %v93 = vld [vmem:[%s0 + $0x12c] sm:$0xf]
  %v94 = vld [vmem:[%s0 + $0x130] sm:$0xf]
  %v95 = vld [vmem:[%s0 + $0x134] sm:$0xf]
  %v96 = vld [vmem:[%s0 + $0x138] sm:$0xf]
  %v97 = vld [vmem:[%s0 + $0x13c] sm:$0xf]
  %v98 = vld [vmem:[%s0 + $0x140] sm:$0xf]
  %v99 = vld [vmem:[%s0 + $0x144] sm:$0xf]
  %v100 = vld [vmem:[%s0 + $0x148] sm:$0xf]
  %v101 = vld [vmem:[%s0 + $0x14c] sm:$0xf]
  %v102 = vld [vmem:[%s0 + $0x150] sm:$0xf]
  %v103 = vld [vmem:[%s0 + $0x154] sm:$0xf]
  %v104 = vld [vmem:[%s0 + $0x158] sm:$0xf]
  %v105 = vld [vmem:[%s0 + $0x15c] sm:$0xf]
  %v106 = vld [vmem:[%s0 + $0x160] sm:$0xf]
  %v107 = vld [vmem:[%s0 + $0x164] sm:$0xf]
  %v108 = vld [vmem:[%s0 + $0x168] sm:$0xf]
  %v109 = vld [vmem:[%s0 + $0x16c] sm:$0xf]
  %v110 = vld [vmem:[%s0 + $0x170] sm:$0xf]
  %v111 = vld [vmem:[%s0 + $0x174] sm:$0xf]
  %v112 = vld [vmem:[%s0 + $0x178] sm:$0xf]
  %v113 = vld [vmem:[%s0 + $0x17c] sm:$0xf]
  %v114 = vld [vmem:[%s0 + $0x180] sm:$0xf]
  %v115 = vld [vmem:[%s0 + $0x184] sm:$0xf]
  %v116 = vld [vmem:[%s0 + $0x188] sm:$0xf]
  %v117 = vld [vmem:[%s0 + $0x18c] sm:$0xf]
  %v118 = vld [vmem:[%s0 + $0x190] sm:$0xf]
  %v119 = vld [vmem:[%s0 + $0x194] sm:$0xf]
  %v120 = vld [vmem:[%s0 + $0x198] sm:$0xf]
  %v121 = vld [vmem:[%s0 + $0x19c] sm:$0xf]
  %v122 = vld [vmem:[%s0 + $0x1a0] sm:$0xf]
  %v123 = vld [vmem:[%s0 + $0x1a4] sm:$0xf]
  %v124 = vld [vmem:[%s0 + $0x1a8] sm:$0xf]
  %v125 = vld [vmem:[%s0 + $0x1ac] sm:$0xf]
  %v126 = vld [vmem:[%s0 + $0x1b0] sm:$0xf]
  %v127 = vld [vmem:[%s0 + $0x1b4] sm:$0xf]
  %v128 = vld [vmem:[%s0 + $0x1b8] sm:$0xf]
  %v129 = vld [vmem:[%s0 + $0x1bc] sm:$0xf]
  %v130 = vld [vmem:[%s0 + $0x1c0] sm:$0xf]
  %v131 = vld [vmem:[%s0 + $0x1c4] sm:$0xf]
  %v132 = vld [vmem:[%s0 + $0x1c8] sm:$0xf]
  %v133 = vld [vmem:[%s0 + $0x1cc] sm:$0xf]
  %v134 = vld [vmem:[%s0 + $0x1d0] sm:$0xf]
  %v135 = vld [vmem:[%s0 + $0x1d4] sm:$0xf]
  %v136 = vld [vmem:[%s0 + $0x1d8] sm:$0xf]
  %v137 = vld [vmem:[%s0 + $0x1dc] sm:$0xf]
  %v138 = vld [vmem:[%s0 + $0x1e0] sm:$0xf]
  %v139 = vld [vmem:[%s0 + $0x1e4] sm:$0xf]
  %v140 = vld [vmem:[%s0 + $0x1e8] sm:$0xf]
  %v141 = vld [vmem:[%s0 + $0x1ec] sm:$0xf]
  %v142 = vld [vmem:[%s0 + $0x1f0] sm:$0xf]
  %v143 = vld [vmem:[%s0 + $0x1f4] sm:$0xf]
  %v144 = vld [vmem:[%s0 + $0x1f8] sm:$0xf]
  %v145 = vld [vmem:[%s0 + $0x1fc] sm:$0xf]
  %v146 = vld [vmem:[%s0 + $0x200] sm:$0xf]
  %v147 = vld [vmem:[%s0 + $0x204] sm:$0xf]
  %v148 = vld [vmem:[%s0 + $0x208] sm:$0xf]
  %v149 = vld [vmem:[%s0 + $0x20c] sm:$0xf]
  %v150 = vld [vmem:[%s0 + $0x210] sm:$0xf]
  %v151 = vld [vmem:[%s0 + $0x214] sm:$0xf]
  %v152 = vld [vmem:[%s0 + $0x218] sm:$0xf]
  %v153 = vld [vmem:[%s0 + $0x21c] sm:$0xf]
  %v154 = vld [vmem:[%s0 + $0x220] sm:$0xf]
  %v155 = vld [vmem:[%s0 + $0x224] sm:$0xf]
  %v156 = vld [vmem:[%s0 + $0x228] sm:$0xf]
  %v157 = vld [vmem:[%s0 + $0x22c] sm:$0xf]
  %v158 = vld [vmem:[%s0 + $0x230] sm:$0xf]
  %v159 = vld [vmem:[%s0 + $0x234] sm:$0xf]
  %v160 = vld [vmem:[%s0 + $0x238] sm:$0xf]
  %v161 = vld [vmem:[%s0 + $0x23c] sm:$0xf]
  %v162 = vld [vmem:[%s0 + $0x240] sm:$0xf]
  %v163 = vld [vmem:[%s0 + $0x244] sm:$0xf]
  %v164 = vld [vmem:[%s0 + $0x248] sm:$0xf]
  %v165 = vld [vmem:[%s0 + $0x24c] sm:$0xf]
  %v166 = vld [vmem:[%s0 + $0x250] sm:$0xf]
  %v167 = vld [vmem:[%s0 + $0x254] sm:$0xf]
  %v168 = vld [vmem:[%s0 + $0x258] sm:$0xf]
  %v169 = vld [vmem:[%s0 + $0x25c] sm:$0xf]
  %v170 = vld [vmem:[%s0 + $0x260] sm:$0xf]
  %v171 = vld [vmem:[%s0 + $0x264] sm:$0xf]
  %v172 = vld [vmem:[%s0 + $0x268] sm:$0xf]
  %v173 = vld [vmem:[%s0 + $0x26c] sm:$0xf]
  %v174 = vld [vmem:[%s0 + $0x270] sm:$0xf]
  %v175 = vld [vmem:[%s0 + $0x274] sm:$0xf]
  %v176 = vld [vmem:[%s0 + $0x278] sm:$0xf]
  %v177 = vld [vmem:[%s0 + $0x27c] sm:$0xf]
  %v178 = vld [vmem:[%s0 + $0x280] sm:$0xf]
  %v179 = vld [vmem:[%s0 + $0x284] sm:$0xf]
  %v180 = vld [vmem:[%s0 + $0x288] sm:$0xf]
  %v181 = vld [vmem:[%s0 + $0x28c] sm:$0xf]
  %v182 = vld [vmem:[%s0 + $0x290] sm:$0xf]
  %v183 = vld [vmem:[%s0 + $0x294] sm:$0xf]
  %v184 = vld [vmem:[%s0 + $0x298] sm:$0xf]
  %v185 = vld [vmem:[%s0 + $0x29c] sm:$0xf]
  %v186 = vld [vmem:[%s0 + $0x2a0] sm:$0xf]
  %v187 = vld [vmem:[%s0 + $0x2a4] sm:$0xf]
  %v188 = vld [vmem:[%s0 + $0x2a8] sm:$0xf]
  %v189 = vld [vmem:[%s0 + $0x2ac] sm:$0xf]
  %v190 = vld [vmem:[%s0 + $0x2b0] sm:$0xf]
  %v191 = vld [vmem:[%s0 + $0x2b4] sm:$0xf]
  %v192 = vld [vmem:[%s0 + $0x2b8] sm:$0xf]
  %v193 = vld [vmem:[%s0 + $0x2bc] sm:$0xf]
  %v194 = vld [vmem:[%s0 + $0x2c0] sm:$0xf]
  %v195 = vld [vmem:[%s0 + $0x2c4] sm:$0xf]
  %v196 = vld [vmem:[%s0 + $0x2c8] sm:$0xf]
  %v197 = vld [vmem:[%s0 + $0x2cc] sm:$0xf]
  %v198 = vld [vmem:[%s0 + $0x2d0] sm:$0xf]
  %v199 = vld [vmem:[%s0 + $0x2d4] sm:$0xf]
  %v200 = vld [vmem:[%s0 + $0x2d8] sm:$0xf]
  %v201 = vld [vmem:[%s0 + $0x2dc] sm:$0xf]
  %v202 = vld [vmem:[%s0 + $0x2e0] sm:$0xf]
  %v203 = vld [vmem:[%s0 + $0x2e4] sm:$0xf]
  %v204 = vld [vmem:[%s0 + $0x2e8] sm:$0xf]
  %v205 = vld [vmem:[%s0 + $0x2ec] sm:$0xf]
  %v206 = vld [vmem:[%s0 + $0x2f0] sm:$0xf]
  %v207 = vld [vmem:[%s0 + $0x2f4] sm:$0xf]
  %v208 = vld [vmem:[%s0 + $0x2f8] sm:$0xf]
  %v209 = vld [vmem:[%s0 + $0x2fc] sm:$0xf]
  %v210 = vld [vmem:[%s0 + $0x300] sm:$0xf]
  %v211 = vld [vmem:[%s0 + $0x304] sm:$0xf]
  %v212 = vld [vmem:[%s0 + $0x308] sm:$0xf]
  %v213 = vld [vmem:[%s0 + $0x30c] sm:$0xf]
  %v214 = vld [vmem:[%s0 + $0x310] sm:$0xf]
  %v215 = vld [vmem:[%s0 + $0x314] sm:$0xf]
  %v216 = vld [vmem:[%s0 + $0x318] sm:$0xf]
  %v217 = vld [vmem:[%s0 + $0x31c] sm:$0xf]
  %v218 = vld [vmem:[%s0 + $0x320] sm:$0xf]
  %v219 = vld [vmem:[%s0 + $0x324] sm:$0xf]
  %v220 = vld [vmem:[%s0 + $0x328] sm:$0xf]
  %v221 = vld [vmem:[%s0 + $0x32c] sm:$0xf]
  %v222 = vld [vmem:[%s0 + $0x330] sm:$0xf]
  %v223 = vld [vmem:[%s0 + $0x334] sm:$0xf]
  %v224 = vld [vmem:[%s0 + $0x338] sm:$0xf]
  %v225 = vld [vmem:[%s0 + $0x33c] sm:$0xf]
  %v226 = vld [vmem:[%s0 + $0x340] sm:$0xf]
  %v227 = vld [vmem:[%s0 + $0x344] sm:$0xf]
  %v228 = vld [vmem:[%s0 + $0x348] sm:$0xf]
  %v229 = vld [vmem:[%s0 + $0x34c] sm:$0xf]
  %v230 = vld [vmem:[%s0 + $0x350] sm:$0xf]
  %v231 = vld [vmem:[%s0 + $0x354] sm:$0xf]
  %v232 = vld [vmem:[%s0 + $0x358] sm:$0xf]
  %v233 = vld [vmem:[%s0 + $0x35c] sm:$0xf]
  %v234 = vld [vmem:[%s0 + $0x360] sm:$0xf]
  %v235 = vld [vmem:[%s0 + $0x364] sm:$0xf]
  %v236 = vld [vmem:[%s0 + $0x368] sm:$0xf]
  %v237 = vld [vmem:[%s0 + $0x36c] sm:$0xf]
  %v238 = vld [vmem:[%s0 + $0x370] sm:$0xf]
  %v239 = vld [vmem:[%s0 + $0x374] sm:$0xf]
  %v240 = vld [vmem:[%s0 + $0x378] sm:$0xf]
  %v241 = vld [vmem:[%s0 + $0x37c] sm:$0xf]
  %v242 = vld [vmem:[%s0 + $0x380] sm:$0xf]
  %v243 = vld [vmem:[%s0 + $0x384] sm:$0xf]
  %v244 = vld [vmem:[%s0 + $0x388] sm:$0xf]
  %v245 = vld [vmem:[%s0 + $0x38c] sm:$0xf]
  %v246 = vld [vmem:[%s0 + $0x390] sm:$0xf]
  %v247 = vld [vmem:[%s0 + $0x394] sm:$0xf]
  %v248 = vld [vmem:[%s0 + $0x398] sm:$0xf]
  %v249 = vld [vmem:[%s0 + $0x39c] sm:$0xf]
  %v250 = vld [vmem:[%s0 + $0x3a0] sm:$0xf]
  %v251 = vld [vmem:[%s0 + $0x3a4] sm:$0xf]
  %v252 = vld [vmem:[%s0 + $0x3a8] sm:$0xf]
  %v253 = vld [vmem:[%s0 + $0x3ac] sm:$0xf]
  %v254 = vld [vmem:[%s0 + $0x3b0] sm:$0xf]
  %v255 = vld [vmem:[%s0 + $0x3b4] sm:$0xf]
  %v256 = vld [vmem:[%s0 + $0x3b8] sm:$0xf]
  %v257 = vld [vmem:[%s0 + $0x3bc] sm:$0xf]
  %v258 = vld [vmem:[%s0 + $0x3c0] sm:$0xf]
  %v259 = vld [vmem:[%s0 + $0x3c4] sm:$0xf]
  %v260 = vld [vmem:[%s0 + $0x3c8] sm:$0xf]
  %v261 = vld [vmem:[%s0 + $0x3cc] sm:$0xf]
  %v262 = vld [vmem:[%s0 + $0x3d0] sm:$0xf]
  %v263 = vld [vmem:[%s0 + $0x3d4] sm:$0xf]
  %v264 = vld [vmem:[%s0 + $0x3d8] sm:$0xf]
  %v265 = vld [vmem:[%s0 + $0x3dc] sm:$0xf]
  %v266 = vld [vmem:[%s0 + $0x3e0] sm:$0xf]
  %v267 = vld [vmem:[%s0 + $0x3e4] sm:$0xf]
  %v268 = vld [vmem:[%s0 + $0x3e8] sm:$0xf]
  %v269 = vld [vmem:[%s0 + $0x3ec] sm:$0xf]
  %v270 = vld [vmem:[%s0 + $0x3f0] sm:$0xf]
  %v271 = vld [vmem:[%s0 + $0x3f4] sm:$0xf]
  %v272 = vld [vmem:[%s0 + $0x3f8] sm:$0xf]
  %v273 = vld [vmem:[%s0 + $0x3fc] sm:$0xf]
  %v274 = vld [vmem:[%s1] sm:$0xf]
  %v275 = vld [vmem:[%s1 + $0x4] sm:$0xf]
  %v276 = vld [vmem:[%s1 + $0x8] sm:$0xf]
  %v277 = vld [vmem:[%s1 + $0xc] sm:$0xf]
  %v278 = vld [vmem:[%s1 + $0x10] sm:$0xf]
  %v279 = vld [vmem:[%s1 + $0x14] sm:$0xf]
  %v536 = vunpack.c.l.b16 %v18
  %v537 = vunpack.c.l.b16 %v19
  %v538 = vunpack.c.l.b16 %v20
  %v539 = vunpack.c.l.b16 %v21
  %v540 = vunpack.c.l.b16 %v22
  %v541 = vunpack.c.l.b16 %v23
  %v542 = vunpack.c.l.b16 %v24
  %v543 = vunpack.c.l.b16 %v25
  %v544 = vunpack.c.l.b16 %v26
  %v545 = vunpack.c.l.b16 %v27
  %v546 = vunpack.c.l.b16 %v28
  %v547 = vunpack.c.l.b16 %v29
  %v548 = vunpack.c.l.b16 %v30
  %v549 = vunpack.c.l.b16 %v31
  %v550 = vunpack.c.l.b16 %v32
  %v551 = vunpack.c.l.b16 %v33
  %v552 = vunpack.c.l.b16 %v34
  %v553 = vunpack.c.l.b16 %v35
  %v554 = vunpack.c.l.b16 %v36
  %v555 = vunpack.c.l.b16 %v37
  %v556 = vunpack.c.l.b16 %v38
  %v557 = vunpack.c.l.b16 %v39
  %v558 = vunpack.c.l.b16 %v40
  %v559 = vunpack.c.l.b16 %v41
  %v560 = vunpack.c.l.b16 %v42
  %v561 = vunpack.c.l.b16 %v43
  %v562 = vunpack.c.l.b16 %v44
  %v563 = vunpack.c.l.b16 %v45
  %v564 = vunpack.c.l.b16 %v46
  %v565 = vunpack.c.l.b16 %v47
  %v566 = vunpack.c.l.b16 %v48
  %v567 = vunpack.c.l.b16 %v49
  %v568 = vunpack.c.l.b16 %v50
  %v569 = vunpack.c.l.b16 %v51
  %v570 = vunpack.c.l.b16 %v52
  %v571 = vunpack.c.l.b16 %v53
  %v572 = vunpack.c.l.b16 %v54
  %v573 = vunpack.c.l.b16 %v55
  %v574 = vunpack.c.l.b16 %v56
  %v575 = vunpack.c.l.b16 %v57
  %v576 = vunpack.c.l.b16 %v58
  %v577 = vunpack.c.l.b16 %v59
  %v578 = vunpack.c.l.b16 %v60
  %v579 = vunpack.c.l.b16 %v61
  %v580 = vunpack.c.l.b16 %v62
  %v581 = vunpack.c.l.b16 %v63
  %v582 = vunpack.c.l.b16 %v64
  %v583 = vunpack.c.l.b16 %v65
  %v584 = vunpack.c.l.b16 %v66
  %v585 = vunpack.c.l.b16 %v67
  %v586 = vunpack.c.l.b16 %v68
  %v587 = vunpack.c.l.b16 %v69
  %v588 = vunpack.c.l.b16 %v70
  %v589 = vunpack.c.l.b16 %v71
  %v590 = vunpack.c.l.b16 %v72
  %v591 = vunpack.c.l.b16 %v73
  %v592 = vunpack.c.l.b16 %v74
  %v593 = vunpack.c.l.b16 %v75
  %v594 = vunpack.c.l.b16 %v76
  %v595 = vunpack.c.l.b16 %v77
  %v596 = vunpack.c.l.b16 %v78
  %v597 = vunpack.c.l.b16 %v79
  %v598 = vunpack.c.l.b16 %v80
  %v599 = vunpack.c.l.b16 %v81
  %v600 = vunpack.c.l.b16 %v82
  %v601 = vunpack.c.l.b16 %v83
  %v602 = vunpack.c.l.b16 %v84
  %v603 = vunpack.c.l.b16 %v85
  %v604 = vunpack.c.l.b16 %v86
  %v605 = vunpack.c.l.b16 %v87
  %v606 = vunpack.c.l.b16 %v88
  %v607 = vunpack.c.l.b16 %v89
  %v608 = vunpack.c.l.b16 %v90
  %v609 = vunpack.c.l.b16 %v91
  %v610 = vunpack.c.l.b16 %v92
  %v611 = vunpack.c.l.b16 %v93
  %v612 = vunpack.c.l.b16 %v94
  %v613 = vunpack.c.l.b16 %v95
  %v614 = vunpack.c.l.b16 %v96
  %v615 = vunpack.c.l.b16 %v97
  %v616 = vunpack.c.l.b16 %v98
  %v617 = vunpack.c.l.b16 %v99
  %v618 = vunpack.c.l.b16 %v100
  %v619 = vunpack.c.l.b16 %v101
  %v620 = vunpack.c.l.b16 %v102
  %v621 = vunpack.c.l.b16 %v103
  %v622 = vunpack.c.l.b16 %v104
  %v623 = vunpack.c.l.b16 %v105
  %v624 = vunpack.c.l.b16 %v106
  %v625 = vunpack.c.l.b16 %v107
  %v626 = vunpack.c.l.b16 %v108
  %v627 = vunpack.c.l.b16 %v109
  %v628 = vunpack.c.l.b16 %v110
  %v629 = vunpack.c.l.b16 %v111
  %v630 = vunpack.c.l.b16 %v112
  %v631 = vunpack.c.l.b16 %v113
  %v632 = vunpack.c.l.b16 %v114
  %v633 = vunpack.c.l.b16 %v115
  %v634 = vunpack.c.l.b16 %v116
  %v635 = vunpack.c.l.b16 %v117
  %v636 = vunpack.c.l.b16 %v118
  %v637 = vunpack.c.l.b16 %v119
  %v638 = vunpack.c.l.b16 %v120
  %v639 = vunpack.c.l.b16 %v121
  %v640 = vunpack.c.l.b16 %v122
  %v641 = vunpack.c.l.b16 %v123
  %v642 = vunpack.c.l.b16 %v124
  %v643 = vunpack.c.l.b16 %v125
  %v644 = vunpack.c.l.b16 %v126
  %v645 = vunpack.c.l.b16 %v127
  %v646 = vunpack.c.l.b16 %v128
  %v647 = vunpack.c.l.b16 %v129
  %v648 = vunpack.c.l.b16 %v130
  %v649 = vunpack.c.l.b16 %v131
  %v650 = vunpack.c.l.b16 %v132
  %v651 = vunpack.c.l.b16 %v133
  %v652 = vunpack.c.l.b16 %v134
  %v653 = vunpack.c.l.b16 %v135
  %v654 = vunpack.c.l.b16 %v136
  %v655 = vunpack.c.l.b16 %v137
  %v656 = vunpack.c.l.b16 %v138
  %v657 = vunpack.c.l.b16 %v139
  %v658 = vunpack.c.l.b16 %v140
  %v659 = vunpack.c.l.b16 %v141
  %v660 = vunpack.c.l.b16 %v142
  %v661 = vunpack.c.l.b16 %v143
  %v662 = vunpack.c.l.b16 %v144
  %v663 = vunpack.c.l.b16 %v145
  %v664 = vunpack.c.l.b16 %v146
  %v665 = vunpack.c.l.b16 %v147
  %v666 = vunpack.c.l.b16 %v148
  %v667 = vunpack.c.l.b16 %v149
  %v668 = vunpack.c.l.b16 %v150
  %v669 = vunpack.c.l.b16 %v151
  %v670 = vunpack.c.l.b16 %v152
  %v671 = vunpack.c.l.b16 %v153
  %v672 = vunpack.c.l.b16 %v154
  %v673 = vunpack.c.l.b16 %v155
  %v674 = vunpack.c.l.b16 %v156
  %v675 = vunpack.c.l.b16 %v157
  %v676 = vunpack.c.l.b16 %v158
  %v677 = vunpack.c.l.b16 %v159
  %v678 = vunpack.c.l.b16 %v160
  %v679 = vunpack.c.l.b16 %v161
  %v680 = vunpack.c.l.b16 %v162
  %v681 = vunpack.c.l.b16 %v163
  %v682 = vunpack.c.l.b16 %v164
  %v683 = vunpack.c.l.b16 %v165
  %v684 = vunpack.c.l.b16 %v166
  %v685 = vunpack.c.l.b16 %v167
  %v686 = vunpack.c.l.b16 %v168
  %v687 = vunpack.c.l.b16 %v169
  %v688 = vunpack.c.l.b16 %v170
  %v689 = vunpack.c.l.b16 %v171
  %v690 = vunpack.c.l.b16 %v172
  %v691 = vunpack.c.l.b16 %v173
  %v692 = vunpack.c.l.b16 %v174
  %v693 = vunpack.c.l.b16 %v175
  %v694 = vunpack.c.l.b16 %v176
  %v695 = vunpack.c.l.b16 %v177
  %v696 = vunpack.c.l.b16 %v178
  %v697 = vunpack.c.l.b16 %v179
  %v698 = vunpack.c.l.b16 %v180
  %v699 = vunpack.c.l.b16 %v181
  %v700 = vunpack.c.l.b16 %v182
  %v701 = vunpack.c.l.b16 %v183
  %v702 = vunpack.c.l.b16 %v184
  %v703 = vunpack.c.l.b16 %v185
  %v704 = vunpack.c.l.b16 %v186
  %v705 = vunpack.c.l.b16 %v187
  %v706 = vunpack.c.l.b16 %v188
  %v707 = vunpack.c.l.b16 %v189
  %v708 = vunpack.c.l.b16 %v190
  %v709 = vunpack.c.l.b16 %v191
  %v710 = vunpack.c.l.b16 %v192
  %v711 = vunpack.c.l.b16 %v193
  %v712 = vunpack.c.l.b16 %v194
  %v713 = vunpack.c.l.b16 %v195
  %v714 = vunpack.c.l.b16 %v196
  %v715 = vunpack.c.l.b16 %v197
  %v716 = vunpack.c.l.b16 %v198
  %v717 = vunpack.c.l.b16 %v199
  %v718 = vunpack.c.l.b16 %v200
  %v719 = vunpack.c.l.b16 %v201
  %v720 = vunpack.c.l.b16 %v202
  %v721 = vunpack.c.l.b16 %v203
  %v722 = vunpack.c.l.b16 %v204
  %v723 = vunpack.c.l.b16 %v205
  %v724 = vunpack.c.l.b16 %v206
  %v725 = vunpack.c.l.b16 %v207
  %v726 = vunpack.c.l.b16 %v208
  %v727 = vunpack.c.l.b16 %v209
  %v728 = vunpack.c.l.b16 %v210
  %v729 = vunpack.c.l.b16 %v211
  %v730 = vunpack.c.l.b16 %v212
  %v731 = vunpack.c.l.b16 %v213
  %v732 = vunpack.c.l.b16 %v214
  %v733 = vunpack.c.l.b16 %v215
  %v734 = vunpack.c.l.b16 %v216
  %v735 = vunpack.c.l.b16 %v217
  %v736 = vunpack.c.l.b16 %v218
  %v737 = vunpack.c.l.b16 %v219
  %v738 = vunpack.c.l.b16 %v220
  %v739 = vunpack.c.l.b16 %v221
  %v740 = vunpack.c.l.b16 %v222
  %v741 = vunpack.c.l.b16 %v223
  %v742 = vunpack.c.l.b16 %v224
  %v743 = vunpack.c.l.b16 %v225
  %v744 = vunpack.c.l.b16 %v226
  %v745 = vunpack.c.l.b16 %v227
  %v746 = vunpack.c.l.b16 %v228
  %v747 = vunpack.c.l.b16 %v229
  %v748 = vunpack.c.l.b16 %v230
  %v749 = vunpack.c.l.b16 %v231
  %v750 = vunpack.c.l.b16 %v232
  %v751 = vunpack.c.l.b16 %v233
  %v752 = vunpack.c.l.b16 %v234
  %v753 = vunpack.c.l.b16 %v235
  %v754 = vunpack.c.l.b16 %v236
  %v755 = vunpack.c.l.b16 %v237
  %v756 = vunpack.c.l.b16 %v238
  %v757 = vunpack.c.l.b16 %v239
  %v758 = vunpack.c.l.b16 %v240
  %v759 = vunpack.c.l.b16 %v241
  %v760 = vunpack.c.l.b16 %v242
  %v761 = vunpack.c.l.b16 %v243
  %v762 = vunpack.c.l.b16 %v244
  %v763 = vunpack.c.l.b16 %v245
  %v764 = vunpack.c.l.b16 %v246
  %v765 = vunpack.c.l.b16 %v247
  %v766 = vunpack.c.l.b16 %v248
  %v767 = vunpack.c.l.b16 %v249
  %v768 = vunpack.c.l.b16 %v250
  %v769 = vunpack.c.l.b16 %v251
  %v770 = vunpack.c.l.b16 %v252
  %v771 = vunpack.c.l.b16 %v253
  %v772 = vunpack.c.l.b16 %v254
  %v773 = vunpack.c.l.b16 %v255
  %v774 = vunpack.c.l.b16 %v256
  %v775 = vunpack.c.l.b16 %v257
  %v776 = vunpack.c.l.b16 %v258
  %v777 = vunpack.c.l.b16 %v259
  %v778 = vunpack.c.l.b16 %v260
  %v779 = vunpack.c.l.b16 %v261
  %v780 = vunpack.c.l.b16 %v262
  %v781 = vunpack.c.l.b16 %v263
  %v782 = vunpack.c.l.b16 %v264
  %v783 = vunpack.c.l.b16 %v265
  %v784 = vunpack.c.l.b16 %v266
  %v785 = vunpack.c.l.b16 %v267
  %v786 = vunpack.c.l.b16 %v268
  %v787 = vunpack.c.l.b16 %v269
  %v788 = vunpack.c.l.b16 %v270
  %v789 = vunpack.c.l.b16 %v271
  %v790 = vunpack.c.l.b16 %v272
  %v791 = vunpack.c.l.b16 %v273
  %v792 = vpack.c.b16 %v537, %v536
  %v793 = vpack.c.b16 %v539, %v538
  %v794 = vpack.c.b16 %v541, %v540
  %v795 = vpack.c.b16 %v543, %v542
  %v796 = vpack.c.b16 %v545, %v544
  %v797 = vpack.c.b16 %v547, %v546
  %v798 = vpack.c.b16 %v549, %v548
  %v799 = vpack.c.b16 %v551, %v550
  %v800 = vpack.c.b16 %v553, %v552
  %v801 = vpack.c.b16 %v555, %v554
  %v802 = vpack.c.b16 %v557, %v556
  %v803 = vpack.c.b16 %v559, %v558
  %v804 = vpack.c.b16 %v561, %v560
  %v805 = vpack.c.b16 %v563, %v562
  %v806 = vpack.c.b16 %v565, %v564
  %v807 = vpack.c.b16 %v567, %v566
  %v808 = vpack.c.b16 %v569, %v568
  %v809 = vpack.c.b16 %v571, %v570
  %v810 = vpack.c.b16 %v573, %v572
  %v811 = vpack.c.b16 %v575, %v574
  %v812 = vpack.c.b16 %v577, %v576
  %v813 = vpack.c.b16 %v579, %v578
  %v814 = vpack.c.b16 %v581, %v580
  %v815 = vpack.c.b16 %v583, %v582
  %v816 = vpack.c.b16 %v585, %v584
  %v817 = vpack.c.b16 %v587, %v586
  %v818 = vpack.c.b16 %v589, %v588
  %v819 = vpack.c.b16 %v591, %v590
  %v820 = vpack.c.b16 %v593, %v592
  %v821 = vpack.c.b16 %v595, %v594
  %v822 = vpack.c.b16 %v597, %v596
  %v823 = vpack.c.b16 %v599, %v598
  %v824 = vpack.c.b16 %v601, %v600
  %v825 = vpack.c.b16 %v603, %v602
  %v826 = vpack.c.b16 %v605, %v604
  %v827 = vpack.c.b16 %v607, %v606
  %v828 = vpack.c.b16 %v609, %v608
  %v829 = vpack.c.b16 %v611, %v610
  %v830 = vpack.c.b16 %v613, %v612
  %v831 = vpack.c.b16 %v615, %v614
  %v832 = vpack.c.b16 %v617, %v616
  %v833 = vpack.c.b16 %v619, %v618
  %v834 = vpack.c.b16 %v621, %v620
  %v835 = vpack.c.b16 %v623, %v622
  %v836 = vpack.c.b16 %v625, %v624
  %v837 = vpack.c.b16 %v627, %v626
  %v838 = vpack.c.b16 %v629, %v628
  %v839 = vpack.c.b16 %v631, %v630
  %v840 = vpack.c.b16 %v633, %v632
  %v841 = vpack.c.b16 %v635, %v634
  %v842 = vpack.c.b16 %v637, %v636
  %v843 = vpack.c.b16 %v639, %v638
  %v844 = vpack.c.b16 %v641, %v640
  %v845 = vpack.c.b16 %v643, %v642
  %v846 = vpack.c.b16 %v645, %v644
  %v847 = vpack.c.b16 %v647, %v646
  %v848 = vpack.c.b16 %v649, %v648
  %v849 = vpack.c.b16 %v651, %v650
  %v850 = vpack.c.b16 %v653, %v652
  %v851 = vpack.c.b16 %v655, %v654
  %v852 = vpack.c.b16 %v657, %v656
  %v853 = vpack.c.b16 %v659, %v658
  %v854 = vpack.c.b16 %v661, %v660
  %v855 = vpack.c.b16 %v663, %v662
  %v856 = vpack.c.b16 %v665, %v664
  %v857 = vpack.c.b16 %v667, %v666
  %v858 = vpack.c.b16 %v669, %v668
  %v859 = vpack.c.b16 %v671, %v670
  %v860 = vpack.c.b16 %v673, %v672
  %v861 = vpack.c.b16 %v675, %v674
  %v862 = vpack.c.b16 %v677, %v676
  %v863 = vpack.c.b16 %v679, %v678
  %v864 = vpack.c.b16 %v681, %v680
  %v865 = vpack.c.b16 %v683, %v682
  %v866 = vpack.c.b16 %v685, %v684
  %v867 = vpack.c.b16 %v687, %v686
  %v868 = vpack.c.b16 %v689, %v688
  %v869 = vpack.c.b16 %v691, %v690
  %v870 = vpack.c.b16 %v693, %v692
  %v871 = vpack.c.b16 %v695, %v694
  %v872 = vpack.c.b16 %v697, %v696
  %v873 = vpack.c.b16 %v699, %v698
  %v874 = vpack.c.b16 %v701, %v700
  %v875 = vpack.c.b16 %v703, %v702
  %v876 = vpack.c.b16 %v705, %v704
  %v877 = vpack.c.b16 %v707, %v706
  %v878 = vpack.c.b16 %v709, %v708
  %v879 = vpack.c.b16 %v711, %v710
  %v880 = vpack.c.b16 %v713, %v712
  %v881 = vpack.c.b16 %v715, %v714
  %v882 = vpack.c.b16 %v717, %v716
  %v883 = vpack.c.b16 %v719, %v718
  %v884 = vpack.c.b16 %v721, %v720
  %v885 = vpack.c.b16 %v723, %v722
  %v886 = vpack.c.b16 %v725, %v724
  %v887 = vpack.c.b16 %v727, %v726
  %v888 = vpack.c.b16 %v729, %v728
  %v889 = vpack.c.b16 %v731, %v730
  %v890 = vpack.c.b16 %v733, %v732
  %v891 = vpack.c.b16 %v735, %v734
  %v892 = vpack.c.b16 %v737, %v736
  %v893 = vpack.c.b16 %v739, %v738
  %v894 = vpack.c.b16 %v741, %v740
  %v895 = vpack.c.b16 %v743, %v742
  %v896 = vpack.c.b16 %v745, %v744
  %v897 = vpack.c.b16 %v747, %v746
  %v898 = vpack.c.b16 %v749, %v748
  %v899 = vpack.c.b16 %v751, %v750
  %v900 = vpack.c.b16 %v753, %v752
  %v901 = vpack.c.b16 %v755, %v754
  %v902 = vpack.c.b16 %v757, %v756
  %v903 = vpack.c.b16 %v759, %v758
  %v904 = vpack.c.b16 %v761, %v760
  %v905 = vpack.c.b16 %v763, %v762
  %v906 = vpack.c.b16 %v765, %v764
  %v907 = vpack.c.b16 %v767, %v766
  %v908 = vpack.c.b16 %v769, %v768
  %v909 = vpack.c.b16 %v771, %v770
  %v910 = vpack.c.b16 %v773, %v772
  %v911 = vpack.c.b16 %v775, %v774
  %v912 = vpack.c.b16 %v777, %v776
  %v913 = vpack.c.b16 %v779, %v778
  %v914 = vpack.c.b16 %v781, %v780
  %v915 = vpack.c.b16 %v783, %v782
  %v916 = vpack.c.b16 %v785, %v784
  %v917 = vpack.c.b16 %v787, %v786
  %v918 = vpack.c.b16 %v789, %v788
  %v919 = vpack.c.b16 %v791, %v790
  %v926 = vunpack.c.l.b16 %v274
  %v927 = vunpack.c.l.b16 %v275
  %v928 = vunpack.c.l.b16 %v276
  %v929 = vunpack.c.l.b16 %v277
  %v930 = vunpack.c.l.b16 %v278
  %v931 = vunpack.c.l.b16 %v279
  %v932 = vpack.c.b16 %v927, %v926
  %v933 = vpack.c.b16 %v929, %v928
  %v934 = vpack.c.b16 %v931, %v930
  %vm938 = vcmask 392192
  %v940 = vsel %vm938, %v792, 0
  %v943 = vsel %vm938, %v793, 0
  %v946 = vsel %vm938, %v794, 0
  %v949 = vsel %vm938, %v795, 0
  %v952 = vsel %vm938, %v796, 0
  %v955 = vsel %vm938, %v797, 0
  %v958 = vsel %vm938, %v798, 0
  %v961 = vsel %vm938, %v799, 0
  %v964 = vsel %vm938, %v800, 0
  %v967 = vsel %vm938, %v801, 0
  %v970 = vsel %vm938, %v802, 0
  %v973 = vsel %vm938, %v803, 0
  %v976 = vsel %vm938, %v804, 0
  %v979 = vsel %vm938, %v805, 0
  %v982 = vsel %vm938, %v806, 0
  %v985 = vsel %vm938, %v807, 0
  %v988 = vsel %vm938, %v808, 0
  %v991 = vsel %vm938, %v809, 0
  %v994 = vsel %vm938, %v810, 0
  %v997 = vsel %vm938, %v811, 0
  %v1000 = vsel %vm938, %v812, 0
  %v1003 = vsel %vm938, %v813, 0
  %v1006 = vsel %vm938, %v814, 0
  %v1009 = vsel %vm938, %v815, 0
  %v1012 = vsel %vm938, %v816, 0
  %v1015 = vsel %vm938, %v817, 0
  %v1018 = vsel %vm938, %v818, 0
  %v1021 = vsel %vm938, %v819, 0
  %v1024 = vsel %vm938, %v820, 0
  %v1027 = vsel %vm938, %v821, 0
  %v1030 = vsel %vm938, %v822, 0
  %v1033 = vsel %vm938, %v823, 0
  %v1036 = vsel %vm938, %v824, 0
  %v1039 = vsel %vm938, %v825, 0
  %v1042 = vsel %vm938, %v826, 0
  %v1045 = vsel %vm938, %v827, 0
  %v1048 = vsel %vm938, %v828, 0
  %v1051 = vsel %vm938, %v829, 0
  %v1054 = vsel %vm938, %v830, 0
  %v1057 = vsel %vm938, %v831, 0
  %v1060 = vsel %vm938, %v832, 0
  %v1063 = vsel %vm938, %v833, 0
  %v1066 = vsel %vm938, %v834, 0
  %v1069 = vsel %vm938, %v835, 0
  %v1072 = vsel %vm938, %v836, 0
  %v1075 = vsel %vm938, %v837, 0
  %v1078 = vsel %vm938, %v838, 0
  %v1081 = vsel %vm938, %v839, 0
  %v1084 = vsel %vm938, %v840, 0
  %v1087 = vsel %vm938, %v841, 0
  %v1090 = vsel %vm938, %v842, 0
  %v1093 = vsel %vm938, %v843, 0
  %v1096 = vsel %vm938, %v844, 0
  %v1099 = vsel %vm938, %v845, 0
  %v1102 = vsel %vm938, %v846, 0
  %v1105 = vsel %vm938, %v847, 0
  %v1108 = vsel %vm938, %v848, 0
  %v1111 = vsel %vm938, %v849, 0
  %v1114 = vsel %vm938, %v850, 0
  %v1117 = vsel %vm938, %v851, 0
  %v1120 = vsel %vm938, %v852, 0
  %v1123 = vsel %vm938, %v853, 0
  %v1126 = vsel %vm938, %v854, 0
  %v1129 = vsel %vm938, %v855, 0
  %v1132 = vsel %vm938, %v856, 0
  %v1135 = vsel %vm938, %v857, 0
  %v1138 = vsel %vm938, %v858, 0
  %v1141 = vsel %vm938, %v859, 0
  %v1144 = vsel %vm938, %v860, 0
  %v1147 = vsel %vm938, %v861, 0
  %v1150 = vsel %vm938, %v862, 0
  %v1153 = vsel %vm938, %v863, 0
  %v1156 = vsel %vm938, %v864, 0
  %v1159 = vsel %vm938, %v865, 0
  %v1162 = vsel %vm938, %v866, 0
  %v1165 = vsel %vm938, %v867, 0
  %v1168 = vsel %vm938, %v868, 0
  %v1171 = vsel %vm938, %v869, 0
  %v1174 = vsel %vm938, %v870, 0
  %v1177 = vsel %vm938, %v871, 0
  %v1180 = vsel %vm938, %v872, 0
  %v1183 = vsel %vm938, %v873, 0
  %v1186 = vsel %vm938, %v874, 0
  %v1189 = vsel %vm938, %v875, 0
  %v1192 = vsel %vm938, %v876, 0
  %v1195 = vsel %vm938, %v877, 0
  %v1198 = vsel %vm938, %v878, 0
  %v1201 = vsel %vm938, %v879, 0
  %v1204 = vsel %vm938, %v880, 0
  %v1207 = vsel %vm938, %v881, 0
  %v1210 = vsel %vm938, %v882, 0
  %v1213 = vsel %vm938, %v883, 0
  %v1216 = vsel %vm938, %v884, 0
  %v1219 = vsel %vm938, %v885, 0
  %v1222 = vsel %vm938, %v886, 0
  %v1225 = vsel %vm938, %v887, 0
  %v1228 = vsel %vm938, %v888, 0
  %v1231 = vsel %vm938, %v889, 0
  %v1234 = vsel %vm938, %v890, 0
  %v1237 = vsel %vm938, %v891, 0
  %v1240 = vsel %vm938, %v892, 0
  %v1243 = vsel %vm938, %v893, 0
  %v1246 = vsel %vm938, %v894, 0
  %v1249 = vsel %vm938, %v895, 0
  %v1252 = vsel %vm938, %v896, 0
  %v1255 = vsel %vm938, %v897, 0
  %v1258 = vsel %vm938, %v898, 0
  %v1261 = vsel %vm938, %v899, 0
  %v1264 = vsel %vm938, %v900, 0
  %v1267 = vsel %vm938, %v901, 0
  %v1270 = vsel %vm938, %v902, 0
  %v1273 = vsel %vm938, %v903, 0
  %v1276 = vsel %vm938, %v904, 0
  %v1279 = vsel %vm938, %v905, 0
  %v1282 = vsel %vm938, %v906, 0
  %v1285 = vsel %vm938, %v907, 0
  %v1288 = vsel %vm938, %v908, 0
  %v1291 = vsel %vm938, %v909, 0
  %v1294 = vsel %vm938, %v910, 0
  %v1297 = vsel %vm938, %v911, 0
  %v1300 = vsel %vm938, %v912, 0
  %v1303 = vsel %vm938, %v913, 0
  %v1306 = vsel %vm938, %v914, 0
  %v1309 = vsel %vm938, %v915, 0
  %v1312 = vsel %vm938, %v916, 0
  %v1315 = vsel %vm938, %v917, 0
  %v1318 = vsel %vm938, %v918, 0
  %v1321 = vsel %vm938, %v919, 0
  %1323 = vmatprep.subr.bf16.mxu0 0
  %1324 = vmatpush1.bf16.msra.mxu0 %v932
  %1325 = vmatprep.subr.bf16.mxu0 0
  %1326 = vmatpush1.bf16.msra.mxu0 %v933
  %1327 = vmatprep.subr.bf16.mxu0 0
  %1328 = vmatpush1.bf16.msra.mxu0 %v934
  %1329 = vmatprep.subr.bf16.mxu0 0
  %1330 = vmatpush1.bf16.msra.mxu0 0
  %1331 = vmatprep.subr.bf16.mxu0 0
  %1332 = vmatpush1.bf16.msra.mxu0 0
  %1333 = vmatprep.subr.bf16.mxu0 0
  %1334 = vmatpush1.bf16.msra.mxu0 0
  %1335 = vmatprep.subr.bf16.mxu0 0
  %1336 = vmatpush1.bf16.msra.mxu0 0
  %1337 = vmatprep.subr.bf16.mxu0 0
  %1338 = vmatpush1.bf16.msra.mxu0 0
  %1339 = vmatprep.subr.bf16.mxu0 0
  %1340 = vmatpush1.bf16.msra.mxu0 0
  %1341 = vmatprep.subr.bf16.mxu0 0
  %1342 = vmatpush1.bf16.msra.mxu0 0
  %1343 = vmatprep.subr.bf16.mxu0 0
  %1344 = vmatpush1.bf16.msra.mxu0 0
  %1345 = vmatprep.subr.bf16.mxu0 0
  %1346 = vmatpush1.bf16.msra.mxu0 0
  %1347 = vmatprep.subr.bf16.mxu0 0
  %1348 = vmatpush1.bf16.msra.mxu0 0
  %1349 = vmatprep.subr.bf16.mxu0 0
  %1350 = vmatpush1.bf16.msra.mxu0 0
  %1351 = vmatprep.subr.bf16.mxu0 0
  %1352 = vmatpush1.bf16.msra.mxu0 0
  %1353 = vmatprep.subr.bf16.mxu0 0
  %1354 = vmatpush1.bf16.msra.mxu0 0
  %1355 = vmatprep.mubr.bf16.mxu0 0
  %1356 = vmatmul.mubr.bf16.gmra.mrb[0].mxu0 %v940
  %v1357 = vpop.f32.mrb[0].mxu0
  %v1358 = vadd.f32 0.0, %v1357
  %v1359 = vpop.f32.mrb[0].mxu0
  %v1360 = vpop.f32.mrb[0].mxu0
  %v1361 = vadd.f32 0.0, %v1360
  %v1362 = vpop.f32.mrb[0].mxu0
  %1363 = vmatprep.mubr.bf16.mxu0 0
  %1364 = vmatmul.mubr.bf16.gmra.mrb[0].mxu0 %v943
  %v1365 = vpop.f32.mrb[0].mxu0
  %v1366 = vadd.f32 0.0, %v1365
  %v1367 = vpop.f32.mrb[0].mxu0
  %v1368 = vpop.f32.mrb[0].mxu0
  %v1369 = vadd.f32 0.0, %v1368
  %v1370 = vpop.f32.mrb[0].mxu0
  %1371 = vmatprep.mubr.bf16.mxu0 0
  %1372 = vmatmul.mubr.bf16.gmra.mrb[0].mxu0 %v946
  %v1373 = vpop.f32.mrb[0].mxu0
  %v1374 = vadd.f32 0.0, %v1373
  %v1375 = vpop.f32.mrb[0].mxu0
  %v1376 = vpop.f32.mrb[0].mxu0
  %v1377 = vadd.f32 0.0, %v1376
  %v1378 = vpop.f32.mrb[0].mxu0
  %1379 = vmatprep.mubr.bf16.mxu0 0
  %1380 = vmatmul.mubr.bf16.gmra.mrb[0].mxu0 %v949
  %v1381 = vpop.f32.mrb[0].mxu0
  %v1382 = vadd.f32 0.0, %v1381
  %v1383 = vpop.f32.mrb[0].mxu0
  %v1384 = vpop.f32.mrb[0].mxu0
  %v1385 = vadd.f32 0.0, %v1384
  %v1386 = vpop.f32.mrb[0].mxu0
  %1387 = vmatprep.mubr.bf16.mxu0 0
  %1388 = vmatmul.mubr.bf16.gmra.mrb[0].mxu0 %v952
  %v1389 = vpop.f32.mrb[0].mxu0
  %v1390 = vadd.f32 0.0, %v1389
  %v1391 = vpop.f32.mrb[0].mxu0
  %v1392 = vpop.f32.mrb[0].mxu0
  %v1393 = vadd.f32 0.0, %v1392
  %v1394 = vpop.f32.mrb[0].mxu0
  %1395 = vmatprep.mubr.bf16.mxu0 0
  %1396 = vmatmul.mubr.bf16.gmra.mrb[0].mxu0 %v955
  %v1397 = vpop.f32.mrb[0].mxu0
  %v1398 = vadd.f32 0.0, %v1397
  %v1399 = vpop.f32.mrb[0].mxu0
  %v1400 = vpop.f32.mrb[0].mxu0
  %v1401 = vadd.f32 0.0, %v1400
  %v1402 = vpop.f32.mrb[0].mxu0
  %1403 = vmatprep.mubr.bf16.mxu0 0
  %1404 = vmatmul.mubr.bf16.gmra.mrb[0].mxu0 %v958
  %v1405 = vpop.f32.mrb[0].mxu0
  %v1406 = vadd.f32 0.0, %v1405
  %v1407 = vpop.f32.mrb[0].mxu0
  %v1408 = vpop.f32.mrb[0].mxu0
  %v1409 = vadd.f32 0.0, %v1408
  %v1410 = vpop.f32.mrb[0].mxu0
  %1411 = vmatprep.mubr.bf16.mxu0 0
  %1412 = vmatmul.mubr.bf16.gmra.mrb[0].mxu0 %v961
  %v1413 = vpop.f32.mrb[0].mxu0
  %v1414 = vadd.f32 0.0, %v1413
  %v1415 = vpop.f32.mrb[0].mxu0
  %v1416 = vpop.f32.mrb[0].mxu0
  %v1417 = vadd.f32 0.0, %v1416
  %v1418 = vpop.f32.mrb[0].mxu0
  %1419 = vmatprep.mubr.bf16.mxu0 0
  %1420 = vmatmul.mubr.bf16.gmra.mrb[0].mxu0 %v964
  %v1421 = vpop.f32.mrb[0].mxu0
  %v1422 = vadd.f32 0.0, %v1421
  %v1423 = vpop.f32.mrb[0].mxu0
  %v1424 = vpop.f32.mrb[0].mxu0
  %v1425 = vadd.f32 0.0, %v1424
  %v1426 = vpop.f32.mrb[0].mxu0
  %1427 = vmatprep.mubr.bf16.mxu0 0
  %1428 = vmatmul.mubr.bf16.gmra.mrb[0].mxu0 %v967
  %v1429 = vpop.f32.mrb[0].mxu0
  %v1430 = vadd.f32 0.0, %v1429
  %v1431 = vpop.f32.mrb[0].mxu0
  %v1432 = vpop.f32.mrb[0].mxu0
  %v1433 = vadd.f32 0.0, %v1432
  %v1434 = vpop.f32.mrb[0].mxu0
  %1435 = vmatprep.mubr.bf16.mxu0 0
  %1436 = vmatmul.mubr.bf16.gmra.mrb[0].mxu0 %v970
  %v1437 = vpop.f32.mrb[0].mxu0
  %v1438 = vadd.f32 0.0, %v1437
  %v1439 = vpop.f32.mrb[0].mxu0
  %v1440 = vpop.f32.mrb[0].mxu0
  %v1441 = vadd.f32 0.0, %v1440
  %v1442 = vpop.f32.mrb[0].mxu0
  %1443 = vmatprep.mubr.bf16.mxu0 0
  %1444 = vmatmul.mubr.bf16.gmra.mrb[0].mxu0 %v973
  %v1445 = vpop.f32.mrb[0].mxu0
  %v1446 = vadd.f32 0.0, %v1445
  %v1447 = vpop.f32.mrb[0].mxu0
  %v1448 = vpop.f32.mrb[0].mxu0
  %v1449 = vadd.f32 0.0, %v1448
  %v1450 = vpop.f32.mrb[0].mxu0
  %1451 = vmatprep.mubr.bf16.mxu0 0
  %1452 = vmatmul.mubr.bf16.gmra.mrb[0].mxu0 %v976
  %v1453 = vpop.f32.mrb[0].mxu0
  %v1454 = vadd.f32 0.0, %v1453
  %v1455 = vpop.f32.mrb[0].mxu0
  %v1456 = vpop.f32.mrb[0].mxu0
  %v1457 = vadd.f32 0.0, %v1456
  %v1458 = vpop.f32.mrb[0].mxu0
  %1459 = vmatprep.mubr.bf16.mxu0 0
  %1460 = vmatmul.mubr.bf16.gmra.mrb[0].mxu0 %v979
  %v1461 = vpop.f32.mrb[0].mxu0
  %v1462 = vadd.f32 0.0, %v1461
  %v1463 = vpop.f32.mrb[0].mxu0
  %v1464 = vpop.f32.mrb[0].mxu0
  %v1465 = vadd.f32 0.0, %v1464
  %v1466 = vpop.f32.mrb[0].mxu0
  %1467 = vmatprep.mubr.bf16.mxu0 0
  %1468 = vmatmul.mubr.bf16.gmra.mrb[0].mxu0 %v982
  %v1469 = vpop.f32.mrb[0].mxu0
  %v1470 = vadd.f32 0.0, %v1469
  %v1471 = vpop.f32.mrb[0].mxu0
  %v1472 = vpop.f32.mrb[0].mxu0
  %v1473 = vadd.f32 0.0, %v1472
  %v1474 = vpop.f32.mrb[0].mxu0
  %1475 = vmatprep.mubr.bf16.mxu0 0
  %1476 = vmatmul.mubr.bf16.gmra.mrb[0].mxu0 %v985
  %v1477 = vpop.f32.mrb[0].mxu0
  %v1478 = vadd.f32 0.0, %v1477
  %v1479 = vpop.f32.mrb[0].mxu0
  %v1480 = vpop.f32.mrb[0].mxu0
  %v1481 = vadd.f32 0.0, %v1480
  %v1482 = vpop.f32.mrb[0].mxu0
  %1483 = vmatprep.mubr.bf16.mxu0 0
  %1484 = vmatmul.mubr.bf16.gmra.mrb[0].mxu0 %v988
  %v1485 = vpop.f32.mrb[0].mxu0
  %v1486 = vadd.f32 0.0, %v1485
  %v1487 = vpop.f32.mrb[0].mxu0
  %v1488 = vpop.f32.mrb[0].mxu0
  %v1489 = vadd.f32 0.0, %v1488
  %v1490 = vpop.f32.mrb[0].mxu0
  %1491 = vmatprep.mubr.bf16.mxu0 0
  %1492 = vmatmul.mubr.bf16.gmra.mrb[0].mxu0 %v991
  %v1493 = vpop.f32.mrb[0].mxu0
  %v1494 = vadd.f32 0.0, %v1493
  %v1495 = vpop.f32.mrb[0].mxu0
  %v1496 = vpop.f32.mrb[0].mxu0
  %v1497 = vadd.f32 0.0, %v1496
  %v1498 = vpop.f32.mrb[0].mxu0
  %1499 = vmatprep.mubr.bf16.mxu0 0
  %1500 = vmatmul.mubr.bf16.gmra.mrb[0].mxu0 %v994
  %v1501 = vpop.f32.mrb[0].mxu0
  %v1502 = vadd.f32 0.0, %v1501
  %v1503 = vpop.f32.mrb[0].mxu0
  %v1504 = vpop.f32.mrb[0].mxu0
  %v1505 = vadd.f32 0.0, %v1504
  %v1506 = vpop.f32.mrb[0].mxu0
  %1507 = vmatprep.mubr.bf16.mxu0 0
  %1508 = vmatmul.mubr.bf16.gmra.mrb[0].mxu0 %v997
  %v1509 = vpop.f32.mrb[0].mxu0
  %v1510 = vadd.f32 0.0, %v1509
  %v1511 = vpop.f32.mrb[0].mxu0
  %v1512 = vpop.f32.mrb[0].mxu0
  %v1513 = vadd.f32 0.0, %v1512
  %v1514 = vpop.f32.mrb[0].mxu0
  %1515 = vmatprep.mubr.bf16.mxu0 0
  %1516 = vmatmul.mubr.bf16.gmra.mrb[0].mxu0 %v1000
  %v1517 = vpop.f32.mrb[0].mxu0
  %v1518 = vadd.f32 0.0, %v1517
  %v1519 = vpop.f32.mrb[0].mxu0
  %v1520 = vpop.f32.mrb[0].mxu0
  %v1521 = vadd.f32 0.0, %v1520
  %v1522 = vpop.f32.mrb[0].mxu0
  %1523 = vmatprep.mubr.bf16.mxu0 0
  %1524 = vmatmul.mubr.bf16.gmra.mrb[0].mxu0 %v1003
  %v1525 = vpop.f32.mrb[0].mxu0
  %v1526 = vadd.f32 0.0, %v1525
  %v1527 = vpop.f32.mrb[0].mxu0
  %v1528 = vpop.f32.mrb[0].mxu0
  %v1529 = vadd.f32 0.0, %v1528
  %v1530 = vpop.f32.mrb[0].mxu0
  %1531 = vmatprep.mubr.bf16.mxu0 0
  %1532 = vmatmul.mubr.bf16.gmra.mrb[0].mxu0 %v1006
  %v1533 = vpop.f32.mrb[0].mxu0
  %v1534 = vadd.f32 0.0, %v1533
  %v1535 = vpop.f32.mrb[0].mxu0
  %v1536 = vpop.f32.mrb[0].mxu0
  %v1537 = vadd.f32 0.0, %v1536
  %v1538 = vpop.f32.mrb[0].mxu0
  %1539 = vmatprep.mubr.bf16.mxu0 0
  %1540 = vmatmul.mubr.bf16.gmra.mrb[0].mxu0 %v1009
  %v1541 = vpop.f32.mrb[0].mxu0
  %v1542 = vadd.f32 0.0, %v1541
  %v1543 = vpop.f32.mrb[0].mxu0
  %v1544 = vpop.f32.mrb[0].mxu0
  %v1545 = vadd.f32 0.0, %v1544
  %v1546 = vpop.f32.mrb[0].mxu0
  %1547 = vmatprep.mubr.bf16.mxu0 0
  %1548 = vmatmul.mubr.bf16.gmra.mrb[0].mxu0 %v1012
  %v1549 = vpop.f32.mrb[0].mxu0
  %v1550 = vadd.f32 0.0, %v1549
  %v1551 = vpop.f32.mrb[0].mxu0
  %v1552 = vpop.f32.mrb[0].mxu0
  %v1553 = vadd.f32 0.0, %v1552
  %v1554 = vpop.f32.mrb[0].mxu0
  %1555 = vmatprep.mubr.bf16.mxu0 0
  %1556 = vmatmul.mubr.bf16.gmra.mrb[0].mxu0 %v1015
  %v1557 = vpop.f32.mrb[0].mxu0
  %v1558 = vadd.f32 0.0, %v1557
  %v1559 = vpop.f32.mrb[0].mxu0
  %v1560 = vpop.f32.mrb[0].mxu0
  %v1561 = vadd.f32 0.0, %v1560
  %v1562 = vpop.f32.mrb[0].mxu0
  %1563 = vmatprep.mubr.bf16.mxu0 0
  %1564 = vmatmul.mubr.bf16.gmra.mrb[0].mxu0 %v1018
  %v1565 = vpop.f32.mrb[0].mxu0
  %v1566 = vadd.f32 0.0, %v1565
  %v1567 = vpop.f32.mrb[0].mxu0
  %v1568 = vpop.f32.mrb[0].mxu0
  %v1569 = vadd.f32 0.0, %v1568
  %v1570 = vpop.f32.mrb[0].mxu0
  %1571 = vmatprep.mubr.bf16.mxu0 0
  %1572 = vmatmul.mubr.bf16.gmra.mrb[0].mxu0 %v1021
  %v1573 = vpop.f32.mrb[0].mxu0
  %v1574 = vadd.f32 0.0, %v1573
  %v1575 = vpop.f32.mrb[0].mxu0
  %v1576 = vpop.f32.mrb[0].mxu0
  %v1577 = vadd.f32 0.0, %v1576
  %v1578 = vpop.f32.mrb[0].mxu0
  %1579 = vmatprep.mubr.bf16.mxu0 0
  %1580 = vmatmul.mubr.bf16.gmra.mrb[0].mxu0 %v1024
  %v1581 = vpop.f32.mrb[0].mxu0
  %v1582 = vadd.f32 0.0, %v1581
  %v1583 = vpop.f32.mrb[0].mxu0
  %v1584 = vpop.f32.mrb[0].mxu0
  %v1585 = vadd.f32 0.0, %v1584
  %v1586 = vpop.f32.mrb[0].mxu0
  %1587 = vmatprep.mubr.bf16.mxu0 0
  %1588 = vmatmul.mubr.bf16.gmra.mrb[0].mxu0 %v1027
  %v1589 = vpop.f32.mrb[0].mxu0
  %v1590 = vadd.f32 0.0, %v1589
  %v1591 = vpop.f32.mrb[0].mxu0
  %v1592 = vpop.f32.mrb[0].mxu0
  %v1593 = vadd.f32 0.0, %v1592
  %v1594 = vpop.f32.mrb[0].mxu0
  %1595 = vmatprep.mubr.bf16.mxu0 0
  %1596 = vmatmul.mubr.bf16.gmra.mrb[0].mxu0 %v1030
  %v1597 = vpop.f32.mrb[0].mxu0
  %v1598 = vadd.f32 0.0, %v1597
  %v1599 = vpop.f32.mrb[0].mxu0
  %v1600 = vpop.f32.mrb[0].mxu0
  %v1601 = vadd.f32 0.0, %v1600
  %v1602 = vpop.f32.mrb[0].mxu0
  %1603 = vmatprep.mubr.bf16.mxu0 0
  %1604 = vmatmul.mubr.bf16.gmra.mrb[0].mxu0 %v1033
  %v1605 = vpop.f32.mrb[0].mxu0
  %v1606 = vadd.f32 0.0, %v1605
  %v1607 = vpop.f32.mrb[0].mxu0
  %v1608 = vpop.f32.mrb[0].mxu0
  %v1609 = vadd.f32 0.0, %v1608
  %v1610 = vpop.f32.mrb[0].mxu0
  %1611 = vmatprep.mubr.bf16.mxu0 0
  %1612 = vmatmul.mubr.bf16.gmra.mrb[0].mxu0 %v1036
  %v1613 = vpop.f32.mrb[0].mxu0
  %v1614 = vadd.f32 0.0, %v1613
  %v1615 = vpop.f32.mrb[0].mxu0
  %v1616 = vpop.f32.mrb[0].mxu0
  %v1617 = vadd.f32 0.0, %v1616
  %v1618 = vpop.f32.mrb[0].mxu0
  %1619 = vmatprep.mubr.bf16.mxu0 0
  %1620 = vmatmul.mubr.bf16.gmra.mrb[0].mxu0 %v1039
  %v1621 = vpop.f32.mrb[0].mxu0
  %v1622 = vadd.f32 0.0, %v1621
  %v1623 = vpop.f32.mrb[0].mxu0
  %v1624 = vpop.f32.mrb[0].mxu0
  %v1625 = vadd.f32 0.0, %v1624
  %v1626 = vpop.f32.mrb[0].mxu0
  %1627 = vmatprep.mubr.bf16.mxu0 0
  %1628 = vmatmul.mubr.bf16.gmra.mrb[0].mxu0 %v1042
  %v1629 = vpop.f32.mrb[0].mxu0
  %v1630 = vadd.f32 0.0, %v1629
  %v1631 = vpop.f32.mrb[0].mxu0
  %v1632 = vpop.f32.mrb[0].mxu0
  %v1633 = vadd.f32 0.0, %v1632
  %v1634 = vpop.f32.mrb[0].mxu0
  %1635 = vmatprep.mubr.bf16.mxu0 0
  %1636 = vmatmul.mubr.bf16.gmra.mrb[0].mxu0 %v1045
  %v1637 = vpop.f32.mrb[0].mxu0
  %v1638 = vadd.f32 0.0, %v1637
  %v1639 = vpop.f32.mrb[0].mxu0
  %v1640 = vpop.f32.mrb[0].mxu0
  %v1641 = vadd.f32 0.0, %v1640
  %v1642 = vpop.f32.mrb[0].mxu0
  %1643 = vmatprep.mubr.bf16.mxu0 0
  %1644 = vmatmul.mubr.bf16.gmra.mrb[0].mxu0 %v1048
  %v1645 = vpop.f32.mrb[0].mxu0
  %v1646 = vadd.f32 0.0, %v1645
  %v1647 = vpop.f32.mrb[0].mxu0
  %v1648 = vpop.f32.mrb[0].mxu0
  %v1649 = vadd.f32 0.0, %v1648
  %v1650 = vpop.f32.mrb[0].mxu0
  %1651 = vmatprep.mubr.bf16.mxu0 0
  %1652 = vmatmul.mubr.bf16.gmra.mrb[0].mxu0 %v1051
  %v1653 = vpop.f32.mrb[0].mxu0
  %v1654 = vadd.f32 0.0, %v1653
  %v1655 = vpop.f32.mrb[0].mxu0
  %v1656 = vpop.f32.mrb[0].mxu0
  %v1657 = vadd.f32 0.0, %v1656
  %v1658 = vpop.f32.mrb[0].mxu0
  %1659 = vmatprep.mubr.bf16.mxu0 0
  %1660 = vmatmul.mubr.bf16.gmra.mrb[0].mxu0 %v1054
  %v1661 = vpop.f32.mrb[0].mxu0
  %v1662 = vadd.f32 0.0, %v1661
  %v1663 = vpop.f32.mrb[0].mxu0
  %v1664 = vpop.f32.mrb[0].mxu0
  %v1665 = vadd.f32 0.0, %v1664
  %v1666 = vpop.f32.mrb[0].mxu0
  %1667 = vmatprep.mubr.bf16.mxu0 0
  %1668 = vmatmul.mubr.bf16.gmra.mrb[0].mxu0 %v1057
  %v1669 = vpop.f32.mrb[0].mxu0
  %v1670 = vadd.f32 0.0, %v1669
  %v1671 = vpop.f32.mrb[0].mxu0
  %v1672 = vpop.f32.mrb[0].mxu0
  %v1673 = vadd.f32 0.0, %v1672
  %v1674 = vpop.f32.mrb[0].mxu0
  %1675 = vmatprep.mubr.bf16.mxu0 0
  %1676 = vmatmul.mubr.bf16.gmra.mrb[0].mxu0 %v1060
  %v1677 = vpop.f32.mrb[0].mxu0
  %v1678 = vadd.f32 0.0, %v1677
  %v1679 = vpop.f32.mrb[0].mxu0
  %v1680 = vpop.f32.mrb[0].mxu0
  %v1681 = vadd.f32 0.0, %v1680
  %v1682 = vpop.f32.mrb[0].mxu0
  %1683 = vmatprep.mubr.bf16.mxu0 0
  %1684 = vmatmul.mubr.bf16.gmra.mrb[0].mxu0 %v1063
  %v1685 = vpop.f32.mrb[0].mxu0
  %v1686 = vadd.f32 0.0, %v1685
  %v1687 = vpop.f32.mrb[0].mxu0
  %v1688 = vpop.f32.mrb[0].mxu0
  %v1689 = vadd.f32 0.0, %v1688
  %v1690 = vpop.f32.mrb[0].mxu0
  %1691 = vmatprep.mubr.bf16.mxu0 0
  %1692 = vmatmul.mubr.bf16.gmra.mrb[0].mxu0 %v1066
  %v1693 = vpop.f32.mrb[0].mxu0
  %v1694 = vadd.f32 0.0, %v1693
  %v1695 = vpop.f32.mrb[0].mxu0
  %v1696 = vpop.f32.mrb[0].mxu0
  %v1697 = vadd.f32 0.0, %v1696
  %v1698 = vpop.f32.mrb[0].mxu0
  %1699 = vmatprep.mubr.bf16.mxu0 0
  %1700 = vmatmul.mubr.bf16.gmra.mrb[0].mxu0 %v1069
  %v1701 = vpop.f32.mrb[0].mxu0
  %v1702 = vadd.f32 0.0, %v1701
  %v1703 = vpop.f32.mrb[0].mxu0
  %v1704 = vpop.f32.mrb[0].mxu0
  %v1705 = vadd.f32 0.0, %v1704
  %v1706 = vpop.f32.mrb[0].mxu0
  %1707 = vmatprep.mubr.bf16.mxu0 0
  %1708 = vmatmul.mubr.bf16.gmra.mrb[0].mxu0 %v1072
  %v1709 = vpop.f32.mrb[0].mxu0
  %v1710 = vadd.f32 0.0, %v1709
  %v1711 = vpop.f32.mrb[0].mxu0
  %v1712 = vpop.f32.mrb[0].mxu0
  %v1713 = vadd.f32 0.0, %v1712
  %v1714 = vpop.f32.mrb[0].mxu0
  %1715 = vmatprep.mubr.bf16.mxu0 0
  %1716 = vmatmul.mubr.bf16.gmra.mrb[0].mxu0 %v1075
  %v1717 = vpop.f32.mrb[0].mxu0
  %v1718 = vadd.f32 0.0, %v1717
  %v1719 = vpop.f32.mrb[0].mxu0
  %v1720 = vpop.f32.mrb[0].mxu0
  %v1721 = vadd.f32 0.0, %v1720
  %v1722 = vpop.f32.mrb[0].mxu0
  %1723 = vmatprep.mubr.bf16.mxu0 0
  %1724 = vmatmul.mubr.bf16.gmra.mrb[0].mxu0 %v1078
  %v1725 = vpop.f32.mrb[0].mxu0
  %v1726 = vadd.f32 0.0, %v1725
  %v1727 = vpop.f32.mrb[0].mxu0
  %v1728 = vpop.f32.mrb[0].mxu0
  %v1729 = vadd.f32 0.0, %v1728
  %v1730 = vpop.f32.mrb[0].mxu0
  %1731 = vmatprep.mubr.bf16.mxu0 0
  %1732 = vmatmul.mubr.bf16.gmra.mrb[0].mxu0 %v1081
  %v1733 = vpop.f32.mrb[0].mxu0
  %v1734 = vadd.f32 0.0, %v1733
  %v1735 = vpop.f32.mrb[0].mxu0
  %v1736 = vpop.f32.mrb[0].mxu0
  %v1737 = vadd.f32 0.0, %v1736
  %v1738 = vpop.f32.mrb[0].mxu0
  %1739 = vmatprep.mubr.bf16.mxu0 0
  %1740 = vmatmul.mubr.bf16.gmra.mrb[0].mxu0 %v1084
  %v1741 = vpop.f32.mrb[0].mxu0
  %v1742 = vadd.f32 0.0, %v1741
  %v1743 = vpop.f32.mrb[0].mxu0
  %v1744 = vpop.f32.mrb[0].mxu0
  %v1745 = vadd.f32 0.0, %v1744
  %v1746 = vpop.f32.mrb[0].mxu0
  %1747 = vmatprep.mubr.bf16.mxu0 0
  %1748 = vmatmul.mubr.bf16.gmra.mrb[0].mxu0 %v1087
  %v1749 = vpop.f32.mrb[0].mxu0
  %v1750 = vadd.f32 0.0, %v1749
  %v1751 = vpop.f32.mrb[0].mxu0
  %v1752 = vpop.f32.mrb[0].mxu0
  %v1753 = vadd.f32 0.0, %v1752
  %v1754 = vpop.f32.mrb[0].mxu0
  %1755 = vmatprep.mubr.bf16.mxu0 0
  %1756 = vmatmul.mubr.bf16.gmra.mrb[0].mxu0 %v1090
  %v1757 = vpop.f32.mrb[0].mxu0
  %v1758 = vadd.f32 0.0, %v1757
  %v1759 = vpop.f32.mrb[0].mxu0
  %v1760 = vpop.f32.mrb[0].mxu0
  %v1761 = vadd.f32 0.0, %v1760
  %v1762 = vpop.f32.mrb[0].mxu0
  %1763 = vmatprep.mubr.bf16.mxu0 0
  %1764 = vmatmul.mubr.bf16.gmra.mrb[0].mxu0 %v1093
  %v1765 = vpop.f32.mrb[0].mxu0
  %v1766 = vadd.f32 0.0, %v1765
  %v1767 = vpop.f32.mrb[0].mxu0
  %v1768 = vpop.f32.mrb[0].mxu0
  %v1769 = vadd.f32 0.0, %v1768
  %v1770 = vpop.f32.mrb[0].mxu0
  %1771 = vmatprep.mubr.bf16.mxu0 0
  %1772 = vmatmul.mubr.bf16.gmra.mrb[0].mxu0 %v1096
  %v1773 = vpop.f32.mrb[0].mxu0
  %v1774 = vadd.f32 0.0, %v1773
  %v1775 = vpop.f32.mrb[0].mxu0
  %v1776 = vpop.f32.mrb[0].mxu0
  %v1777 = vadd.f32 0.0, %v1776
  %v1778 = vpop.f32.mrb[0].mxu0
  %1779 = vmatprep.mubr.bf16.mxu0 0
  %1780 = vmatmul.mubr.bf16.gmra.mrb[0].mxu0 %v1099
  %v1781 = vpop.f32.mrb[0].mxu0
  %v1782 = vadd.f32 0.0, %v1781
  %v1783 = vpop.f32.mrb[0].mxu0
  %v1784 = vpop.f32.mrb[0].mxu0
  %v1785 = vadd.f32 0.0, %v1784
  %v1786 = vpop.f32.mrb[0].mxu0
  %1787 = vmatprep.mubr.bf16.mxu0 0
  %1788 = vmatmul.mubr.bf16.gmra.mrb[0].mxu0 %v1102
  %v1789 = vpop.f32.mrb[0].mxu0
  %v1790 = vadd.f32 0.0, %v1789
  %v1791 = vpop.f32.mrb[0].mxu0
  %v1792 = vpop.f32.mrb[0].mxu0
  %v1793 = vadd.f32 0.0, %v1792
  %v1794 = vpop.f32.mrb[0].mxu0
  %1795 = vmatprep.mubr.bf16.mxu0 0
  %1796 = vmatmul.mubr.bf16.gmra.mrb[0].mxu0 %v1105
  %v1797 = vpop.f32.mrb[0].mxu0
  %v1798 = vadd.f32 0.0, %v1797
  %v1799 = vpop.f32.mrb[0].mxu0
  %v1800 = vpop.f32.mrb[0].mxu0
  %v1801 = vadd.f32 0.0, %v1800
  %v1802 = vpop.f32.mrb[0].mxu0
  %1803 = vmatprep.mubr.bf16.mxu0 0
  %1804 = vmatmul.mubr.bf16.gmra.mrb[0].mxu0 %v1108
  %v1805 = vpop.f32.mrb[0].mxu0
  %v1806 = vadd.f32 0.0, %v1805
  %v1807 = vpop.f32.mrb[0].mxu0
  %v1808 = vpop.f32.mrb[0].mxu0
  %v1809 = vadd.f32 0.0, %v1808
  %v1810 = vpop.f32.mrb[0].mxu0
  %1811 = vmatprep.mubr.bf16.mxu0 0
  %1812 = vmatmul.mubr.bf16.gmra.mrb[0].mxu0 %v1111
  %v1813 = vpop.f32.mrb[0].mxu0
  %v1814 = vadd.f32 0.0, %v1813
  %v1815 = vpop.f32.mrb[0].mxu0
  %v1816 = vpop.f32.mrb[0].mxu0
  %v1817 = vadd.f32 0.0, %v1816
  %v1818 = vpop.f32.mrb[0].mxu0
  %1819 = vmatprep.mubr.bf16.mxu0 0
  %1820 = vmatmul.mubr.bf16.gmra.mrb[0].mxu0 %v1114
  %v1821 = vpop.f32.mrb[0].mxu0
  %v1822 = vadd.f32 0.0, %v1821
  %v1823 = vpop.f32.mrb[0].mxu0
  %v1824 = vpop.f32.mrb[0].mxu0
  %v1825 = vadd.f32 0.0, %v1824
  %v1826 = vpop.f32.mrb[0].mxu0
  %1827 = vmatprep.mubr.bf16.mxu0 0
  %1828 = vmatmul.mubr.bf16.gmra.mrb[0].mxu0 %v1117
  %v1829 = vpop.f32.mrb[0].mxu0
  %v1830 = vadd.f32 0.0, %v1829
  %v1831 = vpop.f32.mrb[0].mxu0
  %v1832 = vpop.f32.mrb[0].mxu0
  %v1833 = vadd.f32 0.0, %v1832
  %v1834 = vpop.f32.mrb[0].mxu0
  %1835 = vmatprep.mubr.bf16.mxu0 0
  %1836 = vmatmul.mubr.bf16.gmra.mrb[0].mxu0 %v1120
  %v1837 = vpop.f32.mrb[0].mxu0
  %v1838 = vadd.f32 0.0, %v1837
  %v1839 = vpop.f32.mrb[0].mxu0
  %v1840 = vpop.f32.mrb[0].mxu0
  %v1841 = vadd.f32 0.0, %v1840
  %v1842 = vpop.f32.mrb[0].mxu0
  %1843 = vmatprep.mubr.bf16.mxu0 0
  %1844 = vmatmul.mubr.bf16.gmra.mrb[0].mxu0 %v1123
  %v1845 = vpop.f32.mrb[0].mxu0
  %v1846 = vadd.f32 0.0, %v1845
  %v1847 = vpop.f32.mrb[0].mxu0
  %v1848 = vpop.f32.mrb[0].mxu0
  %v1849 = vadd.f32 0.0, %v1848
  %v1850 = vpop.f32.mrb[0].mxu0
  %1851 = vmatprep.mubr.bf16.mxu0 0
  %1852 = vmatmul.mubr.bf16.gmra.mrb[0].mxu0 %v1126
  %v1853 = vpop.f32.mrb[0].mxu0
  %v1854 = vadd.f32 0.0, %v1853
  %v1855 = vpop.f32.mrb[0].mxu0
  %v1856 = vpop.f32.mrb[0].mxu0
  %v1857 = vadd.f32 0.0, %v1856
  %v1858 = vpop.f32.mrb[0].mxu0
  %1859 = vmatprep.mubr.bf16.mxu0 0
  %1860 = vmatmul.mubr.bf16.gmra.mrb[0].mxu0 %v1129
  %v1861 = vpop.f32.mrb[0].mxu0
  %v1862 = vadd.f32 0.0, %v1861
  %v1863 = vpop.f32.mrb[0].mxu0
  %v1864 = vpop.f32.mrb[0].mxu0
  %v1865 = vadd.f32 0.0, %v1864
  %v1866 = vpop.f32.mrb[0].mxu0
  %1867 = vmatprep.mubr.bf16.mxu0 0
  %1868 = vmatmul.mubr.bf16.gmra.mrb[0].mxu0 %v1132
  %v1869 = vpop.f32.mrb[0].mxu0
  %v1870 = vadd.f32 0.0, %v1869
  %v1871 = vpop.f32.mrb[0].mxu0
  %v1872 = vpop.f32.mrb[0].mxu0
  %v1873 = vadd.f32 0.0, %v1872
  %v1874 = vpop.f32.mrb[0].mxu0
  %1875 = vmatprep.mubr.bf16.mxu0 0
  %1876 = vmatmul.mubr.bf16.gmra.mrb[0].mxu0 %v1135
  %v1877 = vpop.f32.mrb[0].mxu0
  %v1878 = vadd.f32 0.0, %v1877
  %v1879 = vpop.f32.mrb[0].mxu0
  %v1880 = vpop.f32.mrb[0].mxu0
  %v1881 = vadd.f32 0.0, %v1880
  %v1882 = vpop.f32.mrb[0].mxu0
  %1883 = vmatprep.mubr.bf16.mxu0 0
  %1884 = vmatmul.mubr.bf16.gmra.mrb[0].mxu0 %v1138
  %v1885 = vpop.f32.mrb[0].mxu0
  %v1886 = vadd.f32 0.0, %v1885
  %v1887 = vpop.f32.mrb[0].mxu0
  %v1888 = vpop.f32.mrb[0].mxu0
  %v1889 = vadd.f32 0.0, %v1888
  %v1890 = vpop.f32.mrb[0].mxu0
  %1891 = vmatprep.mubr.bf16.mxu0 0
  %1892 = vmatmul.mubr.bf16.gmra.mrb[0].mxu0 %v1141
  %v1893 = vpop.f32.mrb[0].mxu0
  %v1894 = vadd.f32 0.0, %v1893
  %v1895 = vpop.f32.mrb[0].mxu0
  %v1896 = vpop.f32.mrb[0].mxu0
  %v1897 = vadd.f32 0.0, %v1896
  %v1898 = vpop.f32.mrb[0].mxu0
  %1899 = vmatprep.mubr.bf16.mxu0 0
  %1900 = vmatmul.mubr.bf16.gmra.mrb[0].mxu0 %v1144
  %v1901 = vpop.f32.mrb[0].mxu0
  %v1902 = vadd.f32 0.0, %v1901
  %v1903 = vpop.f32.mrb[0].mxu0
  %v1904 = vpop.f32.mrb[0].mxu0
  %v1905 = vadd.f32 0.0, %v1904
  %v1906 = vpop.f32.mrb[0].mxu0
  %1907 = vmatprep.mubr.bf16.mxu0 0
  %1908 = vmatmul.mubr.bf16.gmra.mrb[0].mxu0 %v1147
  %v1909 = vpop.f32.mrb[0].mxu0
  %v1910 = vadd.f32 0.0, %v1909
  %v1911 = vpop.f32.mrb[0].mxu0
  %v1912 = vpop.f32.mrb[0].mxu0
  %v1913 = vadd.f32 0.0, %v1912
  %v1914 = vpop.f32.mrb[0].mxu0
  %1915 = vmatprep.mubr.bf16.mxu0 0
  %1916 = vmatmul.mubr.bf16.gmra.mrb[0].mxu0 %v1150
  %v1917 = vpop.f32.mrb[0].mxu0
  %v1918 = vadd.f32 0.0, %v1917
  %v1919 = vpop.f32.mrb[0].mxu0
  %v1920 = vpop.f32.mrb[0].mxu0
  %v1921 = vadd.f32 0.0, %v1920
  %v1922 = vpop.f32.mrb[0].mxu0
  %1923 = vmatprep.mubr.bf16.mxu0 0
  %1924 = vmatmul.mubr.bf16.gmra.mrb[0].mxu0 %v1153
  %v1925 = vpop.f32.mrb[0].mxu0
  %v1926 = vadd.f32 0.0, %v1925
  %v1927 = vpop.f32.mrb[0].mxu0
  %v1928 = vpop.f32.mrb[0].mxu0
  %v1929 = vadd.f32 0.0, %v1928
  %v1930 = vpop.f32.mrb[0].mxu0
  %1931 = vmatprep.mubr.bf16.mxu0 0
  %1932 = vmatmul.mubr.bf16.gmra.mrb[0].mxu0 %v1156
  %v1933 = vpop.f32.mrb[0].mxu0
  %v1934 = vadd.f32 0.0, %v1933
  %v1935 = vpop.f32.mrb[0].mxu0
  %v1936 = vpop.f32.mrb[0].mxu0
  %v1937 = vadd.f32 0.0, %v1936
  %v1938 = vpop.f32.mrb[0].mxu0
  %1939 = vmatprep.mubr.bf16.mxu0 0
  %1940 = vmatmul.mubr.bf16.gmra.mrb[0].mxu0 %v1159
  %v1941 = vpop.f32.mrb[0].mxu0
  %v1942 = vadd.f32 0.0, %v1941
  %v1943 = vpop.f32.mrb[0].mxu0
  %v1944 = vpop.f32.mrb[0].mxu0
  %v1945 = vadd.f32 0.0, %v1944
  %v1946 = vpop.f32.mrb[0].mxu0
  %1947 = vmatprep.mubr.bf16.mxu0 0
  %1948 = vmatmul.mubr.bf16.gmra.mrb[0].mxu0 %v1162
  %v1949 = vpop.f32.mrb[0].mxu0
  %v1950 = vadd.f32 0.0, %v1949
  %v1951 = vpop.f32.mrb[0].mxu0
  %v1952 = vpop.f32.mrb[0].mxu0
  %v1953 = vadd.f32 0.0, %v1952
  %v1954 = vpop.f32.mrb[0].mxu0
  %1955 = vmatprep.mubr.bf16.mxu0 0
  %1956 = vmatmul.mubr.bf16.gmra.mrb[0].mxu0 %v1165
  %v1957 = vpop.f32.mrb[0].mxu0
  %v1958 = vadd.f32 0.0, %v1957
  %v1959 = vpop.f32.mrb[0].mxu0
  %v1960 = vpop.f32.mrb[0].mxu0
  %v1961 = vadd.f32 0.0, %v1960
  %v1962 = vpop.f32.mrb[0].mxu0
  %1963 = vmatprep.mubr.bf16.mxu0 0
  %1964 = vmatmul.mubr.bf16.gmra.mrb[0].mxu0 %v1168
  %v1965 = vpop.f32.mrb[0].mxu0
  %v1966 = vadd.f32 0.0, %v1965
  %v1967 = vpop.f32.mrb[0].mxu0
  %v1968 = vpop.f32.mrb[0].mxu0
  %v1969 = vadd.f32 0.0, %v1968
  %v1970 = vpop.f32.mrb[0].mxu0
  %1971 = vmatprep.mubr.bf16.mxu0 0
  %1972 = vmatmul.mubr.bf16.gmra.mrb[0].mxu0 %v1171
  %v1973 = vpop.f32.mrb[0].mxu0
  %v1974 = vadd.f32 0.0, %v1973
  %v1975 = vpop.f32.mrb[0].mxu0
  %v1976 = vpop.f32.mrb[0].mxu0
  %v1977 = vadd.f32 0.0, %v1976
  %v1978 = vpop.f32.mrb[0].mxu0
  %1979 = vmatprep.mubr.bf16.mxu0 0
  %1980 = vmatmul.mubr.bf16.gmra.mrb[0].mxu0 %v1174
  %v1981 = vpop.f32.mrb[0].mxu0
  %v1982 = vadd.f32 0.0, %v1981
  %v1983 = vpop.f32.mrb[0].mxu0
  %v1984 = vpop.f32.mrb[0].mxu0
  %v1985 = vadd.f32 0.0, %v1984
  %v1986 = vpop.f32.mrb[0].mxu0
  %1987 = vmatprep.mubr.bf16.mxu0 0
  %1988 = vmatmul.mubr.bf16.gmra.mrb[0].mxu0 %v1177
  %v1989 = vpop.f32.mrb[0].mxu0
  %v1990 = vadd.f32 0.0, %v1989
  %v1991 = vpop.f32.mrb[0].mxu0
  %v1992 = vpop.f32.mrb[0].mxu0
  %v1993 = vadd.f32 0.0, %v1992
  %v1994 = vpop.f32.mrb[0].mxu0
  %1995 = vmatprep.mubr.bf16.mxu0 0
  %1996 = vmatmul.mubr.bf16.gmra.mrb[0].mxu0 %v1180
  %v1997 = vpop.f32.mrb[0].mxu0
  %v1998 = vadd.f32 0.0, %v1997
  %v1999 = vpop.f32.mrb[0].mxu0
  %v2000 = vpop.f32.mrb[0].mxu0
  %v2001 = vadd.f32 0.0, %v2000
  %v2002 = vpop.f32.mrb[0].mxu0
  %2003 = vmatprep.mubr.bf16.mxu0 0
  %2004 = vmatmul.mubr.bf16.gmra.mrb[0].mxu0 %v1183
  %v2005 = vpop.f32.mrb[0].mxu0
  %v2006 = vadd.f32 0.0, %v2005
  %v2007 = vpop.f32.mrb[0].mxu0
  %v2008 = vpop.f32.mrb[0].mxu0
  %v2009 = vadd.f32 0.0, %v2008
  %v2010 = vpop.f32.mrb[0].mxu0
  %2011 = vmatprep.mubr.bf16.mxu0 0
  %2012 = vmatmul.mubr.bf16.gmra.mrb[0].mxu0 %v1186
  %v2013 = vpop.f32.mrb[0].mxu0
  %v2014 = vadd.f32 0.0, %v2013
  %v2015 = vpop.f32.mrb[0].mxu0
  %v2016 = vpop.f32.mrb[0].mxu0
  %v2017 = vadd.f32 0.0, %v2016
  %v2018 = vpop.f32.mrb[0].mxu0
  %2019 = vmatprep.mubr.bf16.mxu0 0
  %2020 = vmatmul.mubr.bf16.gmra.mrb[0].mxu0 %v1189
  %v2021 = vpop.f32.mrb[0].mxu0
  %v2022 = vadd.f32 0.0, %v2021
  %v2023 = vpop.f32.mrb[0].mxu0
  %v2024 = vpop.f32.mrb[0].mxu0
  %v2025 = vadd.f32 0.0, %v2024
  %v2026 = vpop.f32.mrb[0].mxu0
  %2027 = vmatprep.mubr.bf16.mxu0 0
  %2028 = vmatmul.mubr.bf16.gmra.mrb[0].mxu0 %v1192
  %v2029 = vpop.f32.mrb[0].mxu0
  %v2030 = vadd.f32 0.0, %v2029
  %v2031 = vpop.f32.mrb[0].mxu0
  %v2032 = vpop.f32.mrb[0].mxu0
  %v2033 = vadd.f32 0.0, %v2032
  %v2034 = vpop.f32.mrb[0].mxu0
  %2035 = vmatprep.mubr.bf16.mxu0 0
  %2036 = vmatmul.mubr.bf16.gmra.mrb[0].mxu0 %v1195
  %v2037 = vpop.f32.mrb[0].mxu0
  %v2038 = vadd.f32 0.0, %v2037
  %v2039 = vpop.f32.mrb[0].mxu0
  %v2040 = vpop.f32.mrb[0].mxu0
  %v2041 = vadd.f32 0.0, %v2040
  %v2042 = vpop.f32.mrb[0].mxu0
  %2043 = vmatprep.mubr.bf16.mxu0 0
  %2044 = vmatmul.mubr.bf16.gmra.mrb[0].mxu0 %v1198
  %v2045 = vpop.f32.mrb[0].mxu0
  %v2046 = vadd.f32 0.0, %v2045
  %v2047 = vpop.f32.mrb[0].mxu0
  %v2048 = vpop.f32.mrb[0].mxu0
  %v2049 = vadd.f32 0.0, %v2048
  %v2050 = vpop.f32.mrb[0].mxu0
  %2051 = vmatprep.mubr.bf16.mxu0 0
  %2052 = vmatmul.mubr.bf16.gmra.mrb[0].mxu0 %v1201
  %v2053 = vpop.f32.mrb[0].mxu0
  %v2054 = vadd.f32 0.0, %v2053
  %v2055 = vpop.f32.mrb[0].mxu0
  %v2056 = vpop.f32.mrb[0].mxu0
  %v2057 = vadd.f32 0.0, %v2056
  %v2058 = vpop.f32.mrb[0].mxu0
  %2059 = vmatprep.mubr.bf16.mxu0 0
  %2060 = vmatmul.mubr.bf16.gmra.mrb[0].mxu0 %v1204
  %v2061 = vpop.f32.mrb[0].mxu0
  %v2062 = vadd.f32 0.0, %v2061
  %v2063 = vpop.f32.mrb[0].mxu0
  %v2064 = vpop.f32.mrb[0].mxu0
  %v2065 = vadd.f32 0.0, %v2064
  %v2066 = vpop.f32.mrb[0].mxu0
  %2067 = vmatprep.mubr.bf16.mxu0 0
  %2068 = vmatmul.mubr.bf16.gmra.mrb[0].mxu0 %v1207
  %v2069 = vpop.f32.mrb[0].mxu0
  %v2070 = vadd.f32 0.0, %v2069
  %v2071 = vpop.f32.mrb[0].mxu0
  %v2072 = vpop.f32.mrb[0].mxu0
  %v2073 = vadd.f32 0.0, %v2072
  %v2074 = vpop.f32.mrb[0].mxu0
  %2075 = vmatprep.mubr.bf16.mxu0 0
  %2076 = vmatmul.mubr.bf16.gmra.mrb[0].mxu0 %v1210
  %v2077 = vpop.f32.mrb[0].mxu0
  %v2078 = vadd.f32 0.0, %v2077
  %v2079 = vpop.f32.mrb[0].mxu0
  %v2080 = vpop.f32.mrb[0].mxu0
  %v2081 = vadd.f32 0.0, %v2080
  %v2082 = vpop.f32.mrb[0].mxu0
  %2083 = vmatprep.mubr.bf16.mxu0 0
  %2084 = vmatmul.mubr.bf16.gmra.mrb[0].mxu0 %v1213
  %v2085 = vpop.f32.mrb[0].mxu0
  %v2086 = vadd.f32 0.0, %v2085
  %v2087 = vpop.f32.mrb[0].mxu0
  %v2088 = vpop.f32.mrb[0].mxu0
  %v2089 = vadd.f32 0.0, %v2088
  %v2090 = vpop.f32.mrb[0].mxu0
  %2091 = vmatprep.mubr.bf16.mxu0 0
  %2092 = vmatmul.mubr.bf16.gmra.mrb[0].mxu0 %v1216
  %v2093 = vpop.f32.mrb[0].mxu0
  %v2094 = vadd.f32 0.0, %v2093
  %v2095 = vpop.f32.mrb[0].mxu0
  %v2096 = vpop.f32.mrb[0].mxu0
  %v2097 = vadd.f32 0.0, %v2096
  %v2098 = vpop.f32.mrb[0].mxu0
  %2099 = vmatprep.mubr.bf16.mxu0 0
  %2100 = vmatmul.mubr.bf16.gmra.mrb[0].mxu0 %v1219
  %v2101 = vpop.f32.mrb[0].mxu0
  %v2102 = vadd.f32 0.0, %v2101
  %v2103 = vpop.f32.mrb[0].mxu0
  %v2104 = vpop.f32.mrb[0].mxu0
  %v2105 = vadd.f32 0.0, %v2104
  %v2106 = vpop.f32.mrb[0].mxu0
  %2107 = vmatprep.mubr.bf16.mxu0 0
  %2108 = vmatmul.mubr.bf16.gmra.mrb[0].mxu0 %v1222
  %v2109 = vpop.f32.mrb[0].mxu0
  %v2110 = vadd.f32 0.0, %v2109
  %v2111 = vpop.f32.mrb[0].mxu0
  %v2112 = vpop.f32.mrb[0].mxu0
  %v2113 = vadd.f32 0.0, %v2112
  %v2114 = vpop.f32.mrb[0].mxu0
  %2115 = vmatprep.mubr.bf16.mxu0 0
  %2116 = vmatmul.mubr.bf16.gmra.mrb[0].mxu0 %v1225
  %v2117 = vpop.f32.mrb[0].mxu0
  %v2118 = vadd.f32 0.0, %v2117
  %v2119 = vpop.f32.mrb[0].mxu0
  %v2120 = vpop.f32.mrb[0].mxu0
  %v2121 = vadd.f32 0.0, %v2120
  %v2122 = vpop.f32.mrb[0].mxu0
  %2123 = vmatprep.mubr.bf16.mxu0 0
  %2124 = vmatmul.mubr.bf16.gmra.mrb[0].mxu0 %v1228
  %v2125 = vpop.f32.mrb[0].mxu0
  %v2126 = vadd.f32 0.0, %v2125
  %v2127 = vpop.f32.mrb[0].mxu0
  %v2128 = vpop.f32.mrb[0].mxu0
  %v2129 = vadd.f32 0.0, %v2128
  %v2130 = vpop.f32.mrb[0].mxu0
  %2131 = vmatprep.mubr.bf16.mxu0 0
  %2132 = vmatmul.mubr.bf16.gmra.mrb[0].mxu0 %v1231
  %v2133 = vpop.f32.mrb[0].mxu0
  %v2134 = vadd.f32 0.0, %v2133
  %v2135 = vpop.f32.mrb[0].mxu0
  %v2136 = vpop.f32.mrb[0].mxu0
  %v2137 = vadd.f32 0.0, %v2136
  %v2138 = vpop.f32.mrb[0].mxu0
  %2139 = vmatprep.mubr.bf16.mxu0 0
  %2140 = vmatmul.mubr.bf16.gmra.mrb[0].mxu0 %v1234
  %v2141 = vpop.f32.mrb[0].mxu0
  %v2142 = vadd.f32 0.0, %v2141
  %v2143 = vpop.f32.mrb[0].mxu0
  %v2144 = vpop.f32.mrb[0].mxu0
  %v2145 = vadd.f32 0.0, %v2144
  %v2146 = vpop.f32.mrb[0].mxu0
  %2147 = vmatprep.mubr.bf16.mxu0 0
  %2148 = vmatmul.mubr.bf16.gmra.mrb[0].mxu0 %v1237
  %v2149 = vpop.f32.mrb[0].mxu0
  %v2150 = vadd.f32 0.0, %v2149
  %v2151 = vpop.f32.mrb[0].mxu0
  %v2152 = vpop.f32.mrb[0].mxu0
  %v2153 = vadd.f32 0.0, %v2152
  %v2154 = vpop.f32.mrb[0].mxu0
  %2155 = vmatprep.mubr.bf16.mxu0 0
  %2156 = vmatmul.mubr.bf16.gmra.mrb[0].mxu0 %v1240
  %v2157 = vpop.f32.mrb[0].mxu0
  %v2158 = vadd.f32 0.0, %v2157
  %v2159 = vpop.f32.mrb[0].mxu0
  %v2160 = vpop.f32.mrb[0].mxu0
  %v2161 = vadd.f32 0.0, %v2160
  %v2162 = vpop.f32.mrb[0].mxu0
  %2163 = vmatprep.mubr.bf16.mxu0 0
  %2164 = vmatmul.mubr.bf16.gmra.mrb[0].mxu0 %v1243
  %v2165 = vpop.f32.mrb[0].mxu0
  %v2166 = vadd.f32 0.0, %v2165
  %v2167 = vpop.f32.mrb[0].mxu0
  %v2168 = vpop.f32.mrb[0].mxu0
  %v2169 = vadd.f32 0.0, %v2168
  %v2170 = vpop.f32.mrb[0].mxu0
  %2171 = vmatprep.mubr.bf16.mxu0 0
  %2172 = vmatmul.mubr.bf16.gmra.mrb[0].mxu0 %v1246
  %v2173 = vpop.f32.mrb[0].mxu0
  %v2174 = vadd.f32 0.0, %v2173
  %v2175 = vpop.f32.mrb[0].mxu0
  %v2176 = vpop.f32.mrb[0].mxu0
  %v2177 = vadd.f32 0.0, %v2176
  %v2178 = vpop.f32.mrb[0].mxu0
  %2179 = vmatprep.mubr.bf16.mxu0 0
  %2180 = vmatmul.mubr.bf16.gmra.mrb[0].mxu0 %v1249
  %v2181 = vpop.f32.mrb[0].mxu0
  %v2182 = vadd.f32 0.0, %v2181
  %v2183 = vpop.f32.mrb[0].mxu0
  %v2184 = vpop.f32.mrb[0].mxu0
  %v2185 = vadd.f32 0.0, %v2184
  %v2186 = vpop.f32.mrb[0].mxu0
  %2187 = vmatprep.mubr.bf16.mxu0 0
  %2188 = vmatmul.mubr.bf16.gmra.mrb[0].mxu0 %v1252
  %v2189 = vpop.f32.mrb[0].mxu0
  %v2190 = vadd.f32 0.0, %v2189
  %v2191 = vpop.f32.mrb[0].mxu0
  %v2192 = vpop.f32.mrb[0].mxu0
  %v2193 = vadd.f32 0.0, %v2192
  %v2194 = vpop.f32.mrb[0].mxu0
  %2195 = vmatprep.mubr.bf16.mxu0 0
  %2196 = vmatmul.mubr.bf16.gmra.mrb[0].mxu0 %v1255
  %v2197 = vpop.f32.mrb[0].mxu0
  %v2198 = vadd.f32 0.0, %v2197
  %v2199 = vpop.f32.mrb[0].mxu0
  %v2200 = vpop.f32.mrb[0].mxu0
  %v2201 = vadd.f32 0.0, %v2200
  %v2202 = vpop.f32.mrb[0].mxu0
  %2203 = vmatprep.mubr.bf16.mxu0 0
  %2204 = vmatmul.mubr.bf16.gmra.mrb[0].mxu0 %v1258
  %v2205 = vpop.f32.mrb[0].mxu0
  %v2206 = vadd.f32 0.0, %v2205
  %v2207 = vpop.f32.mrb[0].mxu0
  %v2208 = vpop.f32.mrb[0].mxu0
  %v2209 = vadd.f32 0.0, %v2208
  %v2210 = vpop.f32.mrb[0].mxu0
  %2211 = vmatprep.mubr.bf16.mxu0 0
  %2212 = vmatmul.mubr.bf16.gmra.mrb[0].mxu0 %v1261
  %v2213 = vpop.f32.mrb[0].mxu0
  %v2214 = vadd.f32 0.0, %v2213
  %v2215 = vpop.f32.mrb[0].mxu0
  %v2216 = vpop.f32.mrb[0].mxu0
  %v2217 = vadd.f32 0.0, %v2216
  %v2218 = vpop.f32.mrb[0].mxu0
  %2219 = vmatprep.mubr.bf16.mxu0 0
  %2220 = vmatmul.mubr.bf16.gmra.mrb[0].mxu0 %v1264
  %v2221 = vpop.f32.mrb[0].mxu0
  %v2222 = vadd.f32 0.0, %v2221
  %v2223 = vpop.f32.mrb[0].mxu0
  %v2224 = vpop.f32.mrb[0].mxu0
  %v2225 = vadd.f32 0.0, %v2224
  %v2226 = vpop.f32.mrb[0].mxu0
  %2227 = vmatprep.mubr.bf16.mxu0 0
  %2228 = vmatmul.mubr.bf16.gmra.mrb[0].mxu0 %v1267
  %v2229 = vpop.f32.mrb[0].mxu0
  %v2230 = vadd.f32 0.0, %v2229
  %v2231 = vpop.f32.mrb[0].mxu0
  %v2232 = vpop.f32.mrb[0].mxu0
  %v2233 = vadd.f32 0.0, %v2232
  %v2234 = vpop.f32.mrb[0].mxu0
  %2235 = vmatprep.mubr.bf16.mxu0 0
  %2236 = vmatmul.mubr.bf16.gmra.mrb[0].mxu0 %v1270
  %v2237 = vpop.f32.mrb[0].mxu0
  %v2238 = vadd.f32 0.0, %v2237
  %v2239 = vpop.f32.mrb[0].mxu0
  %v2240 = vpop.f32.mrb[0].mxu0
  %v2241 = vadd.f32 0.0, %v2240
  %v2242 = vpop.f32.mrb[0].mxu0
  %2243 = vmatprep.mubr.bf16.mxu0 0
  %2244 = vmatmul.mubr.bf16.gmra.mrb[0].mxu0 %v1273
  %v2245 = vpop.f32.mrb[0].mxu0
  %v2246 = vadd.f32 0.0, %v2245
  %v2247 = vpop.f32.mrb[0].mxu0
  %v2248 = vpop.f32.mrb[0].mxu0
  %v2249 = vadd.f32 0.0, %v2248
  %v2250 = vpop.f32.mrb[0].mxu0
  %2251 = vmatprep.mubr.bf16.mxu0 0
  %2252 = vmatmul.mubr.bf16.gmra.mrb[0].mxu0 %v1276
  %v2253 = vpop.f32.mrb[0].mxu0
  %v2254 = vadd.f32 0.0, %v2253
  %v2255 = vpop.f32.mrb[0].mxu0
  %v2256 = vpop.f32.mrb[0].mxu0
  %v2257 = vadd.f32 0.0, %v2256
  %v2258 = vpop.f32.mrb[0].mxu0
  %2259 = vmatprep.mubr.bf16.mxu0 0
  %2260 = vmatmul.mubr.bf16.gmra.mrb[0].mxu0 %v1279
  %v2261 = vpop.f32.mrb[0].mxu0
  %v2262 = vadd.f32 0.0, %v2261
  %v2263 = vpop.f32.mrb[0].mxu0
  %v2264 = vpop.f32.mrb[0].mxu0
  %v2265 = vadd.f32 0.0, %v2264
  %v2266 = vpop.f32.mrb[0].mxu0
  %2267 = vmatprep.mubr.bf16.mxu0 0
  %2268 = vmatmul.mubr.bf16.gmra.mrb[0].mxu0 %v1282
  %v2269 = vpop.f32.mrb[0].mxu0
  %v2270 = vadd.f32 0.0, %v2269
  %v2271 = vpop.f32.mrb[0].mxu0
  %v2272 = vpop.f32.mrb[0].mxu0
  %v2273 = vadd.f32 0.0, %v2272
  %v2274 = vpop.f32.mrb[0].mxu0
  %2275 = vmatprep.mubr.bf16.mxu0 0
  %2276 = vmatmul.mubr.bf16.gmra.mrb[0].mxu0 %v1285
  %v2277 = vpop.f32.mrb[0].mxu0
  %v2278 = vadd.f32 0.0, %v2277
  %v2279 = vpop.f32.mrb[0].mxu0
  %v2280 = vpop.f32.mrb[0].mxu0
  %v2281 = vadd.f32 0.0, %v2280
  %v2282 = vpop.f32.mrb[0].mxu0
  %2283 = vmatprep.mubr.bf16.mxu0 0
  %2284 = vmatmul.mubr.bf16.gmra.mrb[0].mxu0 %v1288
  %v2285 = vpop.f32.mrb[0].mxu0
  %v2286 = vadd.f32 0.0, %v2285
  %v2287 = vpop.f32.mrb[0].mxu0
  %v2288 = vpop.f32.mrb[0].mxu0
  %v2289 = vadd.f32 0.0, %v2288
  %v2290 = vpop.f32.mrb[0].mxu0
  %2291 = vmatprep.mubr.bf16.mxu0 0
  %2292 = vmatmul.mubr.bf16.gmra.mrb[0].mxu0 %v1291
  %v2293 = vpop.f32.mrb[0].mxu0
  %v2294 = vadd.f32 0.0, %v2293
  %v2295 = vpop.f32.mrb[0].mxu0
  %v2296 = vpop.f32.mrb[0].mxu0
  %v2297 = vadd.f32 0.0, %v2296
  %v2298 = vpop.f32.mrb[0].mxu0
  %2299 = vmatprep.mubr.bf16.mxu0 0
  %2300 = vmatmul.mubr.bf16.gmra.mrb[0].mxu0 %v1294
  %v2301 = vpop.f32.mrb[0].mxu0
  %v2302 = vadd.f32 0.0, %v2301
  %v2303 = vpop.f32.mrb[0].mxu0
  %v2304 = vpop.f32.mrb[0].mxu0
  %v2305 = vadd.f32 0.0, %v2304
  %v2306 = vpop.f32.mrb[0].mxu0
  %2307 = vmatprep.mubr.bf16.mxu0 0
  %2308 = vmatmul.mubr.bf16.gmra.mrb[0].mxu0 %v1297
  %v2309 = vpop.f32.mrb[0].mxu0
  %v2310 = vadd.f32 0.0, %v2309
  %v2311 = vpop.f32.mrb[0].mxu0
  %v2312 = vpop.f32.mrb[0].mxu0
  %v2313 = vadd.f32 0.0, %v2312
  %v2314 = vpop.f32.mrb[0].mxu0
  %2315 = vmatprep.mubr.bf16.mxu0 0
  %2316 = vmatmul.mubr.bf16.gmra.mrb[0].mxu0 %v1300
  %v2317 = vpop.f32.mrb[0].mxu0
  %v2318 = vadd.f32 0.0, %v2317
  %v2319 = vpop.f32.mrb[0].mxu0
  %v2320 = vpop.f32.mrb[0].mxu0
  %v2321 = vadd.f32 0.0, %v2320
  %v2322 = vpop.f32.mrb[0].mxu0
  %2323 = vmatprep.mubr.bf16.mxu0 0
  %2324 = vmatmul.mubr.bf16.gmra.mrb[0].mxu0 %v1303
  %v2325 = vpop.f32.mrb[0].mxu0
  %v2326 = vadd.f32 0.0, %v2325
  %v2327 = vpop.f32.mrb[0].mxu0
  %v2328 = vpop.f32.mrb[0].mxu0
  %v2329 = vadd.f32 0.0, %v2328
  %v2330 = vpop.f32.mrb[0].mxu0
  %2331 = vmatprep.mubr.bf16.mxu0 0
  %2332 = vmatmul.mubr.bf16.gmra.mrb[0].mxu0 %v1306
  %v2333 = vpop.f32.mrb[0].mxu0
  %v2334 = vadd.f32 0.0, %v2333
  %v2335 = vpop.f32.mrb[0].mxu0
  %v2336 = vpop.f32.mrb[0].mxu0
  %v2337 = vadd.f32 0.0, %v2336
  %v2338 = vpop.f32.mrb[0].mxu0
  %2339 = vmatprep.mubr.bf16.mxu0 0
  %2340 = vmatmul.mubr.bf16.gmra.mrb[0].mxu0 %v1309
  %v2341 = vpop.f32.mrb[0].mxu0
  %v2342 = vadd.f32 0.0, %v2341
  %v2343 = vpop.f32.mrb[0].mxu0
  %v2344 = vpop.f32.mrb[0].mxu0
  %v2345 = vadd.f32 0.0, %v2344
  %v2346 = vpop.f32.mrb[0].mxu0
  %2347 = vmatprep.mubr.bf16.mxu0 0
  %2348 = vmatmul.mubr.bf16.gmra.mrb[0].mxu0 %v1312
  %v2349 = vpop.f32.mrb[0].mxu0
  %v2350 = vadd.f32 0.0, %v2349
  %v2351 = vpop.f32.mrb[0].mxu0
  %v2352 = vpop.f32.mrb[0].mxu0
  %v2353 = vadd.f32 0.0, %v2352
  %v2354 = vpop.f32.mrb[0].mxu0
  %2355 = vmatprep.mubr.bf16.mxu0 0
  %2356 = vmatmul.mubr.bf16.gmra.mrb[0].mxu0 %v1315
  %v2357 = vpop.f32.mrb[0].mxu0
  %v2358 = vadd.f32 0.0, %v2357
  %v2359 = vpop.f32.mrb[0].mxu0
  %v2360 = vpop.f32.mrb[0].mxu0
  %v2361 = vadd.f32 0.0, %v2360
  %v2362 = vpop.f32.mrb[0].mxu0
  %2363 = vmatprep.mubr.bf16.mxu0 0
  %2364 = vmatmul.mubr.bf16.gmra.mrb[0].mxu0 %v1318
  %v2365 = vpop.f32.mrb[0].mxu0
  %v2366 = vadd.f32 0.0, %v2365
  %v2367 = vpop.f32.mrb[0].mxu0
  %v2368 = vpop.f32.mrb[0].mxu0
  %v2369 = vadd.f32 0.0, %v2368
  %v2370 = vpop.f32.mrb[0].mxu0
  %2371 = vmatprep.mubr.bf16.mxu0 0
  %2372 = vmatmul.mubr.bf16.gmra.mrb[0].mxu0 %v1321
  %v2373 = vpop.f32.mrb[0].mxu0
  %v2374 = vadd.f32 0.0, %v2373
  %v2375 = vpop.f32.mrb[0].mxu0
  %v2376 = vpop.f32.mrb[0].mxu0
  %v2377 = vadd.f32 0.0, %v2376
  %v2378 = vpop.f32.mrb[0].mxu0
  %2379 = vdwg.mxu0
  %vm2380 = vcmask 261120
  %v2381 = vsel %vm2380, %v1358, 0.0
  %v2382 = vsel %vm2380, %v1361, 0.0
  %v2383 = vadd.f32 %v2381, %v2382
  %v2384 = vsel %vm2380, %v1366, 0.0
  %v2385 = vadd.f32 %v2383, %v2384
  %v2386 = vsel %vm2380, %v1369, 0.0
  %v2387 = vadd.f32 %v2385, %v2386
  %v2388 = vsel %vm2380, %v1374, 0.0
  %v2389 = vadd.f32 %v2387, %v2388
  %v2390 = vsel %vm2380, %v1377, 0.0
  %v2391 = vadd.f32 %v2389, %v2390
  %v2392 = vsel %vm2380, %v1382, 0.0
  %v2393 = vadd.f32 %v2391, %v2392
  %v2394 = vsel %vm2380, %v1385, 0.0
  %v2395 = vadd.f32 %v2393, %v2394
  %v2396 = vsel %vm2380, %v1390, 0.0
  %v2397 = vadd.f32 %v2395, %v2396
  %v2398 = vsel %vm2380, %v1393, 0.0
  %v2399 = vadd.f32 %v2397, %v2398
  %v2400 = vsel %vm2380, %v1398, 0.0
  %v2401 = vadd.f32 %v2399, %v2400
  %v2402 = vsel %vm2380, %v1401, 0.0
  %v2403 = vadd.f32 %v2401, %v2402
  %v2404 = vsel %vm2380, %v1406, 0.0
  %v2405 = vadd.f32 %v2403, %v2404
  %v2406 = vsel %vm2380, %v1409, 0.0
  %v2407 = vadd.f32 %v2405, %v2406
  %v2408 = vsel %vm2380, %v1414, 0.0
  %v2409 = vadd.f32 %v2407, %v2408
  %v2410 = vsel %vm2380, %v1417, 0.0
  %v2411 = vadd.f32 %v2409, %v2410
  %v2412 = vsel %vm2380, %v1422, 0.0
  %v2413 = vadd.f32 %v2411, %v2412
  %v2414 = vsel %vm2380, %v1425, 0.0
  %v2415 = vadd.f32 %v2413, %v2414
  %v2416 = vsel %vm2380, %v1430, 0.0
  %v2417 = vadd.f32 %v2415, %v2416
  %v2418 = vsel %vm2380, %v1433, 0.0
  %v2419 = vadd.f32 %v2417, %v2418
  %v2420 = vsel %vm2380, %v1438, 0.0
  %v2421 = vadd.f32 %v2419, %v2420
  %v2422 = vsel %vm2380, %v1441, 0.0
  %v2423 = vadd.f32 %v2421, %v2422
  %v2424 = vsel %vm2380, %v1446, 0.0
  %v2425 = vadd.f32 %v2423, %v2424
  %v2426 = vsel %vm2380, %v1449, 0.0
  %v2427 = vadd.f32 %v2425, %v2426
  %v2428 = vsel %vm2380, %v1454, 0.0
  %v2429 = vadd.f32 %v2427, %v2428
  %v2430 = vsel %vm2380, %v1457, 0.0
  %v2431 = vadd.f32 %v2429, %v2430
  %v2432 = vsel %vm2380, %v1462, 0.0
  %v2433 = vadd.f32 %v2431, %v2432
  %v2434 = vsel %vm2380, %v1465, 0.0
  %v2435 = vadd.f32 %v2433, %v2434
  %v2436 = vsel %vm2380, %v1470, 0.0
  %v2437 = vadd.f32 %v2435, %v2436
  %v2438 = vsel %vm2380, %v1473, 0.0
  %v2439 = vadd.f32 %v2437, %v2438
  %v2440 = vsel %vm2380, %v1478, 0.0
  %v2441 = vadd.f32 %v2439, %v2440
  %v2442 = vsel %vm2380, %v1481, 0.0
  %v2443 = vadd.f32 %v2441, %v2442
  %v2444 = vsel %vm2380, %v1486, 0.0
  %v2445 = vadd.f32 %v2443, %v2444
  %v2446 = vsel %vm2380, %v1489, 0.0
  %v2447 = vadd.f32 %v2445, %v2446
  %v2448 = vsel %vm2380, %v1494, 0.0
  %v2449 = vadd.f32 %v2447, %v2448
  %v2450 = vsel %vm2380, %v1497, 0.0
  %v2451 = vadd.f32 %v2449, %v2450
  %v2452 = vsel %vm2380, %v1502, 0.0
  %v2453 = vadd.f32 %v2451, %v2452
  %v2454 = vsel %vm2380, %v1505, 0.0
  %v2455 = vadd.f32 %v2453, %v2454
  %v2456 = vsel %vm2380, %v1510, 0.0
  %v2457 = vadd.f32 %v2455, %v2456
  %v2458 = vsel %vm2380, %v1513, 0.0
  %v2459 = vadd.f32 %v2457, %v2458
  %v2460 = vsel %vm2380, %v1518, 0.0
  %v2461 = vadd.f32 %v2459, %v2460
  %v2462 = vsel %vm2380, %v1521, 0.0
  %v2463 = vadd.f32 %v2461, %v2462
  %v2464 = vsel %vm2380, %v1526, 0.0
  %v2465 = vadd.f32 %v2463, %v2464
  %v2466 = vsel %vm2380, %v1529, 0.0
  %v2467 = vadd.f32 %v2465, %v2466
  %v2468 = vsel %vm2380, %v1534, 0.0
  %v2469 = vadd.f32 %v2467, %v2468
  %v2470 = vsel %vm2380, %v1537, 0.0
  %v2471 = vadd.f32 %v2469, %v2470
  %v2472 = vsel %vm2380, %v1542, 0.0
  %v2473 = vadd.f32 %v2471, %v2472
  %v2474 = vsel %vm2380, %v1545, 0.0
  %v2475 = vadd.f32 %v2473, %v2474
  %v2476 = vsel %vm2380, %v1550, 0.0
  %v2477 = vadd.f32 %v2475, %v2476
  %v2478 = vsel %vm2380, %v1553, 0.0
  %v2479 = vadd.f32 %v2477, %v2478
  %v2480 = vsel %vm2380, %v1558, 0.0
  %v2481 = vadd.f32 %v2479, %v2480
  %v2482 = vsel %vm2380, %v1561, 0.0
  %v2483 = vadd.f32 %v2481, %v2482
  %v2484 = vsel %vm2380, %v1566, 0.0
  %v2485 = vadd.f32 %v2483, %v2484
  %v2486 = vsel %vm2380, %v1569, 0.0
  %v2487 = vadd.f32 %v2485, %v2486
  %v2488 = vsel %vm2380, %v1574, 0.0
  %v2489 = vadd.f32 %v2487, %v2488
  %v2490 = vsel %vm2380, %v1577, 0.0
  %v2491 = vadd.f32 %v2489, %v2490
  %v2492 = vsel %vm2380, %v1582, 0.0
  %v2493 = vadd.f32 %v2491, %v2492
  %v2494 = vsel %vm2380, %v1585, 0.0
  %v2495 = vadd.f32 %v2493, %v2494
  %v2496 = vsel %vm2380, %v1590, 0.0
  %v2497 = vadd.f32 %v2495, %v2496
  %v2498 = vsel %vm2380, %v1593, 0.0
  %v2499 = vadd.f32 %v2497, %v2498
  %v2500 = vsel %vm2380, %v1598, 0.0
  %v2501 = vadd.f32 %v2499, %v2500
  %v2502 = vsel %vm2380, %v1601, 0.0
  %v2503 = vadd.f32 %v2501, %v2502
  %v2504 = vsel %vm2380, %v1606, 0.0
  %v2505 = vadd.f32 %v2503, %v2504
  %v2506 = vsel %vm2380, %v1609, 0.0
  %v2507 = vadd.f32 %v2505, %v2506
  %v2508 = vsel %vm2380, %v1614, 0.0
  %v2509 = vadd.f32 %v2507, %v2508
  %v2510 = vsel %vm2380, %v1617, 0.0
  %v2511 = vadd.f32 %v2509, %v2510
  %v2512 = vsel %vm2380, %v1622, 0.0
  %v2513 = vadd.f32 %v2511, %v2512
  %v2514 = vsel %vm2380, %v1625, 0.0
  %v2515 = vadd.f32 %v2513, %v2514
  %v2516 = vsel %vm2380, %v1630, 0.0
  %v2517 = vadd.f32 %v2515, %v2516
  %v2518 = vsel %vm2380, %v1633, 0.0
  %v2519 = vadd.f32 %v2517, %v2518
  %v2520 = vsel %vm2380, %v1638, 0.0
  %v2521 = vadd.f32 %v2519, %v2520
  %v2522 = vsel %vm2380, %v1641, 0.0
  %v2523 = vadd.f32 %v2521, %v2522
  %v2524 = vsel %vm2380, %v1646, 0.0
  %v2525 = vadd.f32 %v2523, %v2524
  %v2526 = vsel %vm2380, %v1649, 0.0
  %v2527 = vadd.f32 %v2525, %v2526
  %v2528 = vsel %vm2380, %v1654, 0.0
  %v2529 = vadd.f32 %v2527, %v2528
  %v2530 = vsel %vm2380, %v1657, 0.0
  %v2531 = vadd.f32 %v2529, %v2530
  %v2532 = vsel %vm2380, %v1662, 0.0
  %v2533 = vadd.f32 %v2531, %v2532
  %v2534 = vsel %vm2380, %v1665, 0.0
  %v2535 = vadd.f32 %v2533, %v2534
  %v2536 = vsel %vm2380, %v1670, 0.0
  %v2537 = vadd.f32 %v2535, %v2536
  %v2538 = vsel %vm2380, %v1673, 0.0
  %v2539 = vadd.f32 %v2537, %v2538
  %v2540 = vsel %vm2380, %v1678, 0.0
  %v2541 = vadd.f32 %v2539, %v2540
  %v2542 = vsel %vm2380, %v1681, 0.0
  %v2543 = vadd.f32 %v2541, %v2542
  %v2544 = vsel %vm2380, %v1686, 0.0
  %v2545 = vadd.f32 %v2543, %v2544
  %v2546 = vsel %vm2380, %v1689, 0.0
  %v2547 = vadd.f32 %v2545, %v2546
  %v2548 = vsel %vm2380, %v1694, 0.0
  %v2549 = vadd.f32 %v2547, %v2548
  %v2550 = vsel %vm2380, %v1697, 0.0
  %v2551 = vadd.f32 %v2549, %v2550
  %v2552 = vsel %vm2380, %v1702, 0.0
  %v2553 = vadd.f32 %v2551, %v2552
  %v2554 = vsel %vm2380, %v1705, 0.0
  %v2555 = vadd.f32 %v2553, %v2554
  %v2556 = vsel %vm2380, %v1710, 0.0
  %v2557 = vadd.f32 %v2555, %v2556
  %v2558 = vsel %vm2380, %v1713, 0.0
  %v2559 = vadd.f32 %v2557, %v2558
  %v2560 = vsel %vm2380, %v1718, 0.0
  %v2561 = vadd.f32 %v2559, %v2560
  %v2562 = vsel %vm2380, %v1721, 0.0
  %v2563 = vadd.f32 %v2561, %v2562
  %v2564 = vsel %vm2380, %v1726, 0.0
  %v2565 = vadd.f32 %v2563, %v2564
  %v2566 = vsel %vm2380, %v1729, 0.0
  %v2567 = vadd.f32 %v2565, %v2566
  %v2568 = vsel %vm2380, %v1734, 0.0
  %v2569 = vadd.f32 %v2567, %v2568
  %v2570 = vsel %vm2380, %v1737, 0.0
  %v2571 = vadd.f32 %v2569, %v2570
  %v2572 = vsel %vm2380, %v1742, 0.0
  %v2573 = vadd.f32 %v2571, %v2572
  %v2574 = vsel %vm2380, %v1745, 0.0
  %v2575 = vadd.f32 %v2573, %v2574
  %v2576 = vsel %vm2380, %v1750, 0.0
  %v2577 = vadd.f32 %v2575, %v2576
  %v2578 = vsel %vm2380, %v1753, 0.0
  %v2579 = vadd.f32 %v2577, %v2578
  %v2580 = vsel %vm2380, %v1758, 0.0
  %v2581 = vadd.f32 %v2579, %v2580
  %v2582 = vsel %vm2380, %v1761, 0.0
  %v2583 = vadd.f32 %v2581, %v2582
  %v2584 = vsel %vm2380, %v1766, 0.0
  %v2585 = vadd.f32 %v2583, %v2584
  %v2586 = vsel %vm2380, %v1769, 0.0
  %v2587 = vadd.f32 %v2585, %v2586
  %v2588 = vsel %vm2380, %v1774, 0.0
  %v2589 = vadd.f32 %v2587, %v2588
  %v2590 = vsel %vm2380, %v1777, 0.0
  %v2591 = vadd.f32 %v2589, %v2590
  %v2592 = vsel %vm2380, %v1782, 0.0
  %v2593 = vadd.f32 %v2591, %v2592
  %v2594 = vsel %vm2380, %v1785, 0.0
  %v2595 = vadd.f32 %v2593, %v2594
  %v2596 = vsel %vm2380, %v1790, 0.0
  %v2597 = vadd.f32 %v2595, %v2596
  %v2598 = vsel %vm2380, %v1793, 0.0
  %v2599 = vadd.f32 %v2597, %v2598
  %v2600 = vsel %vm2380, %v1798, 0.0
  %v2601 = vadd.f32 %v2599, %v2600
  %v2602 = vsel %vm2380, %v1801, 0.0
  %v2603 = vadd.f32 %v2601, %v2602
  %v2604 = vsel %vm2380, %v1806, 0.0
  %v2605 = vadd.f32 %v2603, %v2604
  %v2606 = vsel %vm2380, %v1809, 0.0
  %v2607 = vadd.f32 %v2605, %v2606
  %v2608 = vsel %vm2380, %v1814, 0.0
  %v2609 = vadd.f32 %v2607, %v2608
  %v2610 = vsel %vm2380, %v1817, 0.0
  %v2611 = vadd.f32 %v2609, %v2610
  %v2612 = vsel %vm2380, %v1822, 0.0
  %v2613 = vadd.f32 %v2611, %v2612
  %v2614 = vsel %vm2380, %v1825, 0.0
  %v2615 = vadd.f32 %v2613, %v2614
  %v2616 = vsel %vm2380, %v1830, 0.0
  %v2617 = vadd.f32 %v2615, %v2616
  %v2618 = vsel %vm2380, %v1833, 0.0
  %v2619 = vadd.f32 %v2617, %v2618
  %v2620 = vsel %vm2380, %v1838, 0.0
  %v2621 = vadd.f32 %v2619, %v2620
  %v2622 = vsel %vm2380, %v1841, 0.0
  %v2623 = vadd.f32 %v2621, %v2622
  %v2624 = vsel %vm2380, %v1846, 0.0
  %v2625 = vadd.f32 %v2623, %v2624
  %v2626 = vsel %vm2380, %v1849, 0.0
  %v2627 = vadd.f32 %v2625, %v2626
  %v2628 = vsel %vm2380, %v1854, 0.0
  %v2629 = vadd.f32 %v2627, %v2628
  %v2630 = vsel %vm2380, %v1857, 0.0
  %v2631 = vadd.f32 %v2629, %v2630
  %v2632 = vsel %vm2380, %v1862, 0.0
  %v2633 = vadd.f32 %v2631, %v2632
  %v2634 = vsel %vm2380, %v1865, 0.0
  %v2635 = vadd.f32 %v2633, %v2634
  %v2636 = vsel %vm2380, %v1870, 0.0
  %v2637 = vadd.f32 %v2635, %v2636
  %v2638 = vsel %vm2380, %v1873, 0.0
  %v2639 = vadd.f32 %v2637, %v2638
  %v2640 = vsel %vm2380, %v1878, 0.0
  %v2641 = vadd.f32 %v2639, %v2640
  %v2642 = vsel %vm2380, %v1881, 0.0
  %v2643 = vadd.f32 %v2641, %v2642
  %v2644 = vsel %vm2380, %v1886, 0.0
  %v2645 = vadd.f32 %v2643, %v2644
  %v2646 = vsel %vm2380, %v1889, 0.0
  %v2647 = vadd.f32 %v2645, %v2646
  %v2648 = vsel %vm2380, %v1894, 0.0
  %v2649 = vadd.f32 %v2647, %v2648
  %v2650 = vsel %vm2380, %v1897, 0.0
  %v2651 = vadd.f32 %v2649, %v2650
  %v2652 = vsel %vm2380, %v1902, 0.0
  %v2653 = vadd.f32 %v2651, %v2652
  %v2654 = vsel %vm2380, %v1905, 0.0
  %v2655 = vadd.f32 %v2653, %v2654
  %v2656 = vsel %vm2380, %v1910, 0.0
  %v2657 = vadd.f32 %v2655, %v2656
  %v2658 = vsel %vm2380, %v1913, 0.0
  %v2659 = vadd.f32 %v2657, %v2658
  %v2660 = vsel %vm2380, %v1918, 0.0
  %v2661 = vadd.f32 %v2659, %v2660
  %v2662 = vsel %vm2380, %v1921, 0.0
  %v2663 = vadd.f32 %v2661, %v2662
  %v2664 = vsel %vm2380, %v1926, 0.0
  %v2665 = vadd.f32 %v2663, %v2664
  %v2666 = vsel %vm2380, %v1929, 0.0
  %v2667 = vadd.f32 %v2665, %v2666
  %v2668 = vsel %vm2380, %v1934, 0.0
  %v2669 = vadd.f32 %v2667, %v2668
  %v2670 = vsel %vm2380, %v1937, 0.0
  %v2671 = vadd.f32 %v2669, %v2670
  %v2672 = vsel %vm2380, %v1942, 0.0
  %v2673 = vadd.f32 %v2671, %v2672
  %v2674 = vsel %vm2380, %v1945, 0.0
  %v2675 = vadd.f32 %v2673, %v2674
  %v2676 = vsel %vm2380, %v1950, 0.0
  %v2677 = vadd.f32 %v2675, %v2676
  %v2678 = vsel %vm2380, %v1953, 0.0
  %v2679 = vadd.f32 %v2677, %v2678
  %v2680 = vsel %vm2380, %v1958, 0.0
  %v2681 = vadd.f32 %v2679, %v2680
  %v2682 = vsel %vm2380, %v1961, 0.0
  %v2683 = vadd.f32 %v2681, %v2682
  %v2684 = vsel %vm2380, %v1966, 0.0
  %v2685 = vadd.f32 %v2683, %v2684
  %v2686 = vsel %vm2380, %v1969, 0.0
  %v2687 = vadd.f32 %v2685, %v2686
  %v2688 = vsel %vm2380, %v1974, 0.0
  %v2689 = vadd.f32 %v2687, %v2688
  %v2690 = vsel %vm2380, %v1977, 0.0
  %v2691 = vadd.f32 %v2689, %v2690
  %v2692 = vsel %vm2380, %v1982, 0.0
  %v2693 = vadd.f32 %v2691, %v2692
  %v2694 = vsel %vm2380, %v1985, 0.0
  %v2695 = vadd.f32 %v2693, %v2694
  %v2696 = vsel %vm2380, %v1990, 0.0
  %v2697 = vadd.f32 %v2695, %v2696
  %v2698 = vsel %vm2380, %v1993, 0.0
  %v2699 = vadd.f32 %v2697, %v2698
  %v2700 = vsel %vm2380, %v1998, 0.0
  %v2701 = vadd.f32 %v2699, %v2700
  %v2702 = vsel %vm2380, %v2001, 0.0
  %v2703 = vadd.f32 %v2701, %v2702
  %v2704 = vsel %vm2380, %v2006, 0.0
  %v2705 = vadd.f32 %v2703, %v2704
  %v2706 = vsel %vm2380, %v2009, 0.0
  %v2707 = vadd.f32 %v2705, %v2706
  %v2708 = vsel %vm2380, %v2014, 0.0
  %v2709 = vadd.f32 %v2707, %v2708
  %v2710 = vsel %vm2380, %v2017, 0.0
  %v2711 = vadd.f32 %v2709, %v2710
  %v2712 = vsel %vm2380, %v2022, 0.0
  %v2713 = vadd.f32 %v2711, %v2712
  %v2714 = vsel %vm2380, %v2025, 0.0
  %v2715 = vadd.f32 %v2713, %v2714
  %v2716 = vsel %vm2380, %v2030, 0.0
  %v2717 = vadd.f32 %v2715, %v2716
  %v2718 = vsel %vm2380, %v2033, 0.0
  %v2719 = vadd.f32 %v2717, %v2718
  %v2720 = vsel %vm2380, %v2038, 0.0
  %v2721 = vadd.f32 %v2719, %v2720
  %v2722 = vsel %vm2380, %v2041, 0.0
  %v2723 = vadd.f32 %v2721, %v2722
  %v2724 = vsel %vm2380, %v2046, 0.0
  %v2725 = vadd.f32 %v2723, %v2724
  %v2726 = vsel %vm2380, %v2049, 0.0
  %v2727 = vadd.f32 %v2725, %v2726
  %v2728 = vsel %vm2380, %v2054, 0.0
  %v2729 = vadd.f32 %v2727, %v2728
  %v2730 = vsel %vm2380, %v2057, 0.0
  %v2731 = vadd.f32 %v2729, %v2730
  %v2732 = vsel %vm2380, %v2062, 0.0
  %v2733 = vadd.f32 %v2731, %v2732
  %v2734 = vsel %vm2380, %v2065, 0.0
  %v2735 = vadd.f32 %v2733, %v2734
  %v2736 = vsel %vm2380, %v2070, 0.0
  %v2737 = vadd.f32 %v2735, %v2736
  %v2738 = vsel %vm2380, %v2073, 0.0
  %v2739 = vadd.f32 %v2737, %v2738
  %v2740 = vsel %vm2380, %v2078, 0.0
  %v2741 = vadd.f32 %v2739, %v2740
  %v2742 = vsel %vm2380, %v2081, 0.0
  %v2743 = vadd.f32 %v2741, %v2742
  %v2744 = vsel %vm2380, %v2086, 0.0
  %v2745 = vadd.f32 %v2743, %v2744
  %v2746 = vsel %vm2380, %v2089, 0.0
  %v2747 = vadd.f32 %v2745, %v2746
  %v2748 = vsel %vm2380, %v2094, 0.0
  %v2749 = vadd.f32 %v2747, %v2748
  %v2750 = vsel %vm2380, %v2097, 0.0
  %v2751 = vadd.f32 %v2749, %v2750
  %v2752 = vsel %vm2380, %v2102, 0.0
  %v2753 = vadd.f32 %v2751, %v2752
  %v2754 = vsel %vm2380, %v2105, 0.0
  %v2755 = vadd.f32 %v2753, %v2754
  %v2756 = vsel %vm2380, %v2110, 0.0
  %v2757 = vadd.f32 %v2755, %v2756
  %v2758 = vsel %vm2380, %v2113, 0.0
  %v2759 = vadd.f32 %v2757, %v2758
  %v2760 = vsel %vm2380, %v2118, 0.0
  %v2761 = vadd.f32 %v2759, %v2760
  %v2762 = vsel %vm2380, %v2121, 0.0
  %v2763 = vadd.f32 %v2761, %v2762
  %v2764 = vsel %vm2380, %v2126, 0.0
  %v2765 = vadd.f32 %v2763, %v2764
  %v2766 = vsel %vm2380, %v2129, 0.0
  %v2767 = vadd.f32 %v2765, %v2766
  %v2768 = vsel %vm2380, %v2134, 0.0
  %v2769 = vadd.f32 %v2767, %v2768
  %v2770 = vsel %vm2380, %v2137, 0.0
  %v2771 = vadd.f32 %v2769, %v2770
  %v2772 = vsel %vm2380, %v2142, 0.0
  %v2773 = vadd.f32 %v2771, %v2772
  %v2774 = vsel %vm2380, %v2145, 0.0
  %v2775 = vadd.f32 %v2773, %v2774
  %v2776 = vsel %vm2380, %v2150, 0.0
  %v2777 = vadd.f32 %v2775, %v2776
  %v2778 = vsel %vm2380, %v2153, 0.0
  %v2779 = vadd.f32 %v2777, %v2778
  %v2780 = vsel %vm2380, %v2158, 0.0
  %v2781 = vadd.f32 %v2779, %v2780
  %v2782 = vsel %vm2380, %v2161, 0.0
  %v2783 = vadd.f32 %v2781, %v2782
  %v2784 = vsel %vm2380, %v2166, 0.0
  %v2785 = vadd.f32 %v2783, %v2784
  %v2786 = vsel %vm2380, %v2169, 0.0
  %v2787 = vadd.f32 %v2785, %v2786
  %v2788 = vsel %vm2380, %v2174, 0.0
  %v2789 = vadd.f32 %v2787, %v2788
  %v2790 = vsel %vm2380, %v2177, 0.0
  %v2791 = vadd.f32 %v2789, %v2790
  %v2792 = vsel %vm2380, %v2182, 0.0
  %v2793 = vadd.f32 %v2791, %v2792
  %v2794 = vsel %vm2380, %v2185, 0.0
  %v2795 = vadd.f32 %v2793, %v2794
  %v2796 = vsel %vm2380, %v2190, 0.0
  %v2797 = vadd.f32 %v2795, %v2796
  %v2798 = vsel %vm2380, %v2193, 0.0
  %v2799 = vadd.f32 %v2797, %v2798
  %v2800 = vsel %vm2380, %v2198, 0.0
  %v2801 = vadd.f32 %v2799, %v2800
  %v2802 = vsel %vm2380, %v2201, 0.0
  %v2803 = vadd.f32 %v2801, %v2802
  %v2804 = vsel %vm2380, %v2206, 0.0
  %v2805 = vadd.f32 %v2803, %v2804
  %v2806 = vsel %vm2380, %v2209, 0.0
  %v2807 = vadd.f32 %v2805, %v2806
  %v2808 = vsel %vm2380, %v2214, 0.0
  %v2809 = vadd.f32 %v2807, %v2808
  %v2810 = vsel %vm2380, %v2217, 0.0
  %v2811 = vadd.f32 %v2809, %v2810
  %v2812 = vsel %vm2380, %v2222, 0.0
  %v2813 = vadd.f32 %v2811, %v2812
  %v2814 = vsel %vm2380, %v2225, 0.0
  %v2815 = vadd.f32 %v2813, %v2814
  %v2816 = vsel %vm2380, %v2230, 0.0
  %v2817 = vadd.f32 %v2815, %v2816
  %v2818 = vsel %vm2380, %v2233, 0.0
  %v2819 = vadd.f32 %v2817, %v2818
  %v2820 = vsel %vm2380, %v2238, 0.0
  %v2821 = vadd.f32 %v2819, %v2820
  %v2822 = vsel %vm2380, %v2241, 0.0
  %v2823 = vadd.f32 %v2821, %v2822
  %v2824 = vsel %vm2380, %v2246, 0.0
  %v2825 = vadd.f32 %v2823, %v2824
  %v2826 = vsel %vm2380, %v2249, 0.0
  %v2827 = vadd.f32 %v2825, %v2826
  %v2828 = vsel %vm2380, %v2254, 0.0
  %v2829 = vadd.f32 %v2827, %v2828
  %v2830 = vsel %vm2380, %v2257, 0.0
  %v2831 = vadd.f32 %v2829, %v2830
  %v2832 = vsel %vm2380, %v2262, 0.0
  %v2833 = vadd.f32 %v2831, %v2832
  %v2834 = vsel %vm2380, %v2265, 0.0
  %v2835 = vadd.f32 %v2833, %v2834
  %v2836 = vsel %vm2380, %v2270, 0.0
  %v2837 = vadd.f32 %v2835, %v2836
  %v2838 = vsel %vm2380, %v2273, 0.0
  %v2839 = vadd.f32 %v2837, %v2838
  %v2840 = vsel %vm2380, %v2278, 0.0
  %v2841 = vadd.f32 %v2839, %v2840
  %v2842 = vsel %vm2380, %v2281, 0.0
  %v2843 = vadd.f32 %v2841, %v2842
  %v2844 = vsel %vm2380, %v2286, 0.0
  %v2845 = vadd.f32 %v2843, %v2844
  %v2846 = vsel %vm2380, %v2289, 0.0
  %v2847 = vadd.f32 %v2845, %v2846
  %v2848 = vsel %vm2380, %v2294, 0.0
  %v2849 = vadd.f32 %v2847, %v2848
  %v2850 = vsel %vm2380, %v2297, 0.0
  %v2851 = vadd.f32 %v2849, %v2850
  %v2852 = vsel %vm2380, %v2302, 0.0
  %v2853 = vadd.f32 %v2851, %v2852
  %v2854 = vsel %vm2380, %v2305, 0.0
  %v2855 = vadd.f32 %v2853, %v2854
  %v2856 = vsel %vm2380, %v2310, 0.0
  %v2857 = vadd.f32 %v2855, %v2856
  %v2858 = vsel %vm2380, %v2313, 0.0
  %v2859 = vadd.f32 %v2857, %v2858
  %v2860 = vsel %vm2380, %v2318, 0.0
  %v2861 = vadd.f32 %v2859, %v2860
  %v2862 = vsel %vm2380, %v2321, 0.0
  %v2863 = vadd.f32 %v2861, %v2862
  %v2864 = vsel %vm2380, %v2326, 0.0
  %v2865 = vadd.f32 %v2863, %v2864
  %v2866 = vsel %vm2380, %v2329, 0.0
  %v2867 = vadd.f32 %v2865, %v2866
  %v2868 = vsel %vm2380, %v2334, 0.0
  %v2869 = vadd.f32 %v2867, %v2868
  %v2870 = vsel %vm2380, %v2337, 0.0
  %v2871 = vadd.f32 %v2869, %v2870
  %v2872 = vsel %vm2380, %v2342, 0.0
  %v2873 = vadd.f32 %v2871, %v2872
  %v2874 = vsel %vm2380, %v2345, 0.0
  %v2875 = vadd.f32 %v2873, %v2874
  %v2876 = vsel %vm2380, %v2350, 0.0
  %v2877 = vadd.f32 %v2875, %v2876
  %v2878 = vsel %vm2380, %v2353, 0.0
  %v2879 = vadd.f32 %v2877, %v2878
  %v2880 = vsel %vm2380, %v2358, 0.0
  %v2881 = vadd.f32 %v2879, %v2880
  %v2882 = vsel %vm2380, %v2361, 0.0
  %v2883 = vadd.f32 %v2881, %v2882
  %v2884 = vsel %vm2380, %v2366, 0.0
  %v2885 = vadd.f32 %v2883, %v2884
  %v2886 = vsel %vm2380, %v2369, 0.0
  %v2887 = vadd.f32 %v2885, %v2886
  %v2888 = vsel %vm2380, %v2374, 0.0
  %v2889 = vadd.f32 %v2887, %v2888
  %v2890 = vsel %vm2380, %v2377, 0.0
  %v2891 = vadd.f32 %v2889, %v2890
  %v2892 = vrot.slane %v2891, 4
  %v2893 = vadd.f32 %v2891, %v2892
  %v2894 = vrot.slane %v2893, 2
  %v2895 = vadd.f32 %v2893, %v2894
  %v2896 = vrot.slane %v2895, 1
  %v2897 = vadd.f32 %v2895, %v2896
  %v2898 = vmul.f32 %v2897, 0.00048828125
  %v2899 = vmul.f32 %v1358, %v1358
  %v2900 = vmul.f32 %v1361, %v1361
  %v2901 = vmul.f32 %v1366, %v1366
  %v2902 = vmul.f32 %v1369, %v1369
  %v2903 = vmul.f32 %v1374, %v1374
  %v2904 = vmul.f32 %v1377, %v1377
  %v2905 = vmul.f32 %v1382, %v1382
  %v2906 = vmul.f32 %v1385, %v1385
  %v2907 = vmul.f32 %v1390, %v1390
  %v2908 = vmul.f32 %v1393, %v1393
  %v2909 = vmul.f32 %v1398, %v1398
  %v2910 = vmul.f32 %v1401, %v1401
  %v2911 = vmul.f32 %v1406, %v1406
  %v2912 = vmul.f32 %v1409, %v1409
  %v2913 = vmul.f32 %v1414, %v1414
  %v2914 = vmul.f32 %v1417, %v1417
  %v2915 = vmul.f32 %v1422, %v1422
  %v2916 = vmul.f32 %v1425, %v1425
  %v2917 = vmul.f32 %v1430, %v1430
  %v2918 = vmul.f32 %v1433, %v1433
  %v2919 = vmul.f32 %v1438, %v1438
  %v2920 = vmul.f32 %v1441, %v1441
  %v2921 = vmul.f32 %v1446, %v1446
  %v2922 = vmul.f32 %v1449, %v1449
  %v2923 = vmul.f32 %v1454, %v1454
  %v2924 = vmul.f32 %v1457, %v1457
  %v2925 = vmul.f32 %v1462, %v1462
  %v2926 = vmul.f32 %v1465, %v1465
  %v2927 = vmul.f32 %v1470, %v1470
  %v2928 = vmul.f32 %v1473, %v1473
  %v2929 = vmul.f32 %v1478, %v1478
  %v2930 = vmul.f32 %v1481, %v1481
  %v2931 = vmul.f32 %v1486, %v1486
  %v2932 = vmul.f32 %v1489, %v1489
  %v2933 = vmul.f32 %v1494, %v1494
  %v2934 = vmul.f32 %v1497, %v1497
  %v2935 = vmul.f32 %v1502, %v1502
  %v2936 = vmul.f32 %v1505, %v1505
  %v2937 = vmul.f32 %v1510, %v1510
  %v2938 = vmul.f32 %v1513, %v1513
  %v2939 = vmul.f32 %v1518, %v1518
  %v2940 = vmul.f32 %v1521, %v1521
  %v2941 = vmul.f32 %v1526, %v1526
  %v2942 = vmul.f32 %v1529, %v1529
  %v2943 = vmul.f32 %v1534, %v1534
  %v2944 = vmul.f32 %v1537, %v1537
  %v2945 = vmul.f32 %v1542, %v1542
  %v2946 = vmul.f32 %v1545, %v1545
  %v2947 = vmul.f32 %v1550, %v1550
  %v2948 = vmul.f32 %v1553, %v1553
  %v2949 = vmul.f32 %v1558, %v1558
  %v2950 = vmul.f32 %v1561, %v1561
  %v2951 = vmul.f32 %v1566, %v1566
  %v2952 = vmul.f32 %v1569, %v1569
  %v2953 = vmul.f32 %v1574, %v1574
  %v2954 = vmul.f32 %v1577, %v1577
  %v2955 = vmul.f32 %v1582, %v1582
  %v2956 = vmul.f32 %v1585, %v1585
  %v2957 = vmul.f32 %v1590, %v1590
  %v2958 = vmul.f32 %v1593, %v1593
  %v2959 = vmul.f32 %v1598, %v1598
  %v2960 = vmul.f32 %v1601, %v1601
  %v2961 = vmul.f32 %v1606, %v1606
  %v2962 = vmul.f32 %v1609, %v1609
  %v2963 = vmul.f32 %v1614, %v1614
  %v2964 = vmul.f32 %v1617, %v1617
  %v2965 = vmul.f32 %v1622, %v1622
  %v2966 = vmul.f32 %v1625, %v1625
  %v2967 = vmul.f32 %v1630, %v1630
  %v2968 = vmul.f32 %v1633, %v1633
  %v2969 = vmul.f32 %v1638, %v1638
  %v2970 = vmul.f32 %v1641, %v1641
  %v2971 = vmul.f32 %v1646, %v1646
  %v2972 = vmul.f32 %v1649, %v1649
  %v2973 = vmul.f32 %v1654, %v1654
  %v2974 = vmul.f32 %v1657, %v1657
  %v2975 = vmul.f32 %v1662, %v1662
  %v2976 = vmul.f32 %v1665, %v1665
  %v2977 = vmul.f32 %v1670, %v1670
  %v2978 = vmul.f32 %v1673, %v1673
  %v2979 = vmul.f32 %v1678, %v1678
  %v2980 = vmul.f32 %v1681, %v1681
  %v2981 = vmul.f32 %v1686, %v1686
  %v2982 = vmul.f32 %v1689, %v1689
  %v2983 = vmul.f32 %v1694, %v1694
  %v2984 = vmul.f32 %v1697, %v1697
  %v2985 = vmul.f32 %v1702, %v1702
  %v2986 = vmul.f32 %v1705, %v1705
  %v2987 = vmul.f32 %v1710, %v1710
  %v2988 = vmul.f32 %v1713, %v1713
  %v2989 = vmul.f32 %v1718, %v1718
  %v2990 = vmul.f32 %v1721, %v1721
  %v2991 = vmul.f32 %v1726, %v1726
  %v2992 = vmul.f32 %v1729, %v1729
  %v2993 = vmul.f32 %v1734, %v1734
  %v2994 = vmul.f32 %v1737, %v1737
  %v2995 = vmul.f32 %v1742, %v1742
  %v2996 = vmul.f32 %v1745, %v1745
  %v2997 = vmul.f32 %v1750, %v1750
  %v2998 = vmul.f32 %v1753, %v1753
  %v2999 = vmul.f32 %v1758, %v1758
  %v3000 = vmul.f32 %v1761, %v1761
  %v3001 = vmul.f32 %v1766, %v1766
  %v3002 = vmul.f32 %v1769, %v1769
  %v3003 = vmul.f32 %v1774, %v1774
  %v3004 = vmul.f32 %v1777, %v1777
  %v3005 = vmul.f32 %v1782, %v1782
  %v3006 = vmul.f32 %v1785, %v1785
  %v3007 = vmul.f32 %v1790, %v1790
  %v3008 = vmul.f32 %v1793, %v1793
  %v3009 = vmul.f32 %v1798, %v1798
  %v3010 = vmul.f32 %v1801, %v1801
  %v3011 = vmul.f32 %v1806, %v1806
  %v3012 = vmul.f32 %v1809, %v1809
  %v3013 = vmul.f32 %v1814, %v1814
  %v3014 = vmul.f32 %v1817, %v1817
  %v3015 = vmul.f32 %v1822, %v1822
  %v3016 = vmul.f32 %v1825, %v1825
  %v3017 = vmul.f32 %v1830, %v1830
  %v3018 = vmul.f32 %v1833, %v1833
  %v3019 = vmul.f32 %v1838, %v1838
  %v3020 = vmul.f32 %v1841, %v1841
  %v3021 = vmul.f32 %v1846, %v1846
  %v3022 = vmul.f32 %v1849, %v1849
  %v3023 = vmul.f32 %v1854, %v1854
  %v3024 = vmul.f32 %v1857, %v1857
  %v3025 = vmul.f32 %v1862, %v1862
  %v3026 = vmul.f32 %v1865, %v1865
  %v3027 = vmul.f32 %v1870, %v1870
  %v3028 = vmul.f32 %v1873, %v1873
  %v3029 = vmul.f32 %v1878, %v1878
  %v3030 = vmul.f32 %v1881, %v1881
  %v3031 = vmul.f32 %v1886, %v1886
  %v3032 = vmul.f32 %v1889, %v1889
  %v3033 = vmul.f32 %v1894, %v1894
  %v3034 = vmul.f32 %v1897, %v1897
  %v3035 = vmul.f32 %v1902, %v1902
  %v3036 = vmul.f32 %v1905, %v1905
  %v3037 = vmul.f32 %v1910, %v1910
  %v3038 = vmul.f32 %v1913, %v1913
  %v3039 = vmul.f32 %v1918, %v1918
  %v3040 = vmul.f32 %v1921, %v1921
  %v3041 = vmul.f32 %v1926, %v1926
  %v3042 = vmul.f32 %v1929, %v1929
  %v3043 = vmul.f32 %v1934, %v1934
  %v3044 = vmul.f32 %v1937, %v1937
  %v3045 = vmul.f32 %v1942, %v1942
  %v3046 = vmul.f32 %v1945, %v1945
  %v3047 = vmul.f32 %v1950, %v1950
  %v3048 = vmul.f32 %v1953, %v1953
  %v3049 = vmul.f32 %v1958, %v1958
  %v3050 = vmul.f32 %v1961, %v1961
  %v3051 = vmul.f32 %v1966, %v1966
  %v3052 = vmul.f32 %v1969, %v1969
  %v3053 = vmul.f32 %v1974, %v1974
  %v3054 = vmul.f32 %v1977, %v1977
  %v3055 = vmul.f32 %v1982, %v1982
  %v3056 = vmul.f32 %v1985, %v1985
  %v3057 = vmul.f32 %v1990, %v1990
  %v3058 = vmul.f32 %v1993, %v1993
  %v3059 = vmul.f32 %v1998, %v1998
  %v3060 = vmul.f32 %v2001, %v2001
  %v3061 = vmul.f32 %v2006, %v2006
  %v3062 = vmul.f32 %v2009, %v2009
  %v3063 = vmul.f32 %v2014, %v2014
  %v3064 = vmul.f32 %v2017, %v2017
  %v3065 = vmul.f32 %v2022, %v2022
  %v3066 = vmul.f32 %v2025, %v2025
  %v3067 = vmul.f32 %v2030, %v2030
  %v3068 = vmul.f32 %v2033, %v2033
  %v3069 = vmul.f32 %v2038, %v2038
  %v3070 = vmul.f32 %v2041, %v2041
  %v3071 = vmul.f32 %v2046, %v2046
  %v3072 = vmul.f32 %v2049, %v2049
  %v3073 = vmul.f32 %v2054, %v2054
  %v3074 = vmul.f32 %v2057, %v2057
  %v3075 = vmul.f32 %v2062, %v2062
  %v3076 = vmul.f32 %v2065, %v2065
  %v3077 = vmul.f32 %v2070, %v2070
  %v3078 = vmul.f32 %v2073, %v2073
  %v3079 = vmul.f32 %v2078, %v2078
  %v3080 = vmul.f32 %v2081, %v2081
  %v3081 = vmul.f32 %v2086, %v2086
  %v3082 = vmul.f32 %v2089, %v2089
  %v3083 = vmul.f32 %v2094, %v2094
  %v3084 = vmul.f32 %v2097, %v2097
  %v3085 = vmul.f32 %v2102, %v2102
  %v3086 = vmul.f32 %v2105, %v2105
  %v3087 = vmul.f32 %v2110, %v2110
  %v3088 = vmul.f32 %v2113, %v2113
  %v3089 = vmul.f32 %v2118, %v2118
  %v3090 = vmul.f32 %v2121, %v2121
  %v3091 = vmul.f32 %v2126, %v2126
  %v3092 = vmul.f32 %v2129, %v2129
  %v3093 = vmul.f32 %v2134, %v2134
  %v3094 = vmul.f32 %v2137, %v2137
  %v3095 = vmul.f32 %v2142, %v2142
  %v3096 = vmul.f32 %v2145, %v2145
  %v3097 = vmul.f32 %v2150, %v2150
  %v3098 = vmul.f32 %v2153, %v2153
  %v3099 = vmul.f32 %v2158, %v2158
  %v3100 = vmul.f32 %v2161, %v2161
  %v3101 = vmul.f32 %v2166, %v2166
  %v3102 = vmul.f32 %v2169, %v2169
  %v3103 = vmul.f32 %v2174, %v2174
  %v3104 = vmul.f32 %v2177, %v2177
  %v3105 = vmul.f32 %v2182, %v2182
  %v3106 = vmul.f32 %v2185, %v2185
  %v3107 = vmul.f32 %v2190, %v2190
  %v3108 = vmul.f32 %v2193, %v2193
  %v3109 = vmul.f32 %v2198, %v2198
  %v3110 = vmul.f32 %v2201, %v2201
  %v3111 = vmul.f32 %v2206, %v2206
  %v3112 = vmul.f32 %v2209, %v2209
  %v3113 = vmul.f32 %v2214, %v2214
  %v3114 = vmul.f32 %v2217, %v2217
  %v3115 = vmul.f32 %v2222, %v2222
  %v3116 = vmul.f32 %v2225, %v2225
  %v3117 = vmul.f32 %v2230, %v2230
  %v3118 = vmul.f32 %v2233, %v2233
  %v3119 = vmul.f32 %v2238, %v2238
  %v3120 = vmul.f32 %v2241, %v2241
  %v3121 = vmul.f32 %v2246, %v2246
  %v3122 = vmul.f32 %v2249, %v2249
  %v3123 = vmul.f32 %v2254, %v2254
  %v3124 = vmul.f32 %v2257, %v2257
  %v3125 = vmul.f32 %v2262, %v2262
  %v3126 = vmul.f32 %v2265, %v2265
  %v3127 = vmul.f32 %v2270, %v2270
  %v3128 = vmul.f32 %v2273, %v2273
  %v3129 = vmul.f32 %v2278, %v2278
  %v3130 = vmul.f32 %v2281, %v2281
  %v3131 = vmul.f32 %v2286, %v2286
  %v3132 = vmul.f32 %v2289, %v2289
  %v3133 = vmul.f32 %v2294, %v2294
  %v3134 = vmul.f32 %v2297, %v2297
  %v3135 = vmul.f32 %v2302, %v2302
  %v3136 = vmul.f32 %v2305, %v2305
  %v3137 = vmul.f32 %v2310, %v2310
  %v3138 = vmul.f32 %v2313, %v2313
  %v3139 = vmul.f32 %v2318, %v2318
  %v3140 = vmul.f32 %v2321, %v2321
  %v3141 = vmul.f32 %v2326, %v2326
  %v3142 = vmul.f32 %v2329, %v2329
  %v3143 = vmul.f32 %v2334, %v2334
  %v3144 = vmul.f32 %v2337, %v2337
  %v3145 = vmul.f32 %v2342, %v2342
  %v3146 = vmul.f32 %v2345, %v2345
  %v3147 = vmul.f32 %v2350, %v2350
  %v3148 = vmul.f32 %v2353, %v2353
  %v3149 = vmul.f32 %v2358, %v2358
  %v3150 = vmul.f32 %v2361, %v2361
  %v3151 = vmul.f32 %v2366, %v2366
  %v3152 = vmul.f32 %v2369, %v2369
  %v3153 = vmul.f32 %v2374, %v2374
  %v3154 = vmul.f32 %v2377, %v2377
  %v3155 = vsel %vm2380, %v2899, 0.0
  %v3156 = vsel %vm2380, %v2900, 0.0
  %v3157 = vadd.f32 %v3155, %v3156
  %v3158 = vsel %vm2380, %v2901, 0.0
  %v3159 = vadd.f32 %v3157, %v3158
  %v3160 = vsel %vm2380, %v2902, 0.0
  %v3161 = vadd.f32 %v3159, %v3160
  %v3162 = vsel %vm2380, %v2903, 0.0
  %v3163 = vadd.f32 %v3161, %v3162
  %v3164 = vsel %vm2380, %v2904, 0.0
  %v3165 = vadd.f32 %v3163, %v3164
  %v3166 = vsel %vm2380, %v2905, 0.0
  %v3167 = vadd.f32 %v3165, %v3166
  %v3168 = vsel %vm2380, %v2906, 0.0
  %v3169 = vadd.f32 %v3167, %v3168
  %v3170 = vsel %vm2380, %v2907, 0.0
  %v3171 = vadd.f32 %v3169, %v3170
  %v3172 = vsel %vm2380, %v2908, 0.0
  %v3173 = vadd.f32 %v3171, %v3172
  %v3174 = vsel %vm2380, %v2909, 0.0
  %v3175 = vadd.f32 %v3173, %v3174
  %v3176 = vsel %vm2380, %v2910, 0.0
  %v3177 = vadd.f32 %v3175, %v3176
  %v3178 = vsel %vm2380, %v2911, 0.0
  %v3179 = vadd.f32 %v3177, %v3178
  %v3180 = vsel %vm2380, %v2912, 0.0
  %v3181 = vadd.f32 %v3179, %v3180
  %v3182 = vsel %vm2380, %v2913, 0.0
  %v3183 = vadd.f32 %v3181, %v3182
  %v3184 = vsel %vm2380, %v2914, 0.0
  %v3185 = vadd.f32 %v3183, %v3184
  %v3186 = vsel %vm2380, %v2915, 0.0
  %v3187 = vadd.f32 %v3185, %v3186
  %v3188 = vsel %vm2380, %v2916, 0.0
  %v3189 = vadd.f32 %v3187, %v3188
  %v3190 = vsel %vm2380, %v2917, 0.0
  %v3191 = vadd.f32 %v3189, %v3190
  %v3192 = vsel %vm2380, %v2918, 0.0
  %v3193 = vadd.f32 %v3191, %v3192
  %v3194 = vsel %vm2380, %v2919, 0.0
  %v3195 = vadd.f32 %v3193, %v3194
  %v3196 = vsel %vm2380, %v2920, 0.0
  %v3197 = vadd.f32 %v3195, %v3196
  %v3198 = vsel %vm2380, %v2921, 0.0
  %v3199 = vadd.f32 %v3197, %v3198
  %v3200 = vsel %vm2380, %v2922, 0.0
  %v3201 = vadd.f32 %v3199, %v3200
  %v3202 = vsel %vm2380, %v2923, 0.0
  %v3203 = vadd.f32 %v3201, %v3202
  %v3204 = vsel %vm2380, %v2924, 0.0
  %v3205 = vadd.f32 %v3203, %v3204
  %v3206 = vsel %vm2380, %v2925, 0.0
  %v3207 = vadd.f32 %v3205, %v3206
  %v3208 = vsel %vm2380, %v2926, 0.0
  %v3209 = vadd.f32 %v3207, %v3208
  %v3210 = vsel %vm2380, %v2927, 0.0
  %v3211 = vadd.f32 %v3209, %v3210
  %v3212 = vsel %vm2380, %v2928, 0.0
  %v3213 = vadd.f32 %v3211, %v3212
  %v3214 = vsel %vm2380, %v2929, 0.0
  %v3215 = vadd.f32 %v3213, %v3214
  %v3216 = vsel %vm2380, %v2930, 0.0
  %v3217 = vadd.f32 %v3215, %v3216
  %v3218 = vsel %vm2380, %v2931, 0.0
  %v3219 = vadd.f32 %v3217, %v3218
  %v3220 = vsel %vm2380, %v2932, 0.0
  %v3221 = vadd.f32 %v3219, %v3220
  %v3222 = vsel %vm2380, %v2933, 0.0
  %v3223 = vadd.f32 %v3221, %v3222
  %v3224 = vsel %vm2380, %v2934, 0.0
  %v3225 = vadd.f32 %v3223, %v3224
  %v3226 = vsel %vm2380, %v2935, 0.0
  %v3227 = vadd.f32 %v3225, %v3226
  %v3228 = vsel %vm2380, %v2936, 0.0
  %v3229 = vadd.f32 %v3227, %v3228
  %v3230 = vsel %vm2380, %v2937, 0.0
  %v3231 = vadd.f32 %v3229, %v3230
  %v3232 = vsel %vm2380, %v2938, 0.0
  %v3233 = vadd.f32 %v3231, %v3232
  %v3234 = vsel %vm2380, %v2939, 0.0
  %v3235 = vadd.f32 %v3233, %v3234
  %v3236 = vsel %vm2380, %v2940, 0.0
  %v3237 = vadd.f32 %v3235, %v3236
  %v3238 = vsel %vm2380, %v2941, 0.0
  %v3239 = vadd.f32 %v3237, %v3238
  %v3240 = vsel %vm2380, %v2942, 0.0
  %v3241 = vadd.f32 %v3239, %v3240
  %v3242 = vsel %vm2380, %v2943, 0.0
  %v3243 = vadd.f32 %v3241, %v3242
  %v3244 = vsel %vm2380, %v2944, 0.0
  %v3245 = vadd.f32 %v3243, %v3244
  %v3246 = vsel %vm2380, %v2945, 0.0
  %v3247 = vadd.f32 %v3245, %v3246
  %v3248 = vsel %vm2380, %v2946, 0.0
  %v3249 = vadd.f32 %v3247, %v3248
  %v3250 = vsel %vm2380, %v2947, 0.0
  %v3251 = vadd.f32 %v3249, %v3250
  %v3252 = vsel %vm2380, %v2948, 0.0
  %v3253 = vadd.f32 %v3251, %v3252
  %v3254 = vsel %vm2380, %v2949, 0.0
  %v3255 = vadd.f32 %v3253, %v3254
  %v3256 = vsel %vm2380, %v2950, 0.0
  %v3257 = vadd.f32 %v3255, %v3256
  %v3258 = vsel %vm2380, %v2951, 0.0
  %v3259 = vadd.f32 %v3257, %v3258
  %v3260 = vsel %vm2380, %v2952, 0.0
  %v3261 = vadd.f32 %v3259, %v3260
  %v3262 = vsel %vm2380, %v2953, 0.0
  %v3263 = vadd.f32 %v3261, %v3262
  %v3264 = vsel %vm2380, %v2954, 0.0
  %v3265 = vadd.f32 %v3263, %v3264
  %v3266 = vsel %vm2380, %v2955, 0.0
  %v3267 = vadd.f32 %v3265, %v3266
  %v3268 = vsel %vm2380, %v2956, 0.0
  %v3269 = vadd.f32 %v3267, %v3268
  %v3270 = vsel %vm2380, %v2957, 0.0
  %v3271 = vadd.f32 %v3269, %v3270
  %v3272 = vsel %vm2380, %v2958, 0.0
  %v3273 = vadd.f32 %v3271, %v3272
  %v3274 = vsel %vm2380, %v2959, 0.0
  %v3275 = vadd.f32 %v3273, %v3274
  %v3276 = vsel %vm2380, %v2960, 0.0
  %v3277 = vadd.f32 %v3275, %v3276
  %v3278 = vsel %vm2380, %v2961, 0.0
  %v3279 = vadd.f32 %v3277, %v3278
  %v3280 = vsel %vm2380, %v2962, 0.0
  %v3281 = vadd.f32 %v3279, %v3280
  %v3282 = vsel %vm2380, %v2963, 0.0
  %v3283 = vadd.f32 %v3281, %v3282
  %v3284 = vsel %vm2380, %v2964, 0.0
  %v3285 = vadd.f32 %v3283, %v3284
  %v3286 = vsel %vm2380, %v2965, 0.0
  %v3287 = vadd.f32 %v3285, %v3286
  %v3288 = vsel %vm2380, %v2966, 0.0
  %v3289 = vadd.f32 %v3287, %v3288
  %v3290 = vsel %vm2380, %v2967, 0.0
  %v3291 = vadd.f32 %v3289, %v3290
  %v3292 = vsel %vm2380, %v2968, 0.0
  %v3293 = vadd.f32 %v3291, %v3292
  %v3294 = vsel %vm2380, %v2969, 0.0
  %v3295 = vadd.f32 %v3293, %v3294
  %v3296 = vsel %vm2380, %v2970, 0.0
  %v3297 = vadd.f32 %v3295, %v3296
  %v3298 = vsel %vm2380, %v2971, 0.0
  %v3299 = vadd.f32 %v3297, %v3298
  %v3300 = vsel %vm2380, %v2972, 0.0
  %v3301 = vadd.f32 %v3299, %v3300
  %v3302 = vsel %vm2380, %v2973, 0.0
  %v3303 = vadd.f32 %v3301, %v3302
  %v3304 = vsel %vm2380, %v2974, 0.0
  %v3305 = vadd.f32 %v3303, %v3304
  %v3306 = vsel %vm2380, %v2975, 0.0
  %v3307 = vadd.f32 %v3305, %v3306
  %v3308 = vsel %vm2380, %v2976, 0.0
  %v3309 = vadd.f32 %v3307, %v3308
  %v3310 = vsel %vm2380, %v2977, 0.0
  %v3311 = vadd.f32 %v3309, %v3310
  %v3312 = vsel %vm2380, %v2978, 0.0
  %v3313 = vadd.f32 %v3311, %v3312
  %v3314 = vsel %vm2380, %v2979, 0.0
  %v3315 = vadd.f32 %v3313, %v3314
  %v3316 = vsel %vm2380, %v2980, 0.0
  %v3317 = vadd.f32 %v3315, %v3316
  %v3318 = vsel %vm2380, %v2981, 0.0
  %v3319 = vadd.f32 %v3317, %v3318
  %v3320 = vsel %vm2380, %v2982, 0.0
  %v3321 = vadd.f32 %v3319, %v3320
  %v3322 = vsel %vm2380, %v2983, 0.0
  %v3323 = vadd.f32 %v3321, %v3322
  %v3324 = vsel %vm2380, %v2984, 0.0
  %v3325 = vadd.f32 %v3323, %v3324
  %v3326 = vsel %vm2380, %v2985, 0.0
  %v3327 = vadd.f32 %v3325, %v3326
  %v3328 = vsel %vm2380, %v2986, 0.0
  %v3329 = vadd.f32 %v3327, %v3328
  %v3330 = vsel %vm2380, %v2987, 0.0
  %v3331 = vadd.f32 %v3329, %v3330
  %v3332 = vsel %vm2380, %v2988, 0.0
  %v3333 = vadd.f32 %v3331, %v3332
  %v3334 = vsel %vm2380, %v2989, 0.0
  %v3335 = vadd.f32 %v3333, %v3334
  %v3336 = vsel %vm2380, %v2990, 0.0
  %v3337 = vadd.f32 %v3335, %v3336
  %v3338 = vsel %vm2380, %v2991, 0.0
  %v3339 = vadd.f32 %v3337, %v3338
  %v3340 = vsel %vm2380, %v2992, 0.0
  %v3341 = vadd.f32 %v3339, %v3340
  %v3342 = vsel %vm2380, %v2993, 0.0
  %v3343 = vadd.f32 %v3341, %v3342
  %v3344 = vsel %vm2380, %v2994, 0.0
  %v3345 = vadd.f32 %v3343, %v3344
  %v3346 = vsel %vm2380, %v2995, 0.0
  %v3347 = vadd.f32 %v3345, %v3346
  %v3348 = vsel %vm2380, %v2996, 0.0
  %v3349 = vadd.f32 %v3347, %v3348
  %v3350 = vsel %vm2380, %v2997, 0.0
  %v3351 = vadd.f32 %v3349, %v3350
  %v3352 = vsel %vm2380, %v2998, 0.0
  %v3353 = vadd.f32 %v3351, %v3352
  %v3354 = vsel %vm2380, %v2999, 0.0
  %v3355 = vadd.f32 %v3353, %v3354
  %v3356 = vsel %vm2380, %v3000, 0.0
  %v3357 = vadd.f32 %v3355, %v3356
  %v3358 = vsel %vm2380, %v3001, 0.0
  %v3359 = vadd.f32 %v3357, %v3358
  %v3360 = vsel %vm2380, %v3002, 0.0
  %v3361 = vadd.f32 %v3359, %v3360
  %v3362 = vsel %vm2380, %v3003, 0.0
  %v3363 = vadd.f32 %v3361, %v3362
  %v3364 = vsel %vm2380, %v3004, 0.0
  %v3365 = vadd.f32 %v3363, %v3364
  %v3366 = vsel %vm2380, %v3005, 0.0
  %v3367 = vadd.f32 %v3365, %v3366
  %v3368 = vsel %vm2380, %v3006, 0.0
  %v3369 = vadd.f32 %v3367, %v3368
  %v3370 = vsel %vm2380, %v3007, 0.0
  %v3371 = vadd.f32 %v3369, %v3370
  %v3372 = vsel %vm2380, %v3008, 0.0
  %v3373 = vadd.f32 %v3371, %v3372
  %v3374 = vsel %vm2380, %v3009, 0.0
  %v3375 = vadd.f32 %v3373, %v3374
  %v3376 = vsel %vm2380, %v3010, 0.0
  %v3377 = vadd.f32 %v3375, %v3376
  %v3378 = vsel %vm2380, %v3011, 0.0
  %v3379 = vadd.f32 %v3377, %v3378
  %v3380 = vsel %vm2380, %v3012, 0.0
  %v3381 = vadd.f32 %v3379, %v3380
  %v3382 = vsel %vm2380, %v3013, 0.0
  %v3383 = vadd.f32 %v3381, %v3382
  %v3384 = vsel %vm2380, %v3014, 0.0
  %v3385 = vadd.f32 %v3383, %v3384
  %v3386 = vsel %vm2380, %v3015, 0.0
  %v3387 = vadd.f32 %v3385, %v3386
  %v3388 = vsel %vm2380, %v3016, 0.0
  %v3389 = vadd.f32 %v3387, %v3388
  %v3390 = vsel %vm2380, %v3017, 0.0
  %v3391 = vadd.f32 %v3389, %v3390
  %v3392 = vsel %vm2380, %v3018, 0.0
  %v3393 = vadd.f32 %v3391, %v3392
  %v3394 = vsel %vm2380, %v3019, 0.0
  %v3395 = vadd.f32 %v3393, %v3394
  %v3396 = vsel %vm2380, %v3020, 0.0
  %v3397 = vadd.f32 %v3395, %v3396
  %v3398 = vsel %vm2380, %v3021, 0.0
  %v3399 = vadd.f32 %v3397, %v3398
  %v3400 = vsel %vm2380, %v3022, 0.0
  %v3401 = vadd.f32 %v3399, %v3400
  %v3402 = vsel %vm2380, %v3023, 0.0
  %v3403 = vadd.f32 %v3401, %v3402
  %v3404 = vsel %vm2380, %v3024, 0.0
  %v3405 = vadd.f32 %v3403, %v3404
  %v3406 = vsel %vm2380, %v3025, 0.0
  %v3407 = vadd.f32 %v3405, %v3406
  %v3408 = vsel %vm2380, %v3026, 0.0
  %v3409 = vadd.f32 %v3407, %v3408
  %v3410 = vsel %vm2380, %v3027, 0.0
  %v3411 = vadd.f32 %v3409, %v3410
  %v3412 = vsel %vm2380, %v3028, 0.0
  %v3413 = vadd.f32 %v3411, %v3412
  %v3414 = vsel %vm2380, %v3029, 0.0
  %v3415 = vadd.f32 %v3413, %v3414
  %v3416 = vsel %vm2380, %v3030, 0.0
  %v3417 = vadd.f32 %v3415, %v3416
  %v3418 = vsel %vm2380, %v3031, 0.0
  %v3419 = vadd.f32 %v3417, %v3418
  %v3420 = vsel %vm2380, %v3032, 0.0
  %v3421 = vadd.f32 %v3419, %v3420
  %v3422 = vsel %vm2380, %v3033, 0.0
  %v3423 = vadd.f32 %v3421, %v3422
  %v3424 = vsel %vm2380, %v3034, 0.0
  %v3425 = vadd.f32 %v3423, %v3424
  %v3426 = vsel %vm2380, %v3035, 0.0
  %v3427 = vadd.f32 %v3425, %v3426
  %v3428 = vsel %vm2380, %v3036, 0.0
  %v3429 = vadd.f32 %v3427, %v3428
  %v3430 = vsel %vm2380, %v3037, 0.0
  %v3431 = vadd.f32 %v3429, %v3430
  %v3432 = vsel %vm2380, %v3038, 0.0
  %v3433 = vadd.f32 %v3431, %v3432
  %v3434 = vsel %vm2380, %v3039, 0.0
  %v3435 = vadd.f32 %v3433, %v3434
  %v3436 = vsel %vm2380, %v3040, 0.0
  %v3437 = vadd.f32 %v3435, %v3436
  %v3438 = vsel %vm2380, %v3041, 0.0
  %v3439 = vadd.f32 %v3437, %v3438
  %v3440 = vsel %vm2380, %v3042, 0.0
  %v3441 = vadd.f32 %v3439, %v3440
  %v3442 = vsel %vm2380, %v3043, 0.0
  %v3443 = vadd.f32 %v3441, %v3442
  %v3444 = vsel %vm2380, %v3044, 0.0
  %v3445 = vadd.f32 %v3443, %v3444
  %v3446 = vsel %vm2380, %v3045, 0.0
  %v3447 = vadd.f32 %v3445, %v3446
  %v3448 = vsel %vm2380, %v3046, 0.0
  %v3449 = vadd.f32 %v3447, %v3448
  %v3450 = vsel %vm2380, %v3047, 0.0
  %v3451 = vadd.f32 %v3449, %v3450
  %v3452 = vsel %vm2380, %v3048, 0.0
  %v3453 = vadd.f32 %v3451, %v3452
  %v3454 = vsel %vm2380, %v3049, 0.0
  %v3455 = vadd.f32 %v3453, %v3454
  %v3456 = vsel %vm2380, %v3050, 0.0
  %v3457 = vadd.f32 %v3455, %v3456
  %v3458 = vsel %vm2380, %v3051, 0.0
  %v3459 = vadd.f32 %v3457, %v3458
  %v3460 = vsel %vm2380, %v3052, 0.0
  %v3461 = vadd.f32 %v3459, %v3460
  %v3462 = vsel %vm2380, %v3053, 0.0
  %v3463 = vadd.f32 %v3461, %v3462
  %v3464 = vsel %vm2380, %v3054, 0.0
  %v3465 = vadd.f32 %v3463, %v3464
  %v3466 = vsel %vm2380, %v3055, 0.0
  %v3467 = vadd.f32 %v3465, %v3466
  %v3468 = vsel %vm2380, %v3056, 0.0
  %v3469 = vadd.f32 %v3467, %v3468
  %v3470 = vsel %vm2380, %v3057, 0.0
  %v3471 = vadd.f32 %v3469, %v3470
  %v3472 = vsel %vm2380, %v3058, 0.0
  %v3473 = vadd.f32 %v3471, %v3472
  %v3474 = vsel %vm2380, %v3059, 0.0
  %v3475 = vadd.f32 %v3473, %v3474
  %v3476 = vsel %vm2380, %v3060, 0.0
  %v3477 = vadd.f32 %v3475, %v3476
  %v3478 = vsel %vm2380, %v3061, 0.0
  %v3479 = vadd.f32 %v3477, %v3478
  %v3480 = vsel %vm2380, %v3062, 0.0
  %v3481 = vadd.f32 %v3479, %v3480
  %v3482 = vsel %vm2380, %v3063, 0.0
  %v3483 = vadd.f32 %v3481, %v3482
  %v3484 = vsel %vm2380, %v3064, 0.0
  %v3485 = vadd.f32 %v3483, %v3484
  %v3486 = vsel %vm2380, %v3065, 0.0
  %v3487 = vadd.f32 %v3485, %v3486
  %v3488 = vsel %vm2380, %v3066, 0.0
  %v3489 = vadd.f32 %v3487, %v3488
  %v3490 = vsel %vm2380, %v3067, 0.0
  %v3491 = vadd.f32 %v3489, %v3490
  %v3492 = vsel %vm2380, %v3068, 0.0
  %v3493 = vadd.f32 %v3491, %v3492
  %v3494 = vsel %vm2380, %v3069, 0.0
  %v3495 = vadd.f32 %v3493, %v3494
  %v3496 = vsel %vm2380, %v3070, 0.0
  %v3497 = vadd.f32 %v3495, %v3496
  %v3498 = vsel %vm2380, %v3071, 0.0
  %v3499 = vadd.f32 %v3497, %v3498
  %v3500 = vsel %vm2380, %v3072, 0.0
  %v3501 = vadd.f32 %v3499, %v3500
  %v3502 = vsel %vm2380, %v3073, 0.0
  %v3503 = vadd.f32 %v3501, %v3502
  %v3504 = vsel %vm2380, %v3074, 0.0
  %v3505 = vadd.f32 %v3503, %v3504
  %v3506 = vsel %vm2380, %v3075, 0.0
  %v3507 = vadd.f32 %v3505, %v3506
  %v3508 = vsel %vm2380, %v3076, 0.0
  %v3509 = vadd.f32 %v3507, %v3508
  %v3510 = vsel %vm2380, %v3077, 0.0
  %v3511 = vadd.f32 %v3509, %v3510
  %v3512 = vsel %vm2380, %v3078, 0.0
  %v3513 = vadd.f32 %v3511, %v3512
  %v3514 = vsel %vm2380, %v3079, 0.0
  %v3515 = vadd.f32 %v3513, %v3514
  %v3516 = vsel %vm2380, %v3080, 0.0
  %v3517 = vadd.f32 %v3515, %v3516
  %v3518 = vsel %vm2380, %v3081, 0.0
  %v3519 = vadd.f32 %v3517, %v3518
  %v3520 = vsel %vm2380, %v3082, 0.0
  %v3521 = vadd.f32 %v3519, %v3520
  %v3522 = vsel %vm2380, %v3083, 0.0
  %v3523 = vadd.f32 %v3521, %v3522
  %v3524 = vsel %vm2380, %v3084, 0.0
  %v3525 = vadd.f32 %v3523, %v3524
  %v3526 = vsel %vm2380, %v3085, 0.0
  %v3527 = vadd.f32 %v3525, %v3526
  %v3528 = vsel %vm2380, %v3086, 0.0
  %v3529 = vadd.f32 %v3527, %v3528
  %v3530 = vsel %vm2380, %v3087, 0.0
  %v3531 = vadd.f32 %v3529, %v3530
  %v3532 = vsel %vm2380, %v3088, 0.0
  %v3533 = vadd.f32 %v3531, %v3532
  %v3534 = vsel %vm2380, %v3089, 0.0
  %v3535 = vadd.f32 %v3533, %v3534
  %v3536 = vsel %vm2380, %v3090, 0.0
  %v3537 = vadd.f32 %v3535, %v3536
  %v3538 = vsel %vm2380, %v3091, 0.0
  %v3539 = vadd.f32 %v3537, %v3538
  %v3540 = vsel %vm2380, %v3092, 0.0
  %v3541 = vadd.f32 %v3539, %v3540
  %v3542 = vsel %vm2380, %v3093, 0.0
  %v3543 = vadd.f32 %v3541, %v3542
  %v3544 = vsel %vm2380, %v3094, 0.0
  %v3545 = vadd.f32 %v3543, %v3544
  %v3546 = vsel %vm2380, %v3095, 0.0
  %v3547 = vadd.f32 %v3545, %v3546
  %v3548 = vsel %vm2380, %v3096, 0.0
  %v3549 = vadd.f32 %v3547, %v3548
  %v3550 = vsel %vm2380, %v3097, 0.0
  %v3551 = vadd.f32 %v3549, %v3550
  %v3552 = vsel %vm2380, %v3098, 0.0
  %v3553 = vadd.f32 %v3551, %v3552
  %v3554 = vsel %vm2380, %v3099, 0.0
  %v3555 = vadd.f32 %v3553, %v3554
  %v3556 = vsel %vm2380, %v3100, 0.0
  %v3557 = vadd.f32 %v3555, %v3556
  %v3558 = vsel %vm2380, %v3101, 0.0
  %v3559 = vadd.f32 %v3557, %v3558
  %v3560 = vsel %vm2380, %v3102, 0.0
  %v3561 = vadd.f32 %v3559, %v3560
  %v3562 = vsel %vm2380, %v3103, 0.0
  %v3563 = vadd.f32 %v3561, %v3562
  %v3564 = vsel %vm2380, %v3104, 0.0
  %v3565 = vadd.f32 %v3563, %v3564
  %v3566 = vsel %vm2380, %v3105, 0.0
  %v3567 = vadd.f32 %v3565, %v3566
  %v3568 = vsel %vm2380, %v3106, 0.0
  %v3569 = vadd.f32 %v3567, %v3568
  %v3570 = vsel %vm2380, %v3107, 0.0
  %v3571 = vadd.f32 %v3569, %v3570
  %v3572 = vsel %vm2380, %v3108, 0.0
  %v3573 = vadd.f32 %v3571, %v3572
  %v3574 = vsel %vm2380, %v3109, 0.0
  %v3575 = vadd.f32 %v3573, %v3574
  %v3576 = vsel %vm2380, %v3110, 0.0
  %v3577 = vadd.f32 %v3575, %v3576
  %v3578 = vsel %vm2380, %v3111, 0.0
  %v3579 = vadd.f32 %v3577, %v3578
  %v3580 = vsel %vm2380, %v3112, 0.0
  %v3581 = vadd.f32 %v3579, %v3580
  %v3582 = vsel %vm2380, %v3113, 0.0
  %v3583 = vadd.f32 %v3581, %v3582
  %v3584 = vsel %vm2380, %v3114, 0.0
  %v3585 = vadd.f32 %v3583, %v3584
  %v3586 = vsel %vm2380, %v3115, 0.0
  %v3587 = vadd.f32 %v3585, %v3586
  %v3588 = vsel %vm2380, %v3116, 0.0
  %v3589 = vadd.f32 %v3587, %v3588
  %v3590 = vsel %vm2380, %v3117, 0.0
  %v3591 = vadd.f32 %v3589, %v3590
  %v3592 = vsel %vm2380, %v3118, 0.0
  %v3593 = vadd.f32 %v3591, %v3592
  %v3594 = vsel %vm2380, %v3119, 0.0
  %v3595 = vadd.f32 %v3593, %v3594
  %v3596 = vsel %vm2380, %v3120, 0.0
  %v3597 = vadd.f32 %v3595, %v3596
  %v3598 = vsel %vm2380, %v3121, 0.0
  %v3599 = vadd.f32 %v3597, %v3598
  %v3600 = vsel %vm2380, %v3122, 0.0
  %v3601 = vadd.f32 %v3599, %v3600
  %v3602 = vsel %vm2380, %v3123, 0.0
  %v3603 = vadd.f32 %v3601, %v3602
  %v3604 = vsel %vm2380, %v3124, 0.0
  %v3605 = vadd.f32 %v3603, %v3604
  %v3606 = vsel %vm2380, %v3125, 0.0
  %v3607 = vadd.f32 %v3605, %v3606
  %v3608 = vsel %vm2380, %v3126, 0.0
  %v3609 = vadd.f32 %v3607, %v3608
  %v3610 = vsel %vm2380, %v3127, 0.0
  %v3611 = vadd.f32 %v3609, %v3610
  %v3612 = vsel %vm2380, %v3128, 0.0
  %v3613 = vadd.f32 %v3611, %v3612
  %v3614 = vsel %vm2380, %v3129, 0.0
  %v3615 = vadd.f32 %v3613, %v3614
  %v3616 = vsel %vm2380, %v3130, 0.0
  %v3617 = vadd.f32 %v3615, %v3616
  %v3618 = vsel %vm2380, %v3131, 0.0
  %v3619 = vadd.f32 %v3617, %v3618
  %v3620 = vsel %vm2380, %v3132, 0.0
  %v3621 = vadd.f32 %v3619, %v3620
  %v3622 = vsel %vm2380, %v3133, 0.0
  %v3623 = vadd.f32 %v3621, %v3622
  %v3624 = vsel %vm2380, %v3134, 0.0
  %v3625 = vadd.f32 %v3623, %v3624
  %v3626 = vsel %vm2380, %v3135, 0.0
  %v3627 = vadd.f32 %v3625, %v3626
  %v3628 = vsel %vm2380, %v3136, 0.0
  %v3629 = vadd.f32 %v3627, %v3628
  %v3630 = vsel %vm2380, %v3137, 0.0
  %v3631 = vadd.f32 %v3629, %v3630
  %v3632 = vsel %vm2380, %v3138, 0.0
  %v3633 = vadd.f32 %v3631, %v3632
  %v3634 = vsel %vm2380, %v3139, 0.0
  %v3635 = vadd.f32 %v3633, %v3634
  %v3636 = vsel %vm2380, %v3140, 0.0
  %v3637 = vadd.f32 %v3635, %v3636
  %v3638 = vsel %vm2380, %v3141, 0.0
  %v3639 = vadd.f32 %v3637, %v3638
  %v3640 = vsel %vm2380, %v3142, 0.0
  %v3641 = vadd.f32 %v3639, %v3640
  %v3642 = vsel %vm2380, %v3143, 0.0
  %v3643 = vadd.f32 %v3641, %v3642
  %v3644 = vsel %vm2380, %v3144, 0.0
  %v3645 = vadd.f32 %v3643, %v3644
  %v3646 = vsel %vm2380, %v3145, 0.0
  %v3647 = vadd.f32 %v3645, %v3646
  %v3648 = vsel %vm2380, %v3146, 0.0
  %v3649 = vadd.f32 %v3647, %v3648
  %v3650 = vsel %vm2380, %v3147, 0.0
  %v3651 = vadd.f32 %v3649, %v3650
  %v3652 = vsel %vm2380, %v3148, 0.0
  %v3653 = vadd.f32 %v3651, %v3652
  %v3654 = vsel %vm2380, %v3149, 0.0
  %v3655 = vadd.f32 %v3653, %v3654
  %v3656 = vsel %vm2380, %v3150, 0.0
  %v3657 = vadd.f32 %v3655, %v3656
  %v3658 = vsel %vm2380, %v3151, 0.0
  %v3659 = vadd.f32 %v3657, %v3658
  %v3660 = vsel %vm2380, %v3152, 0.0
  %v3661 = vadd.f32 %v3659, %v3660
  %v3662 = vsel %vm2380, %v3153, 0.0
  %v3663 = vadd.f32 %v3661, %v3662
  %v3664 = vsel %vm2380, %v3154, 0.0
  %v3665 = vadd.f32 %v3663, %v3664
  %v3666 = vrot.slane %v3665, 4
  %v3667 = vadd.f32 %v3665, %v3666
  %v3668 = vrot.slane %v3667, 2
  %v3669 = vadd.f32 %v3667, %v3668
  %v3670 = vrot.slane %v3669, 1
  %v3671 = vadd.f32 %v3669, %v3670
  %v3672 = vmul.f32 %v3671, 0.00048828125
  %v3673 = vmul.f32 %v2898, %v2898
  %v3674 = vsub.f32 %v3672, %v3673
  %v3675 = vmax.f32 %v3674, 0.0
  %v3676 = vld [vmem:[%s2] sm:$0x1]
  %v3677 = vadd.f32 %v3675, 1e-05
  %v3678 = vrsqrt.pop %v3677
  %v3679 = vmul.f32 %v3676, %v3678
  %v3680 = vld [vmem:[%s3] sm:$0x1]
  %v3681 = vmul.f32 %v2898, %v3679
  %v3682 = vsub.f32 %v3680, %v3681
  %v3684 = vlaneseq
  %v3685 = vshrl.u32 %v3684, 7
  %v3686 = vsub.s32 0, %v3685
  %v3687 = vrot.slane %v3679, %v3686
  %v3689 = vmul.f32 %v1358, %v3687
  %v3690 = vmul.f32 %v1361, %v3687
  %v3691 = vmul.f32 %v1366, %v3687
  %v3692 = vmul.f32 %v1369, %v3687
  %v3693 = vmul.f32 %v1374, %v3687
  %v3694 = vmul.f32 %v1377, %v3687
  %v3695 = vmul.f32 %v1382, %v3687
  %v3696 = vmul.f32 %v1385, %v3687
  %v3697 = vmul.f32 %v1390, %v3687
  %v3698 = vmul.f32 %v1393, %v3687
  %v3699 = vmul.f32 %v1398, %v3687
  %v3700 = vmul.f32 %v1401, %v3687
  %v3701 = vmul.f32 %v1406, %v3687
  %v3702 = vmul.f32 %v1409, %v3687
  %v3703 = vmul.f32 %v1414, %v3687
  %v3704 = vmul.f32 %v1417, %v3687
  %v3705 = vmul.f32 %v1422, %v3687
  %v3706 = vmul.f32 %v1425, %v3687
  %v3707 = vmul.f32 %v1430, %v3687
  %v3708 = vmul.f32 %v1433, %v3687
  %v3709 = vmul.f32 %v1438, %v3687
  %v3710 = vmul.f32 %v1441, %v3687
  %v3711 = vmul.f32 %v1446, %v3687
  %v3712 = vmul.f32 %v1449, %v3687
  %v3713 = vmul.f32 %v1454, %v3687
  %v3714 = vmul.f32 %v1457, %v3687
  %v3715 = vmul.f32 %v1462, %v3687
  %v3716 = vmul.f32 %v1465, %v3687
  %v3717 = vmul.f32 %v1470, %v3687
  %v3718 = vmul.f32 %v1473, %v3687
  %v3719 = vmul.f32 %v1478, %v3687
  %v3720 = vmul.f32 %v1481, %v3687
  %v3721 = vmul.f32 %v1486, %v3687
  %v3722 = vmul.f32 %v1489, %v3687
  %v3723 = vmul.f32 %v1494, %v3687
  %v3724 = vmul.f32 %v1497, %v3687
  %v3725 = vmul.f32 %v1502, %v3687
  %v3726 = vmul.f32 %v1505, %v3687
  %v3727 = vmul.f32 %v1510, %v3687
  %v3728 = vmul.f32 %v1513, %v3687
  %v3729 = vmul.f32 %v1518, %v3687
  %v3730 = vmul.f32 %v1521, %v3687
  %v3731 = vmul.f32 %v1526, %v3687
  %v3732 = vmul.f32 %v1529, %v3687
  %v3733 = vmul.f32 %v1534, %v3687
  %v3734 = vmul.f32 %v1537, %v3687
  %v3735 = vmul.f32 %v1542, %v3687
  %v3736 = vmul.f32 %v1545, %v3687
  %v3737 = vmul.f32 %v1550, %v3687
  %v3738 = vmul.f32 %v1553, %v3687
  %v3739 = vmul.f32 %v1558, %v3687
  %v3740 = vmul.f32 %v1561, %v3687
  %v3741 = vmul.f32 %v1566, %v3687
  %v3742 = vmul.f32 %v1569, %v3687
  %v3743 = vmul.f32 %v1574, %v3687
  %v3744 = vmul.f32 %v1577, %v3687
  %v3745 = vmul.f32 %v1582, %v3687
  %v3746 = vmul.f32 %v1585, %v3687
  %v3747 = vmul.f32 %v1590, %v3687
  %v3748 = vmul.f32 %v1593, %v3687
  %v3749 = vmul.f32 %v1598, %v3687
  %v3750 = vmul.f32 %v1601, %v3687
  %v3751 = vmul.f32 %v1606, %v3687
  %v3752 = vmul.f32 %v1609, %v3687
  %v3753 = vmul.f32 %v1614, %v3687
  %v3754 = vmul.f32 %v1617, %v3687
  %v3755 = vmul.f32 %v1622, %v3687
  %v3756 = vmul.f32 %v1625, %v3687
  %v3757 = vmul.f32 %v1630, %v3687
  %v3758 = vmul.f32 %v1633, %v3687
  %v3759 = vmul.f32 %v1638, %v3687
  %v3760 = vmul.f32 %v1641, %v3687
  %v3761 = vmul.f32 %v1646, %v3687
  %v3762 = vmul.f32 %v1649, %v3687
  %v3763 = vmul.f32 %v1654, %v3687
  %v3764 = vmul.f32 %v1657, %v3687
  %v3765 = vmul.f32 %v1662, %v3687
  %v3766 = vmul.f32 %v1665, %v3687
  %v3767 = vmul.f32 %v1670, %v3687
  %v3768 = vmul.f32 %v1673, %v3687
  %v3769 = vmul.f32 %v1678, %v3687
  %v3770 = vmul.f32 %v1681, %v3687
  %v3771 = vmul.f32 %v1686, %v3687
  %v3772 = vmul.f32 %v1689, %v3687
  %v3773 = vmul.f32 %v1694, %v3687
  %v3774 = vmul.f32 %v1697, %v3687
  %v3775 = vmul.f32 %v1702, %v3687
  %v3776 = vmul.f32 %v1705, %v3687
  %v3777 = vmul.f32 %v1710, %v3687
  %v3778 = vmul.f32 %v1713, %v3687
  %v3779 = vmul.f32 %v1718, %v3687
  %v3780 = vmul.f32 %v1721, %v3687
  %v3781 = vmul.f32 %v1726, %v3687
  %v3782 = vmul.f32 %v1729, %v3687
  %v3783 = vmul.f32 %v1734, %v3687
  %v3784 = vmul.f32 %v1737, %v3687
  %v3785 = vmul.f32 %v1742, %v3687
  %v3786 = vmul.f32 %v1745, %v3687
  %v3787 = vmul.f32 %v1750, %v3687
  %v3788 = vmul.f32 %v1753, %v3687
  %v3789 = vmul.f32 %v1758, %v3687
  %v3790 = vmul.f32 %v1761, %v3687
  %v3791 = vmul.f32 %v1766, %v3687
  %v3792 = vmul.f32 %v1769, %v3687
  %v3793 = vmul.f32 %v1774, %v3687
  %v3794 = vmul.f32 %v1777, %v3687
  %v3795 = vmul.f32 %v1782, %v3687
  %v3796 = vmul.f32 %v1785, %v3687
  %v3797 = vmul.f32 %v1790, %v3687
  %v3798 = vmul.f32 %v1793, %v3687
  %v3799 = vmul.f32 %v1798, %v3687
  %v3800 = vmul.f32 %v1801, %v3687
  %v3801 = vmul.f32 %v1806, %v3687
  %v3802 = vmul.f32 %v1809, %v3687
  %v3803 = vmul.f32 %v1814, %v3687
  %v3804 = vmul.f32 %v1817, %v3687
  %v3805 = vmul.f32 %v1822, %v3687
  %v3806 = vmul.f32 %v1825, %v3687
  %v3807 = vmul.f32 %v1830, %v3687
  %v3808 = vmul.f32 %v1833, %v3687
  %v3809 = vmul.f32 %v1838, %v3687
  %v3810 = vmul.f32 %v1841, %v3687
  %v3811 = vmul.f32 %v1846, %v3687
  %v3812 = vmul.f32 %v1849, %v3687
  %v3813 = vmul.f32 %v1854, %v3687
  %v3814 = vmul.f32 %v1857, %v3687
  %v3815 = vmul.f32 %v1862, %v3687
  %v3816 = vmul.f32 %v1865, %v3687
  %v3817 = vmul.f32 %v1870, %v3687
  %v3818 = vmul.f32 %v1873, %v3687
  %v3819 = vmul.f32 %v1878, %v3687
  %v3820 = vmul.f32 %v1881, %v3687
  %v3821 = vmul.f32 %v1886, %v3687
  %v3822 = vmul.f32 %v1889, %v3687
  %v3823 = vmul.f32 %v1894, %v3687
  %v3824 = vmul.f32 %v1897, %v3687
  %v3825 = vmul.f32 %v1902, %v3687
  %v3826 = vmul.f32 %v1905, %v3687
  %v3827 = vmul.f32 %v1910, %v3687
  %v3828 = vmul.f32 %v1913, %v3687
  %v3829 = vmul.f32 %v1918, %v3687
  %v3830 = vmul.f32 %v1921, %v3687
  %v3831 = vmul.f32 %v1926, %v3687
  %v3832 = vmul.f32 %v1929, %v3687
  %v3833 = vmul.f32 %v1934, %v3687
  %v3834 = vmul.f32 %v1937, %v3687
  %v3835 = vmul.f32 %v1942, %v3687
  %v3836 = vmul.f32 %v1945, %v3687
  %v3837 = vmul.f32 %v1950, %v3687
  %v3838 = vmul.f32 %v1953, %v3687
  %v3839 = vmul.f32 %v1958, %v3687
  %v3840 = vmul.f32 %v1961, %v3687
  %v3841 = vmul.f32 %v1966, %v3687
  %v3842 = vmul.f32 %v1969, %v3687
  %v3843 = vmul.f32 %v1974, %v3687
  %v3844 = vmul.f32 %v1977, %v3687
  %v3845 = vmul.f32 %v1982, %v3687
  %v3846 = vmul.f32 %v1985, %v3687
  %v3847 = vmul.f32 %v1990, %v3687
  %v3848 = vmul.f32 %v1993, %v3687
  %v3849 = vmul.f32 %v1998, %v3687
  %v3850 = vmul.f32 %v2001, %v3687
  %v3851 = vmul.f32 %v2006, %v3687
  %v3852 = vmul.f32 %v2009, %v3687
  %v3853 = vmul.f32 %v2014, %v3687
  %v3854 = vmul.f32 %v2017, %v3687
  %v3855 = vmul.f32 %v2022, %v3687
  %v3856 = vmul.f32 %v2025, %v3687
  %v3857 = vmul.f32 %v2030, %v3687
  %v3858 = vmul.f32 %v2033, %v3687
  %v3859 = vmul.f32 %v2038, %v3687
  %v3860 = vmul.f32 %v2041, %v3687
  %v3861 = vmul.f32 %v2046, %v3687
  %v3862 = vmul.f32 %v2049, %v3687
  %v3863 = vmul.f32 %v2054, %v3687
  %v3864 = vmul.f32 %v2057, %v3687
  %v3865 = vmul.f32 %v2062, %v3687
  %v3866 = vmul.f32 %v2065, %v3687
  %v3867 = vmul.f32 %v2070, %v3687
  %v3868 = vmul.f32 %v2073, %v3687
  %v3869 = vmul.f32 %v2078, %v3687
  %v3870 = vmul.f32 %v2081, %v3687
  %v3871 = vmul.f32 %v2086, %v3687
  %v3872 = vmul.f32 %v2089, %v3687
  %v3873 = vmul.f32 %v2094, %v3687
  %v3874 = vmul.f32 %v2097, %v3687
  %v3875 = vmul.f32 %v2102, %v3687
  %v3876 = vmul.f32 %v2105, %v3687
  %v3877 = vmul.f32 %v2110, %v3687
  %v3878 = vmul.f32 %v2113, %v3687
  %v3879 = vmul.f32 %v2118, %v3687
  %v3880 = vmul.f32 %v2121, %v3687
  %v3881 = vmul.f32 %v2126, %v3687
  %v3882 = vmul.f32 %v2129, %v3687
  %v3883 = vmul.f32 %v2134, %v3687
  %v3884 = vmul.f32 %v2137, %v3687
  %v3885 = vmul.f32 %v2142, %v3687
  %v3886 = vmul.f32 %v2145, %v3687
  %v3887 = vmul.f32 %v2150, %v3687
  %v3888 = vmul.f32 %v2153, %v3687
  %v3889 = vmul.f32 %v2158, %v3687
  %v3890 = vmul.f32 %v2161, %v3687
  %v3891 = vmul.f32 %v2166, %v3687
  %v3892 = vmul.f32 %v2169, %v3687
  %v3893 = vmul.f32 %v2174, %v3687
  %v3894 = vmul.f32 %v2177, %v3687
  %v3895 = vmul.f32 %v2182, %v3687
  %v3896 = vmul.f32 %v2185, %v3687
  %v3897 = vmul.f32 %v2190, %v3687
  %v3898 = vmul.f32 %v2193, %v3687
  %v3899 = vmul.f32 %v2198, %v3687
  %v3900 = vmul.f32 %v2201, %v3687
  %v3901 = vmul.f32 %v2206, %v3687
  %v3902 = vmul.f32 %v2209, %v3687
  %v3903 = vmul.f32 %v2214, %v3687
  %v3904 = vmul.f32 %v2217, %v3687
  %v3905 = vmul.f32 %v2222, %v3687
  %v3906 = vmul.f32 %v2225, %v3687
  %v3907 = vmul.f32 %v2230, %v3687
  %v3908 = vmul.f32 %v2233, %v3687
  %v3909 = vmul.f32 %v2238, %v3687
  %v3910 = vmul.f32 %v2241, %v3687
  %v3911 = vmul.f32 %v2246, %v3687
  %v3912 = vmul.f32 %v2249, %v3687
  %v3913 = vmul.f32 %v2254, %v3687
  %v3914 = vmul.f32 %v2257, %v3687
  %v3915 = vmul.f32 %v2262, %v3687
  %v3916 = vmul.f32 %v2265, %v3687
  %v3917 = vmul.f32 %v2270, %v3687
  %v3918 = vmul.f32 %v2273, %v3687
  %v3919 = vmul.f32 %v2278, %v3687
  %v3920 = vmul.f32 %v2281, %v3687
  %v3921 = vmul.f32 %v2286, %v3687
  %v3922 = vmul.f32 %v2289, %v3687
  %v3923 = vmul.f32 %v2294, %v3687
  %v3924 = vmul.f32 %v2297, %v3687
  %v3925 = vmul.f32 %v2302, %v3687
  %v3926 = vmul.f32 %v2305, %v3687
  %v3927 = vmul.f32 %v2310, %v3687
  %v3928 = vmul.f32 %v2313, %v3687
  %v3929 = vmul.f32 %v2318, %v3687
  %v3930 = vmul.f32 %v2321, %v3687
  %v3931 = vmul.f32 %v2326, %v3687
  %v3932 = vmul.f32 %v2329, %v3687
  %v3933 = vmul.f32 %v2334, %v3687
  %v3934 = vmul.f32 %v2337, %v3687
  %v3935 = vmul.f32 %v2342, %v3687
  %v3936 = vmul.f32 %v2345, %v3687
  %v3937 = vmul.f32 %v2350, %v3687
  %v3938 = vmul.f32 %v2353, %v3687
  %v3939 = vmul.f32 %v2358, %v3687
  %v3940 = vmul.f32 %v2361, %v3687
  %v3941 = vmul.f32 %v2366, %v3687
  %v3942 = vmul.f32 %v2369, %v3687
  %v3943 = vmul.f32 %v2374, %v3687
  %v3944 = vmul.f32 %v2377, %v3687
  %v3946 = vlaneseq
  %v3947 = vshrl.u32 %v3946, 7
  %v3948 = vsub.s32 0, %v3947
  %v3949 = vrot.slane %v3682, %v3948
  %v3951 = vadd.f32 %v3689, %v3949
  %v3952 = vadd.f32 %v3690, %v3949
  %v3953 = vadd.f32 %v3691, %v3949
  %v3954 = vadd.f32 %v3692, %v3949
  %v3955 = vadd.f32 %v3693, %v3949
  %v3956 = vadd.f32 %v3694, %v3949
  %v3957 = vadd.f32 %v3695, %v3949
  %v3958 = vadd.f32 %v3696, %v3949
  %v3959 = vadd.f32 %v3697, %v3949
  %v3960 = vadd.f32 %v3698, %v3949
  %v3961 = vadd.f32 %v3699, %v3949
  %v3962 = vadd.f32 %v3700, %v3949
  %v3963 = vadd.f32 %v3701, %v3949
  %v3964 = vadd.f32 %v3702, %v3949
  %v3965 = vadd.f32 %v3703, %v3949
  %v3966 = vadd.f32 %v3704, %v3949
  %v3967 = vadd.f32 %v3705, %v3949
  %v3968 = vadd.f32 %v3706, %v3949
  %v3969 = vadd.f32 %v3707, %v3949
  %v3970 = vadd.f32 %v3708, %v3949
  %v3971 = vadd.f32 %v3709, %v3949
  %v3972 = vadd.f32 %v3710, %v3949
  %v3973 = vadd.f32 %v3711, %v3949
  %v3974 = vadd.f32 %v3712, %v3949
  %v3975 = vadd.f32 %v3713, %v3949
  %v3976 = vadd.f32 %v3714, %v3949
  %v3977 = vadd.f32 %v3715, %v3949
  %v3978 = vadd.f32 %v3716, %v3949
  %v3979 = vadd.f32 %v3717, %v3949
  %v3980 = vadd.f32 %v3718, %v3949
  %v3981 = vadd.f32 %v3719, %v3949
  %v3982 = vadd.f32 %v3720, %v3949
  %v3983 = vadd.f32 %v3721, %v3949
  %v3984 = vadd.f32 %v3722, %v3949
  %v3985 = vadd.f32 %v3723, %v3949
  %v3986 = vadd.f32 %v3724, %v3949
  %v3987 = vadd.f32 %v3725, %v3949
  %v3988 = vadd.f32 %v3726, %v3949
  %v3989 = vadd.f32 %v3727, %v3949
  %v3990 = vadd.f32 %v3728, %v3949
  %v3991 = vadd.f32 %v3729, %v3949
  %v3992 = vadd.f32 %v3730, %v3949
  %v3993 = vadd.f32 %v3731, %v3949
  %v3994 = vadd.f32 %v3732, %v3949
  %v3995 = vadd.f32 %v3733, %v3949
  %v3996 = vadd.f32 %v3734, %v3949
  %v3997 = vadd.f32 %v3735, %v3949
  %v3998 = vadd.f32 %v3736, %v3949
  %v3999 = vadd.f32 %v3737, %v3949
  %v4000 = vadd.f32 %v3738, %v3949
  %v4001 = vadd.f32 %v3739, %v3949
  %v4002 = vadd.f32 %v3740, %v3949
  %v4003 = vadd.f32 %v3741, %v3949
  %v4004 = vadd.f32 %v3742, %v3949
  %v4005 = vadd.f32 %v3743, %v3949
  %v4006 = vadd.f32 %v3744, %v3949
  %v4007 = vadd.f32 %v3745, %v3949
  %v4008 = vadd.f32 %v3746, %v3949
  %v4009 = vadd.f32 %v3747, %v3949
  %v4010 = vadd.f32 %v3748, %v3949
  %v4011 = vadd.f32 %v3749, %v3949
  %v4012 = vadd.f32 %v3750, %v3949
  %v4013 = vadd.f32 %v3751, %v3949
  %v4014 = vadd.f32 %v3752, %v3949
  %v4015 = vadd.f32 %v3753, %v3949
  %v4016 = vadd.f32 %v3754, %v3949
  %v4017 = vadd.f32 %v3755, %v3949
  %v4018 = vadd.f32 %v3756, %v3949
  %v4019 = vadd.f32 %v3757, %v3949
  %v4020 = vadd.f32 %v3758, %v3949
  %v4021 = vadd.f32 %v3759, %v3949
  %v4022 = vadd.f32 %v3760, %v3949
  %v4023 = vadd.f32 %v3761, %v3949
  %v4024 = vadd.f32 %v3762, %v3949
  %v4025 = vadd.f32 %v3763, %v3949
  %v4026 = vadd.f32 %v3764, %v3949
  %v4027 = vadd.f32 %v3765, %v3949
  %v4028 = vadd.f32 %v3766, %v3949
  %v4029 = vadd.f32 %v3767, %v3949
  %v4030 = vadd.f32 %v3768, %v3949
  %v4031 = vadd.f32 %v3769, %v3949
  %v4032 = vadd.f32 %v3770, %v3949
  %v4033 = vadd.f32 %v3771, %v3949
  %v4034 = vadd.f32 %v3772, %v3949
  %v4035 = vadd.f32 %v3773, %v3949
  %v4036 = vadd.f32 %v3774, %v3949
  %v4037 = vadd.f32 %v3775, %v3949
  %v4038 = vadd.f32 %v3776, %v3949
  %v4039 = vadd.f32 %v3777, %v3949
  %v4040 = vadd.f32 %v3778, %v3949
  %v4041 = vadd.f32 %v3779, %v3949
  %v4042 = vadd.f32 %v3780, %v3949
  %v4043 = vadd.f32 %v3781, %v3949
  %v4044 = vadd.f32 %v3782, %v3949
  %v4045 = vadd.f32 %v3783, %v3949
  %v4046 = vadd.f32 %v3784, %v3949
  %v4047 = vadd.f32 %v3785, %v3949
  %v4048 = vadd.f32 %v3786, %v3949
  %v4049 = vadd.f32 %v3787, %v3949
  %v4050 = vadd.f32 %v3788, %v3949
  %v4051 = vadd.f32 %v3789, %v3949
  %v4052 = vadd.f32 %v3790, %v3949
  %v4053 = vadd.f32 %v3791, %v3949
  %v4054 = vadd.f32 %v3792, %v3949
  %v4055 = vadd.f32 %v3793, %v3949
  %v4056 = vadd.f32 %v3794, %v3949
  %v4057 = vadd.f32 %v3795, %v3949
  %v4058 = vadd.f32 %v3796, %v3949
  %v4059 = vadd.f32 %v3797, %v3949
  %v4060 = vadd.f32 %v3798, %v3949
  %v4061 = vadd.f32 %v3799, %v3949
  %v4062 = vadd.f32 %v3800, %v3949
  %v4063 = vadd.f32 %v3801, %v3949
  %v4064 = vadd.f32 %v3802, %v3949
  %v4065 = vadd.f32 %v3803, %v3949
  %v4066 = vadd.f32 %v3804, %v3949
  %v4067 = vadd.f32 %v3805, %v3949
  %v4068 = vadd.f32 %v3806, %v3949
  %v4069 = vadd.f32 %v3807, %v3949
  %v4070 = vadd.f32 %v3808, %v3949
  %v4071 = vadd.f32 %v3809, %v3949
  %v4072 = vadd.f32 %v3810, %v3949
  %v4073 = vadd.f32 %v3811, %v3949
  %v4074 = vadd.f32 %v3812, %v3949
  %v4075 = vadd.f32 %v3813, %v3949
  %v4076 = vadd.f32 %v3814, %v3949
  %v4077 = vadd.f32 %v3815, %v3949
  %v4078 = vadd.f32 %v3816, %v3949
  %v4079 = vadd.f32 %v3817, %v3949
  %v4080 = vadd.f32 %v3818, %v3949
  %v4081 = vadd.f32 %v3819, %v3949
  %v4082 = vadd.f32 %v3820, %v3949
  %v4083 = vadd.f32 %v3821, %v3949
  %v4084 = vadd.f32 %v3822, %v3949
  %v4085 = vadd.f32 %v3823, %v3949
  %v4086 = vadd.f32 %v3824, %v3949
  %v4087 = vadd.f32 %v3825, %v3949
  %v4088 = vadd.f32 %v3826, %v3949
  %v4089 = vadd.f32 %v3827, %v3949
  %v4090 = vadd.f32 %v3828, %v3949
  %v4091 = vadd.f32 %v3829, %v3949
  %v4092 = vadd.f32 %v3830, %v3949
  %v4093 = vadd.f32 %v3831, %v3949
  %v4094 = vadd.f32 %v3832, %v3949
  %v4095 = vadd.f32 %v3833, %v3949
  %v4096 = vadd.f32 %v3834, %v3949
  %v4097 = vadd.f32 %v3835, %v3949
  %v4098 = vadd.f32 %v3836, %v3949
  %v4099 = vadd.f32 %v3837, %v3949
  %v4100 = vadd.f32 %v3838, %v3949
  %v4101 = vadd.f32 %v3839, %v3949
  %v4102 = vadd.f32 %v3840, %v3949
  %v4103 = vadd.f32 %v3841, %v3949
  %v4104 = vadd.f32 %v3842, %v3949
  %v4105 = vadd.f32 %v3843, %v3949
  %v4106 = vadd.f32 %v3844, %v3949
  %v4107 = vadd.f32 %v3845, %v3949
  %v4108 = vadd.f32 %v3846, %v3949
  %v4109 = vadd.f32 %v3847, %v3949
  %v4110 = vadd.f32 %v3848, %v3949
  %v4111 = vadd.f32 %v3849, %v3949
  %v4112 = vadd.f32 %v3850, %v3949
  %v4113 = vadd.f32 %v3851, %v3949
  %v4114 = vadd.f32 %v3852, %v3949
  %v4115 = vadd.f32 %v3853, %v3949
  %v4116 = vadd.f32 %v3854, %v3949
  %v4117 = vadd.f32 %v3855, %v3949
  %v4118 = vadd.f32 %v3856, %v3949
  %v4119 = vadd.f32 %v3857, %v3949
  %v4120 = vadd.f32 %v3858, %v3949
  %v4121 = vadd.f32 %v3859, %v3949
  %v4122 = vadd.f32 %v3860, %v3949
  %v4123 = vadd.f32 %v3861, %v3949
  %v4124 = vadd.f32 %v3862, %v3949
  %v4125 = vadd.f32 %v3863, %v3949
  %v4126 = vadd.f32 %v3864, %v3949
  %v4127 = vadd.f32 %v3865, %v3949
  %v4128 = vadd.f32 %v3866, %v3949
  %v4129 = vadd.f32 %v3867, %v3949
  %v4130 = vadd.f32 %v3868, %v3949
  %v4131 = vadd.f32 %v3869, %v3949
  %v4132 = vadd.f32 %v3870, %v3949
  %v4133 = vadd.f32 %v3871, %v3949
  %v4134 = vadd.f32 %v3872, %v3949
  %v4135 = vadd.f32 %v3873, %v3949
  %v4136 = vadd.f32 %v3874, %v3949
  %v4137 = vadd.f32 %v3875, %v3949
  %v4138 = vadd.f32 %v3876, %v3949
  %v4139 = vadd.f32 %v3877, %v3949
  %v4140 = vadd.f32 %v3878, %v3949
  %v4141 = vadd.f32 %v3879, %v3949
  %v4142 = vadd.f32 %v3880, %v3949
  %v4143 = vadd.f32 %v3881, %v3949
  %v4144 = vadd.f32 %v3882, %v3949
  %v4145 = vadd.f32 %v3883, %v3949
  %v4146 = vadd.f32 %v3884, %v3949
  %v4147 = vadd.f32 %v3885, %v3949
  %v4148 = vadd.f32 %v3886, %v3949
  %v4149 = vadd.f32 %v3887, %v3949
  %v4150 = vadd.f32 %v3888, %v3949
  %v4151 = vadd.f32 %v3889, %v3949
  %v4152 = vadd.f32 %v3890, %v3949
  %v4153 = vadd.f32 %v3891, %v3949
  %v4154 = vadd.f32 %v3892, %v3949
  %v4155 = vadd.f32 %v3893, %v3949
  %v4156 = vadd.f32 %v3894, %v3949
  %v4157 = vadd.f32 %v3895, %v3949
  %v4158 = vadd.f32 %v3896, %v3949
  %v4159 = vadd.f32 %v3897, %v3949
  %v4160 = vadd.f32 %v3898, %v3949
  %v4161 = vadd.f32 %v3899, %v3949
  %v4162 = vadd.f32 %v3900, %v3949
  %v4163 = vadd.f32 %v3901, %v3949
  %v4164 = vadd.f32 %v3902, %v3949
  %v4165 = vadd.f32 %v3903, %v3949
  %v4166 = vadd.f32 %v3904, %v3949
  %v4167 = vadd.f32 %v3905, %v3949
  %v4168 = vadd.f32 %v3906, %v3949
  %v4169 = vadd.f32 %v3907, %v3949
  %v4170 = vadd.f32 %v3908, %v3949
  %v4171 = vadd.f32 %v3909, %v3949
  %v4172 = vadd.f32 %v3910, %v3949
  %v4173 = vadd.f32 %v3911, %v3949
  %v4174 = vadd.f32 %v3912, %v3949
  %v4175 = vadd.f32 %v3913, %v3949
  %v4176 = vadd.f32 %v3914, %v3949
  %v4177 = vadd.f32 %v3915, %v3949
  %v4178 = vadd.f32 %v3916, %v3949
  %v4179 = vadd.f32 %v3917, %v3949
  %v4180 = vadd.f32 %v3918, %v3949
  %v4181 = vadd.f32 %v3919, %v3949
  %v4182 = vadd.f32 %v3920, %v3949
  %v4183 = vadd.f32 %v3921, %v3949
  %v4184 = vadd.f32 %v3922, %v3949
  %v4185 = vadd.f32 %v3923, %v3949
  %v4186 = vadd.f32 %v3924, %v3949
  %v4187 = vadd.f32 %v3925, %v3949
  %v4188 = vadd.f32 %v3926, %v3949
  %v4189 = vadd.f32 %v3927, %v3949
  %v4190 = vadd.f32 %v3928, %v3949
  %v4191 = vadd.f32 %v3929, %v3949
  %v4192 = vadd.f32 %v3930, %v3949
  %v4193 = vadd.f32 %v3931, %v3949
  %v4194 = vadd.f32 %v3932, %v3949
  %v4195 = vadd.f32 %v3933, %v3949
  %v4196 = vadd.f32 %v3934, %v3949
  %v4197 = vadd.f32 %v3935, %v3949
  %v4198 = vadd.f32 %v3936, %v3949
  %v4199 = vadd.f32 %v3937, %v3949
  %v4200 = vadd.f32 %v3938, %v3949
  %v4201 = vadd.f32 %v3939, %v3949
  %v4202 = vadd.f32 %v3940, %v3949
  %v4203 = vadd.f32 %v3941, %v3949
  %v4204 = vadd.f32 %v3942, %v3949
  %v4205 = vadd.f32 %v3943, %v3949
  %v4206 = vadd.f32 %v3944, %v3949
  %v4207 = vmax.f32 %v3951, 0.0
  %v4208 = vmax.f32 %v3952, 0.0
  %v4209 = vmax.f32 %v3953, 0.0
  %v4210 = vmax.f32 %v3954, 0.0
  %v4211 = vmax.f32 %v3955, 0.0
  %v4212 = vmax.f32 %v3956, 0.0
  %v4213 = vmax.f32 %v3957, 0.0
  %v4214 = vmax.f32 %v3958, 0.0
  %v4215 = vmax.f32 %v3959, 0.0
  %v4216 = vmax.f32 %v3960, 0.0
  %v4217 = vmax.f32 %v3961, 0.0
  %v4218 = vmax.f32 %v3962, 0.0
  %v4219 = vmax.f32 %v3963, 0.0
  %v4220 = vmax.f32 %v3964, 0.0
  %v4221 = vmax.f32 %v3965, 0.0
  %v4222 = vmax.f32 %v3966, 0.0
  %v4223 = vmax.f32 %v3967, 0.0
  %v4224 = vmax.f32 %v3968, 0.0
  %v4225 = vmax.f32 %v3969, 0.0
  %v4226 = vmax.f32 %v3970, 0.0
  %v4227 = vmax.f32 %v3971, 0.0
  %v4228 = vmax.f32 %v3972, 0.0
  %v4229 = vmax.f32 %v3973, 0.0
  %v4230 = vmax.f32 %v3974, 0.0
  %v4231 = vmax.f32 %v3975, 0.0
  %v4232 = vmax.f32 %v3976, 0.0
  %v4233 = vmax.f32 %v3977, 0.0
  %v4234 = vmax.f32 %v3978, 0.0
  %v4235 = vmax.f32 %v3979, 0.0
  %v4236 = vmax.f32 %v3980, 0.0
  %v4237 = vmax.f32 %v3981, 0.0
  %v4238 = vmax.f32 %v3982, 0.0
  %v4239 = vmax.f32 %v3983, 0.0
  %v4240 = vmax.f32 %v3984, 0.0
  %v4241 = vmax.f32 %v3985, 0.0
  %v4242 = vmax.f32 %v3986, 0.0
  %v4243 = vmax.f32 %v3987, 0.0
  %v4244 = vmax.f32 %v3988, 0.0
  %v4245 = vmax.f32 %v3989, 0.0
  %v4246 = vmax.f32 %v3990, 0.0
  %v4247 = vmax.f32 %v3991, 0.0
  %v4248 = vmax.f32 %v3992, 0.0
  %v4249 = vmax.f32 %v3993, 0.0
  %v4250 = vmax.f32 %v3994, 0.0
  %v4251 = vmax.f32 %v3995, 0.0
  %v4252 = vmax.f32 %v3996, 0.0
  %v4253 = vmax.f32 %v3997, 0.0
  %v4254 = vmax.f32 %v3998, 0.0
  %v4255 = vmax.f32 %v3999, 0.0
  %v4256 = vmax.f32 %v4000, 0.0
  %v4257 = vmax.f32 %v4001, 0.0
  %v4258 = vmax.f32 %v4002, 0.0
  %v4259 = vmax.f32 %v4003, 0.0
  %v4260 = vmax.f32 %v4004, 0.0
  %v4261 = vmax.f32 %v4005, 0.0
  %v4262 = vmax.f32 %v4006, 0.0
  %v4263 = vmax.f32 %v4007, 0.0
  %v4264 = vmax.f32 %v4008, 0.0
  %v4265 = vmax.f32 %v4009, 0.0
  %v4266 = vmax.f32 %v4010, 0.0
  %v4267 = vmax.f32 %v4011, 0.0
  %v4268 = vmax.f32 %v4012, 0.0
  %v4269 = vmax.f32 %v4013, 0.0
  %v4270 = vmax.f32 %v4014, 0.0
  %v4271 = vmax.f32 %v4015, 0.0
  %v4272 = vmax.f32 %v4016, 0.0
  %v4273 = vmax.f32 %v4017, 0.0
  %v4274 = vmax.f32 %v4018, 0.0
  %v4275 = vmax.f32 %v4019, 0.0
  %v4276 = vmax.f32 %v4020, 0.0
  %v4277 = vmax.f32 %v4021, 0.0
  %v4278 = vmax.f32 %v4022, 0.0
  %v4279 = vmax.f32 %v4023, 0.0
  %v4280 = vmax.f32 %v4024, 0.0
  %v4281 = vmax.f32 %v4025, 0.0
  %v4282 = vmax.f32 %v4026, 0.0
  %v4283 = vmax.f32 %v4027, 0.0
  %v4284 = vmax.f32 %v4028, 0.0
  %v4285 = vmax.f32 %v4029, 0.0
  %v4286 = vmax.f32 %v4030, 0.0
  %v4287 = vmax.f32 %v4031, 0.0
  %v4288 = vmax.f32 %v4032, 0.0
  %v4289 = vmax.f32 %v4033, 0.0
  %v4290 = vmax.f32 %v4034, 0.0
  %v4291 = vmax.f32 %v4035, 0.0
  %v4292 = vmax.f32 %v4036, 0.0
  %v4293 = vmax.f32 %v4037, 0.0
  %v4294 = vmax.f32 %v4038, 0.0
  %v4295 = vmax.f32 %v4039, 0.0
  %v4296 = vmax.f32 %v4040, 0.0
  %v4297 = vmax.f32 %v4041, 0.0
  %v4298 = vmax.f32 %v4042, 0.0
  %v4299 = vmax.f32 %v4043, 0.0
  %v4300 = vmax.f32 %v4044, 0.0
  %v4301 = vmax.f32 %v4045, 0.0
  %v4302 = vmax.f32 %v4046, 0.0
  %v4303 = vmax.f32 %v4047, 0.0
  %v4304 = vmax.f32 %v4048, 0.0
  %v4305 = vmax.f32 %v4049, 0.0
  %v4306 = vmax.f32 %v4050, 0.0
  %v4307 = vmax.f32 %v4051, 0.0
  %v4308 = vmax.f32 %v4052, 0.0
  %v4309 = vmax.f32 %v4053, 0.0
  %v4310 = vmax.f32 %v4054, 0.0
  %v4311 = vmax.f32 %v4055, 0.0
  %v4312 = vmax.f32 %v4056, 0.0
  %v4313 = vmax.f32 %v4057, 0.0
  %v4314 = vmax.f32 %v4058, 0.0
  %v4315 = vmax.f32 %v4059, 0.0
  %v4316 = vmax.f32 %v4060, 0.0
  %v4317 = vmax.f32 %v4061, 0.0
  %v4318 = vmax.f32 %v4062, 0.0
  %v4319 = vmax.f32 %v4063, 0.0
  %v4320 = vmax.f32 %v4064, 0.0
  %v4321 = vmax.f32 %v4065, 0.0
  %v4322 = vmax.f32 %v4066, 0.0
  %v4323 = vmax.f32 %v4067, 0.0
  %v4324 = vmax.f32 %v4068, 0.0
  %v4325 = vmax.f32 %v4069, 0.0
  %v4326 = vmax.f32 %v4070, 0.0
  %v4327 = vmax.f32 %v4071, 0.0
  %v4328 = vmax.f32 %v4072, 0.0
  %v4329 = vmax.f32 %v4073, 0.0
  %v4330 = vmax.f32 %v4074, 0.0
  %v4331 = vmax.f32 %v4075, 0.0
  %v4332 = vmax.f32 %v4076, 0.0
  %v4333 = vmax.f32 %v4077, 0.0
  %v4334 = vmax.f32 %v4078, 0.0
  %v4335 = vmax.f32 %v4079, 0.0
  %v4336 = vmax.f32 %v4080, 0.0
  %v4337 = vmax.f32 %v4081, 0.0
  %v4338 = vmax.f32 %v4082, 0.0
  %v4339 = vmax.f32 %v4083, 0.0
  %v4340 = vmax.f32 %v4084, 0.0
  %v4341 = vmax.f32 %v4085, 0.0
  %v4342 = vmax.f32 %v4086, 0.0
  %v4343 = vmax.f32 %v4087, 0.0
  %v4344 = vmax.f32 %v4088, 0.0
  %v4345 = vmax.f32 %v4089, 0.0
  %v4346 = vmax.f32 %v4090, 0.0
  %v4347 = vmax.f32 %v4091, 0.0
  %v4348 = vmax.f32 %v4092, 0.0
  %v4349 = vmax.f32 %v4093, 0.0
  %v4350 = vmax.f32 %v4094, 0.0
  %v4351 = vmax.f32 %v4095, 0.0
  %v4352 = vmax.f32 %v4096, 0.0
  %v4353 = vmax.f32 %v4097, 0.0
  %v4354 = vmax.f32 %v4098, 0.0
  %v4355 = vmax.f32 %v4099, 0.0
  %v4356 = vmax.f32 %v4100, 0.0
  %v4357 = vmax.f32 %v4101, 0.0
  %v4358 = vmax.f32 %v4102, 0.0
  %v4359 = vmax.f32 %v4103, 0.0
  %v4360 = vmax.f32 %v4104, 0.0
  %v4361 = vmax.f32 %v4105, 0.0
  %v4362 = vmax.f32 %v4106, 0.0
  %v4363 = vmax.f32 %v4107, 0.0
  %v4364 = vmax.f32 %v4108, 0.0
  %v4365 = vmax.f32 %v4109, 0.0
  %v4366 = vmax.f32 %v4110, 0.0
  %v4367 = vmax.f32 %v4111, 0.0
  %v4368 = vmax.f32 %v4112, 0.0
  %v4369 = vmax.f32 %v4113, 0.0
  %v4370 = vmax.f32 %v4114, 0.0
  %v4371 = vmax.f32 %v4115, 0.0
  %v4372 = vmax.f32 %v4116, 0.0
  %v4373 = vmax.f32 %v4117, 0.0
  %v4374 = vmax.f32 %v4118, 0.0
  %v4375 = vmax.f32 %v4119, 0.0
  %v4376 = vmax.f32 %v4120, 0.0
  %v4377 = vmax.f32 %v4121, 0.0
  %v4378 = vmax.f32 %v4122, 0.0
  %v4379 = vmax.f32 %v4123, 0.0
  %v4380 = vmax.f32 %v4124, 0.0
  %v4381 = vmax.f32 %v4125, 0.0
  %v4382 = vmax.f32 %v4126, 0.0
  %v4383 = vmax.f32 %v4127, 0.0
  %v4384 = vmax.f32 %v4128, 0.0
  %v4385 = vmax.f32 %v4129, 0.0
  %v4386 = vmax.f32 %v4130, 0.0
  %v4387 = vmax.f32 %v4131, 0.0
  %v4388 = vmax.f32 %v4132, 0.0
  %v4389 = vmax.f32 %v4133, 0.0
  %v4390 = vmax.f32 %v4134, 0.0
  %v4391 = vmax.f32 %v4135, 0.0
  %v4392 = vmax.f32 %v4136, 0.0
  %v4393 = vmax.f32 %v4137, 0.0
  %v4394 = vmax.f32 %v4138, 0.0
  %v4395 = vmax.f32 %v4139, 0.0
  %v4396 = vmax.f32 %v4140, 0.0
  %v4397 = vmax.f32 %v4141, 0.0
  %v4398 = vmax.f32 %v4142, 0.0
  %v4399 = vmax.f32 %v4143, 0.0
  %v4400 = vmax.f32 %v4144, 0.0
  %v4401 = vmax.f32 %v4145, 0.0
  %v4402 = vmax.f32 %v4146, 0.0
  %v4403 = vmax.f32 %v4147, 0.0
  %v4404 = vmax.f32 %v4148, 0.0
  %v4405 = vmax.f32 %v4149, 0.0
  %v4406 = vmax.f32 %v4150, 0.0
  %v4407 = vmax.f32 %v4151, 0.0
  %v4408 = vmax.f32 %v4152, 0.0
  %v4409 = vmax.f32 %v4153, 0.0
  %v4410 = vmax.f32 %v4154, 0.0
  %v4411 = vmax.f32 %v4155, 0.0
  %v4412 = vmax.f32 %v4156, 0.0
  %v4413 = vmax.f32 %v4157, 0.0
  %v4414 = vmax.f32 %v4158, 0.0
  %v4415 = vmax.f32 %v4159, 0.0
  %v4416 = vmax.f32 %v4160, 0.0
  %v4417 = vmax.f32 %v4161, 0.0
  %v4418 = vmax.f32 %v4162, 0.0
  %v4419 = vmax.f32 %v4163, 0.0
  %v4420 = vmax.f32 %v4164, 0.0
  %v4421 = vmax.f32 %v4165, 0.0
  %v4422 = vmax.f32 %v4166, 0.0
  %v4423 = vmax.f32 %v4167, 0.0
  %v4424 = vmax.f32 %v4168, 0.0
  %v4425 = vmax.f32 %v4169, 0.0
  %v4426 = vmax.f32 %v4170, 0.0
  %v4427 = vmax.f32 %v4171, 0.0
  %v4428 = vmax.f32 %v4172, 0.0
  %v4429 = vmax.f32 %v4173, 0.0
  %v4430 = vmax.f32 %v4174, 0.0
  %v4431 = vmax.f32 %v4175, 0.0
  %v4432 = vmax.f32 %v4176, 0.0
  %v4433 = vmax.f32 %v4177, 0.0
  %v4434 = vmax.f32 %v4178, 0.0
  %v4435 = vmax.f32 %v4179, 0.0
  %v4436 = vmax.f32 %v4180, 0.0
  %v4437 = vmax.f32 %v4181, 0.0
  %v4438 = vmax.f32 %v4182, 0.0
  %v4439 = vmax.f32 %v4183, 0.0
  %v4440 = vmax.f32 %v4184, 0.0
  %v4441 = vmax.f32 %v4185, 0.0
  %v4442 = vmax.f32 %v4186, 0.0
  %v4443 = vmax.f32 %v4187, 0.0
  %v4444 = vmax.f32 %v4188, 0.0
  %v4445 = vmax.f32 %v4189, 0.0
  %v4446 = vmax.f32 %v4190, 0.0
  %v4447 = vmax.f32 %v4191, 0.0
  %v4448 = vmax.f32 %v4192, 0.0
  %v4449 = vmax.f32 %v4193, 0.0
  %v4450 = vmax.f32 %v4194, 0.0
  %v4451 = vmax.f32 %v4195, 0.0
  %v4452 = vmax.f32 %v4196, 0.0
  %v4453 = vmax.f32 %v4197, 0.0
  %v4454 = vmax.f32 %v4198, 0.0
  %v4455 = vmax.f32 %v4199, 0.0
  %v4456 = vmax.f32 %v4200, 0.0
  %v4457 = vmax.f32 %v4201, 0.0
  %v4458 = vmax.f32 %v4202, 0.0
  %v4459 = vmax.f32 %v4203, 0.0
  %v4460 = vmax.f32 %v4204, 0.0
  %v4461 = vmax.f32 %v4205, 0.0
  %v4462 = vmax.f32 %v4206, 0.0
  %v4463 = vpack.c.bf16 %v4208, %v4207
  %v4464 = vpack.c.bf16 %v4210, %v4209
  %v4465 = vpack.c.bf16 %v4212, %v4211
  %v4466 = vpack.c.bf16 %v4214, %v4213
  %v4467 = vpack.c.bf16 %v4216, %v4215
  %v4468 = vpack.c.bf16 %v4218, %v4217
  %v4469 = vpack.c.bf16 %v4220, %v4219
  %v4470 = vpack.c.bf16 %v4222, %v4221
  %v4471 = vpack.c.bf16 %v4224, %v4223
  %v4472 = vpack.c.bf16 %v4226, %v4225
  %v4473 = vpack.c.bf16 %v4228, %v4227
  %v4474 = vpack.c.bf16 %v4230, %v4229
  %v4475 = vpack.c.bf16 %v4232, %v4231
  %v4476 = vpack.c.bf16 %v4234, %v4233
  %v4477 = vpack.c.bf16 %v4236, %v4235
  %v4478 = vpack.c.bf16 %v4238, %v4237
  %v4479 = vpack.c.bf16 %v4240, %v4239
  %v4480 = vpack.c.bf16 %v4242, %v4241
  %v4481 = vpack.c.bf16 %v4244, %v4243
  %v4482 = vpack.c.bf16 %v4246, %v4245
  %v4483 = vpack.c.bf16 %v4248, %v4247
  %v4484 = vpack.c.bf16 %v4250, %v4249
  %v4485 = vpack.c.bf16 %v4252, %v4251
  %v4486 = vpack.c.bf16 %v4254, %v4253
  %v4487 = vpack.c.bf16 %v4256, %v4255
  %v4488 = vpack.c.bf16 %v4258, %v4257
  %v4489 = vpack.c.bf16 %v4260, %v4259
  %v4490 = vpack.c.bf16 %v4262, %v4261
  %v4491 = vpack.c.bf16 %v4264, %v4263
  %v4492 = vpack.c.bf16 %v4266, %v4265
  %v4493 = vpack.c.bf16 %v4268, %v4267
  %v4494 = vpack.c.bf16 %v4270, %v4269
  %v4495 = vpack.c.bf16 %v4272, %v4271
  %v4496 = vpack.c.bf16 %v4274, %v4273
  %v4497 = vpack.c.bf16 %v4276, %v4275
  %v4498 = vpack.c.bf16 %v4278, %v4277
  %v4499 = vpack.c.bf16 %v4280, %v4279
  %v4500 = vpack.c.bf16 %v4282, %v4281
  %v4501 = vpack.c.bf16 %v4284, %v4283
  %v4502 = vpack.c.bf16 %v4286, %v4285
  %v4503 = vpack.c.bf16 %v4288, %v4287
  %v4504 = vpack.c.bf16 %v4290, %v4289
  %v4505 = vpack.c.bf16 %v4292, %v4291
  %v4506 = vpack.c.bf16 %v4294, %v4293
  %v4507 = vpack.c.bf16 %v4296, %v4295
  %v4508 = vpack.c.bf16 %v4298, %v4297
  %v4509 = vpack.c.bf16 %v4300, %v4299
  %v4510 = vpack.c.bf16 %v4302, %v4301
  %v4511 = vpack.c.bf16 %v4304, %v4303
  %v4512 = vpack.c.bf16 %v4306, %v4305
  %v4513 = vpack.c.bf16 %v4308, %v4307
  %v4514 = vpack.c.bf16 %v4310, %v4309
  %v4515 = vpack.c.bf16 %v4312, %v4311
  %v4516 = vpack.c.bf16 %v4314, %v4313
  %v4517 = vpack.c.bf16 %v4316, %v4315
  %v4518 = vpack.c.bf16 %v4318, %v4317
  %v4519 = vpack.c.bf16 %v4320, %v4319
  %v4520 = vpack.c.bf16 %v4322, %v4321
  %v4521 = vpack.c.bf16 %v4324, %v4323
  %v4522 = vpack.c.bf16 %v4326, %v4325
  %v4523 = vpack.c.bf16 %v4328, %v4327
  %v4524 = vpack.c.bf16 %v4330, %v4329
  %v4525 = vpack.c.bf16 %v4332, %v4331
  %v4526 = vpack.c.bf16 %v4334, %v4333
  %v4527 = vpack.c.bf16 %v4336, %v4335
  %v4528 = vpack.c.bf16 %v4338, %v4337
  %v4529 = vpack.c.bf16 %v4340, %v4339
  %v4530 = vpack.c.bf16 %v4342, %v4341
  %v4531 = vpack.c.bf16 %v4344, %v4343
  %v4532 = vpack.c.bf16 %v4346, %v4345
  %v4533 = vpack.c.bf16 %v4348, %v4347
  %v4534 = vpack.c.bf16 %v4350, %v4349
  %v4535 = vpack.c.bf16 %v4352, %v4351
  %v4536 = vpack.c.bf16 %v4354, %v4353
  %v4537 = vpack.c.bf16 %v4356, %v4355
  %v4538 = vpack.c.bf16 %v4358, %v4357
  %v4539 = vpack.c.bf16 %v4360, %v4359
  %v4540 = vpack.c.bf16 %v4362, %v4361
  %v4541 = vpack.c.bf16 %v4364, %v4363
  %v4542 = vpack.c.bf16 %v4366, %v4365
  %v4543 = vpack.c.bf16 %v4368, %v4367
  %v4544 = vpack.c.bf16 %v4370, %v4369
  %v4545 = vpack.c.bf16 %v4372, %v4371
  %v4546 = vpack.c.bf16 %v4374, %v4373
  %v4547 = vpack.c.bf16 %v4376, %v4375
  %v4548 = vpack.c.bf16 %v4378, %v4377
  %v4549 = vpack.c.bf16 %v4380, %v4379
  %v4550 = vpack.c.bf16 %v4382, %v4381
  %v4551 = vpack.c.bf16 %v4384, %v4383
  %v4552 = vpack.c.bf16 %v4386, %v4385
  %v4553 = vpack.c.bf16 %v4388, %v4387
  %v4554 = vpack.c.bf16 %v4390, %v4389
  %v4555 = vpack.c.bf16 %v4392, %v4391
  %v4556 = vpack.c.bf16 %v4394, %v4393
  %v4557 = vpack.c.bf16 %v4396, %v4395
  %v4558 = vpack.c.bf16 %v4398, %v4397
  %v4559 = vpack.c.bf16 %v4400, %v4399
  %v4560 = vpack.c.bf16 %v4402, %v4401
  %v4561 = vpack.c.bf16 %v4404, %v4403
  %v4562 = vpack.c.bf16 %v4406, %v4405
  %v4563 = vpack.c.bf16 %v4408, %v4407
  %v4564 = vpack.c.bf16 %v4410, %v4409
  %v4565 = vpack.c.bf16 %v4412, %v4411
  %v4566 = vpack.c.bf16 %v4414, %v4413
  %v4567 = vpack.c.bf16 %v4416, %v4415
  %v4568 = vpack.c.bf16 %v4418, %v4417
  %v4569 = vpack.c.bf16 %v4420, %v4419
  %v4570 = vpack.c.bf16 %v4422, %v4421
  %v4571 = vpack.c.bf16 %v4424, %v4423
  %v4572 = vpack.c.bf16 %v4426, %v4425
  %v4573 = vpack.c.bf16 %v4428, %v4427
  %v4574 = vpack.c.bf16 %v4430, %v4429
  %v4575 = vpack.c.bf16 %v4432, %v4431
  %v4576 = vpack.c.bf16 %v4434, %v4433
  %v4577 = vpack.c.bf16 %v4436, %v4435
  %v4578 = vpack.c.bf16 %v4438, %v4437
  %v4579 = vpack.c.bf16 %v4440, %v4439
  %v4580 = vpack.c.bf16 %v4442, %v4441
  %v4581 = vpack.c.bf16 %v4444, %v4443
  %v4582 = vpack.c.bf16 %v4446, %v4445
  %v4583 = vpack.c.bf16 %v4448, %v4447
  %v4584 = vpack.c.bf16 %v4450, %v4449
  %v4585 = vpack.c.bf16 %v4452, %v4451
  %v4586 = vpack.c.bf16 %v4454, %v4453
  %v4587 = vpack.c.bf16 %v4456, %v4455
  %v4588 = vpack.c.bf16 %v4458, %v4457
  %v4589 = vpack.c.bf16 %v4460, %v4459
  %v4590 = vpack.c.bf16 %v4462, %v4461
  %v4719 = vunpack.c.l.b16 %v4463
  %v4720 = vunpack.c.h.b16 %v4463
  %v4721 = vunpack.c.l.b16 %v4464
  %v4722 = vunpack.c.h.b16 %v4464
  %v4723 = vunpack.c.l.b16 %v4465
  %v4724 = vunpack.c.h.b16 %v4465
  %v4725 = vunpack.c.l.b16 %v4466
  %v4726 = vunpack.c.h.b16 %v4466
  %v4727 = vunpack.c.l.b16 %v4467
  %v4728 = vunpack.c.h.b16 %v4467
  %v4729 = vunpack.c.l.b16 %v4468
  %v4730 = vunpack.c.h.b16 %v4468
  %v4731 = vunpack.c.l.b16 %v4469
  %v4732 = vunpack.c.h.b16 %v4469
  %v4733 = vunpack.c.l.b16 %v4470
  %v4734 = vunpack.c.h.b16 %v4470
  %v4735 = vunpack.c.l.b16 %v4471
  %v4736 = vunpack.c.h.b16 %v4471
  %v4737 = vunpack.c.l.b16 %v4472
  %v4738 = vunpack.c.h.b16 %v4472
  %v4739 = vunpack.c.l.b16 %v4473
  %v4740 = vunpack.c.h.b16 %v4473
  %v4741 = vunpack.c.l.b16 %v4474
  %v4742 = vunpack.c.h.b16 %v4474
  %v4743 = vunpack.c.l.b16 %v4475
  %v4744 = vunpack.c.h.b16 %v4475
  %v4745 = vunpack.c.l.b16 %v4476
  %v4746 = vunpack.c.h.b16 %v4476
  %v4747 = vunpack.c.l.b16 %v4477
  %v4748 = vunpack.c.h.b16 %v4477
  %v4749 = vunpack.c.l.b16 %v4478
  %v4750 = vunpack.c.h.b16 %v4478
  %v4751 = vunpack.c.l.b16 %v4479
  %v4752 = vunpack.c.h.b16 %v4479
  %v4753 = vunpack.c.l.b16 %v4480
  %v4754 = vunpack.c.h.b16 %v4480
  %v4755 = vunpack.c.l.b16 %v4481
  %v4756 = vunpack.c.h.b16 %v4481
  %v4757 = vunpack.c.l.b16 %v4482
  %v4758 = vunpack.c.h.b16 %v4482
  %v4759 = vunpack.c.l.b16 %v4483
  %v4760 = vunpack.c.h.b16 %v4483
  %v4761 = vunpack.c.l.b16 %v4484
  %v4762 = vunpack.c.h.b16 %v4484
  %v4763 = vunpack.c.l.b16 %v4485
  %v4764 = vunpack.c.h.b16 %v4485
  %v4765 = vunpack.c.l.b16 %v4486
  %v4766 = vunpack.c.h.b16 %v4486
  %v4767 = vunpack.c.l.b16 %v4487
  %v4768 = vunpack.c.h.b16 %v4487
  %v4769 = vunpack.c.l.b16 %v4488
  %v4770 = vunpack.c.h.b16 %v4488
  %v4771 = vunpack.c.l.b16 %v4489
  %v4772 = vunpack.c.h.b16 %v4489
  %v4773 = vunpack.c.l.b16 %v4490
  %v4774 = vunpack.c.h.b16 %v4490
  %v4775 = vunpack.c.l.b16 %v4491
  %v4776 = vunpack.c.h.b16 %v4491
  %v4777 = vunpack.c.l.b16 %v4492
  %v4778 = vunpack.c.h.b16 %v4492
  %v4779 = vunpack.c.l.b16 %v4493
  %v4780 = vunpack.c.h.b16 %v4493
  %v4781 = vunpack.c.l.b16 %v4494
  %v4782 = vunpack.c.h.b16 %v4494
  %v4783 = vunpack.c.l.b16 %v4495
  %v4784 = vunpack.c.h.b16 %v4495
  %v4785 = vunpack.c.l.b16 %v4496
  %v4786 = vunpack.c.h.b16 %v4496
  %v4787 = vunpack.c.l.b16 %v4497
  %v4788 = vunpack.c.h.b16 %v4497
  %v4789 = vunpack.c.l.b16 %v4498
  %v4790 = vunpack.c.h.b16 %v4498
  %v4791 = vunpack.c.l.b16 %v4499
  %v4792 = vunpack.c.h.b16 %v4499
  %v4793 = vunpack.c.l.b16 %v4500
  %v4794 = vunpack.c.h.b16 %v4500
  %v4795 = vunpack.c.l.b16 %v4501
  %v4796 = vunpack.c.h.b16 %v4501
  %v4797 = vunpack.c.l.b16 %v4502
  %v4798 = vunpack.c.h.b16 %v4502
  %v4799 = vunpack.c.l.b16 %v4503
  %v4800 = vunpack.c.h.b16 %v4503
  %v4801 = vunpack.c.l.b16 %v4504
  %v4802 = vunpack.c.h.b16 %v4504
  %v4803 = vunpack.c.l.b16 %v4505
  %v4804 = vunpack.c.h.b16 %v4505
  %v4805 = vunpack.c.l.b16 %v4506
  %v4806 = vunpack.c.h.b16 %v4506
  %v4807 = vunpack.c.l.b16 %v4507
  %v4808 = vunpack.c.h.b16 %v4507
  %v4809 = vunpack.c.l.b16 %v4508
  %v4810 = vunpack.c.h.b16 %v4508
  %v4811 = vunpack.c.l.b16 %v4509
  %v4812 = vunpack.c.h.b16 %v4509
  %v4813 = vunpack.c.l.b16 %v4510
  %v4814 = vunpack.c.h.b16 %v4510
  %v4815 = vunpack.c.l.b16 %v4511
  %v4816 = vunpack.c.h.b16 %v4511
  %v4817 = vunpack.c.l.b16 %v4512
  %v4818 = vunpack.c.h.b16 %v4512
  %v4819 = vunpack.c.l.b16 %v4513
  %v4820 = vunpack.c.h.b16 %v4513
  %v4821 = vunpack.c.l.b16 %v4514
  %v4822 = vunpack.c.h.b16 %v4514
  %v4823 = vunpack.c.l.b16 %v4515
  %v4824 = vunpack.c.h.b16 %v4515
  %v4825 = vunpack.c.l.b16 %v4516
  %v4826 = vunpack.c.h.b16 %v4516
  %v4827 = vunpack.c.l.b16 %v4517
  %v4828 = vunpack.c.h.b16 %v4517
  %v4829 = vunpack.c.l.b16 %v4518
  %v4830 = vunpack.c.h.b16 %v4518
  %v4831 = vunpack.c.l.b16 %v4519
  %v4832 = vunpack.c.h.b16 %v4519
  %v4833 = vunpack.c.l.b16 %v4520
  %v4834 = vunpack.c.h.b16 %v4520
  %v4835 = vunpack.c.l.b16 %v4521
  %v4836 = vunpack.c.h.b16 %v4521
  %v4837 = vunpack.c.l.b16 %v4522
  %v4838 = vunpack.c.h.b16 %v4522
  %v4839 = vunpack.c.l.b16 %v4523
  %v4840 = vunpack.c.h.b16 %v4523
  %v4841 = vunpack.c.l.b16 %v4524
  %v4842 = vunpack.c.h.b16 %v4524
  %v4843 = vunpack.c.l.b16 %v4525
  %v4844 = vunpack.c.h.b16 %v4525
  %v4845 = vunpack.c.l.b16 %v4526
  %v4846 = vunpack.c.h.b16 %v4526
  %v4847 = vunpack.c.l.b16 %v4527
  %v4848 = vunpack.c.h.b16 %v4527
  %v4849 = vunpack.c.l.b16 %v4528
  %v4850 = vunpack.c.h.b16 %v4528
  %v4851 = vunpack.c.l.b16 %v4529
  %v4852 = vunpack.c.h.b16 %v4529
  %v4853 = vunpack.c.l.b16 %v4530
  %v4854 = vunpack.c.h.b16 %v4530
  %v4855 = vunpack.c.l.b16 %v4531
  %v4856 = vunpack.c.h.b16 %v4531
  %v4857 = vunpack.c.l.b16 %v4532
  %v4858 = vunpack.c.h.b16 %v4532
  %v4859 = vunpack.c.l.b16 %v4533
  %v4860 = vunpack.c.h.b16 %v4533
  %v4861 = vunpack.c.l.b16 %v4534
  %v4862 = vunpack.c.h.b16 %v4534
  %v4863 = vunpack.c.l.b16 %v4535
  %v4864 = vunpack.c.h.b16 %v4535
  %v4865 = vunpack.c.l.b16 %v4536
  %v4866 = vunpack.c.h.b16 %v4536
  %v4867 = vunpack.c.l.b16 %v4537
  %v4868 = vunpack.c.h.b16 %v4537
  %v4869 = vunpack.c.l.b16 %v4538
  %v4870 = vunpack.c.h.b16 %v4538
  %v4871 = vunpack.c.l.b16 %v4539
  %v4872 = vunpack.c.h.b16 %v4539
  %v4873 = vunpack.c.l.b16 %v4540
  %v4874 = vunpack.c.h.b16 %v4540
  %v4875 = vunpack.c.l.b16 %v4541
  %v4876 = vunpack.c.h.b16 %v4541
  %v4877 = vunpack.c.l.b16 %v4542
  %v4878 = vunpack.c.h.b16 %v4542
  %v4879 = vunpack.c.l.b16 %v4543
  %v4880 = vunpack.c.h.b16 %v4543
  %v4881 = vunpack.c.l.b16 %v4544
  %v4882 = vunpack.c.h.b16 %v4544
  %v4883 = vunpack.c.l.b16 %v4545
  %v4884 = vunpack.c.h.b16 %v4545
  %v4885 = vunpack.c.l.b16 %v4546
  %v4886 = vunpack.c.h.b16 %v4546
  %v4887 = vunpack.c.l.b16 %v4547
  %v4888 = vunpack.c.h.b16 %v4547
  %v4889 = vunpack.c.l.b16 %v4548
  %v4890 = vunpack.c.h.b16 %v4548
  %v4891 = vunpack.c.l.b16 %v4549
  %v4892 = vunpack.c.h.b16 %v4549
  %v4893 = vunpack.c.l.b16 %v4550
  %v4894 = vunpack.c.h.b16 %v4550
  %v4895 = vunpack.c.l.b16 %v4551
  %v4896 = vunpack.c.h.b16 %v4551
  %v4897 = vunpack.c.l.b16 %v4552
  %v4898 = vunpack.c.h.b16 %v4552
  %v4899 = vunpack.c.l.b16 %v4553
  %v4900 = vunpack.c.h.b16 %v4553
  %v4901 = vunpack.c.l.b16 %v4554
  %v4902 = vunpack.c.h.b16 %v4554
  %v4903 = vunpack.c.l.b16 %v4555
  %v4904 = vunpack.c.h.b16 %v4555
  %v4905 = vunpack.c.l.b16 %v4556
  %v4906 = vunpack.c.h.b16 %v4556
  %v4907 = vunpack.c.l.b16 %v4557
  %v4908 = vunpack.c.h.b16 %v4557
  %v4909 = vunpack.c.l.b16 %v4558
  %v4910 = vunpack.c.h.b16 %v4558
  %v4911 = vunpack.c.l.b16 %v4559
  %v4912 = vunpack.c.h.b16 %v4559
  %v4913 = vunpack.c.l.b16 %v4560
  %v4914 = vunpack.c.h.b16 %v4560
  %v4915 = vunpack.c.l.b16 %v4561
  %v4916 = vunpack.c.h.b16 %v4561
  %v4917 = vunpack.c.l.b16 %v4562
  %v4918 = vunpack.c.h.b16 %v4562
  %v4919 = vunpack.c.l.b16 %v4563
  %v4920 = vunpack.c.h.b16 %v4563
  %v4921 = vunpack.c.l.b16 %v4564
  %v4922 = vunpack.c.h.b16 %v4564
  %v4923 = vunpack.c.l.b16 %v4565
  %v4924 = vunpack.c.h.b16 %v4565
  %v4925 = vunpack.c.l.b16 %v4566
  %v4926 = vunpack.c.h.b16 %v4566
  %v4927 = vunpack.c.l.b16 %v4567
  %v4928 = vunpack.c.h.b16 %v4567
  %v4929 = vunpack.c.l.b16 %v4568
  %v4930 = vunpack.c.h.b16 %v4568
  %v4931 = vunpack.c.l.b16 %v4569
  %v4932 = vunpack.c.h.b16 %v4569
  %v4933 = vunpack.c.l.b16 %v4570
  %v4934 = vunpack.c.h.b16 %v4570
  %v4935 = vunpack.c.l.b16 %v4571
  %v4936 = vunpack.c.h.b16 %v4571
  %v4937 = vunpack.c.l.b16 %v4572
  %v4938 = vunpack.c.h.b16 %v4572
  %v4939 = vunpack.c.l.b16 %v4573
  %v4940 = vunpack.c.h.b16 %v4573
  %v4941 = vunpack.c.l.b16 %v4574
  %v4942 = vunpack.c.h.b16 %v4574
  %v4943 = vunpack.c.l.b16 %v4575
  %v4944 = vunpack.c.h.b16 %v4575
  %v4945 = vunpack.c.l.b16 %v4576
  %v4946 = vunpack.c.h.b16 %v4576
  %v4947 = vunpack.c.l.b16 %v4577
  %v4948 = vunpack.c.h.b16 %v4577
  %v4949 = vunpack.c.l.b16 %v4578
  %v4950 = vunpack.c.h.b16 %v4578
  %v4951 = vunpack.c.l.b16 %v4579
  %v4952 = vunpack.c.h.b16 %v4579
  %v4953 = vunpack.c.l.b16 %v4580
  %v4954 = vunpack.c.h.b16 %v4580
  %v4955 = vunpack.c.l.b16 %v4581
  %v4956 = vunpack.c.h.b16 %v4581
  %v4957 = vunpack.c.l.b16 %v4582
  %v4958 = vunpack.c.h.b16 %v4582
  %v4959 = vunpack.c.l.b16 %v4583
  %v4960 = vunpack.c.h.b16 %v4583
  %v4961 = vunpack.c.l.b16 %v4584
  %v4962 = vunpack.c.h.b16 %v4584
  %v4963 = vunpack.c.l.b16 %v4585
  %v4964 = vunpack.c.h.b16 %v4585
  %v4965 = vunpack.c.l.b16 %v4586
  %v4966 = vunpack.c.h.b16 %v4586
  %v4967 = vunpack.c.l.b16 %v4587
  %v4968 = vunpack.c.h.b16 %v4587
  %v4969 = vunpack.c.l.b16 %v4588
  %v4970 = vunpack.c.h.b16 %v4588
  %v4971 = vunpack.c.l.b16 %v4589
  %v4972 = vunpack.c.h.b16 %v4589
  %v4973 = vunpack.c.l.b16 %v4590
  %v4974 = vunpack.c.h.b16 %v4590
  %v4975 = vpack.c.b16 %v4719, %v4719
  %v4976 = vpack.c.b16 %v4720, %v4720
  %v4977 = vpack.c.b16 %v4721, %v4721
  %v4978 = vpack.c.b16 %v4722, %v4722
  %v4979 = vpack.c.b16 %v4723, %v4723
  %v4980 = vpack.c.b16 %v4724, %v4724
  %v4981 = vpack.c.b16 %v4725, %v4725
  %v4982 = vpack.c.b16 %v4726, %v4726
  %v4983 = vpack.c.b16 %v4727, %v4727
  %v4984 = vpack.c.b16 %v4728, %v4728
  %v4985 = vpack.c.b16 %v4729, %v4729
  %v4986 = vpack.c.b16 %v4730, %v4730
  %v4987 = vpack.c.b16 %v4731, %v4731
  %v4988 = vpack.c.b16 %v4732, %v4732
  %v4989 = vpack.c.b16 %v4733, %v4733
  %v4990 = vpack.c.b16 %v4734, %v4734
  %v4991 = vpack.c.b16 %v4735, %v4735
  %v4992 = vpack.c.b16 %v4736, %v4736
  %v4993 = vpack.c.b16 %v4737, %v4737
  %v4994 = vpack.c.b16 %v4738, %v4738
  %v4995 = vpack.c.b16 %v4739, %v4739
  %v4996 = vpack.c.b16 %v4740, %v4740
  %v4997 = vpack.c.b16 %v4741, %v4741
  %v4998 = vpack.c.b16 %v4742, %v4742
  %v4999 = vpack.c.b16 %v4743, %v4743
  %v5000 = vpack.c.b16 %v4744, %v4744
  %v5001 = vpack.c.b16 %v4745, %v4745
  %v5002 = vpack.c.b16 %v4746, %v4746
  %v5003 = vpack.c.b16 %v4747, %v4747
  %v5004 = vpack.c.b16 %v4748, %v4748
  %v5005 = vpack.c.b16 %v4749, %v4749
  %v5006 = vpack.c.b16 %v4750, %v4750
  %v5007 = vpack.c.b16 %v4751, %v4751
  %v5008 = vpack.c.b16 %v4752, %v4752
  %v5009 = vpack.c.b16 %v4753, %v4753
  %v5010 = vpack.c.b16 %v4754, %v4754
  %v5011 = vpack.c.b16 %v4755, %v4755
  %v5012 = vpack.c.b16 %v4756, %v4756
  %v5013 = vpack.c.b16 %v4757, %v4757
  %v5014 = vpack.c.b16 %v4758, %v4758
  %v5015 = vpack.c.b16 %v4759, %v4759
  %v5016 = vpack.c.b16 %v4760, %v4760
  %v5017 = vpack.c.b16 %v4761, %v4761
  %v5018 = vpack.c.b16 %v4762, %v4762
  %v5019 = vpack.c.b16 %v4763, %v4763
  %v5020 = vpack.c.b16 %v4764, %v4764
  %v5021 = vpack.c.b16 %v4765, %v4765
  %v5022 = vpack.c.b16 %v4766, %v4766
  %v5023 = vpack.c.b16 %v4767, %v4767
  %v5024 = vpack.c.b16 %v4768, %v4768
  %v5025 = vpack.c.b16 %v4769, %v4769
  %v5026 = vpack.c.b16 %v4770, %v4770
  %v5027 = vpack.c.b16 %v4771, %v4771
  %v5028 = vpack.c.b16 %v4772, %v4772
  %v5029 = vpack.c.b16 %v4773, %v4773
  %v5030 = vpack.c.b16 %v4774, %v4774
  %v5031 = vpack.c.b16 %v4775, %v4775
  %v5032 = vpack.c.b16 %v4776, %v4776
  %v5033 = vpack.c.b16 %v4777, %v4777
  %v5034 = vpack.c.b16 %v4778, %v4778
  %v5035 = vpack.c.b16 %v4779, %v4779
  %v5036 = vpack.c.b16 %v4780, %v4780
  %v5037 = vpack.c.b16 %v4781, %v4781
  %v5038 = vpack.c.b16 %v4782, %v4782
  %v5039 = vpack.c.b16 %v4783, %v4783
  %v5040 = vpack.c.b16 %v4784, %v4784
  %v5041 = vpack.c.b16 %v4785, %v4785
  %v5042 = vpack.c.b16 %v4786, %v4786
  %v5043 = vpack.c.b16 %v4787, %v4787
  %v5044 = vpack.c.b16 %v4788, %v4788
  %v5045 = vpack.c.b16 %v4789, %v4789
  %v5046 = vpack.c.b16 %v4790, %v4790
  %v5047 = vpack.c.b16 %v4791, %v4791
  %v5048 = vpack.c.b16 %v4792, %v4792
  %v5049 = vpack.c.b16 %v4793, %v4793
  %v5050 = vpack.c.b16 %v4794, %v4794
  %v5051 = vpack.c.b16 %v4795, %v4795
  %v5052 = vpack.c.b16 %v4796, %v4796
  %v5053 = vpack.c.b16 %v4797, %v4797
  %v5054 = vpack.c.b16 %v4798, %v4798
  %v5055 = vpack.c.b16 %v4799, %v4799
  %v5056 = vpack.c.b16 %v4800, %v4800
  %v5057 = vpack.c.b16 %v4801, %v4801
  %v5058 = vpack.c.b16 %v4802, %v4802
  %v5059 = vpack.c.b16 %v4803, %v4803
  %v5060 = vpack.c.b16 %v4804, %v4804
  %v5061 = vpack.c.b16 %v4805, %v4805
  %v5062 = vpack.c.b16 %v4806, %v4806
  %v5063 = vpack.c.b16 %v4807, %v4807
  %v5064 = vpack.c.b16 %v4808, %v4808
  %v5065 = vpack.c.b16 %v4809, %v4809
  %v5066 = vpack.c.b16 %v4810, %v4810
  %v5067 = vpack.c.b16 %v4811, %v4811
  %v5068 = vpack.c.b16 %v4812, %v4812
  %v5069 = vpack.c.b16 %v4813, %v4813
  %v5070 = vpack.c.b16 %v4814, %v4814
  %v5071 = vpack.c.b16 %v4815, %v4815
  %v5072 = vpack.c.b16 %v4816, %v4816
  %v5073 = vpack.c.b16 %v4817, %v4817
  %v5074 = vpack.c.b16 %v4818, %v4818
  %v5075 = vpack.c.b16 %v4819, %v4819
  %v5076 = vpack.c.b16 %v4820, %v4820
  %v5077 = vpack.c.b16 %v4821, %v4821
  %v5078 = vpack.c.b16 %v4822, %v4822
  %v5079 = vpack.c.b16 %v4823, %v4823
  %v5080 = vpack.c.b16 %v4824, %v4824
  %v5081 = vpack.c.b16 %v4825, %v4825
  %v5082 = vpack.c.b16 %v4826, %v4826
  %v5083 = vpack.c.b16 %v4827, %v4827
  %v5084 = vpack.c.b16 %v4828, %v4828
  %v5085 = vpack.c.b16 %v4829, %v4829
  %v5086 = vpack.c.b16 %v4830, %v4830
  %v5087 = vpack.c.b16 %v4831, %v4831
  %v5088 = vpack.c.b16 %v4832, %v4832
  %v5089 = vpack.c.b16 %v4833, %v4833
  %v5090 = vpack.c.b16 %v4834, %v4834
  %v5091 = vpack.c.b16 %v4835, %v4835
  %v5092 = vpack.c.b16 %v4836, %v4836
  %v5093 = vpack.c.b16 %v4837, %v4837
  %v5094 = vpack.c.b16 %v4838, %v4838
  %v5095 = vpack.c.b16 %v4839, %v4839
  %v5096 = vpack.c.b16 %v4840, %v4840
  %v5097 = vpack.c.b16 %v4841, %v4841
  %v5098 = vpack.c.b16 %v4842, %v4842
  %v5099 = vpack.c.b16 %v4843, %v4843
  %v5100 = vpack.c.b16 %v4844, %v4844
  %v5101 = vpack.c.b16 %v4845, %v4845
  %v5102 = vpack.c.b16 %v4846, %v4846
  %v5103 = vpack.c.b16 %v4847, %v4847
  %v5104 = vpack.c.b16 %v4848, %v4848
  %v5105 = vpack.c.b16 %v4849, %v4849
  %v5106 = vpack.c.b16 %v4850, %v4850
  %v5107 = vpack.c.b16 %v4851, %v4851
  %v5108 = vpack.c.b16 %v4852, %v4852
  %v5109 = vpack.c.b16 %v4853, %v4853
  %v5110 = vpack.c.b16 %v4854, %v4854
  %v5111 = vpack.c.b16 %v4855, %v4855
  %v5112 = vpack.c.b16 %v4856, %v4856
  %v5113 = vpack.c.b16 %v4857, %v4857
  %v5114 = vpack.c.b16 %v4858, %v4858
  %v5115 = vpack.c.b16 %v4859, %v4859
  %v5116 = vpack.c.b16 %v4860, %v4860
  %v5117 = vpack.c.b16 %v4861, %v4861
  %v5118 = vpack.c.b16 %v4862, %v4862
  %v5119 = vpack.c.b16 %v4863, %v4863
  %v5120 = vpack.c.b16 %v4864, %v4864
  %v5121 = vpack.c.b16 %v4865, %v4865
  %v5122 = vpack.c.b16 %v4866, %v4866
  %v5123 = vpack.c.b16 %v4867, %v4867
  %v5124 = vpack.c.b16 %v4868, %v4868
  %v5125 = vpack.c.b16 %v4869, %v4869
  %v5126 = vpack.c.b16 %v4870, %v4870
  %v5127 = vpack.c.b16 %v4871, %v4871
  %v5128 = vpack.c.b16 %v4872, %v4872
  %v5129 = vpack.c.b16 %v4873, %v4873
  %v5130 = vpack.c.b16 %v4874, %v4874
  %v5131 = vpack.c.b16 %v4875, %v4875
  %v5132 = vpack.c.b16 %v4876, %v4876
  %v5133 = vpack.c.b16 %v4877, %v4877
  %v5134 = vpack.c.b16 %v4878, %v4878
  %v5135 = vpack.c.b16 %v4879, %v4879
  %v5136 = vpack.c.b16 %v4880, %v4880
  %v5137 = vpack.c.b16 %v4881, %v4881
  %v5138 = vpack.c.b16 %v4882, %v4882
  %v5139 = vpack.c.b16 %v4883, %v4883
  %v5140 = vpack.c.b16 %v4884, %v4884
  %v5141 = vpack.c.b16 %v4885, %v4885
  %v5142 = vpack.c.b16 %v4886, %v4886
  %v5143 = vpack.c.b16 %v4887, %v4887
  %v5144 = vpack.c.b16 %v4888, %v4888
  %v5145 = vpack.c.b16 %v4889, %v4889
  %v5146 = vpack.c.b16 %v4890, %v4890
  %v5147 = vpack.c.b16 %v4891, %v4891
  %v5148 = vpack.c.b16 %v4892, %v4892
  %v5149 = vpack.c.b16 %v4893, %v4893
  %v5150 = vpack.c.b16 %v4894, %v4894
  %v5151 = vpack.c.b16 %v4895, %v4895
  %v5152 = vpack.c.b16 %v4896, %v4896
  %v5153 = vpack.c.b16 %v4897, %v4897
  %v5154 = vpack.c.b16 %v4898, %v4898
  %v5155 = vpack.c.b16 %v4899, %v4899
  %v5156 = vpack.c.b16 %v4900, %v4900
  %v5157 = vpack.c.b16 %v4901, %v4901
  %v5158 = vpack.c.b16 %v4902, %v4902
  %v5159 = vpack.c.b16 %v4903, %v4903
  %v5160 = vpack.c.b16 %v4904, %v4904
  %v5161 = vpack.c.b16 %v4905, %v4905
  %v5162 = vpack.c.b16 %v4906, %v4906
  %v5163 = vpack.c.b16 %v4907, %v4907
  %v5164 = vpack.c.b16 %v4908, %v4908
  %v5165 = vpack.c.b16 %v4909, %v4909
  %v5166 = vpack.c.b16 %v4910, %v4910
  %v5167 = vpack.c.b16 %v4911, %v4911
  %v5168 = vpack.c.b16 %v4912, %v4912
  %v5169 = vpack.c.b16 %v4913, %v4913
  %v5170 = vpack.c.b16 %v4914, %v4914
  %v5171 = vpack.c.b16 %v4915, %v4915
  %v5172 = vpack.c.b16 %v4916, %v4916
  %v5173 = vpack.c.b16 %v4917, %v4917
  %v5174 = vpack.c.b16 %v4918, %v4918
  %v5175 = vpack.c.b16 %v4919, %v4919
  %v5176 = vpack.c.b16 %v4920, %v4920
  %v5177 = vpack.c.b16 %v4921, %v4921
  %v5178 = vpack.c.b16 %v4922, %v4922
  %v5179 = vpack.c.b16 %v4923, %v4923
  %v5180 = vpack.c.b16 %v4924, %v4924
  %v5181 = vpack.c.b16 %v4925, %v4925
  %v5182 = vpack.c.b16 %v4926, %v4926
  %v5183 = vpack.c.b16 %v4927, %v4927
  %v5184 = vpack.c.b16 %v4928, %v4928
  %v5185 = vpack.c.b16 %v4929, %v4929
  %v5186 = vpack.c.b16 %v4930, %v4930
  %v5187 = vpack.c.b16 %v4931, %v4931
  %v5188 = vpack.c.b16 %v4932, %v4932
  %v5189 = vpack.c.b16 %v4933, %v4933
  %v5190 = vpack.c.b16 %v4934, %v4934
  %v5191 = vpack.c.b16 %v4935, %v4935
  %v5192 = vpack.c.b16 %v4936, %v4936
  %v5193 = vpack.c.b16 %v4937, %v4937
  %v5194 = vpack.c.b16 %v4938, %v4938
  %v5195 = vpack.c.b16 %v4939, %v4939
  %v5196 = vpack.c.b16 %v4940, %v4940
  %v5197 = vpack.c.b16 %v4941, %v4941
  %v5198 = vpack.c.b16 %v4942, %v4942
  %v5199 = vpack.c.b16 %v4943, %v4943
  %v5200 = vpack.c.b16 %v4944, %v4944
  %v5201 = vpack.c.b16 %v4945, %v4945
  %v5202 = vpack.c.b16 %v4946, %v4946
  %v5203 = vpack.c.b16 %v4947, %v4947
  %v5204 = vpack.c.b16 %v4948, %v4948
  %v5205 = vpack.c.b16 %v4949, %v4949
  %v5206 = vpack.c.b16 %v4950, %v4950
  %v5207 = vpack.c.b16 %v4951, %v4951
  %v5208 = vpack.c.b16 %v4952, %v4952
  %v5209 = vpack.c.b16 %v4953, %v4953
  %v5210 = vpack.c.b16 %v4954, %v4954
  %v5211 = vpack.c.b16 %v4955, %v4955
  %v5212 = vpack.c.b16 %v4956, %v4956
  %v5213 = vpack.c.b16 %v4957, %v4957
  %v5214 = vpack.c.b16 %v4958, %v4958
  %v5215 = vpack.c.b16 %v4959, %v4959
  %v5216 = vpack.c.b16 %v4960, %v4960
  %v5217 = vpack.c.b16 %v4961, %v4961
  %v5218 = vpack.c.b16 %v4962, %v4962
  %v5219 = vpack.c.b16 %v4963, %v4963
  %v5220 = vpack.c.b16 %v4964, %v4964
  %v5221 = vpack.c.b16 %v4965, %v4965
  %v5222 = vpack.c.b16 %v4966, %v4966
  %v5223 = vpack.c.b16 %v4967, %v4967
  %v5224 = vpack.c.b16 %v4968, %v4968
  %v5225 = vpack.c.b16 %v4969, %v4969
  %v5226 = vpack.c.b16 %v4970, %v4970
  %v5227 = vpack.c.b16 %v4971, %v4971
  %v5228 = vpack.c.b16 %v4972, %v4972
  %v5229 = vpack.c.b16 %v4973, %v4973
  %v5230 = vpack.c.b16 %v4974, %v4974
  %vm5487 = vcmask 257024
  %5488 = vst.msk [vmem:[%s4] sm:$0xf] %vm5487, %v4975
  %5489 = vst.msk [vmem:[%s4 + $0x4] sm:$0xf] %vm5487, %v4976
  %5490 = vst.msk [vmem:[%s4 + $0x8] sm:$0xf] %vm5487, %v4977
  %5491 = vst.msk [vmem:[%s4 + $0xc] sm:$0xf] %vm5487, %v4978
  %5492 = vst.msk [vmem:[%s4 + $0x10] sm:$0xf] %vm5487, %v4979
  %5493 = vst.msk [vmem:[%s4 + $0x14] sm:$0xf] %vm5487, %v4980
  %5494 = vst.msk [vmem:[%s4 + $0x18] sm:$0xf] %vm5487, %v4981
  %5495 = vst.msk [vmem:[%s4 + $0x1c] sm:$0xf] %vm5487, %v4982
  %5496 = vst.msk [vmem:[%s4 + $0x20] sm:$0xf] %vm5487, %v4983
  %5497 = vst.msk [vmem:[%s4 + $0x24] sm:$0xf] %vm5487, %v4984
  %5498 = vst.msk [vmem:[%s4 + $0x28] sm:$0xf] %vm5487, %v4985
  %5499 = vst.msk [vmem:[%s4 + $0x2c] sm:$0xf] %vm5487, %v4986
  %5500 = vst.msk [vmem:[%s4 + $0x30] sm:$0xf] %vm5487, %v4987
  %5501 = vst.msk [vmem:[%s4 + $0x34] sm:$0xf] %vm5487, %v4988
  %5502 = vst.msk [vmem:[%s4 + $0x38] sm:$0xf] %vm5487, %v4989
  %5503 = vst.msk [vmem:[%s4 + $0x3c] sm:$0xf] %vm5487, %v4990
  %5504 = vst.msk [vmem:[%s4 + $0x40] sm:$0xf] %vm5487, %v4991
  %5505 = vst.msk [vmem:[%s4 + $0x44] sm:$0xf] %vm5487, %v4992
  %5506 = vst.msk [vmem:[%s4 + $0x48] sm:$0xf] %vm5487, %v4993
  %5507 = vst.msk [vmem:[%s4 + $0x4c] sm:$0xf] %vm5487, %v4994
  %5508 = vst.msk [vmem:[%s4 + $0x50] sm:$0xf] %vm5487, %v4995
  %5509 = vst.msk [vmem:[%s4 + $0x54] sm:$0xf] %vm5487, %v4996
  %5510 = vst.msk [vmem:[%s4 + $0x58] sm:$0xf] %vm5487, %v4997
  %5511 = vst.msk [vmem:[%s4 + $0x5c] sm:$0xf] %vm5487, %v4998
  %5512 = vst.msk [vmem:[%s4 + $0x60] sm:$0xf] %vm5487, %v4999
  %5513 = vst.msk [vmem:[%s4 + $0x64] sm:$0xf] %vm5487, %v5000
  %5514 = vst.msk [vmem:[%s4 + $0x68] sm:$0xf] %vm5487, %v5001
  %5515 = vst.msk [vmem:[%s4 + $0x6c] sm:$0xf] %vm5487, %v5002
  %5516 = vst.msk [vmem:[%s4 + $0x70] sm:$0xf] %vm5487, %v5003
  %5517 = vst.msk [vmem:[%s4 + $0x74] sm:$0xf] %vm5487, %v5004
  %5518 = vst.msk [vmem:[%s4 + $0x78] sm:$0xf] %vm5487, %v5005
  %5519 = vst.msk [vmem:[%s4 + $0x7c] sm:$0xf] %vm5487, %v5006
  %5520 = vst.msk [vmem:[%s4 + $0x80] sm:$0xf] %vm5487, %v5007
  %5521 = vst.msk [vmem:[%s4 + $0x84] sm:$0xf] %vm5487, %v5008
  %5522 = vst.msk [vmem:[%s4 + $0x88] sm:$0xf] %vm5487, %v5009
  %5523 = vst.msk [vmem:[%s4 + $0x8c] sm:$0xf] %vm5487, %v5010
  %5524 = vst.msk [vmem:[%s4 + $0x90] sm:$0xf] %vm5487, %v5011
  %5525 = vst.msk [vmem:[%s4 + $0x94] sm:$0xf] %vm5487, %v5012
  %5526 = vst.msk [vmem:[%s4 + $0x98] sm:$0xf] %vm5487, %v5013
  %5527 = vst.msk [vmem:[%s4 + $0x9c] sm:$0xf] %vm5487, %v5014
  %5528 = vst.msk [vmem:[%s4 + $0xa0] sm:$0xf] %vm5487, %v5015
  %5529 = vst.msk [vmem:[%s4 + $0xa4] sm:$0xf] %vm5487, %v5016
  %5530 = vst.msk [vmem:[%s4 + $0xa8] sm:$0xf] %vm5487, %v5017
  %5531 = vst.msk [vmem:[%s4 + $0xac] sm:$0xf] %vm5487, %v5018
  %5532 = vst.msk [vmem:[%s4 + $0xb0] sm:$0xf] %vm5487, %v5019
  %5533 = vst.msk [vmem:[%s4 + $0xb4] sm:$0xf] %vm5487, %v5020
  %5534 = vst.msk [vmem:[%s4 + $0xb8] sm:$0xf] %vm5487, %v5021
  %5535 = vst.msk [vmem:[%s4 + $0xbc] sm:$0xf] %vm5487, %v5022
  %5536 = vst.msk [vmem:[%s4 + $0xc0] sm:$0xf] %vm5487, %v5023
  %5537 = vst.msk [vmem:[%s4 + $0xc4] sm:$0xf] %vm5487, %v5024
  %5538 = vst.msk [vmem:[%s4 + $0xc8] sm:$0xf] %vm5487, %v5025
  %5539 = vst.msk [vmem:[%s4 + $0xcc] sm:$0xf] %vm5487, %v5026
  %5540 = vst.msk [vmem:[%s4 + $0xd0] sm:$0xf] %vm5487, %v5027
  %5541 = vst.msk [vmem:[%s4 + $0xd4] sm:$0xf] %vm5487, %v5028
  %5542 = vst.msk [vmem:[%s4 + $0xd8] sm:$0xf] %vm5487, %v5029
  %5543 = vst.msk [vmem:[%s4 + $0xdc] sm:$0xf] %vm5487, %v5030
  %5544 = vst.msk [vmem:[%s4 + $0xe0] sm:$0xf] %vm5487, %v5031
  %5545 = vst.msk [vmem:[%s4 + $0xe4] sm:$0xf] %vm5487, %v5032
  %5546 = vst.msk [vmem:[%s4 + $0xe8] sm:$0xf] %vm5487, %v5033
  %5547 = vst.msk [vmem:[%s4 + $0xec] sm:$0xf] %vm5487, %v5034
  %5548 = vst.msk [vmem:[%s4 + $0xf0] sm:$0xf] %vm5487, %v5035
  %5549 = vst.msk [vmem:[%s4 + $0xf4] sm:$0xf] %vm5487, %v5036
  %5550 = vst.msk [vmem:[%s4 + $0xf8] sm:$0xf] %vm5487, %v5037
  %5551 = vst.msk [vmem:[%s4 + $0xfc] sm:$0xf] %vm5487, %v5038
  %5552 = vst.msk [vmem:[%s4 + $0x100] sm:$0xf] %vm5487, %v5039
  %5553 = vst.msk [vmem:[%s4 + $0x104] sm:$0xf] %vm5487, %v5040
  %5554 = vst.msk [vmem:[%s4 + $0x108] sm:$0xf] %vm5487, %v5041
  %5555 = vst.msk [vmem:[%s4 + $0x10c] sm:$0xf] %vm5487, %v5042
  %5556 = vst.msk [vmem:[%s4 + $0x110] sm:$0xf] %vm5487, %v5043
  %5557 = vst.msk [vmem:[%s4 + $0x114] sm:$0xf] %vm5487, %v5044
  %5558 = vst.msk [vmem:[%s4 + $0x118] sm:$0xf] %vm5487, %v5045
  %5559 = vst.msk [vmem:[%s4 + $0x11c] sm:$0xf] %vm5487, %v5046
  %5560 = vst.msk [vmem:[%s4 + $0x120] sm:$0xf] %vm5487, %v5047
  %5561 = vst.msk [vmem:[%s4 + $0x124] sm:$0xf] %vm5487, %v5048
  %5562 = vst.msk [vmem:[%s4 + $0x128] sm:$0xf] %vm5487, %v5049
  %5563 = vst.msk [vmem:[%s4 + $0x12c] sm:$0xf] %vm5487, %v5050
  %5564 = vst.msk [vmem:[%s4 + $0x130] sm:$0xf] %vm5487, %v5051
  %5565 = vst.msk [vmem:[%s4 + $0x134] sm:$0xf] %vm5487, %v5052
  %5566 = vst.msk [vmem:[%s4 + $0x138] sm:$0xf] %vm5487, %v5053
  %5567 = vst.msk [vmem:[%s4 + $0x13c] sm:$0xf] %vm5487, %v5054
  %5568 = vst.msk [vmem:[%s4 + $0x140] sm:$0xf] %vm5487, %v5055
  %5569 = vst.msk [vmem:[%s4 + $0x144] sm:$0xf] %vm5487, %v5056
  %5570 = vst.msk [vmem:[%s4 + $0x148] sm:$0xf] %vm5487, %v5057
  %5571 = vst.msk [vmem:[%s4 + $0x14c] sm:$0xf] %vm5487, %v5058
  %5572 = vst.msk [vmem:[%s4 + $0x150] sm:$0xf] %vm5487, %v5059
  %5573 = vst.msk [vmem:[%s4 + $0x154] sm:$0xf] %vm5487, %v5060
  %5574 = vst.msk [vmem:[%s4 + $0x158] sm:$0xf] %vm5487, %v5061
  %5575 = vst.msk [vmem:[%s4 + $0x15c] sm:$0xf] %vm5487, %v5062
  %5576 = vst.msk [vmem:[%s4 + $0x160] sm:$0xf] %vm5487, %v5063
  %5577 = vst.msk [vmem:[%s4 + $0x164] sm:$0xf] %vm5487, %v5064
  %5578 = vst.msk [vmem:[%s4 + $0x168] sm:$0xf] %vm5487, %v5065
  %5579 = vst.msk [vmem:[%s4 + $0x16c] sm:$0xf] %vm5487, %v5066
  %5580 = vst.msk [vmem:[%s4 + $0x170] sm:$0xf] %vm5487, %v5067
  %5581 = vst.msk [vmem:[%s4 + $0x174] sm:$0xf] %vm5487, %v5068
  %5582 = vst.msk [vmem:[%s4 + $0x178] sm:$0xf] %vm5487, %v5069
  %5583 = vst.msk [vmem:[%s4 + $0x17c] sm:$0xf] %vm5487, %v5070
  %5584 = vst.msk [vmem:[%s4 + $0x180] sm:$0xf] %vm5487, %v5071
  %5585 = vst.msk [vmem:[%s4 + $0x184] sm:$0xf] %vm5487, %v5072
  %5586 = vst.msk [vmem:[%s4 + $0x188] sm:$0xf] %vm5487, %v5073
  %5587 = vst.msk [vmem:[%s4 + $0x18c] sm:$0xf] %vm5487, %v5074
  %5588 = vst.msk [vmem:[%s4 + $0x190] sm:$0xf] %vm5487, %v5075
  %5589 = vst.msk [vmem:[%s4 + $0x194] sm:$0xf] %vm5487, %v5076
  %5590 = vst.msk [vmem:[%s4 + $0x198] sm:$0xf] %vm5487, %v5077
  %5591 = vst.msk [vmem:[%s4 + $0x19c] sm:$0xf] %vm5487, %v5078
  %5592 = vst.msk [vmem:[%s4 + $0x1a0] sm:$0xf] %vm5487, %v5079
  %5593 = vst.msk [vmem:[%s4 + $0x1a4] sm:$0xf] %vm5487, %v5080
  %5594 = vst.msk [vmem:[%s4 + $0x1a8] sm:$0xf] %vm5487, %v5081
  %5595 = vst.msk [vmem:[%s4 + $0x1ac] sm:$0xf] %vm5487, %v5082
  %5596 = vst.msk [vmem:[%s4 + $0x1b0] sm:$0xf] %vm5487, %v5083
  %5597 = vst.msk [vmem:[%s4 + $0x1b4] sm:$0xf] %vm5487, %v5084
  %5598 = vst.msk [vmem:[%s4 + $0x1b8] sm:$0xf] %vm5487, %v5085
  %5599 = vst.msk [vmem:[%s4 + $0x1bc] sm:$0xf] %vm5487, %v5086
  %5600 = vst.msk [vmem:[%s4 + $0x1c0] sm:$0xf] %vm5487, %v5087
  %5601 = vst.msk [vmem:[%s4 + $0x1c4] sm:$0xf] %vm5487, %v5088
  %5602 = vst.msk [vmem:[%s4 + $0x1c8] sm:$0xf] %vm5487, %v5089
  %5603 = vst.msk [vmem:[%s4 + $0x1cc] sm:$0xf] %vm5487, %v5090
  %5604 = vst.msk [vmem:[%s4 + $0x1d0] sm:$0xf] %vm5487, %v5091
  %5605 = vst.msk [vmem:[%s4 + $0x1d4] sm:$0xf] %vm5487, %v5092
  %5606 = vst.msk [vmem:[%s4 + $0x1d8] sm:$0xf] %vm5487, %v5093
  %5607 = vst.msk [vmem:[%s4 + $0x1dc] sm:$0xf] %vm5487, %v5094
  %5608 = vst.msk [vmem:[%s4 + $0x1e0] sm:$0xf] %vm5487, %v5095
  %5609 = vst.msk [vmem:[%s4 + $0x1e4] sm:$0xf] %vm5487, %v5096
  %5610 = vst.msk [vmem:[%s4 + $0x1e8] sm:$0xf] %vm5487, %v5097
  %5611 = vst.msk [vmem:[%s4 + $0x1ec] sm:$0xf] %vm5487, %v5098
  %5612 = vst.msk [vmem:[%s4 + $0x1f0] sm:$0xf] %vm5487, %v5099
  %5613 = vst.msk [vmem:[%s4 + $0x1f4] sm:$0xf] %vm5487, %v5100
  %5614 = vst.msk [vmem:[%s4 + $0x1f8] sm:$0xf] %vm5487, %v5101
  %5615 = vst.msk [vmem:[%s4 + $0x1fc] sm:$0xf] %vm5487, %v5102
  %5616 = vst.msk [vmem:[%s4 + $0x200] sm:$0xf] %vm5487, %v5103
  %5617 = vst.msk [vmem:[%s4 + $0x204] sm:$0xf] %vm5487, %v5104
  %5618 = vst.msk [vmem:[%s4 + $0x208] sm:$0xf] %vm5487, %v5105
  %5619 = vst.msk [vmem:[%s4 + $0x20c] sm:$0xf] %vm5487, %v5106
  %5620 = vst.msk [vmem:[%s4 + $0x210] sm:$0xf] %vm5487, %v5107
  %5621 = vst.msk [vmem:[%s4 + $0x214] sm:$0xf] %vm5487, %v5108
  %5622 = vst.msk [vmem:[%s4 + $0x218] sm:$0xf] %vm5487, %v5109
  %5623 = vst.msk [vmem:[%s4 + $0x21c] sm:$0xf] %vm5487, %v5110
  %5624 = vst.msk [vmem:[%s4 + $0x220] sm:$0xf] %vm5487, %v5111
  %5625 = vst.msk [vmem:[%s4 + $0x224] sm:$0xf] %vm5487, %v5112
  %5626 = vst.msk [vmem:[%s4 + $0x228] sm:$0xf] %vm5487, %v5113
  %5627 = vst.msk [vmem:[%s4 + $0x22c] sm:$0xf] %vm5487, %v5114
  %5628 = vst.msk [vmem:[%s4 + $0x230] sm:$0xf] %vm5487, %v5115
  %5629 = vst.msk [vmem:[%s4 + $0x234] sm:$0xf] %vm5487, %v5116
  %5630 = vst.msk [vmem:[%s4 + $0x238] sm:$0xf] %vm5487, %v5117
  %5631 = vst.msk [vmem:[%s4 + $0x23c] sm:$0xf] %vm5487, %v5118
  %5632 = vst.msk [vmem:[%s4 + $0x240] sm:$0xf] %vm5487, %v5119
  %5633 = vst.msk [vmem:[%s4 + $0x244] sm:$0xf] %vm5487, %v5120
  %5634 = vst.msk [vmem:[%s4 + $0x248] sm:$0xf] %vm5487, %v5121
  %5635 = vst.msk [vmem:[%s4 + $0x24c] sm:$0xf] %vm5487, %v5122
  %5636 = vst.msk [vmem:[%s4 + $0x250] sm:$0xf] %vm5487, %v5123
  %5637 = vst.msk [vmem:[%s4 + $0x254] sm:$0xf] %vm5487, %v5124
  %5638 = vst.msk [vmem:[%s4 + $0x258] sm:$0xf] %vm5487, %v5125
  %5639 = vst.msk [vmem:[%s4 + $0x25c] sm:$0xf] %vm5487, %v5126
  %5640 = vst.msk [vmem:[%s4 + $0x260] sm:$0xf] %vm5487, %v5127
  %5641 = vst.msk [vmem:[%s4 + $0x264] sm:$0xf] %vm5487, %v5128
  %5642 = vst.msk [vmem:[%s4 + $0x268] sm:$0xf] %vm5487, %v5129
  %5643 = vst.msk [vmem:[%s4 + $0x26c] sm:$0xf] %vm5487, %v5130
  %5644 = vst.msk [vmem:[%s4 + $0x270] sm:$0xf] %vm5487, %v5131
  %5645 = vst.msk [vmem:[%s4 + $0x274] sm:$0xf] %vm5487, %v5132
  %5646 = vst.msk [vmem:[%s4 + $0x278] sm:$0xf] %vm5487, %v5133
  %5647 = vst.msk [vmem:[%s4 + $0x27c] sm:$0xf] %vm5487, %v5134
  %5648 = vst.msk [vmem:[%s4 + $0x280] sm:$0xf] %vm5487, %v5135
  %5649 = vst.msk [vmem:[%s4 + $0x284] sm:$0xf] %vm5487, %v5136
  %5650 = vst.msk [vmem:[%s4 + $0x288] sm:$0xf] %vm5487, %v5137
  %5651 = vst.msk [vmem:[%s4 + $0x28c] sm:$0xf] %vm5487, %v5138
  %5652 = vst.msk [vmem:[%s4 + $0x290] sm:$0xf] %vm5487, %v5139
  %5653 = vst.msk [vmem:[%s4 + $0x294] sm:$0xf] %vm5487, %v5140
  %5654 = vst.msk [vmem:[%s4 + $0x298] sm:$0xf] %vm5487, %v5141
  %5655 = vst.msk [vmem:[%s4 + $0x29c] sm:$0xf] %vm5487, %v5142
  %5656 = vst.msk [vmem:[%s4 + $0x2a0] sm:$0xf] %vm5487, %v5143
  %5657 = vst.msk [vmem:[%s4 + $0x2a4] sm:$0xf] %vm5487, %v5144
  %5658 = vst.msk [vmem:[%s4 + $0x2a8] sm:$0xf] %vm5487, %v5145
  %5659 = vst.msk [vmem:[%s4 + $0x2ac] sm:$0xf] %vm5487, %v5146
  %5660 = vst.msk [vmem:[%s4 + $0x2b0] sm:$0xf] %vm5487, %v5147
  %5661 = vst.msk [vmem:[%s4 + $0x2b4] sm:$0xf] %vm5487, %v5148
  %5662 = vst.msk [vmem:[%s4 + $0x2b8] sm:$0xf] %vm5487, %v5149
  %5663 = vst.msk [vmem:[%s4 + $0x2bc] sm:$0xf] %vm5487, %v5150
  %5664 = vst.msk [vmem:[%s4 + $0x2c0] sm:$0xf] %vm5487, %v5151
  %5665 = vst.msk [vmem:[%s4 + $0x2c4] sm:$0xf] %vm5487, %v5152
  %5666 = vst.msk [vmem:[%s4 + $0x2c8] sm:$0xf] %vm5487, %v5153
  %5667 = vst.msk [vmem:[%s4 + $0x2cc] sm:$0xf] %vm5487, %v5154
  %5668 = vst.msk [vmem:[%s4 + $0x2d0] sm:$0xf] %vm5487, %v5155
  %5669 = vst.msk [vmem:[%s4 + $0x2d4] sm:$0xf] %vm5487, %v5156
  %5670 = vst.msk [vmem:[%s4 + $0x2d8] sm:$0xf] %vm5487, %v5157
  %5671 = vst.msk [vmem:[%s4 + $0x2dc] sm:$0xf] %vm5487, %v5158
  %5672 = vst.msk [vmem:[%s4 + $0x2e0] sm:$0xf] %vm5487, %v5159
  %5673 = vst.msk [vmem:[%s4 + $0x2e4] sm:$0xf] %vm5487, %v5160
  %5674 = vst.msk [vmem:[%s4 + $0x2e8] sm:$0xf] %vm5487, %v5161
  %5675 = vst.msk [vmem:[%s4 + $0x2ec] sm:$0xf] %vm5487, %v5162
  %5676 = vst.msk [vmem:[%s4 + $0x2f0] sm:$0xf] %vm5487, %v5163
  %5677 = vst.msk [vmem:[%s4 + $0x2f4] sm:$0xf] %vm5487, %v5164
  %5678 = vst.msk [vmem:[%s4 + $0x2f8] sm:$0xf] %vm5487, %v5165
  %5679 = vst.msk [vmem:[%s4 + $0x2fc] sm:$0xf] %vm5487, %v5166
  %5680 = vst.msk [vmem:[%s4 + $0x300] sm:$0xf] %vm5487, %v5167
  %5681 = vst.msk [vmem:[%s4 + $0x304] sm:$0xf] %vm5487, %v5168
  %5682 = vst.msk [vmem:[%s4 + $0x308] sm:$0xf] %vm5487, %v5169
  %5683 = vst.msk [vmem:[%s4 + $0x30c] sm:$0xf] %vm5487, %v5170
  %5684 = vst.msk [vmem:[%s4 + $0x310] sm:$0xf] %vm5487, %v5171
  %5685 = vst.msk [vmem:[%s4 + $0x314] sm:$0xf] %vm5487, %v5172
  %5686 = vst.msk [vmem:[%s4 + $0x318] sm:$0xf] %vm5487, %v5173
  %5687 = vst.msk [vmem:[%s4 + $0x31c] sm:$0xf] %vm5487, %v5174
  %5688 = vst.msk [vmem:[%s4 + $0x320] sm:$0xf] %vm5487, %v5175
  %5689 = vst.msk [vmem:[%s4 + $0x324] sm:$0xf] %vm5487, %v5176
  %5690 = vst.msk [vmem:[%s4 + $0x328] sm:$0xf] %vm5487, %v5177
  %5691 = vst.msk [vmem:[%s4 + $0x32c] sm:$0xf] %vm5487, %v5178
  %5692 = vst.msk [vmem:[%s4 + $0x330] sm:$0xf] %vm5487, %v5179
  %5693 = vst.msk [vmem:[%s4 + $0x334] sm:$0xf] %vm5487, %v5180
  %5694 = vst.msk [vmem:[%s4 + $0x338] sm:$0xf] %vm5487, %v5181
  %5695 = vst.msk [vmem:[%s4 + $0x33c] sm:$0xf] %vm5487, %v5182
  %5696 = vst.msk [vmem:[%s4 + $0x340] sm:$0xf] %vm5487, %v5183
  %5697 = vst.msk [vmem:[%s4 + $0x344] sm:$0xf] %vm5487, %v5184
  %5698 = vst.msk [vmem:[%s4 + $0x348] sm:$0xf] %vm5487, %v5185
  %5699 = vst.msk [vmem:[%s4 + $0x34c] sm:$0xf] %vm5487, %v5186
  %5700 = vst.msk [vmem:[%s4 + $0x350] sm:$0xf] %vm5487, %v5187
  %5701 = vst.msk [vmem:[%s4 + $0x354] sm:$0xf] %vm5487, %v5188
  %5702 = vst.msk [vmem:[%s4 + $0x358] sm:$0xf] %vm5487, %v5189
  %5703 = vst.msk [vmem:[%s4 + $0x35c] sm:$0xf] %vm5487, %v5190
  %5704 = vst.msk [vmem:[%s4 + $0x360] sm:$0xf] %vm5487, %v5191
  %5705 = vst.msk [vmem:[%s4 + $0x364] sm:$0xf] %vm5487, %v5192
  %5706 = vst.msk [vmem:[%s4 + $0x368] sm:$0xf] %vm5487, %v5193
  %5707 = vst.msk [vmem:[%s4 + $0x36c] sm:$0xf] %vm5487, %v5194
  %5708 = vst.msk [vmem:[%s4 + $0x370] sm:$0xf] %vm5487, %v5195
  %5709 = vst.msk [vmem:[%s4 + $0x374] sm:$0xf] %vm5487, %v5196
  %5710 = vst.msk [vmem:[%s4 + $0x378] sm:$0xf] %vm5487, %v5197
  %5711 = vst.msk [vmem:[%s4 + $0x37c] sm:$0xf] %vm5487, %v5198
  %5712 = vst.msk [vmem:[%s4 + $0x380] sm:$0xf] %vm5487, %v5199
  %5713 = vst.msk [vmem:[%s4 + $0x384] sm:$0xf] %vm5487, %v5200
  %5714 = vst.msk [vmem:[%s4 + $0x388] sm:$0xf] %vm5487, %v5201
  %5715 = vst.msk [vmem:[%s4 + $0x38c] sm:$0xf] %vm5487, %v5202
  %5716 = vst.msk [vmem:[%s4 + $0x390] sm:$0xf] %vm5487, %v5203
  %5717 = vst.msk [vmem:[%s4 + $0x394] sm:$0xf] %vm5487, %v5204
  %5718 = vst.msk [vmem:[%s4 + $0x398] sm:$0xf] %vm5487, %v5205
  %5719 = vst.msk [vmem:[%s4 + $0x39c] sm:$0xf] %vm5487, %v5206
  %5720 = vst.msk [vmem:[%s4 + $0x3a0] sm:$0xf] %vm5487, %v5207
  %5721 = vst.msk [vmem:[%s4 + $0x3a4] sm:$0xf] %vm5487, %v5208
  %5722 = vst.msk [vmem:[%s4 + $0x3a8] sm:$0xf] %vm5487, %v5209
  %5723 = vst.msk [vmem:[%s4 + $0x3ac] sm:$0xf] %vm5487, %v5210
  %5724 = vst.msk [vmem:[%s4 + $0x3b0] sm:$0xf] %vm5487, %v5211
  %5725 = vst.msk [vmem:[%s4 + $0x3b4] sm:$0xf] %vm5487, %v5212
  %5726 = vst.msk [vmem:[%s4 + $0x3b8] sm:$0xf] %vm5487, %v5213
  %5727 = vst.msk [vmem:[%s4 + $0x3bc] sm:$0xf] %vm5487, %v5214
  %5728 = vst.msk [vmem:[%s4 + $0x3c0] sm:$0xf] %vm5487, %v5215
  %5729 = vst.msk [vmem:[%s4 + $0x3c4] sm:$0xf] %vm5487, %v5216
  %5730 = vst.msk [vmem:[%s4 + $0x3c8] sm:$0xf] %vm5487, %v5217
  %5731 = vst.msk [vmem:[%s4 + $0x3cc] sm:$0xf] %vm5487, %v5218
  %5732 = vst.msk [vmem:[%s4 + $0x3d0] sm:$0xf] %vm5487, %v5219
  %5733 = vst.msk [vmem:[%s4 + $0x3d4] sm:$0xf] %vm5487, %v5220
  %5734 = vst.msk [vmem:[%s4 + $0x3d8] sm:$0xf] %vm5487, %v5221
  %5735 = vst.msk [vmem:[%s4 + $0x3dc] sm:$0xf] %vm5487, %v5222
  %5736 = vst.msk [vmem:[%s4 + $0x3e0] sm:$0xf] %vm5487, %v5223
  %5737 = vst.msk [vmem:[%s4 + $0x3e4] sm:$0xf] %vm5487, %v5224
  %5738 = vst.msk [vmem:[%s4 + $0x3e8] sm:$0xf] %vm5487, %v5225
  %5739 = vst.msk [vmem:[%s4 + $0x3ec] sm:$0xf] %vm5487, %v5226
  %5740 = vst.msk [vmem:[%s4 + $0x3f0] sm:$0xf] %vm5487, %v5227
  %5741 = vst.msk [vmem:[%s4 + $0x3f4] sm:$0xf] %vm5487, %v5228
  %5742 = vst.msk [vmem:[%s4 + $0x3f8] sm:$0xf] %vm5487, %v5229
  %5743 = vst.msk [vmem:[%s4 + $0x3fc] sm:$0xf] %vm5487, %v5230
  // Predicated region
  $region18: #{discriminator_forward.5} parent=0 // pred_check
    _
  $region19: #{discriminator_forward.5} parent=0 // pred_check_branch
    %5745 = sbr.rel (0) target = $region21
  $region20: #{discriminator_forward.5} parent=0 // pred_region
    _
  $region21: #{discriminator_forward.5} parent=0 // pred_fallthru
    _
  // Predicated region
  $region22: #{discriminator_forward.5} parent=0 // pred_check
    _
  $region23: #{discriminator_forward.5} parent=0 // pred_check_branch
    %5747 = sbr.rel (0) target = $region25
  $region24: #{discriminator_forward.5} parent=0 // pred_region
    _
  $region25: #{discriminator_forward.5} parent=0 // pred_fallthru
    _

// kernel: discriminator_forward.6
$region0: #{discriminator_forward.6}
  #allocation0 [shape = 'u32[]', space=smem, size = 0x4, offset = 0x4, fixed_abs, tag = 'smem constant byte address 0x4 - core index']
  #allocation1 [shape = 'u32[144,128]{1,0:T(1,128)}', space=vmem, size = 0x12000, scoped, tag = 'internal scratch']
  %s0 = inlined_call_operand.vmem [shape: bf16[512,512], index: 0, kind: input, shape index: {}]
  %s1 = inlined_call_operand.vmem [shape: bf16[512,64], index: 1, kind: input, shape index: {}]
  %s2 = inlined_call_operand.vmem [shape: f32[1,64], index: 2, kind: input, shape index: {}]
  %s3 = inlined_call_operand.vmem [shape: f32[1,64], index: 3, kind: input, shape index: {}]
  %s4 = inlined_call_operand.vmem [shape: bf16[512,64], index: 4, kind: output, shape index: {}]
  %s5 = sld [smem:[#allocation0]]
  $region26: #{discriminator_forward.6} parent=0
    _
  %s7 = ssub.s32 1, %s5
  %s8 = scalar_select 0, %s7, %s5
  // Predicated region
  $region2: #{discriminator_forward.6} parent=0 // pred_check
    _
  $region3: #{discriminator_forward.6} parent=0 // pred_check_branch
    %10 = sbr.rel (0) target = $region5
  $region4: #{discriminator_forward.6} parent=0 // pred_region
    _
  $region5: #{discriminator_forward.6} parent=0 // pred_fallthru
    _
  // Predicated region
  $region6: #{discriminator_forward.6} parent=0 // pred_check
    _
  $region7: #{discriminator_forward.6} parent=0 // pred_check_branch
    %12 = sbr.rel (0) target = $region9
  $region8: #{discriminator_forward.6} parent=0 // pred_region
    _
  $region9: #{discriminator_forward.6} parent=0 // pred_fallthru
    _
  // Predicated region
  $region10: #{discriminator_forward.6} parent=0 // pred_check
    _
  $region11: #{discriminator_forward.6} parent=0 // pred_check_branch
    %14 = sbr.rel (0) target = $region13
  $region12: #{discriminator_forward.6} parent=0 // pred_region
    _
  $region13: #{discriminator_forward.6} parent=0 // pred_fallthru
    _
  // Predicated region
  $region14: #{discriminator_forward.6} parent=0 // pred_check
    _
  $region15: #{discriminator_forward.6} parent=0 // pred_check_branch
    %16 = sbr.rel (0) target = $region17
  $region16: #{discriminator_forward.6} parent=0 // pred_region
    _
  $region17: #{discriminator_forward.6} parent=0 // pred_fallthru
    _
  %v18 = vld [vmem:[%s0] sm:$0xff]
  %v19 = vld [vmem:[%s0 + $0x8] sm:$0xff]
  %v20 = vld [vmem:[%s0 + $0x10] sm:$0xff]
  %v21 = vld [vmem:[%s0 + $0x18] sm:$0xff]
  %v22 = vld [vmem:[%s0 + $0x20] sm:$0xff]
  %v23 = vld [vmem:[%s0 + $0x28] sm:$0xff]
  %v24 = vld [vmem:[%s0 + $0x30] sm:$0xff]
  %v25 = vld [vmem:[%s0 + $0x38] sm:$0xff]
  %v26 = vld [vmem:[%s0 + $0x40] sm:$0xff]
  %v27 = vld [vmem:[%s0 + $0x48] sm:$0xff]
  %v28 = vld [vmem:[%s0 + $0x50] sm:$0xff]
  %v29 = vld [vmem:[%s0 + $0x58] sm:$0xff]
  %v30 = vld [vmem:[%s0 + $0x60] sm:$0xff]
  %v31 = vld [vmem:[%s0 + $0x68] sm:$0xff]
  %v32 = vld [vmem:[%s0 + $0x70] sm:$0xff]
  %v33 = vld [vmem:[%s0 + $0x78] sm:$0xff]
  %v34 = vld [vmem:[%s0 + $0x80] sm:$0xff]
  %v35 = vld [vmem:[%s0 + $0x88] sm:$0xff]
  %v36 = vld [vmem:[%s0 + $0x90] sm:$0xff]
  %v37 = vld [vmem:[%s0 + $0x98] sm:$0xff]
  %v38 = vld [vmem:[%s0 + $0xa0] sm:$0xff]
  %v39 = vld [vmem:[%s0 + $0xa8] sm:$0xff]
  %v40 = vld [vmem:[%s0 + $0xb0] sm:$0xff]
  %v41 = vld [vmem:[%s0 + $0xb8] sm:$0xff]
  %v42 = vld [vmem:[%s0 + $0xc0] sm:$0xff]
  %v43 = vld [vmem:[%s0 + $0xc8] sm:$0xff]
  %v44 = vld [vmem:[%s0 + $0xd0] sm:$0xff]
  %v45 = vld [vmem:[%s0 + $0xd8] sm:$0xff]
  %v46 = vld [vmem:[%s0 + $0xe0] sm:$0xff]
  %v47 = vld [vmem:[%s0 + $0xe8] sm:$0xff]
  %v48 = vld [vmem:[%s0 + $0xf0] sm:$0xff]
  %v49 = vld [vmem:[%s0 + $0xf8] sm:$0xff]
  %v50 = vld [vmem:[%s0 + $0x100] sm:$0xff]
  %v51 = vld [vmem:[%s0 + $0x108] sm:$0xff]
  %v52 = vld [vmem:[%s0 + $0x110] sm:$0xff]
  %v53 = vld [vmem:[%s0 + $0x118] sm:$0xff]
  %v54 = vld [vmem:[%s0 + $0x120] sm:$0xff]
  %v55 = vld [vmem:[%s0 + $0x128] sm:$0xff]
  %v56 = vld [vmem:[%s0 + $0x130] sm:$0xff]
  %v57 = vld [vmem:[%s0 + $0x138] sm:$0xff]
  %v58 = vld [vmem:[%s0 + $0x140] sm:$0xff]
  %v59 = vld [vmem:[%s0 + $0x148] sm:$0xff]
  %v60 = vld [vmem:[%s0 + $0x150] sm:$0xff]
  %v61 = vld [vmem:[%s0 + $0x158] sm:$0xff]
  %v62 = vld [vmem:[%s0 + $0x160] sm:$0xff]
  %v63 = vld [vmem:[%s0 + $0x168] sm:$0xff]
  %v64 = vld [vmem:[%s0 + $0x170] sm:$0xff]
  %v65 = vld [vmem:[%s0 + $0x178] sm:$0xff]
  %v66 = vld [vmem:[%s0 + $0x180] sm:$0xff]
  %v67 = vld [vmem:[%s0 + $0x188] sm:$0xff]
  %v68 = vld [vmem:[%s0 + $0x190] sm:$0xff]
  %v69 = vld [vmem:[%s0 + $0x198] sm:$0xff]
  %v70 = vld [vmem:[%s0 + $0x1a0] sm:$0xff]
  %v71 = vld [vmem:[%s0 + $0x1a8] sm:$0xff]
  %v72 = vld [vmem:[%s0 + $0x1b0] sm:$0xff]
  %v73 = vld [vmem:[%s0 + $0x1b8] sm:$0xff]
  %v74 = vld [vmem:[%s0 + $0x1c0] sm:$0xff]
  %v75 = vld [vmem:[%s0 + $0x1c8] sm:$0xff]
  %v76 = vld [vmem:[%s0 + $0x1d0] sm:$0xff]
  %v77 = vld [vmem:[%s0 + $0x1d8] sm:$0xff]
  %v78 = vld [vmem:[%s0 + $0x1e0] sm:$0xff]
  %v79 = vld [vmem:[%s0 + $0x1e8] sm:$0xff]
  %v80 = vld [vmem:[%s0 + $0x1f0] sm:$0xff]
  %v81 = vld [vmem:[%s0 + $0x1f8] sm:$0xff]
  %v82 = vld [vmem:[%s0 + $0x200] sm:$0xff]
  %v83 = vld [vmem:[%s0 + $0x208] sm:$0xff]
  %v84 = vld [vmem:[%s0 + $0x210] sm:$0xff]
  %v85 = vld [vmem:[%s0 + $0x218] sm:$0xff]
  %v86 = vld [vmem:[%s0 + $0x220] sm:$0xff]
  %v87 = vld [vmem:[%s0 + $0x228] sm:$0xff]
  %v88 = vld [vmem:[%s0 + $0x230] sm:$0xff]
  %v89 = vld [vmem:[%s0 + $0x238] sm:$0xff]
  %v90 = vld [vmem:[%s0 + $0x240] sm:$0xff]
  %v91 = vld [vmem:[%s0 + $0x248] sm:$0xff]
  %v92 = vld [vmem:[%s0 + $0x250] sm:$0xff]
  %v93 = vld [vmem:[%s0 + $0x258] sm:$0xff]
  %v94 = vld [vmem:[%s0 + $0x260] sm:$0xff]
  %v95 = vld [vmem:[%s0 + $0x268] sm:$0xff]
  %v96 = vld [vmem:[%s0 + $0x270] sm:$0xff]
  %v97 = vld [vmem:[%s0 + $0x278] sm:$0xff]
  %v98 = vld [vmem:[%s0 + $0x280] sm:$0xff]
  %v99 = vld [vmem:[%s0 + $0x288] sm:$0xff]
  %v100 = vld [vmem:[%s0 + $0x290] sm:$0xff]
  %v101 = vld [vmem:[%s0 + $0x298] sm:$0xff]
  %v102 = vld [vmem:[%s0 + $0x2a0] sm:$0xff]
  %v103 = vld [vmem:[%s0 + $0x2a8] sm:$0xff]
  %v104 = vld [vmem:[%s0 + $0x2b0] sm:$0xff]
  %v105 = vld [vmem:[%s0 + $0x2b8] sm:$0xff]
  %v106 = vld [vmem:[%s0 + $0x2c0] sm:$0xff]
  %v107 = vld [vmem:[%s0 + $0x2c8] sm:$0xff]
  %v108 = vld [vmem:[%s0 + $0x2d0] sm:$0xff]
  %v109 = vld [vmem:[%s0 + $0x2d8] sm:$0xff]
  %v110 = vld [vmem:[%s0 + $0x2e0] sm:$0xff]
  %v111 = vld [vmem:[%s0 + $0x2e8] sm:$0xff]
  %v112 = vld [vmem:[%s0 + $0x2f0] sm:$0xff]
  %v113 = vld [vmem:[%s0 + $0x2f8] sm:$0xff]
  %v114 = vld [vmem:[%s0 + $0x300] sm:$0xff]
  %v115 = vld [vmem:[%s0 + $0x308] sm:$0xff]
  %v116 = vld [vmem:[%s0 + $0x310] sm:$0xff]
  %v117 = vld [vmem:[%s0 + $0x318] sm:$0xff]
  %v118 = vld [vmem:[%s0 + $0x320] sm:$0xff]
  %v119 = vld [vmem:[%s0 + $0x328] sm:$0xff]
  %v120 = vld [vmem:[%s0 + $0x330] sm:$0xff]
  %v121 = vld [vmem:[%s0 + $0x338] sm:$0xff]
  %v122 = vld [vmem:[%s0 + $0x340] sm:$0xff]
  %v123 = vld [vmem:[%s0 + $0x348] sm:$0xff]
  %v124 = vld [vmem:[%s0 + $0x350] sm:$0xff]
  %v125 = vld [vmem:[%s0 + $0x358] sm:$0xff]
  %v126 = vld [vmem:[%s0 + $0x360] sm:$0xff]
  %v127 = vld [vmem:[%s0 + $0x368] sm:$0xff]
  %v128 = vld [vmem:[%s0 + $0x370] sm:$0xff]
  %v129 = vld [vmem:[%s0 + $0x378] sm:$0xff]
  %v130 = vld [vmem:[%s0 + $0x380] sm:$0xff]
  %v131 = vld [vmem:[%s0 + $0x388] sm:$0xff]
  %v132 = vld [vmem:[%s0 + $0x390] sm:$0xff]
  %v133 = vld [vmem:[%s0 + $0x398] sm:$0xff]
  %v134 = vld [vmem:[%s0 + $0x3a0] sm:$0xff]
  %v135 = vld [vmem:[%s0 + $0x3a8] sm:$0xff]
  %v136 = vld [vmem:[%s0 + $0x3b0] sm:$0xff]
  %v137 = vld [vmem:[%s0 + $0x3b8] sm:$0xff]
  %v138 = vld [vmem:[%s0 + $0x3c0] sm:$0xff]
  %v139 = vld [vmem:[%s0 + $0x3c8] sm:$0xff]
  %v140 = vld [vmem:[%s0 + $0x3d0] sm:$0xff]
  %v141 = vld [vmem:[%s0 + $0x3d8] sm:$0xff]
  %v142 = vld [vmem:[%s0 + $0x3e0] sm:$0xff]
  %v143 = vld [vmem:[%s0 + $0x3e8] sm:$0xff]
  %v144 = vld [vmem:[%s0 + $0x3f0] sm:$0xff]
  %v145 = vld [vmem:[%s0 + $0x3f8] sm:$0xff]
  %v146 = vld [vmem:[%s1] sm:$0xf]
  %v147 = vld [vmem:[%s1 + $0x4] sm:$0xf]
  %v148 = vld [vmem:[%s1 + $0x8] sm:$0xf]
  %v149 = vld [vmem:[%s1 + $0xc] sm:$0xf]
  %v150 = vld [vmem:[%s1 + $0x10] sm:$0xf]
  %v151 = vld [vmem:[%s1 + $0x14] sm:$0xf]
  %v152 = vld [vmem:[%s1 + $0x18] sm:$0xf]
  %v153 = vld [vmem:[%s1 + $0x1c] sm:$0xf]
  %v154 = vld [vmem:[%s1 + $0x20] sm:$0xf]
  %v155 = vld [vmem:[%s1 + $0x24] sm:$0xf]
  %v156 = vld [vmem:[%s1 + $0x28] sm:$0xf]
  %v157 = vld [vmem:[%s1 + $0x2c] sm:$0xf]
  %v158 = vld [vmem:[%s1 + $0x30] sm:$0xf]
  %v159 = vld [vmem:[%s1 + $0x34] sm:$0xf]
  %v160 = vld [vmem:[%s1 + $0x38] sm:$0xf]
  %v161 = vld [vmem:[%s1 + $0x3c] sm:$0xf]
  %v162 = vld [vmem:[%s1 + $0x40] sm:$0xf]
  %v163 = vld [vmem:[%s1 + $0x44] sm:$0xf]
  %v164 = vld [vmem:[%s1 + $0x48] sm:$0xf]
  %v165 = vld [vmem:[%s1 + $0x4c] sm:$0xf]
  %v166 = vld [vmem:[%s1 + $0x50] sm:$0xf]
  %v167 = vld [vmem:[%s1 + $0x54] sm:$0xf]
  %v168 = vld [vmem:[%s1 + $0x58] sm:$0xf]
  %v169 = vld [vmem:[%s1 + $0x5c] sm:$0xf]
  %v170 = vld [vmem:[%s1 + $0x60] sm:$0xf]
  %v171 = vld [vmem:[%s1 + $0x64] sm:$0xf]
  %v172 = vld [vmem:[%s1 + $0x68] sm:$0xf]
  %v173 = vld [vmem:[%s1 + $0x6c] sm:$0xf]
  %v174 = vld [vmem:[%s1 + $0x70] sm:$0xf]
  %v175 = vld [vmem:[%s1 + $0x74] sm:$0xf]
  %v176 = vld [vmem:[%s1 + $0x78] sm:$0xf]
  %v177 = vld [vmem:[%s1 + $0x7c] sm:$0xf]
  %v178 = vld [vmem:[%s1 + $0x80] sm:$0xf]
  %v179 = vld [vmem:[%s1 + $0x84] sm:$0xf]
  %v180 = vld [vmem:[%s1 + $0x88] sm:$0xf]
  %v181 = vld [vmem:[%s1 + $0x8c] sm:$0xf]
  %v182 = vld [vmem:[%s1 + $0x90] sm:$0xf]
  %v183 = vld [vmem:[%s1 + $0x94] sm:$0xf]
  %v184 = vld [vmem:[%s1 + $0x98] sm:$0xf]
  %v185 = vld [vmem:[%s1 + $0x9c] sm:$0xf]
  %v186 = vld [vmem:[%s1 + $0xa0] sm:$0xf]
  %v187 = vld [vmem:[%s1 + $0xa4] sm:$0xf]
  %v188 = vld [vmem:[%s1 + $0xa8] sm:$0xf]
  %v189 = vld [vmem:[%s1 + $0xac] sm:$0xf]
  %v190 = vld [vmem:[%s1 + $0xb0] sm:$0xf]
  %v191 = vld [vmem:[%s1 + $0xb4] sm:$0xf]
  %v192 = vld [vmem:[%s1 + $0xb8] sm:$0xf]
  %v193 = vld [vmem:[%s1 + $0xbc] sm:$0xf]
  %v194 = vld [vmem:[%s1 + $0xc0] sm:$0xf]
  %v195 = vld [vmem:[%s1 + $0xc4] sm:$0xf]
  %v196 = vld [vmem:[%s1 + $0xc8] sm:$0xf]
  %v197 = vld [vmem:[%s1 + $0xcc] sm:$0xf]
  %v198 = vld [vmem:[%s1 + $0xd0] sm:$0xf]
  %v199 = vld [vmem:[%s1 + $0xd4] sm:$0xf]
  %v200 = vld [vmem:[%s1 + $0xd8] sm:$0xf]
  %v201 = vld [vmem:[%s1 + $0xdc] sm:$0xf]
  %v202 = vld [vmem:[%s1 + $0xe0] sm:$0xf]
  %v203 = vld [vmem:[%s1 + $0xe4] sm:$0xf]
  %v204 = vld [vmem:[%s1 + $0xe8] sm:$0xf]
  %v205 = vld [vmem:[%s1 + $0xec] sm:$0xf]
  %v206 = vld [vmem:[%s1 + $0xf0] sm:$0xf]
  %v207 = vld [vmem:[%s1 + $0xf4] sm:$0xf]
  %v208 = vld [vmem:[%s1 + $0xf8] sm:$0xf]
  %v209 = vld [vmem:[%s1 + $0xfc] sm:$0xf]
  %v338 = vunpack.c.l.b16 %v18
  %v339 = vunpack.c.h.b16 %v18
  %v340 = vunpack.c.l.b16 %v19
  %v341 = vunpack.c.h.b16 %v19
  %v342 = vunpack.c.l.b16 %v20
  %v343 = vunpack.c.h.b16 %v20
  %v344 = vunpack.c.l.b16 %v21
  %v345 = vunpack.c.h.b16 %v21
  %v346 = vunpack.c.l.b16 %v22
  %v347 = vunpack.c.h.b16 %v22
  %v348 = vunpack.c.l.b16 %v23
  %v349 = vunpack.c.h.b16 %v23
  %v350 = vunpack.c.l.b16 %v24
  %v351 = vunpack.c.h.b16 %v24
  %v352 = vunpack.c.l.b16 %v25
  %v353 = vunpack.c.h.b16 %v25
  %v354 = vunpack.c.l.b16 %v26
  %v355 = vunpack.c.h.b16 %v26
  %v356 = vunpack.c.l.b16 %v27
  %v357 = vunpack.c.h.b16 %v27
  %v358 = vunpack.c.l.b16 %v28
  %v359 = vunpack.c.h.b16 %v28
  %v360 = vunpack.c.l.b16 %v29
  %v361 = vunpack.c.h.b16 %v29
  %v362 = vunpack.c.l.b16 %v30
  %v363 = vunpack.c.h.b16 %v30
  %v364 = vunpack.c.l.b16 %v31
  %v365 = vunpack.c.h.b16 %v31
  %v366 = vunpack.c.l.b16 %v32
  %v367 = vunpack.c.h.b16 %v32
  %v368 = vunpack.c.l.b16 %v33
  %v369 = vunpack.c.h.b16 %v33
  %v370 = vunpack.c.l.b16 %v34
  %v371 = vunpack.c.h.b16 %v34
  %v372 = vunpack.c.l.b16 %v35
  %v373 = vunpack.c.h.b16 %v35
  %v374 = vunpack.c.l.b16 %v36
  %v375 = vunpack.c.h.b16 %v36
  %v376 = vunpack.c.l.b16 %v37
  %v377 = vunpack.c.h.b16 %v37
  %v378 = vunpack.c.l.b16 %v38
  %v379 = vunpack.c.h.b16 %v38
  %v380 = vunpack.c.l.b16 %v39
  %v381 = vunpack.c.h.b16 %v39
  %v382 = vunpack.c.l.b16 %v40
  %v383 = vunpack.c.h.b16 %v40
  %v384 = vunpack.c.l.b16 %v41
  %v385 = vunpack.c.h.b16 %v41
  %v386 = vunpack.c.l.b16 %v42
  %v387 = vunpack.c.h.b16 %v42
  %v388 = vunpack.c.l.b16 %v43
  %v389 = vunpack.c.h.b16 %v43
  %v390 = vunpack.c.l.b16 %v44
  %v391 = vunpack.c.h.b16 %v44
  %v392 = vunpack.c.l.b16 %v45
  %v393 = vunpack.c.h.b16 %v45
  %v394 = vunpack.c.l.b16 %v46
  %v395 = vunpack.c.h.b16 %v46
  %v396 = vunpack.c.l.b16 %v47
  %v397 = vunpack.c.h.b16 %v47
  %v398 = vunpack.c.l.b16 %v48
  %v399 = vunpack.c.h.b16 %v48
  %v400 = vunpack.c.l.b16 %v49
  %v401 = vunpack.c.h.b16 %v49
  %v402 = vunpack.c.l.b16 %v50
  %v403 = vunpack.c.h.b16 %v50
  %v404 = vunpack.c.l.b16 %v51
  %v405 = vunpack.c.h.b16 %v51
  %v406 = vunpack.c.l.b16 %v52
  %v407 = vunpack.c.h.b16 %v52
  %v408 = vunpack.c.l.b16 %v53
  %v409 = vunpack.c.h.b16 %v53
  %v410 = vunpack.c.l.b16 %v54
  %v411 = vunpack.c.h.b16 %v54
  %v412 = vunpack.c.l.b16 %v55
  %v413 = vunpack.c.h.b16 %v55
  %v414 = vunpack.c.l.b16 %v56
  %v415 = vunpack.c.h.b16 %v56
  %v416 = vunpack.c.l.b16 %v57
  %v417 = vunpack.c.h.b16 %v57
  %v418 = vunpack.c.l.b16 %v58
  %v419 = vunpack.c.h.b16 %v58
  %v420 = vunpack.c.l.b16 %v59
  %v421 = vunpack.c.h.b16 %v59
  %v422 = vunpack.c.l.b16 %v60
  %v423 = vunpack.c.h.b16 %v60
  %v424 = vunpack.c.l.b16 %v61
  %v425 = vunpack.c.h.b16 %v61
  %v426 = vunpack.c.l.b16 %v62
  %v427 = vunpack.c.h.b16 %v62
  %v428 = vunpack.c.l.b16 %v63
  %v429 = vunpack.c.h.b16 %v63
  %v430 = vunpack.c.l.b16 %v64
  %v431 = vunpack.c.h.b16 %v64
  %v432 = vunpack.c.l.b16 %v65
  %v433 = vunpack.c.h.b16 %v65
  %v434 = vunpack.c.l.b16 %v66
  %v435 = vunpack.c.h.b16 %v66
  %v436 = vunpack.c.l.b16 %v67
  %v437 = vunpack.c.h.b16 %v67
  %v438 = vunpack.c.l.b16 %v68
  %v439 = vunpack.c.h.b16 %v68
  %v440 = vunpack.c.l.b16 %v69
  %v441 = vunpack.c.h.b16 %v69
  %v442 = vunpack.c.l.b16 %v70
  %v443 = vunpack.c.h.b16 %v70
  %v444 = vunpack.c.l.b16 %v71
  %v445 = vunpack.c.h.b16 %v71
  %v446 = vunpack.c.l.b16 %v72
  %v447 = vunpack.c.h.b16 %v72
  %v448 = vunpack.c.l.b16 %v73
  %v449 = vunpack.c.h.b16 %v73
  %v450 = vunpack.c.l.b16 %v74
  %v451 = vunpack.c.h.b16 %v74
  %v452 = vunpack.c.l.b16 %v75
  %v453 = vunpack.c.h.b16 %v75
  %v454 = vunpack.c.l.b16 %v76
  %v455 = vunpack.c.h.b16 %v76
  %v456 = vunpack.c.l.b16 %v77
  %v457 = vunpack.c.h.b16 %v77
  %v458 = vunpack.c.l.b16 %v78
  %v459 = vunpack.c.h.b16 %v78
  %v460 = vunpack.c.l.b16 %v79
  %v461 = vunpack.c.h.b16 %v79
  %v462 = vunpack.c.l.b16 %v80
  %v463 = vunpack.c.h.b16 %v80
  %v464 = vunpack.c.l.b16 %v81
  %v465 = vunpack.c.h.b16 %v81
  %v466 = vunpack.c.l.b16 %v82
  %v467 = vunpack.c.h.b16 %v82
  %v468 = vunpack.c.l.b16 %v83
  %v469 = vunpack.c.h.b16 %v83
  %v470 = vunpack.c.l.b16 %v84
  %v471 = vunpack.c.h.b16 %v84
  %v472 = vunpack.c.l.b16 %v85
  %v473 = vunpack.c.h.b16 %v85
  %v474 = vunpack.c.l.b16 %v86
  %v475 = vunpack.c.h.b16 %v86
  %v476 = vunpack.c.l.b16 %v87
  %v477 = vunpack.c.h.b16 %v87
  %v478 = vunpack.c.l.b16 %v88
  %v479 = vunpack.c.h.b16 %v88
  %v480 = vunpack.c.l.b16 %v89
  %v481 = vunpack.c.h.b16 %v89
  %v482 = vunpack.c.l.b16 %v90
  %v483 = vunpack.c.h.b16 %v90
  %v484 = vunpack.c.l.b16 %v91
  %v485 = vunpack.c.h.b16 %v91
  %v486 = vunpack.c.l.b16 %v92
  %v487 = vunpack.c.h.b16 %v92
  %v488 = vunpack.c.l.b16 %v93
  %v489 = vunpack.c.h.b16 %v93
  %v490 = vunpack.c.l.b16 %v94
  %v491 = vunpack.c.h.b16 %v94
  %v492 = vunpack.c.l.b16 %v95
  %v493 = vunpack.c.h.b16 %v95
  %v494 = vunpack.c.l.b16 %v96
  %v495 = vunpack.c.h.b16 %v96
  %v496 = vunpack.c.l.b16 %v97
  %v497 = vunpack.c.h.b16 %v97
  %v498 = vunpack.c.l.b16 %v98
  %v499 = vunpack.c.h.b16 %v98
  %v500 = vunpack.c.l.b16 %v99
  %v501 = vunpack.c.h.b16 %v99
  %v502 = vunpack.c.l.b16 %v100
  %v503 = vunpack.c.h.b16 %v100
  %v504 = vunpack.c.l.b16 %v101
  %v505 = vunpack.c.h.b16 %v101
  %v506 = vunpack.c.l.b16 %v102
  %v507 = vunpack.c.h.b16 %v102
  %v508 = vunpack.c.l.b16 %v103
  %v509 = vunpack.c.h.b16 %v103
  %v510 = vunpack.c.l.b16 %v104
  %v511 = vunpack.c.h.b16 %v104
  %v512 = vunpack.c.l.b16 %v105
  %v513 = vunpack.c.h.b16 %v105
  %v514 = vunpack.c.l.b16 %v106
  %v515 = vunpack.c.h.b16 %v106
  %v516 = vunpack.c.l.b16 %v107
  %v517 = vunpack.c.h.b16 %v107
  %v518 = vunpack.c.l.b16 %v108
  %v519 = vunpack.c.h.b16 %v108
  %v520 = vunpack.c.l.b16 %v109
  %v521 = vunpack.c.h.b16 %v109
  %v522 = vunpack.c.l.b16 %v110
  %v523 = vunpack.c.h.b16 %v110
  %v524 = vunpack.c.l.b16 %v111
  %v525 = vunpack.c.h.b16 %v111
  %v526 = vunpack.c.l.b16 %v112
  %v527 = vunpack.c.h.b16 %v112
  %v528 = vunpack.c.l.b16 %v113
  %v529 = vunpack.c.h.b16 %v113
  %v530 = vunpack.c.l.b16 %v114
  %v531 = vunpack.c.h.b16 %v114
  %v532 = vunpack.c.l.b16 %v115
  %v533 = vunpack.c.h.b16 %v115
  %v534 = vunpack.c.l.b16 %v116
  %v535 = vunpack.c.h.b16 %v116
  %v536 = vunpack.c.l.b16 %v117
  %v537 = vunpack.c.h.b16 %v117
  %v538 = vunpack.c.l.b16 %v118
  %v539 = vunpack.c.h.b16 %v118
  %v540 = vunpack.c.l.b16 %v119
  %v541 = vunpack.c.h.b16 %v119
  %v542 = vunpack.c.l.b16 %v120
  %v543 = vunpack.c.h.b16 %v120
  %v544 = vunpack.c.l.b16 %v121
  %v545 = vunpack.c.h.b16 %v121
  %v546 = vunpack.c.l.b16 %v122
  %v547 = vunpack.c.h.b16 %v122
  %v548 = vunpack.c.l.b16 %v123
  %v549 = vunpack.c.h.b16 %v123
  %v550 = vunpack.c.l.b16 %v124
  %v551 = vunpack.c.h.b16 %v124
  %v552 = vunpack.c.l.b16 %v125
  %v553 = vunpack.c.h.b16 %v125
  %v554 = vunpack.c.l.b16 %v126
  %v555 = vunpack.c.h.b16 %v126
  %v556 = vunpack.c.l.b16 %v127
  %v557 = vunpack.c.h.b16 %v127
  %v558 = vunpack.c.l.b16 %v128
  %v559 = vunpack.c.h.b16 %v128
  %v560 = vunpack.c.l.b16 %v129
  %v561 = vunpack.c.h.b16 %v129
  %v562 = vunpack.c.l.b16 %v130
  %v563 = vunpack.c.h.b16 %v130
  %v564 = vunpack.c.l.b16 %v131
  %v565 = vunpack.c.h.b16 %v131
  %v566 = vunpack.c.l.b16 %v132
  %v567 = vunpack.c.h.b16 %v132
  %v568 = vunpack.c.l.b16 %v133
  %v569 = vunpack.c.h.b16 %v133
  %v570 = vunpack.c.l.b16 %v134
  %v571 = vunpack.c.h.b16 %v134
  %v572 = vunpack.c.l.b16 %v135
  %v573 = vunpack.c.h.b16 %v135
  %v574 = vunpack.c.l.b16 %v136
  %v575 = vunpack.c.h.b16 %v136
  %v576 = vunpack.c.l.b16 %v137
  %v577 = vunpack.c.h.b16 %v137
  %v578 = vunpack.c.l.b16 %v138
  %v579 = vunpack.c.h.b16 %v138
  %v580 = vunpack.c.l.b16 %v139
  %v581 = vunpack.c.h.b16 %v139
  %v582 = vunpack.c.l.b16 %v140
  %v583 = vunpack.c.h.b16 %v140
  %v584 = vunpack.c.l.b16 %v141
  %v585 = vunpack.c.h.b16 %v141
  %v586 = vunpack.c.l.b16 %v142
  %v587 = vunpack.c.h.b16 %v142
  %v588 = vunpack.c.l.b16 %v143
  %v589 = vunpack.c.h.b16 %v143
  %v590 = vunpack.c.l.b16 %v144
  %v591 = vunpack.c.h.b16 %v144
  %v592 = vunpack.c.l.b16 %v145
  %v593 = vunpack.c.h.b16 %v145
  %v594 = vpack.c.b16 %v342, %v338
  %v595 = vpack.c.b16 %v343, %v339
  %v596 = vpack.c.b16 %v344, %v340
  %v597 = vpack.c.b16 %v345, %v341
  %v598 = vpack.c.b16 %v350, %v346
  %v599 = vpack.c.b16 %v351, %v347
  %v600 = vpack.c.b16 %v352, %v348
  %v601 = vpack.c.b16 %v353, %v349
  %v602 = vpack.c.b16 %v358, %v354
  %v603 = vpack.c.b16 %v359, %v355
  %v604 = vpack.c.b16 %v360, %v356
  %v605 = vpack.c.b16 %v361, %v357
  %v606 = vpack.c.b16 %v366, %v362
  %v607 = vpack.c.b16 %v367, %v363
  %v608 = vpack.c.b16 %v368, %v364
  %v609 = vpack.c.b16 %v369, %v365
  %v610 = vpack.c.b16 %v374, %v370
  %v611 = vpack.c.b16 %v375, %v371
  %v612 = vpack.c.b16 %v376, %v372
  %v613 = vpack.c.b16 %v377, %v373
  %v614 = vpack.c.b16 %v382, %v378
  %v615 = vpack.c.b16 %v383, %v379
  %v616 = vpack.c.b16 %v384, %v380
  %v617 = vpack.c.b16 %v385, %v381
  %v618 = vpack.c.b16 %v390, %v386
  %v619 = vpack.c.b16 %v391, %v387
  %v620 = vpack.c.b16 %v392, %v388
  %v621 = vpack.c.b16 %v393, %v389
  %v622 = vpack.c.b16 %v398, %v394
  %v623 = vpack.c.b16 %v399, %v395
  %v624 = vpack.c.b16 %v400, %v396
  %v625 = vpack.c.b16 %v401, %v397
  %v626 = vpack.c.b16 %v406, %v402
  %v627 = vpack.c.b16 %v407, %v403
  %v628 = vpack.c.b16 %v408, %v404
  %v629 = vpack.c.b16 %v409, %v405
  %v630 = vpack.c.b16 %v414, %v410
  %v631 = vpack.c.b16 %v415, %v411
  %v632 = vpack.c.b16 %v416, %v412
  %v633 = vpack.c.b16 %v417, %v413
  %v634 = vpack.c.b16 %v422, %v418
  %v635 = vpack.c.b16 %v423, %v419
  %v636 = vpack.c.b16 %v424, %v420
  %v637 = vpack.c.b16 %v425, %v421
  %v638 = vpack.c.b16 %v430, %v426
  %v639 = vpack.c.b16 %v431, %v427
  %v640 = vpack.c.b16 %v432, %v428
  %v641 = vpack.c.b16 %v433, %v429
  %v642 = vpack.c.b16 %v438, %v434
  %v643 = vpack.c.b16 %v439, %v435
  %v644 = vpack.c.b16 %v440, %v436
  %v645 = vpack.c.b16 %v441, %v437
  %v646 = vpack.c.b16 %v446, %v442
  %v647 = vpack.c.b16 %v447, %v443
  %v648 = vpack.c.b16 %v448, %v444
  %v649 = vpack.c.b16 %v449, %v445
  %v650 = vpack.c.b16 %v454, %v450
  %v651 = vpack.c.b16 %v455, %v451
  %v652 = vpack.c.b16 %v456, %v452
  %v653 = vpack.c.b16 %v457, %v453
  %v654 = vpack.c.b16 %v462, %v458
  %v655 = vpack.c.b16 %v463, %v459
  %v656 = vpack.c.b16 %v464, %v460
  %v657 = vpack.c.b16 %v465, %v461
  %v658 = vpack.c.b16 %v470, %v466
  %v659 = vpack.c.b16 %v471, %v467
  %v660 = vpack.c.b16 %v472, %v468
  %v661 = vpack.c.b16 %v473, %v469
  %v662 = vpack.c.b16 %v478, %v474
  %v663 = vpack.c.b16 %v479, %v475
  %v664 = vpack.c.b16 %v480, %v476
  %v665 = vpack.c.b16 %v481, %v477
  %v666 = vpack.c.b16 %v486, %v482
  %v667 = vpack.c.b16 %v487, %v483
  %v668 = vpack.c.b16 %v488, %v484
  %v669 = vpack.c.b16 %v489, %v485
  %v670 = vpack.c.b16 %v494, %v490
  %v671 = vpack.c.b16 %v495, %v491
  %v672 = vpack.c.b16 %v496, %v492
  %v673 = vpack.c.b16 %v497, %v493
  %v674 = vpack.c.b16 %v502, %v498
  %v675 = vpack.c.b16 %v503, %v499
  %v676 = vpack.c.b16 %v504, %v500
  %v677 = vpack.c.b16 %v505, %v501
  %v678 = vpack.c.b16 %v510, %v506
  %v679 = vpack.c.b16 %v511, %v507
  %v680 = vpack.c.b16 %v512, %v508
  %v681 = vpack.c.b16 %v513, %v509
  %v682 = vpack.c.b16 %v518, %v514
  %v683 = vpack.c.b16 %v519, %v515
  %v684 = vpack.c.b16 %v520, %v516
  %v685 = vpack.c.b16 %v521, %v517
  %v686 = vpack.c.b16 %v526, %v522
  %v687 = vpack.c.b16 %v527, %v523
  %v688 = vpack.c.b16 %v528, %v524
  %v689 = vpack.c.b16 %v529, %v525
  %v690 = vpack.c.b16 %v534, %v530
  %v691 = vpack.c.b16 %v535, %v531
  %v692 = vpack.c.b16 %v536, %v532
  %v693 = vpack.c.b16 %v537, %v533
  %v694 = vpack.c.b16 %v542, %v538
  %v695 = vpack.c.b16 %v543, %v539
  %v696 = vpack.c.b16 %v544, %v540
  %v697 = vpack.c.b16 %v545, %v541
  %v698 = vpack.c.b16 %v550, %v546
  %v699 = vpack.c.b16 %v551, %v547
  %v700 = vpack.c.b16 %v552, %v548
  %v701 = vpack.c.b16 %v553, %v549
  %v702 = vpack.c.b16 %v558, %v554
  %v703 = vpack.c.b16 %v559, %v555
  %v704 = vpack.c.b16 %v560, %v556
  %v705 = vpack.c.b16 %v561, %v557
  %v706 = vpack.c.b16 %v566, %v562
  %v707 = vpack.c.b16 %v567, %v563
  %v708 = vpack.c.b16 %v568, %v564
  %v709 = vpack.c.b16 %v569, %v565
  %v710 = vpack.c.b16 %v574, %v570
  %v711 = vpack.c.b16 %v575, %v571
  %v712 = vpack.c.b16 %v576, %v572
  %v713 = vpack.c.b16 %v577, %v573
  %v714 = vpack.c.b16 %v582, %v578
  %v715 = vpack.c.b16 %v583, %v579
  %v716 = vpack.c.b16 %v584, %v580
  %v717 = vpack.c.b16 %v585, %v581
  %v718 = vpack.c.b16 %v590, %v586
  %v719 = vpack.c.b16 %v591, %v587
  %v720 = vpack.c.b16 %v592, %v588
  %v721 = vpack.c.b16 %v593, %v589
  %v914 = vunpack.c.l.b16 %v146
  %v915 = vunpack.c.l.b16 %v147
  %v916 = vunpack.c.l.b16 %v148
  %v917 = vunpack.c.l.b16 %v149
  %v918 = vunpack.c.l.b16 %v150
  %v919 = vunpack.c.l.b16 %v151
  %v920 = vunpack.c.l.b16 %v152
  %v921 = vunpack.c.l.b16 %v153
  %v922 = vunpack.c.l.b16 %v154
  %v923 = vunpack.c.l.b16 %v155
  %v924 = vunpack.c.l.b16 %v156
  %v925 = vunpack.c.l.b16 %v157
  %v926 = vunpack.c.l.b16 %v158
  %v927 = vunpack.c.l.b16 %v159
  %v928 = vunpack.c.l.b16 %v160
  %v929 = vunpack.c.l.b16 %v161
  %v930 = vunpack.c.l.b16 %v162
  %v931 = vunpack.c.l.b16 %v163
  %v932 = vunpack.c.l.b16 %v164
  %v933 = vunpack.c.l.b16 %v165
  %v934 = vunpack.c.l.b16 %v166
  %v935 = vunpack.c.l.b16 %v167
  %v936 = vunpack.c.l.b16 %v168
  %v937 = vunpack.c.l.b16 %v169
  %v938 = vunpack.c.l.b16 %v170
  %v939 = vunpack.c.l.b16 %v171
  %v940 = vunpack.c.l.b16 %v172
  %v941 = vunpack.c.l.b16 %v173
  %v942 = vunpack.c.l.b16 %v174
  %v943 = vunpack.c.l.b16 %v175
  %v944 = vunpack.c.l.b16 %v176
  %v945 = vunpack.c.l.b16 %v177
  %v946 = vunpack.c.l.b16 %v178
  %v947 = vunpack.c.l.b16 %v179
  %v948 = vunpack.c.l.b16 %v180
  %v949 = vunpack.c.l.b16 %v181
  %v950 = vunpack.c.l.b16 %v182
  %v951 = vunpack.c.l.b16 %v183
  %v952 = vunpack.c.l.b16 %v184
  %v953 = vunpack.c.l.b16 %v185
  %v954 = vunpack.c.l.b16 %v186
  %v955 = vunpack.c.l.b16 %v187
  %v956 = vunpack.c.l.b16 %v188
  %v957 = vunpack.c.l.b16 %v189
  %v958 = vunpack.c.l.b16 %v190
  %v959 = vunpack.c.l.b16 %v191
  %v960 = vunpack.c.l.b16 %v192
  %v961 = vunpack.c.l.b16 %v193
  %v962 = vunpack.c.l.b16 %v194
  %v963 = vunpack.c.l.b16 %v195
  %v964 = vunpack.c.l.b16 %v196
  %v965 = vunpack.c.l.b16 %v197
  %v966 = vunpack.c.l.b16 %v198
  %v967 = vunpack.c.l.b16 %v199
  %v968 = vunpack.c.l.b16 %v200
  %v969 = vunpack.c.l.b16 %v201
  %v970 = vunpack.c.l.b16 %v202
  %v971 = vunpack.c.l.b16 %v203
  %v972 = vunpack.c.l.b16 %v204
  %v973 = vunpack.c.l.b16 %v205
  %v974 = vunpack.c.l.b16 %v206
  %v975 = vunpack.c.l.b16 %v207
  %v976 = vunpack.c.l.b16 %v208
  %v977 = vunpack.c.l.b16 %v209
  %v978 = vpack.c.b16 %v915, %v914
  %v979 = vpack.c.b16 %v917, %v916
  %v980 = vpack.c.b16 %v919, %v918
  %v981 = vpack.c.b16 %v921, %v920
  %v982 = vpack.c.b16 %v923, %v922
  %v983 = vpack.c.b16 %v925, %v924
  %v984 = vpack.c.b16 %v927, %v926
  %v985 = vpack.c.b16 %v929, %v928
  %v986 = vpack.c.b16 %v931, %v930
  %v987 = vpack.c.b16 %v933, %v932
  %v988 = vpack.c.b16 %v935, %v934
  %v989 = vpack.c.b16 %v937, %v936
  %v990 = vpack.c.b16 %v939, %v938
  %v991 = vpack.c.b16 %v941, %v940
  %v992 = vpack.c.b16 %v943, %v942
  %v993 = vpack.c.b16 %v945, %v944
  %v994 = vpack.c.b16 %v947, %v946
  %v995 = vpack.c.b16 %v949, %v948
  %v996 = vpack.c.b16 %v951, %v950
  %v997 = vpack.c.b16 %v953, %v952
  %v998 = vpack.c.b16 %v955, %v954
  %v999 = vpack.c.b16 %v957, %v956
  %v1000 = vpack.c.b16 %v959, %v958
  %v1001 = vpack.c.b16 %v961, %v960
  %v1002 = vpack.c.b16 %v963, %v962
  %v1003 = vpack.c.b16 %v965, %v964
  %v1004 = vpack.c.b16 %v967, %v966
  %v1005 = vpack.c.b16 %v969, %v968
  %v1006 = vpack.c.b16 %v971, %v970
  %v1007 = vpack.c.b16 %v973, %v972
  %v1008 = vpack.c.b16 %v975, %v974
  %v1009 = vpack.c.b16 %v977, %v976
  %1042 = vmatprep.subr.bf16.mxu0 0
  %1043 = vmatpush1.bf16.msra.mxu0 %v978
  %1044 = vmatprep.subr.bf16.mxu0 0
  %1045 = vmatpush1.bf16.msra.mxu0 %v979
  %1046 = vmatprep.subr.bf16.mxu0 0
  %1047 = vmatpush1.bf16.msra.mxu0 %v980
  %1048 = vmatprep.subr.bf16.mxu0 0
  %1049 = vmatpush1.bf16.msra.mxu0 %v981
  %1050 = vmatprep.subr.bf16.mxu0 0
  %1051 = vmatpush1.bf16.msra.mxu0 %v982
  %1052 = vmatprep.subr.bf16.mxu0 0
  %1053 = vmatpush1.bf16.msra.mxu0 %v983
  %1054 = vmatprep.subr.bf16.mxu0 0
  %1055 = vmatpush1.bf16.msra.mxu0 %v984
  %1056 = vmatprep.subr.bf16.mxu0 0
  %1057 = vmatpush1.bf16.msra.mxu0 %v985
  %1058 = vmatprep.subr.bf16.mxu0 0
  %1059 = vmatpush1.bf16.msra.mxu0 %v986
  %1060 = vmatprep.subr.bf16.mxu0 0
  %1061 = vmatpush1.bf16.msra.mxu0 %v987
  %1062 = vmatprep.subr.bf16.mxu0 0
  %1063 = vmatpush1.bf16.msra.mxu0 %v988
  %1064 = vmatprep.subr.bf16.mxu0 0
  %1065 = vmatpush1.bf16.msra.mxu0 %v989
  %1066 = vmatprep.subr.bf16.mxu0 0
  %1067 = vmatpush1.bf16.msra.mxu0 %v990
  %1068 = vmatprep.subr.bf16.mxu0 0
  %1069 = vmatpush1.bf16.msra.mxu0 %v991
  %1070 = vmatprep.subr.bf16.mxu0 0
  %1071 = vmatpush1.bf16.msra.mxu0 %v992
  %1072 = vmatprep.subr.bf16.mxu0 0
  %1073 = vmatpush1.bf16.msra.mxu0 %v993
  %1074 = vmatprep.mubr.bf16.mxu0 %v595
  %1075 = vmatmul.mubr.bf16.gmra.mrb[0].mxu0 %v594
  %v1076 = vpop.f32.mrb[0].mxu0
  %v1077 = vadd.f32 0.0, %v1076
  %v1078 = vpop.f32.mrb[0].mxu0
  %v1079 = vpop.f32.mrb[0].mxu0
  %v1080 = vadd.f32 0.0, %v1079
  %v1081 = vpop.f32.mrb[0].mxu0
  %1082 = vmatprep.mubr.bf16.mxu0 %v599
  %1083 = vmatmul.mubr.bf16.gmra.mrb[0].mxu0 %v598
  %v1084 = vpop.f32.mrb[0].mxu0
  %v1085 = vadd.f32 0.0, %v1084
  %v1086 = vpop.f32.mrb[0].mxu0
  %v1087 = vpop.f32.mrb[0].mxu0
  %v1088 = vadd.f32 0.0, %v1087
  %v1089 = vpop.f32.mrb[0].mxu0
  %1090 = vmatprep.mubr.bf16.mxu0 %v603
  %1091 = vmatmul.mubr.bf16.gmra.mrb[0].mxu0 %v602
  %v1092 = vpop.f32.mrb[0].mxu0
  %v1093 = vadd.f32 0.0, %v1092
  %v1094 = vpop.f32.mrb[0].mxu0
  %v1095 = vpop.f32.mrb[0].mxu0
  %v1096 = vadd.f32 0.0, %v1095
  %v1097 = vpop.f32.mrb[0].mxu0
  %1098 = vmatprep.mubr.bf16.mxu0 %v607
  %1099 = vmatmul.mubr.bf16.gmra.mrb[0].mxu0 %v606
  %v1100 = vpop.f32.mrb[0].mxu0
  %v1101 = vadd.f32 0.0, %v1100
  %v1102 = vpop.f32.mrb[0].mxu0
  %v1103 = vpop.f32.mrb[0].mxu0
  %v1104 = vadd.f32 0.0, %v1103
  %v1105 = vpop.f32.mrb[0].mxu0
  %1106 = vmatprep.mubr.bf16.mxu0 %v611
  %1107 = vmatmul.mubr.bf16.gmra.mrb[0].mxu0 %v610
  %v1108 = vpop.f32.mrb[0].mxu0
  %v1109 = vadd.f32 0.0, %v1108
  %v1110 = vpop.f32.mrb[0].mxu0
  %v1111 = vpop.f32.mrb[0].mxu0
  %v1112 = vadd.f32 0.0, %v1111
  %v1113 = vpop.f32.mrb[0].mxu0
  %1114 = vmatprep.mubr.bf16.mxu0 %v615
  %1115 = vmatmul.mubr.bf16.gmra.mrb[0].mxu0 %v614
  %v1116 = vpop.f32.mrb[0].mxu0
  %v1117 = vadd.f32 0.0, %v1116
  %v1118 = vpop.f32.mrb[0].mxu0
  %v1119 = vpop.f32.mrb[0].mxu0
  %v1120 = vadd.f32 0.0, %v1119
  %v1121 = vpop.f32.mrb[0].mxu0
  %1122 = vmatprep.mubr.bf16.mxu0 %v619
  %1123 = vmatmul.mubr.bf16.gmra.mrb[0].mxu0 %v618
  %v1124 = vpop.f32.mrb[0].mxu0
  %v1125 = vadd.f32 0.0, %v1124
  %v1126 = vpop.f32.mrb[0].mxu0
  %v1127 = vpop.f32.mrb[0].mxu0
  %v1128 = vadd.f32 0.0, %v1127
  %v1129 = vpop.f32.mrb[0].mxu0
  %1130 = vmatprep.mubr.bf16.mxu0 %v623
  %1131 = vmatmul.mubr.bf16.gmra.mrb[0].mxu0 %v622
  %v1132 = vpop.f32.mrb[0].mxu0
  %v1133 = vadd.f32 0.0, %v1132
  %v1134 = vpop.f32.mrb[0].mxu0
  %v1135 = vpop.f32.mrb[0].mxu0
  %v1136 = vadd.f32 0.0, %v1135
  %v1137 = vpop.f32.mrb[0].mxu0
  %1138 = vmatprep.mubr.bf16.mxu0 %v627
  %1139 = vmatmul.mubr.bf16.gmra.mrb[0].mxu0 %v626
  %v1140 = vpop.f32.mrb[0].mxu0
  %v1141 = vadd.f32 0.0, %v1140
  %v1142 = vpop.f32.mrb[0].mxu0
  %v1143 = vpop.f32.mrb[0].mxu0
  %v1144 = vadd.f32 0.0, %v1143
  %v1145 = vpop.f32.mrb[0].mxu0
  %1146 = vmatprep.mubr.bf16.mxu0 %v631
  %1147 = vmatmul.mubr.bf16.gmra.mrb[0].mxu0 %v630
  %v1148 = vpop.f32.mrb[0].mxu0
  %v1149 = vadd.f32 0.0, %v1148
  %v1150 = vpop.f32.mrb[0].mxu0
  %v1151 = vpop.f32.mrb[0].mxu0
  %v1152 = vadd.f32 0.0, %v1151
  %v1153 = vpop.f32.mrb[0].mxu0
  %1154 = vmatprep.mubr.bf16.mxu0 %v635
  %1155 = vmatmul.mubr.bf16.gmra.mrb[0].mxu0 %v634
  %v1156 = vpop.f32.mrb[0].mxu0
  %v1157 = vadd.f32 0.0, %v1156
  %v1158 = vpop.f32.mrb[0].mxu0
  %v1159 = vpop.f32.mrb[0].mxu0
  %v1160 = vadd.f32 0.0, %v1159
  %v1161 = vpop.f32.mrb[0].mxu0
  %1162 = vmatprep.mubr.bf16.mxu0 %v639
  %1163 = vmatmul.mubr.bf16.gmra.mrb[0].mxu0 %v638
  %v1164 = vpop.f32.mrb[0].mxu0
  %v1165 = vadd.f32 0.0, %v1164
  %v1166 = vpop.f32.mrb[0].mxu0
  %v1167 = vpop.f32.mrb[0].mxu0
  %v1168 = vadd.f32 0.0, %v1167
  %v1169 = vpop.f32.mrb[0].mxu0
  %1170 = vmatprep.mubr.bf16.mxu0 %v643
  %1171 = vmatmul.mubr.bf16.gmra.mrb[0].mxu0 %v642
  %v1172 = vpop.f32.mrb[0].mxu0
  %v1173 = vadd.f32 0.0, %v1172
  %v1174 = vpop.f32.mrb[0].mxu0
  %v1175 = vpop.f32.mrb[0].mxu0
  %v1176 = vadd.f32 0.0, %v1175
  %v1177 = vpop.f32.mrb[0].mxu0
  %1178 = vmatprep.mubr.bf16.mxu0 %v647
  %1179 = vmatmul.mubr.bf16.gmra.mrb[0].mxu0 %v646
  %v1180 = vpop.f32.mrb[0].mxu0
  %v1181 = vadd.f32 0.0, %v1180
  %v1182 = vpop.f32.mrb[0].mxu0
  %v1183 = vpop.f32.mrb[0].mxu0
  %v1184 = vadd.f32 0.0, %v1183
  %v1185 = vpop.f32.mrb[0].mxu0
  %1186 = vmatprep.mubr.bf16.mxu0 %v651
  %1187 = vmatmul.mubr.bf16.gmra.mrb[0].mxu0 %v650
  %v1188 = vpop.f32.mrb[0].mxu0
  %v1189 = vadd.f32 0.0, %v1188
  %v1190 = vpop.f32.mrb[0].mxu0
  %v1191 = vpop.f32.mrb[0].mxu0
  %v1192 = vadd.f32 0.0, %v1191
  %v1193 = vpop.f32.mrb[0].mxu0
  %1194 = vmatprep.mubr.bf16.mxu0 %v655
  %1195 = vmatmul.mubr.bf16.gmra.mrb[0].mxu0 %v654
  %v1196 = vpop.f32.mrb[0].mxu0
  %v1197 = vadd.f32 0.0, %v1196
  %v1198 = vpop.f32.mrb[0].mxu0
  %v1199 = vpop.f32.mrb[0].mxu0
  %v1200 = vadd.f32 0.0, %v1199
  %v1201 = vpop.f32.mrb[0].mxu0
  %1202 = vmatprep.mubr.bf16.mxu0 %v659
  %1203 = vmatmul.mubr.bf16.gmra.mrb[0].mxu0 %v658
  %v1204 = vpop.f32.mrb[0].mxu0
  %v1205 = vadd.f32 0.0, %v1204
  %v1206 = vpop.f32.mrb[0].mxu0
  %v1207 = vpop.f32.mrb[0].mxu0
  %v1208 = vadd.f32 0.0, %v1207
  %v1209 = vpop.f32.mrb[0].mxu0
  %1210 = vmatprep.mubr.bf16.mxu0 %v663
  %1211 = vmatmul.mubr.bf16.gmra.mrb[0].mxu0 %v662
  %v1212 = vpop.f32.mrb[0].mxu0
  %v1213 = vadd.f32 0.0, %v1212
  %v1214 = vpop.f32.mrb[0].mxu0
  %v1215 = vpop.f32.mrb[0].mxu0
  %v1216 = vadd.f32 0.0, %v1215
  %v1217 = vpop.f32.mrb[0].mxu0
  %1218 = vmatprep.mubr.bf16.mxu0 %v667
  %1219 = vmatmul.mubr.bf16.gmra.mrb[0].mxu0 %v666
  %v1220 = vpop.f32.mrb[0].mxu0
  %v1221 = vadd.f32 0.0, %v1220
  %v1222 = vpop.f32.mrb[0].mxu0
  %v1223 = vpop.f32.mrb[0].mxu0
  %v1224 = vadd.f32 0.0, %v1223
  %v1225 = vpop.f32.mrb[0].mxu0
  %1226 = vmatprep.mubr.bf16.mxu0 %v671
  %1227 = vmatmul.mubr.bf16.gmra.mrb[0].mxu0 %v670
  %v1228 = vpop.f32.mrb[0].mxu0
  %v1229 = vadd.f32 0.0, %v1228
  %v1230 = vpop.f32.mrb[0].mxu0
  %v1231 = vpop.f32.mrb[0].mxu0
  %v1232 = vadd.f32 0.0, %v1231
  %v1233 = vpop.f32.mrb[0].mxu0
  %1234 = vmatprep.mubr.bf16.mxu0 %v675
  %1235 = vmatmul.mubr.bf16.gmra.mrb[0].mxu0 %v674
  %v1236 = vpop.f32.mrb[0].mxu0
  %v1237 = vadd.f32 0.0, %v1236
  %v1238 = vpop.f32.mrb[0].mxu0
  %v1239 = vpop.f32.mrb[0].mxu0
  %v1240 = vadd.f32 0.0, %v1239
  %v1241 = vpop.f32.mrb[0].mxu0
  %1242 = vmatprep.mubr.bf16.mxu0 %v679
  %1243 = vmatmul.mubr.bf16.gmra.mrb[0].mxu0 %v678
  %v1244 = vpop.f32.mrb[0].mxu0
  %v1245 = vadd.f32 0.0, %v1244
  %v1246 = vpop.f32.mrb[0].mxu0
  %v1247 = vpop.f32.mrb[0].mxu0
  %v1248 = vadd.f32 0.0, %v1247
  %v1249 = vpop.f32.mrb[0].mxu0
  %1250 = vmatprep.mubr.bf16.mxu0 %v683
  %1251 = vmatmul.mubr.bf16.gmra.mrb[0].mxu0 %v682
  %v1252 = vpop.f32.mrb[0].mxu0
  %v1253 = vadd.f32 0.0, %v1252
  %v1254 = vpop.f32.mrb[0].mxu0
  %v1255 = vpop.f32.mrb[0].mxu0
  %v1256 = vadd.f32 0.0, %v1255
  %v1257 = vpop.f32.mrb[0].mxu0
  %1258 = vmatprep.mubr.bf16.mxu0 %v687
  %1259 = vmatmul.mubr.bf16.gmra.mrb[0].mxu0 %v686
  %v1260 = vpop.f32.mrb[0].mxu0
  %v1261 = vadd.f32 0.0, %v1260
  %v1262 = vpop.f32.mrb[0].mxu0
  %v1263 = vpop.f32.mrb[0].mxu0
  %v1264 = vadd.f32 0.0, %v1263
  %v1265 = vpop.f32.mrb[0].mxu0
  %1266 = vmatprep.mubr.bf16.mxu0 %v691
  %1267 = vmatmul.mubr.bf16.gmra.mrb[0].mxu0 %v690
  %v1268 = vpop.f32.mrb[0].mxu0
  %v1269 = vadd.f32 0.0, %v1268
  %v1270 = vpop.f32.mrb[0].mxu0
  %v1271 = vpop.f32.mrb[0].mxu0
  %v1272 = vadd.f32 0.0, %v1271
  %v1273 = vpop.f32.mrb[0].mxu0
  %1274 = vmatprep.mubr.bf16.mxu0 %v695
  %1275 = vmatmul.mubr.bf16.gmra.mrb[0].mxu0 %v694
  %v1276 = vpop.f32.mrb[0].mxu0
  %v1277 = vadd.f32 0.0, %v1276
  %v1278 = vpop.f32.mrb[0].mxu0
  %v1279 = vpop.f32.mrb[0].mxu0
  %v1280 = vadd.f32 0.0, %v1279
  %v1281 = vpop.f32.mrb[0].mxu0
  %1282 = vmatprep.mubr.bf16.mxu0 %v699
  %1283 = vmatmul.mubr.bf16.gmra.mrb[0].mxu0 %v698
  %v1284 = vpop.f32.mrb[0].mxu0
  %v1285 = vadd.f32 0.0, %v1284
  %v1286 = vpop.f32.mrb[0].mxu0
  %v1287 = vpop.f32.mrb[0].mxu0
  %v1288 = vadd.f32 0.0, %v1287
  %v1289 = vpop.f32.mrb[0].mxu0
  %1290 = vmatprep.mubr.bf16.mxu0 %v703
  %1291 = vmatmul.mubr.bf16.gmra.mrb[0].mxu0 %v702
  %v1292 = vpop.f32.mrb[0].mxu0
  %v1293 = vadd.f32 0.0, %v1292
  %v1294 = vpop.f32.mrb[0].mxu0
  %v1295 = vpop.f32.mrb[0].mxu0
  %v1296 = vadd.f32 0.0, %v1295
  %v1297 = vpop.f32.mrb[0].mxu0
  %1298 = vmatprep.mubr.bf16.mxu0 %v707
  %1299 = vmatmul.mubr.bf16.gmra.mrb[0].mxu0 %v706
  %v1300 = vpop.f32.mrb[0].mxu0
  %v1301 = vadd.f32 0.0, %v1300
  %v1302 = vpop.f32.mrb[0].mxu0
  %v1303 = vpop.f32.mrb[0].mxu0
  %v1304 = vadd.f32 0.0, %v1303
  %v1305 = vpop.f32.mrb[0].mxu0
  %1306 = vmatprep.mubr.bf16.mxu0 %v711
  %1307 = vmatmul.mubr.bf16.gmra.mrb[0].mxu0 %v710
  %v1308 = vpop.f32.mrb[0].mxu0
  %v1309 = vadd.f32 0.0, %v1308
  %v1310 = vpop.f32.mrb[0].mxu0
  %v1311 = vpop.f32.mrb[0].mxu0
  %v1312 = vadd.f32 0.0, %v1311
  %v1313 = vpop.f32.mrb[0].mxu0
  %1314 = vmatprep.mubr.bf16.mxu0 %v715
  %1315 = vmatmul.mubr.bf16.gmra.mrb[0].mxu0 %v714
  %v1316 = vpop.f32.mrb[0].mxu0
  %v1317 = vadd.f32 0.0, %v1316
  %v1318 = vpop.f32.mrb[0].mxu0
  %v1319 = vpop.f32.mrb[0].mxu0
  %v1320 = vadd.f32 0.0, %v1319
  %v1321 = vpop.f32.mrb[0].mxu0
  %1322 = vmatprep.mubr.bf16.mxu0 %v719
  %1323 = vmatmul.mubr.bf16.gmra.mrb[0].mxu0 %v718
  %v1324 = vpop.f32.mrb[0].mxu0
  %v1325 = vadd.f32 0.0, %v1324
  %v1326 = vpop.f32.mrb[0].mxu0
  %v1327 = vpop.f32.mrb[0].mxu0
  %v1328 = vadd.f32 0.0, %v1327
  %v1329 = vpop.f32.mrb[0].mxu0
  %1330 = vdwg.mxu0
  %1331 = vmatprep.subr.bf16.mxu0 0
  %1332 = vmatpush1.bf16.msra.mxu0 %v994
  %1333 = vmatprep.subr.bf16.mxu0 0
  %1334 = vmatpush1.bf16.msra.mxu0 %v995
  %1335 = vmatprep.subr.bf16.mxu0 0
  %1336 = vmatpush1.bf16.msra.mxu0 %v996
  %1337 = vmatprep.subr.bf16.mxu0 0
  %1338 = vmatpush1.bf16.msra.mxu0 %v997
  %1339 = vmatprep.subr.bf16.mxu0 0
  %1340 = vmatpush1.bf16.msra.mxu0 %v998
  %1341 = vmatprep.subr.bf16.mxu0 0
  %1342 = vmatpush1.bf16.msra.mxu0 %v999
  %1343 = vmatprep.subr.bf16.mxu0 0
  %1344 = vmatpush1.bf16.msra.mxu0 %v1000
  %1345 = vmatprep.subr.bf16.mxu0 0
  %1346 = vmatpush1.bf16.msra.mxu0 %v1001
  %1347 = vmatprep.subr.bf16.mxu0 0
  %1348 = vmatpush1.bf16.msra.mxu0 %v1002
  %1349 = vmatprep.subr.bf16.mxu0 0
  %1350 = vmatpush1.bf16.msra.mxu0 %v1003
  %1351 = vmatprep.subr.bf16.mxu0 0
  %1352 = vmatpush1.bf16.msra.mxu0 %v1004
  %1353 = vmatprep.subr.bf16.mxu0 0
  %1354 = vmatpush1.bf16.msra.mxu0 %v1005
  %1355 = vmatprep.subr.bf16.mxu0 0
  %1356 = vmatpush1.bf16.msra.mxu0 %v1006
  %1357 = vmatprep.subr.bf16.mxu0 0
  %1358 = vmatpush1.bf16.msra.mxu0 %v1007
  %1359 = vmatprep.subr.bf16.mxu0 0
  %1360 = vmatpush1.bf16.msra.mxu0 %v1008
  %1361 = vmatprep.subr.bf16.mxu0 0
  %1362 = vmatpush1.bf16.msra.mxu0 %v1009
  %1363 = vmatprep.mubr.bf16.mxu0 %v597
  %1364 = vmatmul.mubr.bf16.gmra.mrb[0].mxu0 %v596
  %v1365 = vpop.f32.mrb[0].mxu0
  %v1366 = vadd.f32 %v1077, %v1365
  %v1367 = vpop.f32.mrb[0].mxu0
  %v1368 = vpop.f32.mrb[0].mxu0
  %v1369 = vadd.f32 %v1080, %v1368
  %v1370 = vpop.f32.mrb[0].mxu0
  %1371 = vmatprep.mubr.bf16.mxu0 %v601
  %1372 = vmatmul.mubr.bf16.gmra.mrb[0].mxu0 %v600
  %v1373 = vpop.f32.mrb[0].mxu0
  %v1374 = vadd.f32 %v1085, %v1373
  %v1375 = vpop.f32.mrb[0].mxu0
  %v1376 = vpop.f32.mrb[0].mxu0
  %v1377 = vadd.f32 %v1088, %v1376
  %v1378 = vpop.f32.mrb[0].mxu0
  %1379 = vmatprep.mubr.bf16.mxu0 %v605
  %1380 = vmatmul.mubr.bf16.gmra.mrb[0].mxu0 %v604
  %v1381 = vpop.f32.mrb[0].mxu0
  %v1382 = vadd.f32 %v1093, %v1381
  %v1383 = vpop.f32.mrb[0].mxu0
  %v1384 = vpop.f32.mrb[0].mxu0
  %v1385 = vadd.f32 %v1096, %v1384
  %v1386 = vpop.f32.mrb[0].mxu0
  %1387 = vmatprep.mubr.bf16.mxu0 %v609
  %1388 = vmatmul.mubr.bf16.gmra.mrb[0].mxu0 %v608
  %v1389 = vpop.f32.mrb[0].mxu0
  %v1390 = vadd.f32 %v1101, %v1389
  %v1391 = vpop.f32.mrb[0].mxu0
  %v1392 = vpop.f32.mrb[0].mxu0
  %v1393 = vadd.f32 %v1104, %v1392
  %v1394 = vpop.f32.mrb[0].mxu0
  %1395 = vmatprep.mubr.bf16.mxu0 %v613
  %1396 = vmatmul.mubr.bf16.gmra.mrb[0].mxu0 %v612
  %v1397 = vpop.f32.mrb[0].mxu0
  %v1398 = vadd.f32 %v1109, %v1397
  %v1399 = vpop.f32.mrb[0].mxu0
  %v1400 = vpop.f32.mrb[0].mxu0
  %v1401 = vadd.f32 %v1112, %v1400
  %v1402 = vpop.f32.mrb[0].mxu0
  %1403 = vmatprep.mubr.bf16.mxu0 %v617
  %1404 = vmatmul.mubr.bf16.gmra.mrb[0].mxu0 %v616
  %v1405 = vpop.f32.mrb[0].mxu0
  %v1406 = vadd.f32 %v1117, %v1405
  %v1407 = vpop.f32.mrb[0].mxu0
  %v1408 = vpop.f32.mrb[0].mxu0
  %v1409 = vadd.f32 %v1120, %v1408
  %v1410 = vpop.f32.mrb[0].mxu0
  %1411 = vmatprep.mubr.bf16.mxu0 %v621
  %1412 = vmatmul.mubr.bf16.gmra.mrb[0].mxu0 %v620
  %v1413 = vpop.f32.mrb[0].mxu0
  %v1414 = vadd.f32 %v1125, %v1413
  %v1415 = vpop.f32.mrb[0].mxu0
  %v1416 = vpop.f32.mrb[0].mxu0
  %v1417 = vadd.f32 %v1128, %v1416
  %v1418 = vpop.f32.mrb[0].mxu0
  %1419 = vmatprep.mubr.bf16.mxu0 %v625
  %1420 = vmatmul.mubr.bf16.gmra.mrb[0].mxu0 %v624
  %v1421 = vpop.f32.mrb[0].mxu0
  %v1422 = vadd.f32 %v1133, %v1421
  %v1423 = vpop.f32.mrb[0].mxu0
  %v1424 = vpop.f32.mrb[0].mxu0
  %v1425 = vadd.f32 %v1136, %v1424
  %v1426 = vpop.f32.mrb[0].mxu0
  %1427 = vmatprep.mubr.bf16.mxu0 %v629
  %1428 = vmatmul.mubr.bf16.gmra.mrb[0].mxu0 %v628
  %v1429 = vpop.f32.mrb[0].mxu0
  %v1430 = vadd.f32 %v1141, %v1429
  %v1431 = vpop.f32.mrb[0].mxu0
  %v1432 = vpop.f32.mrb[0].mxu0
  %v1433 = vadd.f32 %v1144, %v1432
  %v1434 = vpop.f32.mrb[0].mxu0
  %1435 = vmatprep.mubr.bf16.mxu0 %v633
  %1436 = vmatmul.mubr.bf16.gmra.mrb[0].mxu0 %v632
  %v1437 = vpop.f32.mrb[0].mxu0
  %v1438 = vadd.f32 %v1149, %v1437
  %v1439 = vpop.f32.mrb[0].mxu0
  %v1440 = vpop.f32.mrb[0].mxu0
  %v1441 = vadd.f32 %v1152, %v1440
  %v1442 = vpop.f32.mrb[0].mxu0
  %1443 = vmatprep.mubr.bf16.mxu0 %v637
  %1444 = vmatmul.mubr.bf16.gmra.mrb[0].mxu0 %v636
  %v1445 = vpop.f32.mrb[0].mxu0
  %v1446 = vadd.f32 %v1157, %v1445
  %v1447 = vpop.f32.mrb[0].mxu0
  %v1448 = vpop.f32.mrb[0].mxu0
  %v1449 = vadd.f32 %v1160, %v1448
  %v1450 = vpop.f32.mrb[0].mxu0
  %1451 = vmatprep.mubr.bf16.mxu0 %v641
  %1452 = vmatmul.mubr.bf16.gmra.mrb[0].mxu0 %v640
  %v1453 = vpop.f32.mrb[0].mxu0
  %v1454 = vadd.f32 %v1165, %v1453
  %v1455 = vpop.f32.mrb[0].mxu0
  %v1456 = vpop.f32.mrb[0].mxu0
  %v1457 = vadd.f32 %v1168, %v1456
  %v1458 = vpop.f32.mrb[0].mxu0
  %1459 = vmatprep.mubr.bf16.mxu0 %v645
  %1460 = vmatmul.mubr.bf16.gmra.mrb[0].mxu0 %v644
  %v1461 = vpop.f32.mrb[0].mxu0
  %v1462 = vadd.f32 %v1173, %v1461
  %v1463 = vpop.f32.mrb[0].mxu0
  %v1464 = vpop.f32.mrb[0].mxu0
  %v1465 = vadd.f32 %v1176, %v1464
  %v1466 = vpop.f32.mrb[0].mxu0
  %1467 = vmatprep.mubr.bf16.mxu0 %v649
  %1468 = vmatmul.mubr.bf16.gmra.mrb[0].mxu0 %v648
  %v1469 = vpop.f32.mrb[0].mxu0
  %v1470 = vadd.f32 %v1181, %v1469
  %v1471 = vpop.f32.mrb[0].mxu0
  %v1472 = vpop.f32.mrb[0].mxu0
  %v1473 = vadd.f32 %v1184, %v1472
  %v1474 = vpop.f32.mrb[0].mxu0
  %1475 = vmatprep.mubr.bf16.mxu0 %v653
  %1476 = vmatmul.mubr.bf16.gmra.mrb[0].mxu0 %v652
  %v1477 = vpop.f32.mrb[0].mxu0
  %v1478 = vadd.f32 %v1189, %v1477
  %v1479 = vpop.f32.mrb[0].mxu0
  %v1480 = vpop.f32.mrb[0].mxu0
  %v1481 = vadd.f32 %v1192, %v1480
  %v1482 = vpop.f32.mrb[0].mxu0
  %1483 = vmatprep.mubr.bf16.mxu0 %v657
  %1484 = vmatmul.mubr.bf16.gmra.mrb[0].mxu0 %v656
  %v1485 = vpop.f32.mrb[0].mxu0
  %v1486 = vadd.f32 %v1197, %v1485
  %v1487 = vpop.f32.mrb[0].mxu0
  %v1488 = vpop.f32.mrb[0].mxu0
  %v1489 = vadd.f32 %v1200, %v1488
  %v1490 = vpop.f32.mrb[0].mxu0
  %1491 = vmatprep.mubr.bf16.mxu0 %v661
  %1492 = vmatmul.mubr.bf16.gmra.mrb[0].mxu0 %v660
  %v1493 = vpop.f32.mrb[0].mxu0
  %v1494 = vadd.f32 %v1205, %v1493
  %v1495 = vpop.f32.mrb[0].mxu0
  %v1496 = vpop.f32.mrb[0].mxu0
  %v1497 = vadd.f32 %v1208, %v1496
  %v1498 = vpop.f32.mrb[0].mxu0
  %1499 = vmatprep.mubr.bf16.mxu0 %v665
  %1500 = vmatmul.mubr.bf16.gmra.mrb[0].mxu0 %v664
  %v1501 = vpop.f32.mrb[0].mxu0
  %v1502 = vadd.f32 %v1213, %v1501
  %v1503 = vpop.f32.mrb[0].mxu0
  %v1504 = vpop.f32.mrb[0].mxu0
  %v1505 = vadd.f32 %v1216, %v1504
  %v1506 = vpop.f32.mrb[0].mxu0
  %1507 = vmatprep.mubr.bf16.mxu0 %v669
  %1508 = vmatmul.mubr.bf16.gmra.mrb[0].mxu0 %v668
  %v1509 = vpop.f32.mrb[0].mxu0
  %v1510 = vadd.f32 %v1221, %v1509
  %v1511 = vpop.f32.mrb[0].mxu0
  %v1512 = vpop.f32.mrb[0].mxu0
  %v1513 = vadd.f32 %v1224, %v1512
  %v1514 = vpop.f32.mrb[0].mxu0
  %1515 = vmatprep.mubr.bf16.mxu0 %v673
  %1516 = vmatmul.mubr.bf16.gmra.mrb[0].mxu0 %v672
  %v1517 = vpop.f32.mrb[0].mxu0
  %v1518 = vadd.f32 %v1229, %v1517
  %v1519 = vpop.f32.mrb[0].mxu0
  %v1520 = vpop.f32.mrb[0].mxu0
  %v1521 = vadd.f32 %v1232, %v1520
  %v1522 = vpop.f32.mrb[0].mxu0
  %1523 = vmatprep.mubr.bf16.mxu0 %v677
  %1524 = vmatmul.mubr.bf16.gmra.mrb[0].mxu0 %v676
  %v1525 = vpop.f32.mrb[0].mxu0
  %v1526 = vadd.f32 %v1237, %v1525
  %v1527 = vpop.f32.mrb[0].mxu0
  %v1528 = vpop.f32.mrb[0].mxu0
  %v1529 = vadd.f32 %v1240, %v1528
  %v1530 = vpop.f32.mrb[0].mxu0
  %1531 = vmatprep.mubr.bf16.mxu0 %v681
  %1532 = vmatmul.mubr.bf16.gmra.mrb[0].mxu0 %v680
  %v1533 = vpop.f32.mrb[0].mxu0
  %v1534 = vadd.f32 %v1245, %v1533
  %v1535 = vpop.f32.mrb[0].mxu0
  %v1536 = vpop.f32.mrb[0].mxu0
  %v1537 = vadd.f32 %v1248, %v1536
  %v1538 = vpop.f32.mrb[0].mxu0
  %1539 = vmatprep.mubr.bf16.mxu0 %v685
  %1540 = vmatmul.mubr.bf16.gmra.mrb[0].mxu0 %v684
  %v1541 = vpop.f32.mrb[0].mxu0
  %v1542 = vadd.f32 %v1253, %v1541
  %v1543 = vpop.f32.mrb[0].mxu0
  %v1544 = vpop.f32.mrb[0].mxu0
  %v1545 = vadd.f32 %v1256, %v1544
  %v1546 = vpop.f32.mrb[0].mxu0
  %1547 = vmatprep.mubr.bf16.mxu0 %v689
  %1548 = vmatmul.mubr.bf16.gmra.mrb[0].mxu0 %v688
  %v1549 = vpop.f32.mrb[0].mxu0
  %v1550 = vadd.f32 %v1261, %v1549
  %v1551 = vpop.f32.mrb[0].mxu0
  %v1552 = vpop.f32.mrb[0].mxu0
  %v1553 = vadd.f32 %v1264, %v1552
  %v1554 = vpop.f32.mrb[0].mxu0
  %1555 = vmatprep.mubr.bf16.mxu0 %v693
  %1556 = vmatmul.mubr.bf16.gmra.mrb[0].mxu0 %v692
  %v1557 = vpop.f32.mrb[0].mxu0
  %v1558 = vadd.f32 %v1269, %v1557
  %v1559 = vpop.f32.mrb[0].mxu0
  %v1560 = vpop.f32.mrb[0].mxu0
  %v1561 = vadd.f32 %v1272, %v1560
  %v1562 = vpop.f32.mrb[0].mxu0
  %1563 = vmatprep.mubr.bf16.mxu0 %v697
  %1564 = vmatmul.mubr.bf16.gmra.mrb[0].mxu0 %v696
  %v1565 = vpop.f32.mrb[0].mxu0
  %v1566 = vadd.f32 %v1277, %v1565
  %v1567 = vpop.f32.mrb[0].mxu0
  %v1568 = vpop.f32.mrb[0].mxu0
  %v1569 = vadd.f32 %v1280, %v1568
  %v1570 = vpop.f32.mrb[0].mxu0
  %1571 = vmatprep.mubr.bf16.mxu0 %v701
  %1572 = vmatmul.mubr.bf16.gmra.mrb[0].mxu0 %v700
  %v1573 = vpop.f32.mrb[0].mxu0
  %v1574 = vadd.f32 %v1285, %v1573
  %v1575 = vpop.f32.mrb[0].mxu0
  %v1576 = vpop.f32.mrb[0].mxu0
  %v1577 = vadd.f32 %v1288, %v1576
  %v1578 = vpop.f32.mrb[0].mxu0
  %1579 = vmatprep.mubr.bf16.mxu0 %v705
  %1580 = vmatmul.mubr.bf16.gmra.mrb[0].mxu0 %v704
  %v1581 = vpop.f32.mrb[0].mxu0
  %v1582 = vadd.f32 %v1293, %v1581
  %v1583 = vpop.f32.mrb[0].mxu0
  %v1584 = vpop.f32.mrb[0].mxu0
  %v1585 = vadd.f32 %v1296, %v1584
  %v1586 = vpop.f32.mrb[0].mxu0
  %1587 = vmatprep.mubr.bf16.mxu0 %v709
  %1588 = vmatmul.mubr.bf16.gmra.mrb[0].mxu0 %v708
  %v1589 = vpop.f32.mrb[0].mxu0
  %v1590 = vadd.f32 %v1301, %v1589
  %v1591 = vpop.f32.mrb[0].mxu0
  %v1592 = vpop.f32.mrb[0].mxu0
  %v1593 = vadd.f32 %v1304, %v1592
  %v1594 = vpop.f32.mrb[0].mxu0
  %1595 = vmatprep.mubr.bf16.mxu0 %v713
  %1596 = vmatmul.mubr.bf16.gmra.mrb[0].mxu0 %v712
  %v1597 = vpop.f32.mrb[0].mxu0
  %v1598 = vadd.f32 %v1309, %v1597
  %v1599 = vpop.f32.mrb[0].mxu0
  %v1600 = vpop.f32.mrb[0].mxu0
  %v1601 = vadd.f32 %v1312, %v1600
  %v1602 = vpop.f32.mrb[0].mxu0
  %1603 = vmatprep.mubr.bf16.mxu0 %v717
  %1604 = vmatmul.mubr.bf16.gmra.mrb[0].mxu0 %v716
  %v1605 = vpop.f32.mrb[0].mxu0
  %v1606 = vadd.f32 %v1317, %v1605
  %v1607 = vpop.f32.mrb[0].mxu0
  %v1608 = vpop.f32.mrb[0].mxu0
  %v1609 = vadd.f32 %v1320, %v1608
  %v1610 = vpop.f32.mrb[0].mxu0
  %1611 = vmatprep.mubr.bf16.mxu0 %v721
  %1612 = vmatmul.mubr.bf16.gmra.mrb[0].mxu0 %v720
  %v1613 = vpop.f32.mrb[0].mxu0
  %v1614 = vadd.f32 %v1325, %v1613
  %v1615 = vpop.f32.mrb[0].mxu0
  %v1616 = vpop.f32.mrb[0].mxu0
  %v1617 = vadd.f32 %v1328, %v1616
  %v1618 = vpop.f32.mrb[0].mxu0
  %1619 = vdwg.mxu0
  %vm1620 = vcmask 523264
  %v1621 = vsel %vm1620, %v1366, 0.0
  %v1622 = vsel %vm1620, %v1369, 0.0
  %v1623 = vadd.f32 %v1621, %v1622
  %v1624 = vsel %vm1620, %v1374, 0.0
  %v1625 = vadd.f32 %v1623, %v1624
  %v1626 = vsel %vm1620, %v1377, 0.0
  %v1627 = vadd.f32 %v1625, %v1626
  %v1628 = vsel %vm1620, %v1382, 0.0
  %v1629 = vadd.f32 %v1627, %v1628
  %v1630 = vsel %vm1620, %v1385, 0.0
  %v1631 = vadd.f32 %v1629, %v1630
  %v1632 = vsel %vm1620, %v1390, 0.0
  %v1633 = vadd.f32 %v1631, %v1632
  %v1634 = vsel %vm1620, %v1393, 0.0
  %v1635 = vadd.f32 %v1633, %v1634
  %v1636 = vsel %vm1620, %v1398, 0.0
  %v1637 = vadd.f32 %v1635, %v1636
  %v1638 = vsel %vm1620, %v1401, 0.0
  %v1639 = vadd.f32 %v1637, %v1638
  %v1640 = vsel %vm1620, %v1406, 0.0
  %v1641 = vadd.f32 %v1639, %v1640
  %v1642 = vsel %vm1620, %v1409, 0.0
  %v1643 = vadd.f32 %v1641, %v1642
  %v1644 = vsel %vm1620, %v1414, 0.0
  %v1645 = vadd.f32 %v1643, %v1644
  %v1646 = vsel %vm1620, %v1417, 0.0
  %v1647 = vadd.f32 %v1645, %v1646
  %v1648 = vsel %vm1620, %v1422, 0.0
  %v1649 = vadd.f32 %v1647, %v1648
  %v1650 = vsel %vm1620, %v1425, 0.0
  %v1651 = vadd.f32 %v1649, %v1650
  %v1652 = vsel %vm1620, %v1430, 0.0
  %v1653 = vadd.f32 %v1651, %v1652
  %v1654 = vsel %vm1620, %v1433, 0.0
  %v1655 = vadd.f32 %v1653, %v1654
  %v1656 = vsel %vm1620, %v1438, 0.0
  %v1657 = vadd.f32 %v1655, %v1656
  %v1658 = vsel %vm1620, %v1441, 0.0
  %v1659 = vadd.f32 %v1657, %v1658
  %v1660 = vsel %vm1620, %v1446, 0.0
  %v1661 = vadd.f32 %v1659, %v1660
  %v1662 = vsel %vm1620, %v1449, 0.0
  %v1663 = vadd.f32 %v1661, %v1662
  %v1664 = vsel %vm1620, %v1454, 0.0
  %v1665 = vadd.f32 %v1663, %v1664
  %v1666 = vsel %vm1620, %v1457, 0.0
  %v1667 = vadd.f32 %v1665, %v1666
  %v1668 = vsel %vm1620, %v1462, 0.0
  %v1669 = vadd.f32 %v1667, %v1668
  %v1670 = vsel %vm1620, %v1465, 0.0
  %v1671 = vadd.f32 %v1669, %v1670
  %v1672 = vsel %vm1620, %v1470, 0.0
  %v1673 = vadd.f32 %v1671, %v1672
  %v1674 = vsel %vm1620, %v1473, 0.0
  %v1675 = vadd.f32 %v1673, %v1674
  %v1676 = vsel %vm1620, %v1478, 0.0
  %v1677 = vadd.f32 %v1675, %v1676
  %v1678 = vsel %vm1620, %v1481, 0.0
  %v1679 = vadd.f32 %v1677, %v1678
  %v1680 = vsel %vm1620, %v1486, 0.0
  %v1681 = vadd.f32 %v1679, %v1680
  %v1682 = vsel %vm1620, %v1489, 0.0
  %v1683 = vadd.f32 %v1681, %v1682
  %v1684 = vsel %vm1620, %v1494, 0.0
  %v1685 = vadd.f32 %v1683, %v1684
  %v1686 = vsel %vm1620, %v1497, 0.0
  %v1687 = vadd.f32 %v1685, %v1686
  %v1688 = vsel %vm1620, %v1502, 0.0
  %v1689 = vadd.f32 %v1687, %v1688
  %v1690 = vsel %vm1620, %v1505, 0.0
  %v1691 = vadd.f32 %v1689, %v1690
  %v1692 = vsel %vm1620, %v1510, 0.0
  %v1693 = vadd.f32 %v1691, %v1692
  %v1694 = vsel %vm1620, %v1513, 0.0
  %v1695 = vadd.f32 %v1693, %v1694
  %v1696 = vsel %vm1620, %v1518, 0.0
  %v1697 = vadd.f32 %v1695, %v1696
  %v1698 = vsel %vm1620, %v1521, 0.0
  %v1699 = vadd.f32 %v1697, %v1698
  %v1700 = vsel %vm1620, %v1526, 0.0
  %v1701 = vadd.f32 %v1699, %v1700
  %v1702 = vsel %vm1620, %v1529, 0.0
  %v1703 = vadd.f32 %v1701, %v1702
  %v1704 = vsel %vm1620, %v1534, 0.0
  %v1705 = vadd.f32 %v1703, %v1704
  %v1706 = vsel %vm1620, %v1537, 0.0
  %v1707 = vadd.f32 %v1705, %v1706
  %v1708 = vsel %vm1620, %v1542, 0.0
  %v1709 = vadd.f32 %v1707, %v1708
  %v1710 = vsel %vm1620, %v1545, 0.0
  %v1711 = vadd.f32 %v1709, %v1710
  %v1712 = vsel %vm1620, %v1550, 0.0
  %v1713 = vadd.f32 %v1711, %v1712
  %v1714 = vsel %vm1620, %v1553, 0.0
  %v1715 = vadd.f32 %v1713, %v1714
  %v1716 = vsel %vm1620, %v1558, 0.0
  %v1717 = vadd.f32 %v1715, %v1716
  %v1718 = vsel %vm1620, %v1561, 0.0
  %v1719 = vadd.f32 %v1717, %v1718
  %v1720 = vsel %vm1620, %v1566, 0.0
  %v1721 = vadd.f32 %v1719, %v1720
  %v1722 = vsel %vm1620, %v1569, 0.0
  %v1723 = vadd.f32 %v1721, %v1722
  %v1724 = vsel %vm1620, %v1574, 0.0
  %v1725 = vadd.f32 %v1723, %v1724
  %v1726 = vsel %vm1620, %v1577, 0.0
  %v1727 = vadd.f32 %v1725, %v1726
  %v1728 = vsel %vm1620, %v1582, 0.0
  %v1729 = vadd.f32 %v1727, %v1728
  %v1730 = vsel %vm1620, %v1585, 0.0
  %v1731 = vadd.f32 %v1729, %v1730
  %v1732 = vsel %vm1620, %v1590, 0.0
  %v1733 = vadd.f32 %v1731, %v1732
  %v1734 = vsel %vm1620, %v1593, 0.0
  %v1735 = vadd.f32 %v1733, %v1734
  %v1736 = vsel %vm1620, %v1598, 0.0
  %v1737 = vadd.f32 %v1735, %v1736
  %v1738 = vsel %vm1620, %v1601, 0.0
  %v1739 = vadd.f32 %v1737, %v1738
  %v1740 = vsel %vm1620, %v1606, 0.0
  %v1741 = vadd.f32 %v1739, %v1740
  %v1742 = vsel %vm1620, %v1609, 0.0
  %v1743 = vadd.f32 %v1741, %v1742
  %v1744 = vsel %vm1620, %v1614, 0.0
  %v1745 = vadd.f32 %v1743, %v1744
  %v1746 = vsel %vm1620, %v1617, 0.0
  %v1747 = vadd.f32 %v1745, %v1746
  %v1748 = vrot.slane %v1747, 4
  %v1749 = vadd.f32 %v1747, %v1748
  %v1750 = vrot.slane %v1749, 2
  %v1751 = vadd.f32 %v1749, %v1750
  %v1752 = vrot.slane %v1751, 1
  %v1753 = vadd.f32 %v1751, %v1752
  %v1754 = vmul.f32 %v1753, 0.001953125
  %v1755 = vmul.f32 %v1366, %v1366
  %v1756 = vmul.f32 %v1369, %v1369
  %v1757 = vmul.f32 %v1374, %v1374
  %v1758 = vmul.f32 %v1377, %v1377
  %v1759 = vmul.f32 %v1382, %v1382
  %v1760 = vmul.f32 %v1385, %v1385
  %v1761 = vmul.f32 %v1390, %v1390
  %v1762 = vmul.f32 %v1393, %v1393
  %v1763 = vmul.f32 %v1398, %v1398
  %v1764 = vmul.f32 %v1401, %v1401
  %v1765 = vmul.f32 %v1406, %v1406
  %v1766 = vmul.f32 %v1409, %v1409
  %v1767 = vmul.f32 %v1414, %v1414
  %v1768 = vmul.f32 %v1417, %v1417
  %v1769 = vmul.f32 %v1422, %v1422
  %v1770 = vmul.f32 %v1425, %v1425
  %v1771 = vmul.f32 %v1430, %v1430
  %v1772 = vmul.f32 %v1433, %v1433
  %v1773 = vmul.f32 %v1438, %v1438
  %v1774 = vmul.f32 %v1441, %v1441
  %v1775 = vmul.f32 %v1446, %v1446
  %v1776 = vmul.f32 %v1449, %v1449
  %v1777 = vmul.f32 %v1454, %v1454
  %v1778 = vmul.f32 %v1457, %v1457
  %v1779 = vmul.f32 %v1462, %v1462
  %v1780 = vmul.f32 %v1465, %v1465
  %v1781 = vmul.f32 %v1470, %v1470
  %v1782 = vmul.f32 %v1473, %v1473
  %v1783 = vmul.f32 %v1478, %v1478
  %v1784 = vmul.f32 %v1481, %v1481
  %v1785 = vmul.f32 %v1486, %v1486
  %v1786 = vmul.f32 %v1489, %v1489
  %v1787 = vmul.f32 %v1494, %v1494
  %v1788 = vmul.f32 %v1497, %v1497
  %v1789 = vmul.f32 %v1502, %v1502
  %v1790 = vmul.f32 %v1505, %v1505
  %v1791 = vmul.f32 %v1510, %v1510
  %v1792 = vmul.f32 %v1513, %v1513
  %v1793 = vmul.f32 %v1518, %v1518
  %v1794 = vmul.f32 %v1521, %v1521
  %v1795 = vmul.f32 %v1526, %v1526
  %v1796 = vmul.f32 %v1529, %v1529
  %v1797 = vmul.f32 %v1534, %v1534
  %v1798 = vmul.f32 %v1537, %v1537
  %v1799 = vmul.f32 %v1542, %v1542
  %v1800 = vmul.f32 %v1545, %v1545
  %v1801 = vmul.f32 %v1550, %v1550
  %v1802 = vmul.f32 %v1553, %v1553
  %v1803 = vmul.f32 %v1558, %v1558
  %v1804 = vmul.f32 %v1561, %v1561
  %v1805 = vmul.f32 %v1566, %v1566
  %v1806 = vmul.f32 %v1569, %v1569
  %v1807 = vmul.f32 %v1574, %v1574
  %v1808 = vmul.f32 %v1577, %v1577
  %v1809 = vmul.f32 %v1582, %v1582
  %v1810 = vmul.f32 %v1585, %v1585
  %v1811 = vmul.f32 %v1590, %v1590
  %v1812 = vmul.f32 %v1593, %v1593
  %v1813 = vmul.f32 %v1598, %v1598
  %v1814 = vmul.f32 %v1601, %v1601
  %v1815 = vmul.f32 %v1606, %v1606
  %v1816 = vmul.f32 %v1609, %v1609
  %v1817 = vmul.f32 %v1614, %v1614
  %v1818 = vmul.f32 %v1617, %v1617
  %v1819 = vsel %vm1620, %v1755, 0.0
  %v1820 = vsel %vm1620, %v1756, 0.0
  %v1821 = vadd.f32 %v1819, %v1820
  %v1822 = vsel %vm1620, %v1757, 0.0
  %v1823 = vadd.f32 %v1821, %v1822
  %v1824 = vsel %vm1620, %v1758, 0.0
  %v1825 = vadd.f32 %v1823, %v1824
  %v1826 = vsel %vm1620, %v1759, 0.0
  %v1827 = vadd.f32 %v1825, %v1826
  %v1828 = vsel %vm1620, %v1760, 0.0
  %v1829 = vadd.f32 %v1827, %v1828
  %v1830 = vsel %vm1620, %v1761, 0.0
  %v1831 = vadd.f32 %v1829, %v1830
  %v1832 = vsel %vm1620, %v1762, 0.0
  %v1833 = vadd.f32 %v1831, %v1832
  %v1834 = vsel %vm1620, %v1763, 0.0
  %v1835 = vadd.f32 %v1833, %v1834
  %v1836 = vsel %vm1620, %v1764, 0.0
  %v1837 = vadd.f32 %v1835, %v1836
  %v1838 = vsel %vm1620, %v1765, 0.0
  %v1839 = vadd.f32 %v1837, %v1838
  %v1840 = vsel %vm1620, %v1766, 0.0
  %v1841 = vadd.f32 %v1839, %v1840
  %v1842 = vsel %vm1620, %v1767, 0.0
  %v1843 = vadd.f32 %v1841, %v1842
  %v1844 = vsel %vm1620, %v1768, 0.0
  %v1845 = vadd.f32 %v1843, %v1844
  %v1846 = vsel %vm1620, %v1769, 0.0
  %v1847 = vadd.f32 %v1845, %v1846
  %v1848 = vsel %vm1620, %v1770, 0.0
  %v1849 = vadd.f32 %v1847, %v1848
  %v1850 = vsel %vm1620, %v1771, 0.0
  %v1851 = vadd.f32 %v1849, %v1850
  %v1852 = vsel %vm1620, %v1772, 0.0
  %v1853 = vadd.f32 %v1851, %v1852
  %v1854 = vsel %vm1620, %v1773, 0.0
  %v1855 = vadd.f32 %v1853, %v1854
  %v1856 = vsel %vm1620, %v1774, 0.0
  %v1857 = vadd.f32 %v1855, %v1856
  %v1858 = vsel %vm1620, %v1775, 0.0
  %v1859 = vadd.f32 %v1857, %v1858
  %v1860 = vsel %vm1620, %v1776, 0.0
  %v1861 = vadd.f32 %v1859, %v1860
  %v1862 = vsel %vm1620, %v1777, 0.0
  %v1863 = vadd.f32 %v1861, %v1862
  %v1864 = vsel %vm1620, %v1778, 0.0
  %v1865 = vadd.f32 %v1863, %v1864
  %v1866 = vsel %vm1620, %v1779, 0.0
  %v1867 = vadd.f32 %v1865, %v1866
  %v1868 = vsel %vm1620, %v1780, 0.0
  %v1869 = vadd.f32 %v1867, %v1868
  %v1870 = vsel %vm1620, %v1781, 0.0
  %v1871 = vadd.f32 %v1869, %v1870
  %v1872 = vsel %vm1620, %v1782, 0.0
  %v1873 = vadd.f32 %v1871, %v1872
  %v1874 = vsel %vm1620, %v1783, 0.0
  %v1875 = vadd.f32 %v1873, %v1874
  %v1876 = vsel %vm1620, %v1784, 0.0
  %v1877 = vadd.f32 %v1875, %v1876
  %v1878 = vsel %vm1620, %v1785, 0.0
  %v1879 = vadd.f32 %v1877, %v1878
  %v1880 = vsel %vm1620, %v1786, 0.0
  %v1881 = vadd.f32 %v1879, %v1880
  %v1882 = vsel %vm1620, %v1787, 0.0
  %v1883 = vadd.f32 %v1881, %v1882
  %v1884 = vsel %vm1620, %v1788, 0.0
  %v1885 = vadd.f32 %v1883, %v1884
  %v1886 = vsel %vm1620, %v1789, 0.0
  %v1887 = vadd.f32 %v1885, %v1886
  %v1888 = vsel %vm1620, %v1790, 0.0
  %v1889 = vadd.f32 %v1887, %v1888
  %v1890 = vsel %vm1620, %v1791, 0.0
  %v1891 = vadd.f32 %v1889, %v1890
  %v1892 = vsel %vm1620, %v1792, 0.0
  %v1893 = vadd.f32 %v1891, %v1892
  %v1894 = vsel %vm1620, %v1793, 0.0
  %v1895 = vadd.f32 %v1893, %v1894
  %v1896 = vsel %vm1620, %v1794, 0.0
  %v1897 = vadd.f32 %v1895, %v1896
  %v1898 = vsel %vm1620, %v1795, 0.0
  %v1899 = vadd.f32 %v1897, %v1898
  %v1900 = vsel %vm1620, %v1796, 0.0
  %v1901 = vadd.f32 %v1899, %v1900
  %v1902 = vsel %vm1620, %v1797, 0.0
  %v1903 = vadd.f32 %v1901, %v1902
  %v1904 = vsel %vm1620, %v1798, 0.0
  %v1905 = vadd.f32 %v1903, %v1904
  %v1906 = vsel %vm1620, %v1799, 0.0
  %v1907 = vadd.f32 %v1905, %v1906
  %v1908 = vsel %vm1620, %v1800, 0.0
  %v1909 = vadd.f32 %v1907, %v1908
  %v1910 = vsel %vm1620, %v1801, 0.0
  %v1911 = vadd.f32 %v1909, %v1910
  %v1912 = vsel %vm1620, %v1802, 0.0
  %v1913 = vadd.f32 %v1911, %v1912
  %v1914 = vsel %vm1620, %v1803, 0.0
  %v1915 = vadd.f32 %v1913, %v1914
  %v1916 = vsel %vm1620, %v1804, 0.0
  %v1917 = vadd.f32 %v1915, %v1916
  %v1918 = vsel %vm1620, %v1805, 0.0
  %v1919 = vadd.f32 %v1917, %v1918
  %v1920 = vsel %vm1620, %v1806, 0.0
  %v1921 = vadd.f32 %v1919, %v1920
  %v1922 = vsel %vm1620, %v1807, 0.0
  %v1923 = vadd.f32 %v1921, %v1922
  %v1924 = vsel %vm1620, %v1808, 0.0
  %v1925 = vadd.f32 %v1923, %v1924
  %v1926 = vsel %vm1620, %v1809, 0.0
  %v1927 = vadd.f32 %v1925, %v1926
  %v1928 = vsel %vm1620, %v1810, 0.0
  %v1929 = vadd.f32 %v1927, %v1928
  %v1930 = vsel %vm1620, %v1811, 0.0
  %v1931 = vadd.f32 %v1929, %v1930
  %v1932 = vsel %vm1620, %v1812, 0.0
  %v1933 = vadd.f32 %v1931, %v1932
  %v1934 = vsel %vm1620, %v1813, 0.0
  %v1935 = vadd.f32 %v1933, %v1934
  %v1936 = vsel %vm1620, %v1814, 0.0
  %v1937 = vadd.f32 %v1935, %v1936
  %v1938 = vsel %vm1620, %v1815, 0.0
  %v1939 = vadd.f32 %v1937, %v1938
  %v1940 = vsel %vm1620, %v1816, 0.0
  %v1941 = vadd.f32 %v1939, %v1940
  %v1942 = vsel %vm1620, %v1817, 0.0
  %v1943 = vadd.f32 %v1941, %v1942
  %v1944 = vsel %vm1620, %v1818, 0.0
  %v1945 = vadd.f32 %v1943, %v1944
  %v1946 = vrot.slane %v1945, 4
  %v1947 = vadd.f32 %v1945, %v1946
  %v1948 = vrot.slane %v1947, 2
  %v1949 = vadd.f32 %v1947, %v1948
  %v1950 = vrot.slane %v1949, 1
  %v1951 = vadd.f32 %v1949, %v1950
  %v1952 = vmul.f32 %v1951, 0.001953125
  %v1953 = vmul.f32 %v1754, %v1754
  %v1954 = vsub.f32 %v1952, %v1953
  %v1955 = vmax.f32 %v1954, 0.0
  %v1956 = vld [vmem:[%s2] sm:$0x1]
  %v1957 = vadd.f32 %v1955, 1e-05
  %v1958 = vrsqrt.pop %v1957
  %v1959 = vmul.f32 %v1956, %v1958
  %v1960 = vld [vmem:[%s3] sm:$0x1]
  %v1961 = vmul.f32 %v1754, %v1959
  %v1962 = vsub.f32 %v1960, %v1961
  %v1964 = vlaneseq
  %v1965 = vshrl.u32 %v1964, 7
  %v1966 = vsub.s32 0, %v1965
  %v1967 = vrot.slane %v1959, %v1966
  %v1969 = vmul.f32 %v1366, %v1967
  %v1970 = vmul.f32 %v1369, %v1967
  %v1971 = vmul.f32 %v1374, %v1967
  %v1972 = vmul.f32 %v1377, %v1967
  %v1973 = vmul.f32 %v1382, %v1967
  %v1974 = vmul.f32 %v1385, %v1967
  %v1975 = vmul.f32 %v1390, %v1967
  %v1976 = vmul.f32 %v1393, %v1967
  %v1977 = vmul.f32 %v1398, %v1967
  %v1978 = vmul.f32 %v1401, %v1967
  %v1979 = vmul.f32 %v1406, %v1967
  %v1980 = vmul.f32 %v1409, %v1967
  %v1981 = vmul.f32 %v1414, %v1967
  %v1982 = vmul.f32 %v1417, %v1967
  %v1983 = vmul.f32 %v1422, %v1967
  %v1984 = vmul.f32 %v1425, %v1967
  %v1985 = vmul.f32 %v1430, %v1967
  %v1986 = vmul.f32 %v1433, %v1967
  %v1987 = vmul.f32 %v1438, %v1967
  %v1988 = vmul.f32 %v1441, %v1967
  %v1989 = vmul.f32 %v1446, %v1967
  %v1990 = vmul.f32 %v1449, %v1967
  %v1991 = vmul.f32 %v1454, %v1967
  %v1992 = vmul.f32 %v1457, %v1967
  %v1993 = vmul.f32 %v1462, %v1967
  %v1994 = vmul.f32 %v1465, %v1967
  %v1995 = vmul.f32 %v1470, %v1967
  %v1996 = vmul.f32 %v1473, %v1967
  %v1997 = vmul.f32 %v1478, %v1967
  %v1998 = vmul.f32 %v1481, %v1967
  %v1999 = vmul.f32 %v1486, %v1967
  %v2000 = vmul.f32 %v1489, %v1967
  %v2001 = vmul.f32 %v1494, %v1967
  %v2002 = vmul.f32 %v1497, %v1967
  %v2003 = vmul.f32 %v1502, %v1967
  %v2004 = vmul.f32 %v1505, %v1967
  %v2005 = vmul.f32 %v1510, %v1967
  %v2006 = vmul.f32 %v1513, %v1967
  %v2007 = vmul.f32 %v1518, %v1967
  %v2008 = vmul.f32 %v1521, %v1967
  %v2009 = vmul.f32 %v1526, %v1967
  %v2010 = vmul.f32 %v1529, %v1967
  %v2011 = vmul.f32 %v1534, %v1967
  %v2012 = vmul.f32 %v1537, %v1967
  %v2013 = vmul.f32 %v1542, %v1967
  %v2014 = vmul.f32 %v1545, %v1967
  %v2015 = vmul.f32 %v1550, %v1967
  %v2016 = vmul.f32 %v1553, %v1967
  %v2017 = vmul.f32 %v1558, %v1967
  %v2018 = vmul.f32 %v1561, %v1967
  %v2019 = vmul.f32 %v1566, %v1967
  %v2020 = vmul.f32 %v1569, %v1967
  %v2021 = vmul.f32 %v1574, %v1967
  %v2022 = vmul.f32 %v1577, %v1967
  %v2023 = vmul.f32 %v1582, %v1967
  %v2024 = vmul.f32 %v1585, %v1967
  %v2025 = vmul.f32 %v1590, %v1967
  %v2026 = vmul.f32 %v1593, %v1967
  %v2027 = vmul.f32 %v1598, %v1967
  %v2028 = vmul.f32 %v1601, %v1967
  %v2029 = vmul.f32 %v1606, %v1967
  %v2030 = vmul.f32 %v1609, %v1967
  %v2031 = vmul.f32 %v1614, %v1967
  %v2032 = vmul.f32 %v1617, %v1967
  %v2034 = vlaneseq
  %v2035 = vshrl.u32 %v2034, 7
  %v2036 = vsub.s32 0, %v2035
  %v2037 = vrot.slane %v1962, %v2036
  %v2039 = vadd.f32 %v1969, %v2037
  %v2040 = vadd.f32 %v1970, %v2037
  %v2041 = vadd.f32 %v1971, %v2037
  %v2042 = vadd.f32 %v1972, %v2037
  %v2043 = vadd.f32 %v1973, %v2037
  %v2044 = vadd.f32 %v1974, %v2037
  %v2045 = vadd.f32 %v1975, %v2037
  %v2046 = vadd.f32 %v1976, %v2037
  %v2047 = vadd.f32 %v1977, %v2037
  %v2048 = vadd.f32 %v1978, %v2037
  %v2049 = vadd.f32 %v1979, %v2037
  %v2050 = vadd.f32 %v1980, %v2037
  %v2051 = vadd.f32 %v1981, %v2037
  %v2052 = vadd.f32 %v1982, %v2037
  %v2053 = vadd.f32 %v1983, %v2037
  %v2054 = vadd.f32 %v1984, %v2037
  %v2055 = vadd.f32 %v1985, %v2037
  %v2056 = vadd.f32 %v1986, %v2037
  %v2057 = vadd.f32 %v1987, %v2037
  %v2058 = vadd.f32 %v1988, %v2037
  %v2059 = vadd.f32 %v1989, %v2037
  %v2060 = vadd.f32 %v1990, %v2037
  %v2061 = vadd.f32 %v1991, %v2037
  %v2062 = vadd.f32 %v1992, %v2037
  %v2063 = vadd.f32 %v1993, %v2037
  %v2064 = vadd.f32 %v1994, %v2037
  %v2065 = vadd.f32 %v1995, %v2037
  %v2066 = vadd.f32 %v1996, %v2037
  %v2067 = vadd.f32 %v1997, %v2037
  %v2068 = vadd.f32 %v1998, %v2037
  %v2069 = vadd.f32 %v1999, %v2037
  %v2070 = vadd.f32 %v2000, %v2037
  %v2071 = vadd.f32 %v2001, %v2037
  %v2072 = vadd.f32 %v2002, %v2037
  %v2073 = vadd.f32 %v2003, %v2037
  %v2074 = vadd.f32 %v2004, %v2037
  %v2075 = vadd.f32 %v2005, %v2037
  %v2076 = vadd.f32 %v2006, %v2037
  %v2077 = vadd.f32 %v2007, %v2037
  %v2078 = vadd.f32 %v2008, %v2037
  %v2079 = vadd.f32 %v2009, %v2037
  %v2080 = vadd.f32 %v2010, %v2037
  %v2081 = vadd.f32 %v2011, %v2037
  %v2082 = vadd.f32 %v2012, %v2037
  %v2083 = vadd.f32 %v2013, %v2037
  %v2084 = vadd.f32 %v2014, %v2037
  %v2085 = vadd.f32 %v2015, %v2037
  %v2086 = vadd.f32 %v2016, %v2037
  %v2087 = vadd.f32 %v2017, %v2037
  %v2088 = vadd.f32 %v2018, %v2037
  %v2089 = vadd.f32 %v2019, %v2037
  %v2090 = vadd.f32 %v2020, %v2037
  %v2091 = vadd.f32 %v2021, %v2037
  %v2092 = vadd.f32 %v2022, %v2037
  %v2093 = vadd.f32 %v2023, %v2037
  %v2094 = vadd.f32 %v2024, %v2037
  %v2095 = vadd.f32 %v2025, %v2037
  %v2096 = vadd.f32 %v2026, %v2037
  %v2097 = vadd.f32 %v2027, %v2037
  %v2098 = vadd.f32 %v2028, %v2037
  %v2099 = vadd.f32 %v2029, %v2037
  %v2100 = vadd.f32 %v2030, %v2037
  %v2101 = vadd.f32 %v2031, %v2037
  %v2102 = vadd.f32 %v2032, %v2037
  %v2103 = vmax.f32 %v2039, 0.0
  %v2104 = vmax.f32 %v2040, 0.0
  %v2105 = vmax.f32 %v2041, 0.0
  %v2106 = vmax.f32 %v2042, 0.0
  %v2107 = vmax.f32 %v2043, 0.0
  %v2108 = vmax.f32 %v2044, 0.0
  %v2109 = vmax.f32 %v2045, 0.0
  %v2110 = vmax.f32 %v2046, 0.0
  %v2111 = vmax.f32 %v2047, 0.0
  %v2112 = vmax.f32 %v2048, 0.0
  %v2113 = vmax.f32 %v2049, 0.0
  %v2114 = vmax.f32 %v2050, 0.0
  %v2115 = vmax.f32 %v2051, 0.0
  %v2116 = vmax.f32 %v2052, 0.0
  %v2117 = vmax.f32 %v2053, 0.0
  %v2118 = vmax.f32 %v2054, 0.0
  %v2119 = vmax.f32 %v2055, 0.0
  %v2120 = vmax.f32 %v2056, 0.0
  %v2121 = vmax.f32 %v2057, 0.0
  %v2122 = vmax.f32 %v2058, 0.0
  %v2123 = vmax.f32 %v2059, 0.0
  %v2124 = vmax.f32 %v2060, 0.0
  %v2125 = vmax.f32 %v2061, 0.0
  %v2126 = vmax.f32 %v2062, 0.0
  %v2127 = vmax.f32 %v2063, 0.0
  %v2128 = vmax.f32 %v2064, 0.0
  %v2129 = vmax.f32 %v2065, 0.0
  %v2130 = vmax.f32 %v2066, 0.0
  %v2131 = vmax.f32 %v2067, 0.0
  %v2132 = vmax.f32 %v2068, 0.0
  %v2133 = vmax.f32 %v2069, 0.0
  %v2134 = vmax.f32 %v2070, 0.0
  %v2135 = vmax.f32 %v2071, 0.0
  %v2136 = vmax.f32 %v2072, 0.0
  %v2137 = vmax.f32 %v2073, 0.0
  %v2138 = vmax.f32 %v2074, 0.0
  %v2139 = vmax.f32 %v2075, 0.0
  %v2140 = vmax.f32 %v2076, 0.0
  %v2141 = vmax.f32 %v2077, 0.0
  %v2142 = vmax.f32 %v2078, 0.0
  %v2143 = vmax.f32 %v2079, 0.0
  %v2144 = vmax.f32 %v2080, 0.0
  %v2145 = vmax.f32 %v2081, 0.0
  %v2146 = vmax.f32 %v2082, 0.0
  %v2147 = vmax.f32 %v2083, 0.0
  %v2148 = vmax.f32 %v2084, 0.0
  %v2149 = vmax.f32 %v2085, 0.0
  %v2150 = vmax.f32 %v2086, 0.0
  %v2151 = vmax.f32 %v2087, 0.0
  %v2152 = vmax.f32 %v2088, 0.0
  %v2153 = vmax.f32 %v2089, 0.0
  %v2154 = vmax.f32 %v2090, 0.0
  %v2155 = vmax.f32 %v2091, 0.0
  %v2156 = vmax.f32 %v2092, 0.0
  %v2157 = vmax.f32 %v2093, 0.0
  %v2158 = vmax.f32 %v2094, 0.0
  %v2159 = vmax.f32 %v2095, 0.0
  %v2160 = vmax.f32 %v2096, 0.0
  %v2161 = vmax.f32 %v2097, 0.0
  %v2162 = vmax.f32 %v2098, 0.0
  %v2163 = vmax.f32 %v2099, 0.0
  %v2164 = vmax.f32 %v2100, 0.0
  %v2165 = vmax.f32 %v2101, 0.0
  %v2166 = vmax.f32 %v2102, 0.0
  %v2167 = vpack.c.bf16 %v2104, %v2103
  %v2168 = vpack.c.bf16 %v2106, %v2105
  %v2169 = vpack.c.bf16 %v2108, %v2107
  %v2170 = vpack.c.bf16 %v2110, %v2109
  %v2171 = vpack.c.bf16 %v2112, %v2111
  %v2172 = vpack.c.bf16 %v2114, %v2113
  %v2173 = vpack.c.bf16 %v2116, %v2115
  %v2174 = vpack.c.bf16 %v2118, %v2117
  %v2175 = vpack.c.bf16 %v2120, %v2119
  %v2176 = vpack.c.bf16 %v2122, %v2121
  %v2177 = vpack.c.bf16 %v2124, %v2123
  %v2178 = vpack.c.bf16 %v2126, %v2125
  %v2179 = vpack.c.bf16 %v2128, %v2127
  %v2180 = vpack.c.bf16 %v2130, %v2129
  %v2181 = vpack.c.bf16 %v2132, %v2131
  %v2182 = vpack.c.bf16 %v2134, %v2133
  %v2183 = vpack.c.bf16 %v2136, %v2135
  %v2184 = vpack.c.bf16 %v2138, %v2137
  %v2185 = vpack.c.bf16 %v2140, %v2139
  %v2186 = vpack.c.bf16 %v2142, %v2141
  %v2187 = vpack.c.bf16 %v2144, %v2143
  %v2188 = vpack.c.bf16 %v2146, %v2145
  %v2189 = vpack.c.bf16 %v2148, %v2147
  %v2190 = vpack.c.bf16 %v2150, %v2149
  %v2191 = vpack.c.bf16 %v2152, %v2151
  %v2192 = vpack.c.bf16 %v2154, %v2153
  %v2193 = vpack.c.bf16 %v2156, %v2155
  %v2194 = vpack.c.bf16 %v2158, %v2157
  %v2195 = vpack.c.bf16 %v2160, %v2159
  %v2196 = vpack.c.bf16 %v2162, %v2161
  %v2197 = vpack.c.bf16 %v2164, %v2163
  %v2198 = vpack.c.bf16 %v2166, %v2165
  %v2231 = vunpack.c.l.b16 %v2167
  %v2232 = vunpack.c.h.b16 %v2167
  %v2233 = vunpack.c.l.b16 %v2168
  %v2234 = vunpack.c.h.b16 %v2168
  %v2235 = vunpack.c.l.b16 %v2169
  %v2236 = vunpack.c.h.b16 %v2169
  %v2237 = vunpack.c.l.b16 %v2170
  %v2238 = vunpack.c.h.b16 %v2170
  %v2239 = vunpack.c.l.b16 %v2171
  %v2240 = vunpack.c.h.b16 %v2171
  %v2241 = vunpack.c.l.b16 %v2172
  %v2242 = vunpack.c.h.b16 %v2172
  %v2243 = vunpack.c.l.b16 %v2173
  %v2244 = vunpack.c.h.b16 %v2173
  %v2245 = vunpack.c.l.b16 %v2174
  %v2246 = vunpack.c.h.b16 %v2174
  %v2247 = vunpack.c.l.b16 %v2175
  %v2248 = vunpack.c.h.b16 %v2175
  %v2249 = vunpack.c.l.b16 %v2176
  %v2250 = vunpack.c.h.b16 %v2176
  %v2251 = vunpack.c.l.b16 %v2177
  %v2252 = vunpack.c.h.b16 %v2177
  %v2253 = vunpack.c.l.b16 %v2178
  %v2254 = vunpack.c.h.b16 %v2178
  %v2255 = vunpack.c.l.b16 %v2179
  %v2256 = vunpack.c.h.b16 %v2179
  %v2257 = vunpack.c.l.b16 %v2180
  %v2258 = vunpack.c.h.b16 %v2180
  %v2259 = vunpack.c.l.b16 %v2181
  %v2260 = vunpack.c.h.b16 %v2181
  %v2261 = vunpack.c.l.b16 %v2182
  %v2262 = vunpack.c.h.b16 %v2182
  %v2263 = vunpack.c.l.b16 %v2183
  %v2264 = vunpack.c.h.b16 %v2183
  %v2265 = vunpack.c.l.b16 %v2184
  %v2266 = vunpack.c.h.b16 %v2184
  %v2267 = vunpack.c.l.b16 %v2185
  %v2268 = vunpack.c.h.b16 %v2185
  %v2269 = vunpack.c.l.b16 %v2186
  %v2270 = vunpack.c.h.b16 %v2186
  %v2271 = vunpack.c.l.b16 %v2187
  %v2272 = vunpack.c.h.b16 %v2187
  %v2273 = vunpack.c.l.b16 %v2188
  %v2274 = vunpack.c.h.b16 %v2188
  %v2275 = vunpack.c.l.b16 %v2189
  %v2276 = vunpack.c.h.b16 %v2189
  %v2277 = vunpack.c.l.b16 %v2190
  %v2278 = vunpack.c.h.b16 %v2190
  %v2279 = vunpack.c.l.b16 %v2191
  %v2280 = vunpack.c.h.b16 %v2191
  %v2281 = vunpack.c.l.b16 %v2192
  %v2282 = vunpack.c.h.b16 %v2192
  %v2283 = vunpack.c.l.b16 %v2193
  %v2284 = vunpack.c.h.b16 %v2193
  %v2285 = vunpack.c.l.b16 %v2194
  %v2286 = vunpack.c.h.b16 %v2194
  %v2287 = vunpack.c.l.b16 %v2195
  %v2288 = vunpack.c.h.b16 %v2195
  %v2289 = vunpack.c.l.b16 %v2196
  %v2290 = vunpack.c.h.b16 %v2196
  %v2291 = vunpack.c.l.b16 %v2197
  %v2292 = vunpack.c.h.b16 %v2197
  %v2293 = vunpack.c.l.b16 %v2198
  %v2294 = vunpack.c.h.b16 %v2198
  %v2295 = vpack.c.b16 %v2231, %v2231
  %v2296 = vpack.c.b16 %v2232, %v2232
  %v2297 = vpack.c.b16 %v2233, %v2233
  %v2298 = vpack.c.b16 %v2234, %v2234
  %v2299 = vpack.c.b16 %v2235, %v2235
  %v2300 = vpack.c.b16 %v2236, %v2236
  %v2301 = vpack.c.b16 %v2237, %v2237
  %v2302 = vpack.c.b16 %v2238, %v2238
  %v2303 = vpack.c.b16 %v2239, %v2239
  %v2304 = vpack.c.b16 %v2240, %v2240
  %v2305 = vpack.c.b16 %v2241, %v2241
  %v2306 = vpack.c.b16 %v2242, %v2242
  %v2307 = vpack.c.b16 %v2243, %v2243
  %v2308 = vpack.c.b16 %v2244, %v2244
  %v2309 = vpack.c.b16 %v2245, %v2245
  %v2310 = vpack.c.b16 %v2246, %v2246
  %v2311 = vpack.c.b16 %v2247, %v2247
  %v2312 = vpack.c.b16 %v2248, %v2248
  %v2313 = vpack.c.b16 %v2249, %v2249
  %v2314 = vpack.c.b16 %v2250, %v2250
  %v2315 = vpack.c.b16 %v2251, %v2251
  %v2316 = vpack.c.b16 %v2252, %v2252
  %v2317 = vpack.c.b16 %v2253, %v2253
  %v2318 = vpack.c.b16 %v2254, %v2254
  %v2319 = vpack.c.b16 %v2255, %v2255
  %v2320 = vpack.c.b16 %v2256, %v2256
  %v2321 = vpack.c.b16 %v2257, %v2257
  %v2322 = vpack.c.b16 %v2258, %v2258
  %v2323 = vpack.c.b16 %v2259, %v2259
  %v2324 = vpack.c.b16 %v2260, %v2260
  %v2325 = vpack.c.b16 %v2261, %v2261
  %v2326 = vpack.c.b16 %v2262, %v2262
  %v2327 = vpack.c.b16 %v2263, %v2263
  %v2328 = vpack.c.b16 %v2264, %v2264
  %v2329 = vpack.c.b16 %v2265, %v2265
  %v2330 = vpack.c.b16 %v2266, %v2266
  %v2331 = vpack.c.b16 %v2267, %v2267
  %v2332 = vpack.c.b16 %v2268, %v2268
  %v2333 = vpack.c.b16 %v2269, %v2269
  %v2334 = vpack.c.b16 %v2270, %v2270
  %v2335 = vpack.c.b16 %v2271, %v2271
  %v2336 = vpack.c.b16 %v2272, %v2272
  %v2337 = vpack.c.b16 %v2273, %v2273
  %v2338 = vpack.c.b16 %v2274, %v2274
  %v2339 = vpack.c.b16 %v2275, %v2275
  %v2340 = vpack.c.b16 %v2276, %v2276
  %v2341 = vpack.c.b16 %v2277, %v2277
  %v2342 = vpack.c.b16 %v2278, %v2278
  %v2343 = vpack.c.b16 %v2279, %v2279
  %v2344 = vpack.c.b16 %v2280, %v2280
  %v2345 = vpack.c.b16 %v2281, %v2281
  %v2346 = vpack.c.b16 %v2282, %v2282
  %v2347 = vpack.c.b16 %v2283, %v2283
  %v2348 = vpack.c.b16 %v2284, %v2284
  %v2349 = vpack.c.b16 %v2285, %v2285
  %v2350 = vpack.c.b16 %v2286, %v2286
  %v2351 = vpack.c.b16 %v2287, %v2287
  %v2352 = vpack.c.b16 %v2288, %v2288
  %v2353 = vpack.c.b16 %v2289, %v2289
  %v2354 = vpack.c.b16 %v2290, %v2290
  %v2355 = vpack.c.b16 %v2291, %v2291
  %v2356 = vpack.c.b16 %v2292, %v2292
  %v2357 = vpack.c.b16 %v2293, %v2293
  %v2358 = vpack.c.b16 %v2294, %v2294
  %vm2423 = vcmask 519168
  %2424 = vst.msk [vmem:[%s4] sm:$0xf] %vm2423, %v2295
  %2425 = vst.msk [vmem:[%s4 + $0x4] sm:$0xf] %vm2423, %v2296
  %2426 = vst.msk [vmem:[%s4 + $0x8] sm:$0xf] %vm2423, %v2297
  %2427 = vst.msk [vmem:[%s4 + $0xc] sm:$0xf] %vm2423, %v2298
  %2428 = vst.msk [vmem:[%s4 + $0x10] sm:$0xf] %vm2423, %v2299
  %2429 = vst.msk [vmem:[%s4 + $0x14] sm:$0xf] %vm2423, %v2300
  %2430 = vst.msk [vmem:[%s4 + $0x18] sm:$0xf] %vm2423, %v2301
  %2431 = vst.msk [vmem:[%s4 + $0x1c] sm:$0xf] %vm2423, %v2302
  %2432 = vst.msk [vmem:[%s4 + $0x20] sm:$0xf] %vm2423, %v2303
  %2433 = vst.msk [vmem:[%s4 + $0x24] sm:$0xf] %vm2423, %v2304
  %2434 = vst.msk [vmem:[%s4 + $0x28] sm:$0xf] %vm2423, %v2305
  %2435 = vst.msk [vmem:[%s4 + $0x2c] sm:$0xf] %vm2423, %v2306
  %2436 = vst.msk [vmem:[%s4 + $0x30] sm:$0xf] %vm2423, %v2307
  %2437 = vst.msk [vmem:[%s4 + $0x34] sm:$0xf] %vm2423, %v2308
  %2438 = vst.msk [vmem:[%s4 + $0x38] sm:$0xf] %vm2423, %v2309
  %2439 = vst.msk [vmem:[%s4 + $0x3c] sm:$0xf] %vm2423, %v2310
  %2440 = vst.msk [vmem:[%s4 + $0x40] sm:$0xf] %vm2423, %v2311
  %2441 = vst.msk [vmem:[%s4 + $0x44] sm:$0xf] %vm2423, %v2312
  %2442 = vst.msk [vmem:[%s4 + $0x48] sm:$0xf] %vm2423, %v2313
  %2443 = vst.msk [vmem:[%s4 + $0x4c] sm:$0xf] %vm2423, %v2314
  %2444 = vst.msk [vmem:[%s4 + $0x50] sm:$0xf] %vm2423, %v2315
  %2445 = vst.msk [vmem:[%s4 + $0x54] sm:$0xf] %vm2423, %v2316
  %2446 = vst.msk [vmem:[%s4 + $0x58] sm:$0xf] %vm2423, %v2317
  %2447 = vst.msk [vmem:[%s4 + $0x5c] sm:$0xf] %vm2423, %v2318
  %2448 = vst.msk [vmem:[%s4 + $0x60] sm:$0xf] %vm2423, %v2319
  %2449 = vst.msk [vmem:[%s4 + $0x64] sm:$0xf] %vm2423, %v2320
  %2450 = vst.msk [vmem:[%s4 + $0x68] sm:$0xf] %vm2423, %v2321
  %2451 = vst.msk [vmem:[%s4 + $0x6c] sm:$0xf] %vm2423, %v2322
  %2452 = vst.msk [vmem:[%s4 + $0x70] sm:$0xf] %vm2423, %v2323
  %2453 = vst.msk [vmem:[%s4 + $0x74] sm:$0xf] %vm2423, %v2324
  %2454 = vst.msk [vmem:[%s4 + $0x78] sm:$0xf] %vm2423, %v2325
  %2455 = vst.msk [vmem:[%s4 + $0x7c] sm:$0xf] %vm2423, %v2326
  %2456 = vst.msk [vmem:[%s4 + $0x80] sm:$0xf] %vm2423, %v2327
  %2457 = vst.msk [vmem:[%s4 + $0x84] sm:$0xf] %vm2423, %v2328
  %2458 = vst.msk [vmem:[%s4 + $0x88] sm:$0xf] %vm2423, %v2329
  %2459 = vst.msk [vmem:[%s4 + $0x8c] sm:$0xf] %vm2423, %v2330
  %2460 = vst.msk [vmem:[%s4 + $0x90] sm:$0xf] %vm2423, %v2331
  %2461 = vst.msk [vmem:[%s4 + $0x94] sm:$0xf] %vm2423, %v2332
  %2462 = vst.msk [vmem:[%s4 + $0x98] sm:$0xf] %vm2423, %v2333
  %2463 = vst.msk [vmem:[%s4 + $0x9c] sm:$0xf] %vm2423, %v2334
  %2464 = vst.msk [vmem:[%s4 + $0xa0] sm:$0xf] %vm2423, %v2335
  %2465 = vst.msk [vmem:[%s4 + $0xa4] sm:$0xf] %vm2423, %v2336
  %2466 = vst.msk [vmem:[%s4 + $0xa8] sm:$0xf] %vm2423, %v2337
  %2467 = vst.msk [vmem:[%s4 + $0xac] sm:$0xf] %vm2423, %v2338
  %2468 = vst.msk [vmem:[%s4 + $0xb0] sm:$0xf] %vm2423, %v2339
  %2469 = vst.msk [vmem:[%s4 + $0xb4] sm:$0xf] %vm2423, %v2340
  %2470 = vst.msk [vmem:[%s4 + $0xb8] sm:$0xf] %vm2423, %v2341
  %2471 = vst.msk [vmem:[%s4 + $0xbc] sm:$0xf] %vm2423, %v2342
  %2472 = vst.msk [vmem:[%s4 + $0xc0] sm:$0xf] %vm2423, %v2343
  %2473 = vst.msk [vmem:[%s4 + $0xc4] sm:$0xf] %vm2423, %v2344
  %2474 = vst.msk [vmem:[%s4 + $0xc8] sm:$0xf] %vm2423, %v2345
  %2475 = vst.msk [vmem:[%s4 + $0xcc] sm:$0xf] %vm2423, %v2346
  %2476 = vst.msk [vmem:[%s4 + $0xd0] sm:$0xf] %vm2423, %v2347
  %2477 = vst.msk [vmem:[%s4 + $0xd4] sm:$0xf] %vm2423, %v2348
  %2478 = vst.msk [vmem:[%s4 + $0xd8] sm:$0xf] %vm2423, %v2349
  %2479 = vst.msk [vmem:[%s4 + $0xdc] sm:$0xf] %vm2423, %v2350
  %2480 = vst.msk [vmem:[%s4 + $0xe0] sm:$0xf] %vm2423, %v2351
  %2481 = vst.msk [vmem:[%s4 + $0xe4] sm:$0xf] %vm2423, %v2352
  %2482 = vst.msk [vmem:[%s4 + $0xe8] sm:$0xf] %vm2423, %v2353
  %2483 = vst.msk [vmem:[%s4 + $0xec] sm:$0xf] %vm2423, %v2354
  %2484 = vst.msk [vmem:[%s4 + $0xf0] sm:$0xf] %vm2423, %v2355
  %2485 = vst.msk [vmem:[%s4 + $0xf4] sm:$0xf] %vm2423, %v2356
  %2486 = vst.msk [vmem:[%s4 + $0xf8] sm:$0xf] %vm2423, %v2357
  %2487 = vst.msk [vmem:[%s4 + $0xfc] sm:$0xf] %vm2423, %v2358
  // Predicated region
  $region18: #{discriminator_forward.6} parent=0 // pred_check
    _
  $region19: #{discriminator_forward.6} parent=0 // pred_check_branch
    %2489 = sbr.rel (0) target = $region21
  $region20: #{discriminator_forward.6} parent=0 // pred_region
    _
  $region21: #{discriminator_forward.6} parent=0 // pred_fallthru
    _
  // Predicated region
  $region22: #{discriminator_forward.6} parent=0 // pred_check
    _
  $region23: #{discriminator_forward.6} parent=0 // pred_check_branch
    %2491 = sbr.rel (0) target = $region25
  $region24: #{discriminator_forward.6} parent=0 // pred_region
    _
  $region25: #{discriminator_forward.6} parent=0 // pred_fallthru
    _

// kernel: discriminator_forward.7
$region0: #{discriminator_forward.7}
  #allocation0 [shape = 'u32[]', space=smem, size = 0x4, offset = 0x4, fixed_abs, tag = 'smem constant byte address 0x4 - core index']
  #allocation1 [shape = 'u32[144,128]{1,0:T(1,128)}', space=vmem, size = 0x12000, scoped, tag = 'internal scratch']
  %s0 = inlined_call_operand.vmem [shape: bf16[128,1024], index: 0, kind: input, shape index: {}]
  %s1 = inlined_call_operand.vmem [shape: bf16[1024,128], index: 1, kind: input, shape index: {}]
  %s2 = inlined_call_operand.vmem [shape: f32[1,128], index: 2, kind: input, shape index: {}]
  %s3 = inlined_call_operand.vmem [shape: f32[1,128], index: 3, kind: input, shape index: {}]
  %s4 = inlined_call_operand.vmem [shape: bf16[128,128], index: 4, kind: output, shape index: {}]
  %s5 = sld [smem:[#allocation0]]
  $region26: #{discriminator_forward.7} parent=0
    _
  %s7 = ssub.s32 1, %s5
  %s8 = scalar_select 0, %s7, %s5
  // Predicated region
  $region2: #{discriminator_forward.7} parent=0 // pred_check
    _
  $region3: #{discriminator_forward.7} parent=0 // pred_check_branch
    %10 = sbr.rel (0) target = $region5
  $region4: #{discriminator_forward.7} parent=0 // pred_region
    _
  $region5: #{discriminator_forward.7} parent=0 // pred_fallthru
    _
  // Predicated region
  $region6: #{discriminator_forward.7} parent=0 // pred_check
    _
  $region7: #{discriminator_forward.7} parent=0 // pred_check_branch
    %12 = sbr.rel (0) target = $region9
  $region8: #{discriminator_forward.7} parent=0 // pred_region
    _
  $region9: #{discriminator_forward.7} parent=0 // pred_fallthru
    _
  // Predicated region
  $region10: #{discriminator_forward.7} parent=0 // pred_check
    _
  $region11: #{discriminator_forward.7} parent=0 // pred_check_branch
    %14 = sbr.rel (0) target = $region13
  $region12: #{discriminator_forward.7} parent=0 // pred_region
    _
  $region13: #{discriminator_forward.7} parent=0 // pred_fallthru
    _
  // Predicated region
  $region14: #{discriminator_forward.7} parent=0 // pred_check
    _
  $region15: #{discriminator_forward.7} parent=0 // pred_check_branch
    %16 = sbr.rel (0) target = $region17
  $region16: #{discriminator_forward.7} parent=0 // pred_region
    _
  $region17: #{discriminator_forward.7} parent=0 // pred_fallthru
    _
  %v18 = vld [vmem:[%s0] sm:$0xff]
  %v19 = vld [vmem:[%s0 + $0x8] sm:$0xff]
  %v20 = vld [vmem:[%s0 + $0x10] sm:$0xff]
  %v21 = vld [vmem:[%s0 + $0x18] sm:$0xff]
  %v22 = vld [vmem:[%s0 + $0x20] sm:$0xff]
  %v23 = vld [vmem:[%s0 + $0x28] sm:$0xff]
  %v24 = vld [vmem:[%s0 + $0x30] sm:$0xff]
  %v25 = vld [vmem:[%s0 + $0x38] sm:$0xff]
  %v26 = vld [vmem:[%s0 + $0x40] sm:$0xff]
  %v27 = vld [vmem:[%s0 + $0x48] sm:$0xff]
  %v28 = vld [vmem:[%s0 + $0x50] sm:$0xff]
  %v29 = vld [vmem:[%s0 + $0x58] sm:$0xff]
  %v30 = vld [vmem:[%s0 + $0x60] sm:$0xff]
  %v31 = vld [vmem:[%s0 + $0x68] sm:$0xff]
  %v32 = vld [vmem:[%s0 + $0x70] sm:$0xff]
  %v33 = vld [vmem:[%s0 + $0x78] sm:$0xff]
  %v34 = vld [vmem:[%s0 + $0x80] sm:$0xff]
  %v35 = vld [vmem:[%s0 + $0x88] sm:$0xff]
  %v36 = vld [vmem:[%s0 + $0x90] sm:$0xff]
  %v37 = vld [vmem:[%s0 + $0x98] sm:$0xff]
  %v38 = vld [vmem:[%s0 + $0xa0] sm:$0xff]
  %v39 = vld [vmem:[%s0 + $0xa8] sm:$0xff]
  %v40 = vld [vmem:[%s0 + $0xb0] sm:$0xff]
  %v41 = vld [vmem:[%s0 + $0xb8] sm:$0xff]
  %v42 = vld [vmem:[%s0 + $0xc0] sm:$0xff]
  %v43 = vld [vmem:[%s0 + $0xc8] sm:$0xff]
  %v44 = vld [vmem:[%s0 + $0xd0] sm:$0xff]
  %v45 = vld [vmem:[%s0 + $0xd8] sm:$0xff]
  %v46 = vld [vmem:[%s0 + $0xe0] sm:$0xff]
  %v47 = vld [vmem:[%s0 + $0xe8] sm:$0xff]
  %v48 = vld [vmem:[%s0 + $0xf0] sm:$0xff]
  %v49 = vld [vmem:[%s0 + $0xf8] sm:$0xff]
  %v50 = vld [vmem:[%s0 + $0x100] sm:$0xff]
  %v51 = vld [vmem:[%s0 + $0x108] sm:$0xff]
  %v52 = vld [vmem:[%s0 + $0x110] sm:$0xff]
  %v53 = vld [vmem:[%s0 + $0x118] sm:$0xff]
  %v54 = vld [vmem:[%s0 + $0x120] sm:$0xff]
  %v55 = vld [vmem:[%s0 + $0x128] sm:$0xff]
  %v56 = vld [vmem:[%s0 + $0x130] sm:$0xff]
  %v57 = vld [vmem:[%s0 + $0x138] sm:$0xff]
  %v58 = vld [vmem:[%s0 + $0x140] sm:$0xff]
  %v59 = vld [vmem:[%s0 + $0x148] sm:$0xff]
  %v60 = vld [vmem:[%s0 + $0x150] sm:$0xff]
  %v61 = vld [vmem:[%s0 + $0x158] sm:$0xff]
  %v62 = vld [vmem:[%s0 + $0x160] sm:$0xff]
  %v63 = vld [vmem:[%s0 + $0x168] sm:$0xff]
  %v64 = vld [vmem:[%s0 + $0x170] sm:$0xff]
  %v65 = vld [vmem:[%s0 + $0x178] sm:$0xff]
  %v66 = vld [vmem:[%s0 + $0x180] sm:$0xff]
  %v67 = vld [vmem:[%s0 + $0x188] sm:$0xff]
  %v68 = vld [vmem:[%s0 + $0x190] sm:$0xff]
  %v69 = vld [vmem:[%s0 + $0x198] sm:$0xff]
  %v70 = vld [vmem:[%s0 + $0x1a0] sm:$0xff]
  %v71 = vld [vmem:[%s0 + $0x1a8] sm:$0xff]
  %v72 = vld [vmem:[%s0 + $0x1b0] sm:$0xff]
  %v73 = vld [vmem:[%s0 + $0x1b8] sm:$0xff]
  %v74 = vld [vmem:[%s0 + $0x1c0] sm:$0xff]
  %v75 = vld [vmem:[%s0 + $0x1c8] sm:$0xff]
  %v76 = vld [vmem:[%s0 + $0x1d0] sm:$0xff]
  %v77 = vld [vmem:[%s0 + $0x1d8] sm:$0xff]
  %v78 = vld [vmem:[%s0 + $0x1e0] sm:$0xff]
  %v79 = vld [vmem:[%s0 + $0x1e8] sm:$0xff]
  %v80 = vld [vmem:[%s0 + $0x1f0] sm:$0xff]
  %v81 = vld [vmem:[%s0 + $0x1f8] sm:$0xff]
  %v82 = vld [vmem:[%s1] sm:$0xf]
  %v83 = vld [vmem:[%s1 + $0x4] sm:$0xf]
  %v84 = vld [vmem:[%s1 + $0x8] sm:$0xf]
  %v85 = vld [vmem:[%s1 + $0xc] sm:$0xf]
  %v86 = vld [vmem:[%s1 + $0x10] sm:$0xf]
  %v87 = vld [vmem:[%s1 + $0x14] sm:$0xf]
  %v88 = vld [vmem:[%s1 + $0x18] sm:$0xf]
  %v89 = vld [vmem:[%s1 + $0x1c] sm:$0xf]
  %v90 = vld [vmem:[%s1 + $0x20] sm:$0xf]
  %v91 = vld [vmem:[%s1 + $0x24] sm:$0xf]
  %v92 = vld [vmem:[%s1 + $0x28] sm:$0xf]
  %v93 = vld [vmem:[%s1 + $0x2c] sm:$0xf]
  %v94 = vld [vmem:[%s1 + $0x30] sm:$0xf]
  %v95 = vld [vmem:[%s1 + $0x34] sm:$0xf]
  %v96 = vld [vmem:[%s1 + $0x38] sm:$0xf]
  %v97 = vld [vmem:[%s1 + $0x3c] sm:$0xf]
  %v98 = vld [vmem:[%s1 + $0x40] sm:$0xf]
  %v99 = vld [vmem:[%s1 + $0x44] sm:$0xf]
  %v100 = vld [vmem:[%s1 + $0x48] sm:$0xf]
  %v101 = vld [vmem:[%s1 + $0x4c] sm:$0xf]
  %v102 = vld [vmem:[%s1 + $0x50] sm:$0xf]
  %v103 = vld [vmem:[%s1 + $0x54] sm:$0xf]
  %v104 = vld [vmem:[%s1 + $0x58] sm:$0xf]
  %v105 = vld [vmem:[%s1 + $0x5c] sm:$0xf]
  %v106 = vld [vmem:[%s1 + $0x60] sm:$0xf]
  %v107 = vld [vmem:[%s1 + $0x64] sm:$0xf]
  %v108 = vld [vmem:[%s1 + $0x68] sm:$0xf]
  %v109 = vld [vmem:[%s1 + $0x6c] sm:$0xf]
  %v110 = vld [vmem:[%s1 + $0x70] sm:$0xf]
  %v111 = vld [vmem:[%s1 + $0x74] sm:$0xf]
  %v112 = vld [vmem:[%s1 + $0x78] sm:$0xf]
  %v113 = vld [vmem:[%s1 + $0x7c] sm:$0xf]
  %v114 = vld [vmem:[%s1 + $0x80] sm:$0xf]
  %v115 = vld [vmem:[%s1 + $0x84] sm:$0xf]
  %v116 = vld [vmem:[%s1 + $0x88] sm:$0xf]
  %v117 = vld [vmem:[%s1 + $0x8c] sm:$0xf]
  %v118 = vld [vmem:[%s1 + $0x90] sm:$0xf]
  %v119 = vld [vmem:[%s1 + $0x94] sm:$0xf]
  %v120 = vld [vmem:[%s1 + $0x98] sm:$0xf]
  %v121 = vld [vmem:[%s1 + $0x9c] sm:$0xf]
  %v122 = vld [vmem:[%s1 + $0xa0] sm:$0xf]
  %v123 = vld [vmem:[%s1 + $0xa4] sm:$0xf]
  %v124 = vld [vmem:[%s1 + $0xa8] sm:$0xf]
  %v125 = vld [vmem:[%s1 + $0xac] sm:$0xf]
  %v126 = vld [vmem:[%s1 + $0xb0] sm:$0xf]
  %v127 = vld [vmem:[%s1 + $0xb4] sm:$0xf]
  %v128 = vld [vmem:[%s1 + $0xb8] sm:$0xf]
  %v129 = vld [vmem:[%s1 + $0xbc] sm:$0xf]
  %v130 = vld [vmem:[%s1 + $0xc0] sm:$0xf]
  %v131 = vld [vmem:[%s1 + $0xc4] sm:$0xf]
  %v132 = vld [vmem:[%s1 + $0xc8] sm:$0xf]
  %v133 = vld [vmem:[%s1 + $0xcc] sm:$0xf]
  %v134 = vld [vmem:[%s1 + $0xd0] sm:$0xf]
  %v135 = vld [vmem:[%s1 + $0xd4] sm:$0xf]
  %v136 = vld [vmem:[%s1 + $0xd8] sm:$0xf]
  %v137 = vld [vmem:[%s1 + $0xdc] sm:$0xf]
  %v138 = vld [vmem:[%s1 + $0xe0] sm:$0xf]
  %v139 = vld [vmem:[%s1 + $0xe4] sm:$0xf]
  %v140 = vld [vmem:[%s1 + $0xe8] sm:$0xf]
  %v141 = vld [vmem:[%s1 + $0xec] sm:$0xf]
  %v142 = vld [vmem:[%s1 + $0xf0] sm:$0xf]
  %v143 = vld [vmem:[%s1 + $0xf4] sm:$0xf]
  %v144 = vld [vmem:[%s1 + $0xf8] sm:$0xf]
  %v145 = vld [vmem:[%s1 + $0xfc] sm:$0xf]
  %v146 = vld [vmem:[%s1 + $0x100] sm:$0xf]
  %v147 = vld [vmem:[%s1 + $0x104] sm:$0xf]
  %v148 = vld [vmem:[%s1 + $0x108] sm:$0xf]
  %v149 = vld [vmem:[%s1 + $0x10c] sm:$0xf]
  %v150 = vld [vmem:[%s1 + $0x110] sm:$0xf]
  %v151 = vld [vmem:[%s1 + $0x114] sm:$0xf]
  %v152 = vld [vmem:[%s1 + $0x118] sm:$0xf]
  %v153 = vld [vmem:[%s1 + $0x11c] sm:$0xf]
  %v154 = vld [vmem:[%s1 + $0x120] sm:$0xf]
  %v155 = vld [vmem:[%s1 + $0x124] sm:$0xf]
  %v156 = vld [vmem:[%s1 + $0x128] sm:$0xf]
  %v157 = vld [vmem:[%s1 + $0x12c] sm:$0xf]
  %v158 = vld [vmem:[%s1 + $0x130] sm:$0xf]
  %v159 = vld [vmem:[%s1 + $0x134] sm:$0xf]
  %v160 = vld [vmem:[%s1 + $0x138] sm:$0xf]
  %v161 = vld [vmem:[%s1 + $0x13c] sm:$0xf]
  %v162 = vld [vmem:[%s1 + $0x140] sm:$0xf]
  %v163 = vld [vmem:[%s1 + $0x144] sm:$0xf]
  %v164 = vld [vmem:[%s1 + $0x148] sm:$0xf]
  %v165 = vld [vmem:[%s1 + $0x14c] sm:$0xf]
  %v166 = vld [vmem:[%s1 + $0x150] sm:$0xf]
  %v167 = vld [vmem:[%s1 + $0x154] sm:$0xf]
  %v168 = vld [vmem:[%s1 + $0x158] sm:$0xf]
  %v169 = vld [vmem:[%s1 + $0x15c] sm:$0xf]
  %v170 = vld [vmem:[%s1 + $0x160] sm:$0xf]
  %v171 = vld [vmem:[%s1 + $0x164] sm:$0xf]
  %v172 = vld [vmem:[%s1 + $0x168] sm:$0xf]
  %v173 = vld [vmem:[%s1 + $0x16c] sm:$0xf]
  %v174 = vld [vmem:[%s1 + $0x170] sm:$0xf]
  %v175 = vld [vmem:[%s1 + $0x174] sm:$0xf]
  %v176 = vld [vmem:[%s1 + $0x178] sm:$0xf]
  %v177 = vld [vmem:[%s1 + $0x17c] sm:$0xf]
  %v178 = vld [vmem:[%s1 + $0x180] sm:$0xf]
  %v179 = vld [vmem:[%s1 + $0x184] sm:$0xf]
  %v180 = vld [vmem:[%s1 + $0x188] sm:$0xf]
  %v181 = vld [vmem:[%s1 + $0x18c] sm:$0xf]
  %v182 = vld [vmem:[%s1 + $0x190] sm:$0xf]
  %v183 = vld [vmem:[%s1 + $0x194] sm:$0xf]
  %v184 = vld [vmem:[%s1 + $0x198] sm:$0xf]
  %v185 = vld [vmem:[%s1 + $0x19c] sm:$0xf]
  %v186 = vld [vmem:[%s1 + $0x1a0] sm:$0xf]
  %v187 = vld [vmem:[%s1 + $0x1a4] sm:$0xf]
  %v188 = vld [vmem:[%s1 + $0x1a8] sm:$0xf]
  %v189 = vld [vmem:[%s1 + $0x1ac] sm:$0xf]
  %v190 = vld [vmem:[%s1 + $0x1b0] sm:$0xf]
  %v191 = vld [vmem:[%s1 + $0x1b4] sm:$0xf]
  %v192 = vld [vmem:[%s1 + $0x1b8] sm:$0xf]
  %v193 = vld [vmem:[%s1 + $0x1bc] sm:$0xf]
  %v194 = vld [vmem:[%s1 + $0x1c0] sm:$0xf]
  %v195 = vld [vmem:[%s1 + $0x1c4] sm:$0xf]
  %v196 = vld [vmem:[%s1 + $0x1c8] sm:$0xf]
  %v197 = vld [vmem:[%s1 + $0x1cc] sm:$0xf]
  %v198 = vld [vmem:[%s1 + $0x1d0] sm:$0xf]
  %v199 = vld [vmem:[%s1 + $0x1d4] sm:$0xf]
  %v200 = vld [vmem:[%s1 + $0x1d8] sm:$0xf]
  %v201 = vld [vmem:[%s1 + $0x1dc] sm:$0xf]
  %v202 = vld [vmem:[%s1 + $0x1e0] sm:$0xf]
  %v203 = vld [vmem:[%s1 + $0x1e4] sm:$0xf]
  %v204 = vld [vmem:[%s1 + $0x1e8] sm:$0xf]
  %v205 = vld [vmem:[%s1 + $0x1ec] sm:$0xf]
  %v206 = vld [vmem:[%s1 + $0x1f0] sm:$0xf]
  %v207 = vld [vmem:[%s1 + $0x1f4] sm:$0xf]
  %v208 = vld [vmem:[%s1 + $0x1f8] sm:$0xf]
  %v209 = vld [vmem:[%s1 + $0x1fc] sm:$0xf]
  %v274 = vunpack.c.l.b16 %v18
  %v275 = vunpack.c.h.b16 %v18
  %v276 = vunpack.c.l.b16 %v19
  %v277 = vunpack.c.h.b16 %v19
  %v278 = vunpack.c.l.b16 %v20
  %v279 = vunpack.c.h.b16 %v20
  %v280 = vunpack.c.l.b16 %v21
  %v281 = vunpack.c.h.b16 %v21
  %v282 = vunpack.c.l.b16 %v22
  %v283 = vunpack.c.h.b16 %v22
  %v284 = vunpack.c.l.b16 %v23
  %v285 = vunpack.c.h.b16 %v23
  %v286 = vunpack.c.l.b16 %v24
  %v287 = vunpack.c.h.b16 %v24
  %v288 = vunpack.c.l.b16 %v25
  %v289 = vunpack.c.h.b16 %v25
  %v290 = vunpack.c.l.b16 %v26
  %v291 = vunpack.c.h.b16 %v26
  %v292 = vunpack.c.l.b16 %v27
  %v293 = vunpack.c.h.b16 %v27
  %v294 = vunpack.c.l.b16 %v28
  %v295 = vunpack.c.h.b16 %v28
  %v296 = vunpack.c.l.b16 %v29
  %v297 = vunpack.c.h.b16 %v29
  %v298 = vunpack.c.l.b16 %v30
  %v299 = vunpack.c.h.b16 %v30
  %v300 = vunpack.c.l.b16 %v31
  %v301 = vunpack.c.h.b16 %v31
  %v302 = vunpack.c.l.b16 %v32
  %v303 = vunpack.c.h.b16 %v32
  %v304 = vunpack.c.l.b16 %v33
  %v305 = vunpack.c.h.b16 %v33
  %v306 = vunpack.c.l.b16 %v34
  %v307 = vunpack.c.h.b16 %v34
  %v308 = vunpack.c.l.b16 %v35
  %v309 = vunpack.c.h.b16 %v35
  %v310 = vunpack.c.l.b16 %v36
  %v311 = vunpack.c.h.b16 %v36
  %v312 = vunpack.c.l.b16 %v37
  %v313 = vunpack.c.h.b16 %v37
  %v314 = vunpack.c.l.b16 %v38
  %v315 = vunpack.c.h.b16 %v38
  %v316 = vunpack.c.l.b16 %v39
  %v317 = vunpack.c.h.b16 %v39
  %v318 = vunpack.c.l.b16 %v40
  %v319 = vunpack.c.h.b16 %v40
  %v320 = vunpack.c.l.b16 %v41
  %v321 = vunpack.c.h.b16 %v41
  %v322 = vunpack.c.l.b16 %v42
  %v323 = vunpack.c.h.b16 %v42
  %v324 = vunpack.c.l.b16 %v43
  %v325 = vunpack.c.h.b16 %v43
  %v326 = vunpack.c.l.b16 %v44
  %v327 = vunpack.c.h.b16 %v44
  %v328 = vunpack.c.l.b16 %v45
  %v329 = vunpack.c.h.b16 %v45
  %v330 = vunpack.c.l.b16 %v46
  %v331 = vunpack.c.h.b16 %v46
  %v332 = vunpack.c.l.b16 %v47
  %v333 = vunpack.c.h.b16 %v47
  %v334 = vunpack.c.l.b16 %v48
  %v335 = vunpack.c.h.b16 %v48
  %v336 = vunpack.c.l.b16 %v49
  %v337 = vunpack.c.h.b16 %v49
  %v338 = vunpack.c.l.b16 %v50
  %v339 = vunpack.c.h.b16 %v50
  %v340 = vunpack.c.l.b16 %v51
  %v341 = vunpack.c.h.b16 %v51
  %v342 = vunpack.c.l.b16 %v52
  %v343 = vunpack.c.h.b16 %v52
  %v344 = vunpack.c.l.b16 %v53
  %v345 = vunpack.c.h.b16 %v53
  %v346 = vunpack.c.l.b16 %v54
  %v347 = vunpack.c.h.b16 %v54
  %v348 = vunpack.c.l.b16 %v55
  %v349 = vunpack.c.h.b16 %v55
  %v350 = vunpack.c.l.b16 %v56
  %v351 = vunpack.c.h.b16 %v56
  %v352 = vunpack.c.l.b16 %v57
  %v353 = vunpack.c.h.b16 %v57
  %v354 = vunpack.c.l.b16 %v58
  %v355 = vunpack.c.h.b16 %v58
  %v356 = vunpack.c.l.b16 %v59
  %v357 = vunpack.c.h.b16 %v59
  %v358 = vunpack.c.l.b16 %v60
  %v359 = vunpack.c.h.b16 %v60
  %v360 = vunpack.c.l.b16 %v61
  %v361 = vunpack.c.h.b16 %v61
  %v362 = vunpack.c.l.b16 %v62
  %v363 = vunpack.c.h.b16 %v62
  %v364 = vunpack.c.l.b16 %v63
  %v365 = vunpack.c.h.b16 %v63
  %v366 = vunpack.c.l.b16 %v64
  %v367 = vunpack.c.h.b16 %v64
  %v368 = vunpack.c.l.b16 %v65
  %v369 = vunpack.c.h.b16 %v65
  %v370 = vunpack.c.l.b16 %v66
  %v371 = vunpack.c.h.b16 %v66
  %v372 = vunpack.c.l.b16 %v67
  %v373 = vunpack.c.h.b16 %v67
  %v374 = vunpack.c.l.b16 %v68
  %v375 = vunpack.c.h.b16 %v68
  %v376 = vunpack.c.l.b16 %v69
  %v377 = vunpack.c.h.b16 %v69
  %v378 = vunpack.c.l.b16 %v70
  %v379 = vunpack.c.h.b16 %v70
  %v380 = vunpack.c.l.b16 %v71
  %v381 = vunpack.c.h.b16 %v71
  %v382 = vunpack.c.l.b16 %v72
  %v383 = vunpack.c.h.b16 %v72
  %v384 = vunpack.c.l.b16 %v73
  %v385 = vunpack.c.h.b16 %v73
  %v386 = vunpack.c.l.b16 %v74
  %v387 = vunpack.c.h.b16 %v74
  %v388 = vunpack.c.l.b16 %v75
  %v389 = vunpack.c.h.b16 %v75
  %v390 = vunpack.c.l.b16 %v76
  %v391 = vunpack.c.h.b16 %v76
  %v392 = vunpack.c.l.b16 %v77
  %v393 = vunpack.c.h.b16 %v77
  %v394 = vunpack.c.l.b16 %v78
  %v395 = vunpack.c.h.b16 %v78
  %v396 = vunpack.c.l.b16 %v79
  %v397 = vunpack.c.h.b16 %v79
  %v398 = vunpack.c.l.b16 %v80
  %v399 = vunpack.c.h.b16 %v80
  %v400 = vunpack.c.l.b16 %v81
  %v401 = vunpack.c.h.b16 %v81
  %v402 = vpack.c.b16 %v282, %v274
  %v403 = vpack.c.b16 %v283, %v275
  %v404 = vpack.c.b16 %v284, %v276
  %v405 = vpack.c.b16 %v285, %v277
  %v406 = vpack.c.b16 %v286, %v278
  %v407 = vpack.c.b16 %v287, %v279
  %v408 = vpack.c.b16 %v288, %v280
  %v409 = vpack.c.b16 %v289, %v281
  %v410 = vpack.c.b16 %v298, %v290
  %v411 = vpack.c.b16 %v299, %v291
  %v412 = vpack.c.b16 %v300, %v292
  %v413 = vpack.c.b16 %v301, %v293
  %v414 = vpack.c.b16 %v302, %v294
  %v415 = vpack.c.b16 %v303, %v295
  %v416 = vpack.c.b16 %v304, %v296
  %v417 = vpack.c.b16 %v305, %v297
  %v418 = vpack.c.b16 %v314, %v306
  %v419 = vpack.c.b16 %v315, %v307
  %v420 = vpack.c.b16 %v316, %v308
  %v421 = vpack.c.b16 %v317, %v309
  %v422 = vpack.c.b16 %v318, %v310
  %v423 = vpack.c.b16 %v319, %v311
  %v424 = vpack.c.b16 %v320, %v312
  %v425 = vpack.c.b16 %v321, %v313
  %v426 = vpack.c.b16 %v330, %v322
  %v427 = vpack.c.b16 %v331, %v323
  %v428 = vpack.c.b16 %v332, %v324
  %v429 = vpack.c.b16 %v333, %v325
  %v430 = vpack.c.b16 %v334, %v326
  %v431 = vpack.c.b16 %v335, %v327
  %v432 = vpack.c.b16 %v336, %v328
  %v433 = vpack.c.b16 %v337, %v329
  %v434 = vpack.c.b16 %v346, %v338
  %v435 = vpack.c.b16 %v347, %v339
  %v436 = vpack.c.b16 %v348, %v340
  %v437 = vpack.c.b16 %v349, %v341
  %v438 = vpack.c.b16 %v350, %v342
  %v439 = vpack.c.b16 %v351, %v343
  %v440 = vpack.c.b16 %v352, %v344
  %v441 = vpack.c.b16 %v353, %v345
  %v442 = vpack.c.b16 %v362, %v354
  %v443 = vpack.c.b16 %v363, %v355
  %v444 = vpack.c.b16 %v364, %v356
  %v445 = vpack.c.b16 %v365, %v357
  %v446 = vpack.c.b16 %v366, %v358
  %v447 = vpack.c.b16 %v367, %v359
  %v448 = vpack.c.b16 %v368, %v360
  %v449 = vpack.c.b16 %v369, %v361
  %v450 = vpack.c.b16 %v378, %v370
  %v451 = vpack.c.b16 %v379, %v371
  %v452 = vpack.c.b16 %v380, %v372
  %v453 = vpack.c.b16 %v381, %v373
  %v454 = vpack.c.b16 %v382, %v374
  %v455 = vpack.c.b16 %v383, %v375
  %v456 = vpack.c.b16 %v384, %v376
  %v457 = vpack.c.b16 %v385, %v377
  %v458 = vpack.c.b16 %v394, %v386
  %v459 = vpack.c.b16 %v395, %v387
  %v460 = vpack.c.b16 %v396, %v388
  %v461 = vpack.c.b16 %v397, %v389
  %v462 = vpack.c.b16 %v398, %v390
  %v463 = vpack.c.b16 %v399, %v391
  %v464 = vpack.c.b16 %v400, %v392
  %v465 = vpack.c.b16 %v401, %v393
  %v658 = vunpack.c.l.b16 %v82
  %v659 = vunpack.c.l.b16 %v83
  %v660 = vunpack.c.l.b16 %v84
  %v661 = vunpack.c.l.b16 %v85
  %v662 = vunpack.c.l.b16 %v86
  %v663 = vunpack.c.l.b16 %v87
  %v664 = vunpack.c.l.b16 %v88
  %v665 = vunpack.c.l.b16 %v89
  %v666 = vunpack.c.l.b16 %v90
  %v667 = vunpack.c.l.b16 %v91
  %v668 = vunpack.c.l.b16 %v92
  %v669 = vunpack.c.l.b16 %v93
  %v670 = vunpack.c.l.b16 %v94
  %v671 = vunpack.c.l.b16 %v95
  %v672 = vunpack.c.l.b16 %v96
  %v673 = vunpack.c.l.b16 %v97
  %v674 = vunpack.c.l.b16 %v98
  %v675 = vunpack.c.l.b16 %v99
  %v676 = vunpack.c.l.b16 %v100
  %v677 = vunpack.c.l.b16 %v101
  %v678 = vunpack.c.l.b16 %v102
  %v679 = vunpack.c.l.b16 %v103
  %v680 = vunpack.c.l.b16 %v104
  %v681 = vunpack.c.l.b16 %v105
  %v682 = vunpack.c.l.b16 %v106
  %v683 = vunpack.c.l.b16 %v107
  %v684 = vunpack.c.l.b16 %v108
  %v685 = vunpack.c.l.b16 %v109
  %v686 = vunpack.c.l.b16 %v110
  %v687 = vunpack.c.l.b16 %v111
  %v688 = vunpack.c.l.b16 %v112
  %v689 = vunpack.c.l.b16 %v113
  %v690 = vunpack.c.l.b16 %v114
  %v691 = vunpack.c.l.b16 %v115
  %v692 = vunpack.c.l.b16 %v116
  %v693 = vunpack.c.l.b16 %v117
  %v694 = vunpack.c.l.b16 %v118
  %v695 = vunpack.c.l.b16 %v119
  %v696 = vunpack.c.l.b16 %v120
  %v697 = vunpack.c.l.b16 %v121
  %v698 = vunpack.c.l.b16 %v122
  %v699 = vunpack.c.l.b16 %v123
  %v700 = vunpack.c.l.b16 %v124
  %v701 = vunpack.c.l.b16 %v125
  %v702 = vunpack.c.l.b16 %v126
  %v703 = vunpack.c.l.b16 %v127
  %v704 = vunpack.c.l.b16 %v128
  %v705 = vunpack.c.l.b16 %v129
  %v706 = vunpack.c.l.b16 %v130
  %v707 = vunpack.c.l.b16 %v131
  %v708 = vunpack.c.l.b16 %v132
  %v709 = vunpack.c.l.b16 %v133
  %v710 = vunpack.c.l.b16 %v134
  %v711 = vunpack.c.l.b16 %v135
  %v712 = vunpack.c.l.b16 %v136
  %v713 = vunpack.c.l.b16 %v137
  %v714 = vunpack.c.l.b16 %v138
  %v715 = vunpack.c.l.b16 %v139
  %v716 = vunpack.c.l.b16 %v140
  %v717 = vunpack.c.l.b16 %v141
  %v718 = vunpack.c.l.b16 %v142
  %v719 = vunpack.c.l.b16 %v143
  %v720 = vunpack.c.l.b16 %v144
  %v721 = vunpack.c.l.b16 %v145
  %v722 = vunpack.c.l.b16 %v146
  %v723 = vunpack.c.l.b16 %v147
  %v724 = vunpack.c.l.b16 %v148
  %v725 = vunpack.c.l.b16 %v149
  %v726 = vunpack.c.l.b16 %v150
  %v727 = vunpack.c.l.b16 %v151
  %v728 = vunpack.c.l.b16 %v152
  %v729 = vunpack.c.l.b16 %v153
  %v730 = vunpack.c.l.b16 %v154
  %v731 = vunpack.c.l.b16 %v155
  %v732 = vunpack.c.l.b16 %v156
  %v733 = vunpack.c.l.b16 %v157
  %v734 = vunpack.c.l.b16 %v158
  %v735 = vunpack.c.l.b16 %v159
  %v736 = vunpack.c.l.b16 %v160
  %v737 = vunpack.c.l.b16 %v161
  %v738 = vunpack.c.l.b16 %v162
  %v739 = vunpack.c.l.b16 %v163
  %v740 = vunpack.c.l.b16 %v164
  %v741 = vunpack.c.l.b16 %v165
  %v742 = vunpack.c.l.b16 %v166
  %v743 = vunpack.c.l.b16 %v167
  %v744 = vunpack.c.l.b16 %v168
  %v745 = vunpack.c.l.b16 %v169
  %v746 = vunpack.c.l.b16 %v170
  %v747 = vunpack.c.l.b16 %v171
  %v748 = vunpack.c.l.b16 %v172
  %v749 = vunpack.c.l.b16 %v173
  %v750 = vunpack.c.l.b16 %v174
  %v751 = vunpack.c.l.b16 %v175
  %v752 = vunpack.c.l.b16 %v176
  %v753 = vunpack.c.l.b16 %v177
  %v754 = vunpack.c.l.b16 %v178
  %v755 = vunpack.c.l.b16 %v179
  %v756 = vunpack.c.l.b16 %v180
  %v757 = vunpack.c.l.b16 %v181
  %v758 = vunpack.c.l.b16 %v182
  %v759 = vunpack.c.l.b16 %v183
  %v760 = vunpack.c.l.b16 %v184
  %v761 = vunpack.c.l.b16 %v185
  %v762 = vunpack.c.l.b16 %v186
  %v763 = vunpack.c.l.b16 %v187
  %v764 = vunpack.c.l.b16 %v188
  %v765 = vunpack.c.l.b16 %v189
  %v766 = vunpack.c.l.b16 %v190
  %v767 = vunpack.c.l.b16 %v191
  %v768 = vunpack.c.l.b16 %v192
  %v769 = vunpack.c.l.b16 %v193
  %v770 = vunpack.c.l.b16 %v194
  %v771 = vunpack.c.l.b16 %v195
  %v772 = vunpack.c.l.b16 %v196
  %v773 = vunpack.c.l.b16 %v197
  %v774 = vunpack.c.l.b16 %v198
  %v775 = vunpack.c.l.b16 %v199
  %v776 = vunpack.c.l.b16 %v200
  %v777 = vunpack.c.l.b16 %v201
  %v778 = vunpack.c.l.b16 %v202
  %v779 = vunpack.c.l.b16 %v203
  %v780 = vunpack.c.l.b16 %v204
  %v781 = vunpack.c.l.b16 %v205
  %v782 = vunpack.c.l.b16 %v206
  %v783 = vunpack.c.l.b16 %v207
  %v784 = vunpack.c.l.b16 %v208
  %v785 = vunpack.c.l.b16 %v209
  %v786 = vpack.c.b16 %v659, %v658
  %v787 = vpack.c.b16 %v661, %v660
  %v788 = vpack.c.b16 %v663, %v662
  %v789 = vpack.c.b16 %v665, %v664
  %v790 = vpack.c.b16 %v667, %v666
  %v791 = vpack.c.b16 %v669, %v668
  %v792 = vpack.c.b16 %v671, %v670
  %v793 = vpack.c.b16 %v673, %v672
  %v794 = vpack.c.b16 %v675, %v674
  %v795 = vpack.c.b16 %v677, %v676
  %v796 = vpack.c.b16 %v679, %v678
  %v797 = vpack.c.b16 %v681, %v680
  %v798 = vpack.c.b16 %v683, %v682
  %v799 = vpack.c.b16 %v685, %v684
  %v800 = vpack.c.b16 %v687, %v686
  %v801 = vpack.c.b16 %v689, %v688
  %v802 = vpack.c.b16 %v691, %v690
  %v803 = vpack.c.b16 %v693, %v692
  %v804 = vpack.c.b16 %v695, %v694
  %v805 = vpack.c.b16 %v697, %v696
  %v806 = vpack.c.b16 %v699, %v698
  %v807 = vpack.c.b16 %v701, %v700
  %v808 = vpack.c.b16 %v703, %v702
  %v809 = vpack.c.b16 %v705, %v704
  %v810 = vpack.c.b16 %v707, %v706
  %v811 = vpack.c.b16 %v709, %v708
  %v812 = vpack.c.b16 %v711, %v710
  %v813 = vpack.c.b16 %v713, %v712
  %v814 = vpack.c.b16 %v715, %v714
  %v815 = vpack.c.b16 %v717, %v716
  %v816 = vpack.c.b16 %v719, %v718
  %v817 = vpack.c.b16 %v721, %v720
  %v818 = vpack.c.b16 %v723, %v722
  %v819 = vpack.c.b16 %v725, %v724
  %v820 = vpack.c.b16 %v727, %v726
  %v821 = vpack.c.b16 %v729, %v728
  %v822 = vpack.c.b16 %v731, %v730
  %v823 = vpack.c.b16 %v733, %v732
  %v824 = vpack.c.b16 %v735, %v734
  %v825 = vpack.c.b16 %v737, %v736
  %v826 = vpack.c.b16 %v739, %v738
  %v827 = vpack.c.b16 %v741, %v740
  %v828 = vpack.c.b16 %v743, %v742
  %v829 = vpack.c.b16 %v745, %v744
  %v830 = vpack.c.b16 %v747, %v746
  %v831 = vpack.c.b16 %v749, %v748
  %v832 = vpack.c.b16 %v751, %v750
  %v833 = vpack.c.b16 %v753, %v752
  %v834 = vpack.c.b16 %v755, %v754
  %v835 = vpack.c.b16 %v757, %v756
  %v836 = vpack.c.b16 %v759, %v758
  %v837 = vpack.c.b16 %v761, %v760
  %v838 = vpack.c.b16 %v763, %v762
  %v839 = vpack.c.b16 %v765, %v764
  %v840 = vpack.c.b16 %v767, %v766
  %v841 = vpack.c.b16 %v769, %v768
  %v842 = vpack.c.b16 %v771, %v770
  %v843 = vpack.c.b16 %v773, %v772
  %v844 = vpack.c.b16 %v775, %v774
  %v845 = vpack.c.b16 %v777, %v776
  %v846 = vpack.c.b16 %v779, %v778
  %v847 = vpack.c.b16 %v781, %v780
  %v848 = vpack.c.b16 %v783, %v782
  %v849 = vpack.c.b16 %v785, %v784
  %914 = vmatprep.subr.bf16.mxu0 0
  %915 = vmatpush1.bf16.msra.mxu0 %v786
  %916 = vmatprep.subr.bf16.mxu0 0
  %917 = vmatpush1.bf16.msra.mxu0 %v787
  %918 = vmatprep.subr.bf16.mxu0 0
  %919 = vmatpush1.bf16.msra.mxu0 %v788
  %920 = vmatprep.subr.bf16.mxu0 0
  %921 = vmatpush1.bf16.msra.mxu0 %v789
  %922 = vmatprep.subr.bf16.mxu0 0
  %923 = vmatpush1.bf16.msra.mxu0 %v790
  %924 = vmatprep.subr.bf16.mxu0 0
  %925 = vmatpush1.bf16.msra.mxu0 %v791
  %926 = vmatprep.subr.bf16.mxu0 0
  %927 = vmatpush1.bf16.msra.mxu0 %v792
  %928 = vmatprep.subr.bf16.mxu0 0
  %929 = vmatpush1.bf16.msra.mxu0 %v793
  %930 = vmatprep.subr.bf16.mxu0 0
  %931 = vmatpush1.bf16.msra.mxu0 %v794
  %932 = vmatprep.subr.bf16.mxu0 0
  %933 = vmatpush1.bf16.msra.mxu0 %v795
  %934 = vmatprep.subr.bf16.mxu0 0
  %935 = vmatpush1.bf16.msra.mxu0 %v796
  %936 = vmatprep.subr.bf16.mxu0 0
  %937 = vmatpush1.bf16.msra.mxu0 %v797
  %938 = vmatprep.subr.bf16.mxu0 0
  %939 = vmatpush1.bf16.msra.mxu0 %v798
  %940 = vmatprep.subr.bf16.mxu0 0
  %941 = vmatpush1.bf16.msra.mxu0 %v799
  %942 = vmatprep.subr.bf16.mxu0 0
  %943 = vmatpush1.bf16.msra.mxu0 %v800
  %944 = vmatprep.subr.bf16.mxu0 0
  %945 = vmatpush1.bf16.msra.mxu0 %v801
  %946 = vmatprep.mubr.bf16.mxu0 %v403
  %947 = vmatmul.mubr.bf16.gmra.mrb[0].mxu0 %v402
  %v948 = vpop.f32.mrb[0].mxu0
  %v949 = vadd.f32 0.0, %v948
  %v950 = vpop.f32.mrb[0].mxu0
  %v951 = vpop.f32.mrb[0].mxu0
  %v952 = vadd.f32 0.0, %v951
  %v953 = vpop.f32.mrb[0].mxu0
  %954 = vmatprep.mubr.bf16.mxu0 %v411
  %955 = vmatmul.mubr.bf16.gmra.mrb[0].mxu0 %v410
  %v956 = vpop.f32.mrb[0].mxu0
  %v957 = vadd.f32 0.0, %v956
  %v958 = vpop.f32.mrb[0].mxu0
  %v959 = vpop.f32.mrb[0].mxu0
  %v960 = vadd.f32 0.0, %v959
  %v961 = vpop.f32.mrb[0].mxu0
  %962 = vmatprep.mubr.bf16.mxu0 %v419
  %963 = vmatmul.mubr.bf16.gmra.mrb[0].mxu0 %v418
  %v964 = vpop.f32.mrb[0].mxu0
  %v965 = vadd.f32 0.0, %v964
  %v966 = vpop.f32.mrb[0].mxu0
  %v967 = vpop.f32.mrb[0].mxu0
  %v968 = vadd.f32 0.0, %v967
  %v969 = vpop.f32.mrb[0].mxu0
  %970 = vmatprep.mubr.bf16.mxu0 %v427
  %971 = vmatmul.mubr.bf16.gmra.mrb[0].mxu0 %v426
  %v972 = vpop.f32.mrb[0].mxu0
  %v973 = vadd.f32 0.0, %v972
  %v974 = vpop.f32.mrb[0].mxu0
  %v975 = vpop.f32.mrb[0].mxu0
  %v976 = vadd.f32 0.0, %v975
  %v977 = vpop.f32.mrb[0].mxu0
  %978 = vmatprep.mubr.bf16.mxu0 %v435
  %979 = vmatmul.mubr.bf16.gmra.mrb[0].mxu0 %v434
  %v980 = vpop.f32.mrb[0].mxu0
  %v981 = vadd.f32 0.0, %v980
  %v982 = vpop.f32.mrb[0].mxu0
  %v983 = vpop.f32.mrb[0].mxu0
  %v984 = vadd.f32 0.0, %v983
  %v985 = vpop.f32.mrb[0].mxu0
  %986 = vmatprep.mubr.bf16.mxu0 %v443
  %987 = vmatmul.mubr.bf16.gmra.mrb[0].mxu0 %v442
  %v988 = vpop.f32.mrb[0].mxu0
  %v989 = vadd.f32 0.0, %v988
  %v990 = vpop.f32.mrb[0].mxu0
  %v991 = vpop.f32.mrb[0].mxu0
  %v992 = vadd.f32 0.0, %v991
  %v993 = vpop.f32.mrb[0].mxu0
  %994 = vmatprep.mubr.bf16.mxu0 %v451
  %995 = vmatmul.mubr.bf16.gmra.mrb[0].mxu0 %v450
  %v996 = vpop.f32.mrb[0].mxu0
  %v997 = vadd.f32 0.0, %v996
  %v998 = vpop.f32.mrb[0].mxu0
  %v999 = vpop.f32.mrb[0].mxu0
  %v1000 = vadd.f32 0.0, %v999
  %v1001 = vpop.f32.mrb[0].mxu0
  %1002 = vmatprep.mubr.bf16.mxu0 %v459
  %1003 = vmatmul.mubr.bf16.gmra.mrb[0].mxu0 %v458
  %v1004 = vpop.f32.mrb[0].mxu0
  %v1005 = vadd.f32 0.0, %v1004
  %v1006 = vpop.f32.mrb[0].mxu0
  %v1007 = vpop.f32.mrb[0].mxu0
  %v1008 = vadd.f32 0.0, %v1007
  %v1009 = vpop.f32.mrb[0].mxu0
  %1010 = vdwg.mxu0
  %1011 = vmatprep.subr.bf16.mxu0 0
  %1012 = vmatpush1.bf16.msra.mxu0 %v802
  %1013 = vmatprep.subr.bf16.mxu0 0
  %1014 = vmatpush1.bf16.msra.mxu0 %v803
  %1015 = vmatprep.subr.bf16.mxu0 0
  %1016 = vmatpush1.bf16.msra.mxu0 %v804
  %1017 = vmatprep.subr.bf16.mxu0 0
  %1018 = vmatpush1.bf16.msra.mxu0 %v805
  %1019 = vmatprep.subr.bf16.mxu0 0
  %1020 = vmatpush1.bf16.msra.mxu0 %v806
  %1021 = vmatprep.subr.bf16.mxu0 0
  %1022 = vmatpush1.bf16.msra.mxu0 %v807
  %1023 = vmatprep.subr.bf16.mxu0 0
  %1024 = vmatpush1.bf16.msra.mxu0 %v808
  %1025 = vmatprep.subr.bf16.mxu0 0
  %1026 = vmatpush1.bf16.msra.mxu0 %v809
  %1027 = vmatprep.subr.bf16.mxu0 0
  %1028 = vmatpush1.bf16.msra.mxu0 %v810
  %1029 = vmatprep.subr.bf16.mxu0 0
  %1030 = vmatpush1.bf16.msra.mxu0 %v811
  %1031 = vmatprep.subr.bf16.mxu0 0
  %1032 = vmatpush1.bf16.msra.mxu0 %v812
  %1033 = vmatprep.subr.bf16.mxu0 0
  %1034 = vmatpush1.bf16.msra.mxu0 %v813
  %1035 = vmatprep.subr.bf16.mxu0 0
  %1036 = vmatpush1.bf16.msra.mxu0 %v814
  %1037 = vmatprep.subr.bf16.mxu0 0
  %1038 = vmatpush1.bf16.msra.mxu0 %v815
  %1039 = vmatprep.subr.bf16.mxu0 0
  %1040 = vmatpush1.bf16.msra.mxu0 %v816
  %1041 = vmatprep.subr.bf16.mxu0 0
  %1042 = vmatpush1.bf16.msra.mxu0 %v817
  %1043 = vmatprep.mubr.bf16.mxu0 %v405
  %1044 = vmatmul.mubr.bf16.gmra.mrb[0].mxu0 %v404
  %v1045 = vpop.f32.mrb[0].mxu0
  %v1046 = vadd.f32 %v949, %v1045
  %v1047 = vpop.f32.mrb[0].mxu0
  %v1048 = vpop.f32.mrb[0].mxu0
  %v1049 = vadd.f32 %v952, %v1048
  %v1050 = vpop.f32.mrb[0].mxu0
  %1051 = vmatprep.mubr.bf16.mxu0 %v413
  %1052 = vmatmul.mubr.bf16.gmra.mrb[0].mxu0 %v412
  %v1053 = vpop.f32.mrb[0].mxu0
  %v1054 = vadd.f32 %v957, %v1053
  %v1055 = vpop.f32.mrb[0].mxu0
  %v1056 = vpop.f32.mrb[0].mxu0
  %v1057 = vadd.f32 %v960, %v1056
  %v1058 = vpop.f32.mrb[0].mxu0
  %1059 = vmatprep.mubr.bf16.mxu0 %v421
  %1060 = vmatmul.mubr.bf16.gmra.mrb[0].mxu0 %v420
  %v1061 = vpop.f32.mrb[0].mxu0
  %v1062 = vadd.f32 %v965, %v1061
  %v1063 = vpop.f32.mrb[0].mxu0
  %v1064 = vpop.f32.mrb[0].mxu0
  %v1065 = vadd.f32 %v968, %v1064
  %v1066 = vpop.f32.mrb[0].mxu0
  %1067 = vmatprep.mubr.bf16.mxu0 %v429
  %1068 = vmatmul.mubr.bf16.gmra.mrb[0].mxu0 %v428
  %v1069 = vpop.f32.mrb[0].mxu0
  %v1070 = vadd.f32 %v973, %v1069
  %v1071 = vpop.f32.mrb[0].mxu0
  %v1072 = vpop.f32.mrb[0].mxu0
  %v1073 = vadd.f32 %v976, %v1072
  %v1074 = vpop.f32.mrb[0].mxu0
  %1075 = vmatprep.mubr.bf16.mxu0 %v437
  %1076 = vmatmul.mubr.bf16.gmra.mrb[0].mxu0 %v436
  %v1077 = vpop.f32.mrb[0].mxu0
  %v1078 = vadd.f32 %v981, %v1077
  %v1079 = vpop.f32.mrb[0].mxu0
  %v1080 = vpop.f32.mrb[0].mxu0
  %v1081 = vadd.f32 %v984, %v1080
  %v1082 = vpop.f32.mrb[0].mxu0
  %1083 = vmatprep.mubr.bf16.mxu0 %v445
  %1084 = vmatmul.mubr.bf16.gmra.mrb[0].mxu0 %v444
  %v1085 = vpop.f32.mrb[0].mxu0
  %v1086 = vadd.f32 %v989, %v1085
  %v1087 = vpop.f32.mrb[0].mxu0
  %v1088 = vpop.f32.mrb[0].mxu0
  %v1089 = vadd.f32 %v992, %v1088
  %v1090 = vpop.f32.mrb[0].mxu0
  %1091 = vmatprep.mubr.bf16.mxu0 %v453
  %1092 = vmatmul.mubr.bf16.gmra.mrb[0].mxu0 %v452
  %v1093 = vpop.f32.mrb[0].mxu0
  %v1094 = vadd.f32 %v997, %v1093
  %v1095 = vpop.f32.mrb[0].mxu0
  %v1096 = vpop.f32.mrb[0].mxu0
  %v1097 = vadd.f32 %v1000, %v1096
  %v1098 = vpop.f32.mrb[0].mxu0
  %1099 = vmatprep.mubr.bf16.mxu0 %v461
  %1100 = vmatmul.mubr.bf16.gmra.mrb[0].mxu0 %v460
  %v1101 = vpop.f32.mrb[0].mxu0
  %v1102 = vadd.f32 %v1005, %v1101
  %v1103 = vpop.f32.mrb[0].mxu0
  %v1104 = vpop.f32.mrb[0].mxu0
  %v1105 = vadd.f32 %v1008, %v1104
  %v1106 = vpop.f32.mrb[0].mxu0
  %1107 = vdwg.mxu0
  %1108 = vmatprep.subr.bf16.mxu0 0
  %1109 = vmatpush1.bf16.msra.mxu0 %v818
  %1110 = vmatprep.subr.bf16.mxu0 0
  %1111 = vmatpush1.bf16.msra.mxu0 %v819
  %1112 = vmatprep.subr.bf16.mxu0 0
  %1113 = vmatpush1.bf16.msra.mxu0 %v820
  %1114 = vmatprep.subr.bf16.mxu0 0
  %1115 = vmatpush1.bf16.msra.mxu0 %v821
  %1116 = vmatprep.subr.bf16.mxu0 0
  %1117 = vmatpush1.bf16.msra.mxu0 %v822
  %1118 = vmatprep.subr.bf16.mxu0 0
  %1119 = vmatpush1.bf16.msra.mxu0 %v823
  %1120 = vmatprep.subr.bf16.mxu0 0
  %1121 = vmatpush1.bf16.msra.mxu0 %v824
  %1122 = vmatprep.subr.bf16.mxu0 0
  %1123 = vmatpush1.bf16.msra.mxu0 %v825
  %1124 = vmatprep.subr.bf16.mxu0 0
  %1125 = vmatpush1.bf16.msra.mxu0 %v826
  %1126 = vmatprep.subr.bf16.mxu0 0
  %1127 = vmatpush1.bf16.msra.mxu0 %v827
  %1128 = vmatprep.subr.bf16.mxu0 0
  %1129 = vmatpush1.bf16.msra.mxu0 %v828
  %1130 = vmatprep.subr.bf16.mxu0 0
  %1131 = vmatpush1.bf16.msra.mxu0 %v829
  %1132 = vmatprep.subr.bf16.mxu0 0
  %1133 = vmatpush1.bf16.msra.mxu0 %v830
  %1134 = vmatprep.subr.bf16.mxu0 0
  %1135 = vmatpush1.bf16.msra.mxu0 %v831
  %1136 = vmatprep.subr.bf16.mxu0 0
  %1137 = vmatpush1.bf16.msra.mxu0 %v832
  %1138 = vmatprep.subr.bf16.mxu0 0
  %1139 = vmatpush1.bf16.msra.mxu0 %v833
  %1140 = vmatprep.mubr.bf16.mxu0 %v407
  %1141 = vmatmul.mubr.bf16.gmra.mrb[0].mxu0 %v406
  %v1142 = vpop.f32.mrb[0].mxu0
  %v1143 = vadd.f32 %v1046, %v1142
  %v1144 = vpop.f32.mrb[0].mxu0
  %v1145 = vpop.f32.mrb[0].mxu0
  %v1146 = vadd.f32 %v1049, %v1145
  %v1147 = vpop.f32.mrb[0].mxu0
  %1148 = vmatprep.mubr.bf16.mxu0 %v415
  %1149 = vmatmul.mubr.bf16.gmra.mrb[0].mxu0 %v414
  %v1150 = vpop.f32.mrb[0].mxu0
  %v1151 = vadd.f32 %v1054, %v1150
  %v1152 = vpop.f32.mrb[0].mxu0
  %v1153 = vpop.f32.mrb[0].mxu0
  %v1154 = vadd.f32 %v1057, %v1153
  %v1155 = vpop.f32.mrb[0].mxu0
  %1156 = vmatprep.mubr.bf16.mxu0 %v423
  %1157 = vmatmul.mubr.bf16.gmra.mrb[0].mxu0 %v422
  %v1158 = vpop.f32.mrb[0].mxu0
  %v1159 = vadd.f32 %v1062, %v1158
  %v1160 = vpop.f32.mrb[0].mxu0
  %v1161 = vpop.f32.mrb[0].mxu0
  %v1162 = vadd.f32 %v1065, %v1161
  %v1163 = vpop.f32.mrb[0].mxu0
  %1164 = vmatprep.mubr.bf16.mxu0 %v431
  %1165 = vmatmul.mubr.bf16.gmra.mrb[0].mxu0 %v430
  %v1166 = vpop.f32.mrb[0].mxu0
  %v1167 = vadd.f32 %v1070, %v1166
  %v1168 = vpop.f32.mrb[0].mxu0
  %v1169 = vpop.f32.mrb[0].mxu0
  %v1170 = vadd.f32 %v1073, %v1169
  %v1171 = vpop.f32.mrb[0].mxu0
  %1172 = vmatprep.mubr.bf16.mxu0 %v439
  %1173 = vmatmul.mubr.bf16.gmra.mrb[0].mxu0 %v438
  %v1174 = vpop.f32.mrb[0].mxu0
  %v1175 = vadd.f32 %v1078, %v1174
  %v1176 = vpop.f32.mrb[0].mxu0
  %v1177 = vpop.f32.mrb[0].mxu0
  %v1178 = vadd.f32 %v1081, %v1177
  %v1179 = vpop.f32.mrb[0].mxu0
  %1180 = vmatprep.mubr.bf16.mxu0 %v447
  %1181 = vmatmul.mubr.bf16.gmra.mrb[0].mxu0 %v446
  %v1182 = vpop.f32.mrb[0].mxu0
  %v1183 = vadd.f32 %v1086, %v1182
  %v1184 = vpop.f32.mrb[0].mxu0
  %v1185 = vpop.f32.mrb[0].mxu0
  %v1186 = vadd.f32 %v1089, %v1185
  %v1187 = vpop.f32.mrb[0].mxu0
  %1188 = vmatprep.mubr.bf16.mxu0 %v455
  %1189 = vmatmul.mubr.bf16.gmra.mrb[0].mxu0 %v454
  %v1190 = vpop.f32.mrb[0].mxu0
  %v1191 = vadd.f32 %v1094, %v1190
  %v1192 = vpop.f32.mrb[0].mxu0
  %v1193 = vpop.f32.mrb[0].mxu0
  %v1194 = vadd.f32 %v1097, %v1193
  %v1195 = vpop.f32.mrb[0].mxu0
  %1196 = vmatprep.mubr.bf16.mxu0 %v463
  %1197 = vmatmul.mubr.bf16.gmra.mrb[0].mxu0 %v462
  %v1198 = vpop.f32.mrb[0].mxu0
  %v1199 = vadd.f32 %v1102, %v1198
  %v1200 = vpop.f32.mrb[0].mxu0
  %v1201 = vpop.f32.mrb[0].mxu0
  %v1202 = vadd.f32 %v1105, %v1201
  %v1203 = vpop.f32.mrb[0].mxu0
  %1204 = vdwg.mxu0
  %1205 = vmatprep.subr.bf16.mxu0 0
  %1206 = vmatpush1.bf16.msra.mxu0 %v834
  %1207 = vmatprep.subr.bf16.mxu0 0
  %1208 = vmatpush1.bf16.msra.mxu0 %v835
  %1209 = vmatprep.subr.bf16.mxu0 0
  %1210 = vmatpush1.bf16.msra.mxu0 %v836
  %1211 = vmatprep.subr.bf16.mxu0 0
  %1212 = vmatpush1.bf16.msra.mxu0 %v837
  %1213 = vmatprep.subr.bf16.mxu0 0
  %1214 = vmatpush1.bf16.msra.mxu0 %v838
  %1215 = vmatprep.subr.bf16.mxu0 0
  %1216 = vmatpush1.bf16.msra.mxu0 %v839
  %1217 = vmatprep.subr.bf16.mxu0 0
  %1218 = vmatpush1.bf16.msra.mxu0 %v840
  %1219 = vmatprep.subr.bf16.mxu0 0
  %1220 = vmatpush1.bf16.msra.mxu0 %v841
  %1221 = vmatprep.subr.bf16.mxu0 0
  %1222 = vmatpush1.bf16.msra.mxu0 %v842
  %1223 = vmatprep.subr.bf16.mxu0 0
  %1224 = vmatpush1.bf16.msra.mxu0 %v843
  %1225 = vmatprep.subr.bf16.mxu0 0
  %1226 = vmatpush1.bf16.msra.mxu0 %v844
  %1227 = vmatprep.subr.bf16.mxu0 0
  %1228 = vmatpush1.bf16.msra.mxu0 %v845
  %1229 = vmatprep.subr.bf16.mxu0 0
  %1230 = vmatpush1.bf16.msra.mxu0 %v846
  %1231 = vmatprep.subr.bf16.mxu0 0
  %1232 = vmatpush1.bf16.msra.mxu0 %v847
  %1233 = vmatprep.subr.bf16.mxu0 0
  %1234 = vmatpush1.bf16.msra.mxu0 %v848
  %1235 = vmatprep.subr.bf16.mxu0 0
  %1236 = vmatpush1.bf16.msra.mxu0 %v849
  %1237 = vmatprep.mubr.bf16.mxu0 %v409
  %1238 = vmatmul.mubr.bf16.gmra.mrb[0].mxu0 %v408
  %v1239 = vpop.f32.mrb[0].mxu0
  %v1240 = vadd.f32 %v1143, %v1239
  %v1241 = vpop.f32.mrb[0].mxu0
  %v1242 = vpop.f32.mrb[0].mxu0
  %v1243 = vadd.f32 %v1146, %v1242
  %v1244 = vpop.f32.mrb[0].mxu0
  %1245 = vmatprep.mubr.bf16.mxu0 %v417
  %1246 = vmatmul.mubr.bf16.gmra.mrb[0].mxu0 %v416
  %v1247 = vpop.f32.mrb[0].mxu0
  %v1248 = vadd.f32 %v1151, %v1247
  %v1249 = vpop.f32.mrb[0].mxu0
  %v1250 = vpop.f32.mrb[0].mxu0
  %v1251 = vadd.f32 %v1154, %v1250
  %v1252 = vpop.f32.mrb[0].mxu0
  %1253 = vmatprep.mubr.bf16.mxu0 %v425
  %1254 = vmatmul.mubr.bf16.gmra.mrb[0].mxu0 %v424
  %v1255 = vpop.f32.mrb[0].mxu0
  %v1256 = vadd.f32 %v1159, %v1255
  %v1257 = vpop.f32.mrb[0].mxu0
  %v1258 = vpop.f32.mrb[0].mxu0
  %v1259 = vadd.f32 %v1162, %v1258
  %v1260 = vpop.f32.mrb[0].mxu0
  %1261 = vmatprep.mubr.bf16.mxu0 %v433
  %1262 = vmatmul.mubr.bf16.gmra.mrb[0].mxu0 %v432
  %v1263 = vpop.f32.mrb[0].mxu0
  %v1264 = vadd.f32 %v1167, %v1263
  %v1265 = vpop.f32.mrb[0].mxu0
  %v1266 = vpop.f32.mrb[0].mxu0
  %v1267 = vadd.f32 %v1170, %v1266
  %v1268 = vpop.f32.mrb[0].mxu0
  %1269 = vmatprep.mubr.bf16.mxu0 %v441
  %1270 = vmatmul.mubr.bf16.gmra.mrb[0].mxu0 %v440
  %v1271 = vpop.f32.mrb[0].mxu0
  %v1272 = vadd.f32 %v1175, %v1271
  %v1273 = vpop.f32.mrb[0].mxu0
  %v1274 = vpop.f32.mrb[0].mxu0
  %v1275 = vadd.f32 %v1178, %v1274
  %v1276 = vpop.f32.mrb[0].mxu0
  %1277 = vmatprep.mubr.bf16.mxu0 %v449
  %1278 = vmatmul.mubr.bf16.gmra.mrb[0].mxu0 %v448
  %v1279 = vpop.f32.mrb[0].mxu0
  %v1280 = vadd.f32 %v1183, %v1279
  %v1281 = vpop.f32.mrb[0].mxu0
  %v1282 = vpop.f32.mrb[0].mxu0
  %v1283 = vadd.f32 %v1186, %v1282
  %v1284 = vpop.f32.mrb[0].mxu0
  %1285 = vmatprep.mubr.bf16.mxu0 %v457
  %1286 = vmatmul.mubr.bf16.gmra.mrb[0].mxu0 %v456
  %v1287 = vpop.f32.mrb[0].mxu0
  %v1288 = vadd.f32 %v1191, %v1287
  %v1289 = vpop.f32.mrb[0].mxu0
  %v1290 = vpop.f32.mrb[0].mxu0
  %v1291 = vadd.f32 %v1194, %v1290
  %v1292 = vpop.f32.mrb[0].mxu0
  %1293 = vmatprep.mubr.bf16.mxu0 %v465
  %1294 = vmatmul.mubr.bf16.gmra.mrb[0].mxu0 %v464
  %v1295 = vpop.f32.mrb[0].mxu0
  %v1296 = vadd.f32 %v1199, %v1295
  %v1297 = vpop.f32.mrb[0].mxu0
  %v1298 = vpop.f32.mrb[0].mxu0
  %v1299 = vadd.f32 %v1202, %v1298
  %v1300 = vpop.f32.mrb[0].mxu0
  %1301 = vdwg.mxu0
  %v1302 = vadd.f32 %v1240, %v1243
  %v1303 = vadd.f32 %v1302, %v1248
  %v1304 = vadd.f32 %v1303, %v1251
  %v1305 = vadd.f32 %v1304, %v1256
  %v1306 = vadd.f32 %v1305, %v1259
  %v1307 = vadd.f32 %v1306, %v1264
  %v1308 = vadd.f32 %v1307, %v1267
  %v1309 = vadd.f32 %v1308, %v1272
  %v1310 = vadd.f32 %v1309, %v1275
  %v1311 = vadd.f32 %v1310, %v1280
  %v1312 = vadd.f32 %v1311, %v1283
  %v1313 = vadd.f32 %v1312, %v1288
  %v1314 = vadd.f32 %v1313, %v1291
  %v1315 = vadd.f32 %v1314, %v1296
  %v1316 = vadd.f32 %v1315, %v1299
  %v1317 = vrot.slane %v1316, 4
  %v1318 = vadd.f32 %v1316, %v1317
  %v1319 = vrot.slane %v1318, 2
  %v1320 = vadd.f32 %v1318, %v1319
  %v1321 = vrot.slane %v1320, 1
  %v1322 = vadd.f32 %v1320, %v1321
  %v1323 = vmul.f32 %v1322, 0.0078125
  %v1324 = vmul.f32 %v1240, %v1240
  %v1325 = vmul.f32 %v1243, %v1243
  %v1326 = vmul.f32 %v1248, %v1248
  %v1327 = vmul.f32 %v1251, %v1251
  %v1328 = vmul.f32 %v1256, %v1256
  %v1329 = vmul.f32 %v1259, %v1259
  %v1330 = vmul.f32 %v1264, %v1264
  %v1331 = vmul.f32 %v1267, %v1267
  %v1332 = vmul.f32 %v1272, %v1272
  %v1333 = vmul.f32 %v1275, %v1275
  %v1334 = vmul.f32 %v1280, %v1280
  %v1335 = vmul.f32 %v1283, %v1283
  %v1336 = vmul.f32 %v1288, %v1288
  %v1337 = vmul.f32 %v1291, %v1291
  %v1338 = vmul.f32 %v1296, %v1296
  %v1339 = vmul.f32 %v1299, %v1299
  %v1340 = vadd.f32 %v1324, %v1325
  %v1341 = vadd.f32 %v1340, %v1326
  %v1342 = vadd.f32 %v1341, %v1327
  %v1343 = vadd.f32 %v1342, %v1328
  %v1344 = vadd.f32 %v1343, %v1329
  %v1345 = vadd.f32 %v1344, %v1330
  %v1346 = vadd.f32 %v1345, %v1331
  %v1347 = vadd.f32 %v1346, %v1332
  %v1348 = vadd.f32 %v1347, %v1333
  %v1349 = vadd.f32 %v1348, %v1334
  %v1350 = vadd.f32 %v1349, %v1335
  %v1351 = vadd.f32 %v1350, %v1336
  %v1352 = vadd.f32 %v1351, %v1337
  %v1353 = vadd.f32 %v1352, %v1338
  %v1354 = vadd.f32 %v1353, %v1339
  %v1355 = vrot.slane %v1354, 4
  %v1356 = vadd.f32 %v1354, %v1355
  %v1357 = vrot.slane %v1356, 2
  %v1358 = vadd.f32 %v1356, %v1357
  %v1359 = vrot.slane %v1358, 1
  %v1360 = vadd.f32 %v1358, %v1359
  %v1361 = vmul.f32 %v1360, 0.0078125
  %v1362 = vmul.f32 %v1323, %v1323
  %v1363 = vsub.f32 %v1361, %v1362
  %v1364 = vmax.f32 %v1363, 0.0
  %v1365 = vld [vmem:[%s2] sm:$0x1]
  %v1366 = vadd.f32 %v1364, 1e-05
  %v1367 = vrsqrt.pop %v1366
  %v1368 = vmul.f32 %v1365, %v1367
  %v1369 = vld [vmem:[%s3] sm:$0x1]
  %v1370 = vmul.f32 %v1323, %v1368
  %v1371 = vsub.f32 %v1369, %v1370
  %v1373 = vlaneseq
  %v1374 = vshrl.u32 %v1373, 7
  %v1375 = vsub.s32 0, %v1374
  %v1376 = vrot.slane %v1368, %v1375
  %v1378 = vmul.f32 %v1240, %v1376
  %v1379 = vmul.f32 %v1243, %v1376
  %v1380 = vmul.f32 %v1248, %v1376
  %v1381 = vmul.f32 %v1251, %v1376
  %v1382 = vmul.f32 %v1256, %v1376
  %v1383 = vmul.f32 %v1259, %v1376
  %v1384 = vmul.f32 %v1264, %v1376
  %v1385 = vmul.f32 %v1267, %v1376
  %v1386 = vmul.f32 %v1272, %v1376
  %v1387 = vmul.f32 %v1275, %v1376
  %v1388 = vmul.f32 %v1280, %v1376
  %v1389 = vmul.f32 %v1283, %v1376
  %v1390 = vmul.f32 %v1288, %v1376
  %v1391 = vmul.f32 %v1291, %v1376
  %v1392 = vmul.f32 %v1296, %v1376
  %v1393 = vmul.f32 %v1299, %v1376
  %v1395 = vlaneseq
  %v1396 = vshrl.u32 %v1395, 7
  %v1397 = vsub.s32 0, %v1396
  %v1398 = vrot.slane %v1371, %v1397
  %v1400 = vadd.f32 %v1378, %v1398
  %v1401 = vadd.f32 %v1379, %v1398
  %v1402 = vadd.f32 %v1380, %v1398
  %v1403 = vadd.f32 %v1381, %v1398
  %v1404 = vadd.f32 %v1382, %v1398
  %v1405 = vadd.f32 %v1383, %v1398
  %v1406 = vadd.f32 %v1384, %v1398
  %v1407 = vadd.f32 %v1385, %v1398
  %v1408 = vadd.f32 %v1386, %v1398
  %v1409 = vadd.f32 %v1387, %v1398
  %v1410 = vadd.f32 %v1388, %v1398
  %v1411 = vadd.f32 %v1389, %v1398
  %v1412 = vadd.f32 %v1390, %v1398
  %v1413 = vadd.f32 %v1391, %v1398
  %v1414 = vadd.f32 %v1392, %v1398
  %v1415 = vadd.f32 %v1393, %v1398
  %v1416 = vmax.f32 %v1400, 0.0
  %v1417 = vmax.f32 %v1401, 0.0
  %v1418 = vmax.f32 %v1402, 0.0
  %v1419 = vmax.f32 %v1403, 0.0
  %v1420 = vmax.f32 %v1404, 0.0
  %v1421 = vmax.f32 %v1405, 0.0
  %v1422 = vmax.f32 %v1406, 0.0
  %v1423 = vmax.f32 %v1407, 0.0
  %v1424 = vmax.f32 %v1408, 0.0
  %v1425 = vmax.f32 %v1409, 0.0
  %v1426 = vmax.f32 %v1410, 0.0
  %v1427 = vmax.f32 %v1411, 0.0
  %v1428 = vmax.f32 %v1412, 0.0
  %v1429 = vmax.f32 %v1413, 0.0
  %v1430 = vmax.f32 %v1414, 0.0
  %v1431 = vmax.f32 %v1415, 0.0
  %v1432 = vpack.c.bf16 %v1417, %v1416
  %v1433 = vpack.c.bf16 %v1419, %v1418
  %v1434 = vpack.c.bf16 %v1421, %v1420
  %v1435 = vpack.c.bf16 %v1423, %v1422
  %v1436 = vpack.c.bf16 %v1425, %v1424
  %v1437 = vpack.c.bf16 %v1427, %v1426
  %v1438 = vpack.c.bf16 %v1429, %v1428
  %v1439 = vpack.c.bf16 %v1431, %v1430
  %v1448 = vunpack.c.l.b16 %v1432
  %v1449 = vunpack.c.h.b16 %v1432
  %v1450 = vunpack.c.l.b16 %v1433
  %v1451 = vunpack.c.h.b16 %v1433
  %v1452 = vunpack.c.l.b16 %v1434
  %v1453 = vunpack.c.h.b16 %v1434
  %v1454 = vunpack.c.l.b16 %v1435
  %v1455 = vunpack.c.h.b16 %v1435
  %v1456 = vunpack.c.l.b16 %v1436
  %v1457 = vunpack.c.h.b16 %v1436
  %v1458 = vunpack.c.l.b16 %v1437
  %v1459 = vunpack.c.h.b16 %v1437
  %v1460 = vunpack.c.l.b16 %v1438
  %v1461 = vunpack.c.h.b16 %v1438
  %v1462 = vunpack.c.l.b16 %v1439
  %v1463 = vunpack.c.h.b16 %v1439
  %v1464 = vpack.c.b16 %v1448, %v1448
  %v1465 = vpack.c.b16 %v1449, %v1449
  %v1466 = vpack.c.b16 %v1450, %v1450
  %v1467 = vpack.c.b16 %v1451, %v1451
  %v1468 = vpack.c.b16 %v1452, %v1452
  %v1469 = vpack.c.b16 %v1453, %v1453
  %v1470 = vpack.c.b16 %v1454, %v1454
  %v1471 = vpack.c.b16 %v1455, %v1455
  %v1472 = vpack.c.b16 %v1456, %v1456
  %v1473 = vpack.c.b16 %v1457, %v1457
  %v1474 = vpack.c.b16 %v1458, %v1458
  %v1475 = vpack.c.b16 %v1459, %v1459
  %v1476 = vpack.c.b16 %v1460, %v1460
  %v1477 = vpack.c.b16 %v1461, %v1461
  %v1478 = vpack.c.b16 %v1462, %v1462
  %v1479 = vpack.c.b16 %v1463, %v1463
  %1496 = vst [vmem:[%s4] sm:$0xf] %v1464
  %1497 = vst [vmem:[%s4 + $0x4] sm:$0xf] %v1465
  %1498 = vst [vmem:[%s4 + $0x8] sm:$0xf] %v1466
  %1499 = vst [vmem:[%s4 + $0xc] sm:$0xf] %v1467
  %1500 = vst [vmem:[%s4 + $0x10] sm:$0xf] %v1468
  %1501 = vst [vmem:[%s4 + $0x14] sm:$0xf] %v1469
  %1502 = vst [vmem:[%s4 + $0x18] sm:$0xf] %v1470
  %1503 = vst [vmem:[%s4 + $0x1c] sm:$0xf] %v1471
  %1504 = vst [vmem:[%s4 + $0x20] sm:$0xf] %v1472
  %1505 = vst [vmem:[%s4 + $0x24] sm:$0xf] %v1473
  %1506 = vst [vmem:[%s4 + $0x28] sm:$0xf] %v1474
  %1507 = vst [vmem:[%s4 + $0x2c] sm:$0xf] %v1475
  %1508 = vst [vmem:[%s4 + $0x30] sm:$0xf] %v1476
  %1509 = vst [vmem:[%s4 + $0x34] sm:$0xf] %v1477
  %1510 = vst [vmem:[%s4 + $0x38] sm:$0xf] %v1478
  %1511 = vst [vmem:[%s4 + $0x3c] sm:$0xf] %v1479
  // Predicated region
  $region18: #{discriminator_forward.7} parent=0 // pred_check
    _
  $region19: #{discriminator_forward.7} parent=0 // pred_check_branch
    %1513 = sbr.rel (0) target = $region21
  $region20: #{discriminator_forward.7} parent=0 // pred_region
    _
  $region21: #{discriminator_forward.7} parent=0 // pred_fallthru
    _
  // Predicated region
  $region22: #{discriminator_forward.7} parent=0 // pred_check
    _
  $region23: #{discriminator_forward.7} parent=0 // pred_check_branch
    %1515 = sbr.rel (0) target = $region25
  $region24: #{discriminator_forward.7} parent=0 // pred_region
    _
  $region25: #{discriminator_forward.7} parent=0 // pred_fallthru
    _

// kernel: discriminator_forward.8
$region0: #{discriminator_forward.8}
  #allocation0 [shape = 'u32[]', space=smem, size = 0x4, offset = 0x4, fixed_abs, tag = 'smem constant byte address 0x4 - core index']
  #allocation1 [shape = 'u32[144,128]{1,0:T(1,128)}', space=vmem, size = 0x12000, scoped, tag = 'internal scratch']
  %s0 = inlined_call_operand.vmem [shape: bf16[32,2048], index: 0, kind: input, shape index: {}]
  %s1 = inlined_call_operand.vmem [shape: bf16[2048,128], index: 1, kind: input, shape index: {}]
  %s2 = inlined_call_operand.vmem [shape: f32[1,128], index: 2, kind: input, shape index: {}]
  %s3 = inlined_call_operand.vmem [shape: f32[1,128], index: 3, kind: input, shape index: {}]
  %s4 = inlined_call_operand.vmem [shape: bf16[32,128], index: 4, kind: output, shape index: {}]
  %s5 = sld [smem:[#allocation0]]
  $region26: #{discriminator_forward.8} parent=0
    _
  %s7 = ssub.s32 1, %s5
  %s8 = scalar_select 0, %s7, %s5
  // Predicated region
  $region2: #{discriminator_forward.8} parent=0 // pred_check
    _
  $region3: #{discriminator_forward.8} parent=0 // pred_check_branch
    %10 = sbr.rel (0) target = $region5
  $region4: #{discriminator_forward.8} parent=0 // pred_region
    _
  $region5: #{discriminator_forward.8} parent=0 // pred_fallthru
    _
  // Predicated region
  $region6: #{discriminator_forward.8} parent=0 // pred_check
    _
  $region7: #{discriminator_forward.8} parent=0 // pred_check_branch
    %12 = sbr.rel (0) target = $region9
  $region8: #{discriminator_forward.8} parent=0 // pred_region
    _
  $region9: #{discriminator_forward.8} parent=0 // pred_fallthru
    _
  // Predicated region
  $region10: #{discriminator_forward.8} parent=0 // pred_check
    _
  $region11: #{discriminator_forward.8} parent=0 // pred_check_branch
    %14 = sbr.rel (0) target = $region13
  $region12: #{discriminator_forward.8} parent=0 // pred_region
    _
  $region13: #{discriminator_forward.8} parent=0 // pred_fallthru
    _
  // Predicated region
  $region14: #{discriminator_forward.8} parent=0 // pred_check
    _
  $region15: #{discriminator_forward.8} parent=0 // pred_check_branch
    %16 = sbr.rel (0) target = $region17
  $region16: #{discriminator_forward.8} parent=0 // pred_region
    _
  $region17: #{discriminator_forward.8} parent=0 // pred_fallthru
    _
  %v18 = vld [vmem:[%s0] sm:$0xff]
  %v19 = vld [vmem:[%s0 + $0x8] sm:$0xff]
  %v20 = vld [vmem:[%s0 + $0x10] sm:$0xff]
  %v21 = vld [vmem:[%s0 + $0x18] sm:$0xff]
  %v22 = vld [vmem:[%s0 + $0x20] sm:$0xff]
  %v23 = vld [vmem:[%s0 + $0x28] sm:$0xff]
  %v24 = vld [vmem:[%s0 + $0x30] sm:$0xff]
  %v25 = vld [vmem:[%s0 + $0x38] sm:$0xff]
  %v26 = vld [vmem:[%s0 + $0x40] sm:$0xff]
  %v27 = vld [vmem:[%s0 + $0x48] sm:$0xff]
  %v28 = vld [vmem:[%s0 + $0x50] sm:$0xff]
  %v29 = vld [vmem:[%s0 + $0x58] sm:$0xff]
  %v30 = vld [vmem:[%s0 + $0x60] sm:$0xff]
  %v31 = vld [vmem:[%s0 + $0x68] sm:$0xff]
  %v32 = vld [vmem:[%s0 + $0x70] sm:$0xff]
  %v33 = vld [vmem:[%s0 + $0x78] sm:$0xff]
  %v34 = vld [vmem:[%s0 + $0x80] sm:$0xff]
  %v35 = vld [vmem:[%s0 + $0x88] sm:$0xff]
  %v36 = vld [vmem:[%s0 + $0x90] sm:$0xff]
  %v37 = vld [vmem:[%s0 + $0x98] sm:$0xff]
  %v38 = vld [vmem:[%s0 + $0xa0] sm:$0xff]
  %v39 = vld [vmem:[%s0 + $0xa8] sm:$0xff]
  %v40 = vld [vmem:[%s0 + $0xb0] sm:$0xff]
  %v41 = vld [vmem:[%s0 + $0xb8] sm:$0xff]
  %v42 = vld [vmem:[%s0 + $0xc0] sm:$0xff]
  %v43 = vld [vmem:[%s0 + $0xc8] sm:$0xff]
  %v44 = vld [vmem:[%s0 + $0xd0] sm:$0xff]
  %v45 = vld [vmem:[%s0 + $0xd8] sm:$0xff]
  %v46 = vld [vmem:[%s0 + $0xe0] sm:$0xff]
  %v47 = vld [vmem:[%s0 + $0xe8] sm:$0xff]
  %v48 = vld [vmem:[%s0 + $0xf0] sm:$0xff]
  %v49 = vld [vmem:[%s0 + $0xf8] sm:$0xff]
  %v50 = vld [vmem:[%s1] sm:$0xf]
  %v51 = vld [vmem:[%s1 + $0x4] sm:$0xf]
  %v52 = vld [vmem:[%s1 + $0x8] sm:$0xf]
  %v53 = vld [vmem:[%s1 + $0xc] sm:$0xf]
  %v54 = vld [vmem:[%s1 + $0x10] sm:$0xf]
  %v55 = vld [vmem:[%s1 + $0x14] sm:$0xf]
  %v56 = vld [vmem:[%s1 + $0x18] sm:$0xf]
  %v57 = vld [vmem:[%s1 + $0x1c] sm:$0xf]
  %v58 = vld [vmem:[%s1 + $0x20] sm:$0xf]
  %v59 = vld [vmem:[%s1 + $0x24] sm:$0xf]
  %v60 = vld [vmem:[%s1 + $0x28] sm:$0xf]
  %v61 = vld [vmem:[%s1 + $0x2c] sm:$0xf]
  %v62 = vld [vmem:[%s1 + $0x30] sm:$0xf]
  %v63 = vld [vmem:[%s1 + $0x34] sm:$0xf]
  %v64 = vld [vmem:[%s1 + $0x38] sm:$0xf]
  %v65 = vld [vmem:[%s1 + $0x3c] sm:$0xf]
  %v66 = vld [vmem:[%s1 + $0x40] sm:$0xf]
  %v67 = vld [vmem:[%s1 + $0x44] sm:$0xf]
  %v68 = vld [vmem:[%s1 + $0x48] sm:$0xf]
  %v69 = vld [vmem:[%s1 + $0x4c] sm:$0xf]
  %v70 = vld [vmem:[%s1 + $0x50] sm:$0xf]
  %v71 = vld [vmem:[%s1 + $0x54] sm:$0xf]
  %v72 = vld [vmem:[%s1 + $0x58] sm:$0xf]
  %v73 = vld [vmem:[%s1 + $0x5c] sm:$0xf]
  %v74 = vld [vmem:[%s1 + $0x60] sm:$0xf]
  %v75 = vld [vmem:[%s1 + $0x64] sm:$0xf]
  %v76 = vld [vmem:[%s1 + $0x68] sm:$0xf]
  %v77 = vld [vmem:[%s1 + $0x6c] sm:$0xf]
  %v78 = vld [vmem:[%s1 + $0x70] sm:$0xf]
  %v79 = vld [vmem:[%s1 + $0x74] sm:$0xf]
  %v80 = vld [vmem:[%s1 + $0x78] sm:$0xf]
  %v81 = vld [vmem:[%s1 + $0x7c] sm:$0xf]
  %v82 = vld [vmem:[%s1 + $0x80] sm:$0xf]
  %v83 = vld [vmem:[%s1 + $0x84] sm:$0xf]
  %v84 = vld [vmem:[%s1 + $0x88] sm:$0xf]
  %v85 = vld [vmem:[%s1 + $0x8c] sm:$0xf]
  %v86 = vld [vmem:[%s1 + $0x90] sm:$0xf]
  %v87 = vld [vmem:[%s1 + $0x94] sm:$0xf]
  %v88 = vld [vmem:[%s1 + $0x98] sm:$0xf]
  %v89 = vld [vmem:[%s1 + $0x9c] sm:$0xf]
  %v90 = vld [vmem:[%s1 + $0xa0] sm:$0xf]
  %v91 = vld [vmem:[%s1 + $0xa4] sm:$0xf]
  %v92 = vld [vmem:[%s1 + $0xa8] sm:$0xf]
  %v93 = vld [vmem:[%s1 + $0xac] sm:$0xf]
  %v94 = vld [vmem:[%s1 + $0xb0] sm:$0xf]
  %v95 = vld [vmem:[%s1 + $0xb4] sm:$0xf]
  %v96 = vld [vmem:[%s1 + $0xb8] sm:$0xf]
  %v97 = vld [vmem:[%s1 + $0xbc] sm:$0xf]
  %v98 = vld [vmem:[%s1 + $0xc0] sm:$0xf]
  %v99 = vld [vmem:[%s1 + $0xc4] sm:$0xf]
  %v100 = vld [vmem:[%s1 + $0xc8] sm:$0xf]
  %v101 = vld [vmem:[%s1 + $0xcc] sm:$0xf]
  %v102 = vld [vmem:[%s1 + $0xd0] sm:$0xf]
  %v103 = vld [vmem:[%s1 + $0xd4] sm:$0xf]
  %v104 = vld [vmem:[%s1 + $0xd8] sm:$0xf]
  %v105 = vld [vmem:[%s1 + $0xdc] sm:$0xf]
  %v106 = vld [vmem:[%s1 + $0xe0] sm:$0xf]
  %v107 = vld [vmem:[%s1 + $0xe4] sm:$0xf]
  %v108 = vld [vmem:[%s1 + $0xe8] sm:$0xf]
  %v109 = vld [vmem:[%s1 + $0xec] sm:$0xf]
  %v110 = vld [vmem:[%s1 + $0xf0] sm:$0xf]
  %v111 = vld [vmem:[%s1 + $0xf4] sm:$0xf]
  %v112 = vld [vmem:[%s1 + $0xf8] sm:$0xf]
  %v113 = vld [vmem:[%s1 + $0xfc] sm:$0xf]
  %v114 = vld [vmem:[%s1 + $0x100] sm:$0xf]
  %v115 = vld [vmem:[%s1 + $0x104] sm:$0xf]
  %v116 = vld [vmem:[%s1 + $0x108] sm:$0xf]
  %v117 = vld [vmem:[%s1 + $0x10c] sm:$0xf]
  %v118 = vld [vmem:[%s1 + $0x110] sm:$0xf]
  %v119 = vld [vmem:[%s1 + $0x114] sm:$0xf]
  %v120 = vld [vmem:[%s1 + $0x118] sm:$0xf]
  %v121 = vld [vmem:[%s1 + $0x11c] sm:$0xf]
  %v122 = vld [vmem:[%s1 + $0x120] sm:$0xf]
  %v123 = vld [vmem:[%s1 + $0x124] sm:$0xf]
  %v124 = vld [vmem:[%s1 + $0x128] sm:$0xf]
  %v125 = vld [vmem:[%s1 + $0x12c] sm:$0xf]
  %v126 = vld [vmem:[%s1 + $0x130] sm:$0xf]
  %v127 = vld [vmem:[%s1 + $0x134] sm:$0xf]
  %v128 = vld [vmem:[%s1 + $0x138] sm:$0xf]
  %v129 = vld [vmem:[%s1 + $0x13c] sm:$0xf]
  %v130 = vld [vmem:[%s1 + $0x140] sm:$0xf]
  %v131 = vld [vmem:[%s1 + $0x144] sm:$0xf]
  %v132 = vld [vmem:[%s1 + $0x148] sm:$0xf]
  %v133 = vld [vmem:[%s1 + $0x14c] sm:$0xf]
  %v134 = vld [vmem:[%s1 + $0x150] sm:$0xf]
  %v135 = vld [vmem:[%s1 + $0x154] sm:$0xf]
  %v136 = vld [vmem:[%s1 + $0x158] sm:$0xf]
  %v137 = vld [vmem:[%s1 + $0x15c] sm:$0xf]
  %v138 = vld [vmem:[%s1 + $0x160] sm:$0xf]
  %v139 = vld [vmem:[%s1 + $0x164] sm:$0xf]
  %v140 = vld [vmem:[%s1 + $0x168] sm:$0xf]
  %v141 = vld [vmem:[%s1 + $0x16c] sm:$0xf]
  %v142 = vld [vmem:[%s1 + $0x170] sm:$0xf]
  %v143 = vld [vmem:[%s1 + $0x174] sm:$0xf]
  %v144 = vld [vmem:[%s1 + $0x178] sm:$0xf]
  %v145 = vld [vmem:[%s1 + $0x17c] sm:$0xf]
  %v146 = vld [vmem:[%s1 + $0x180] sm:$0xf]
  %v147 = vld [vmem:[%s1 + $0x184] sm:$0xf]
  %v148 = vld [vmem:[%s1 + $0x188] sm:$0xf]
  %v149 = vld [vmem:[%s1 + $0x18c] sm:$0xf]
  %v150 = vld [vmem:[%s1 + $0x190] sm:$0xf]
  %v151 = vld [vmem:[%s1 + $0x194] sm:$0xf]
  %v152 = vld [vmem:[%s1 + $0x198] sm:$0xf]
  %v153 = vld [vmem:[%s1 + $0x19c] sm:$0xf]
  %v154 = vld [vmem:[%s1 + $0x1a0] sm:$0xf]
  %v155 = vld [vmem:[%s1 + $0x1a4] sm:$0xf]
  %v156 = vld [vmem:[%s1 + $0x1a8] sm:$0xf]
  %v157 = vld [vmem:[%s1 + $0x1ac] sm:$0xf]
  %v158 = vld [vmem:[%s1 + $0x1b0] sm:$0xf]
  %v159 = vld [vmem:[%s1 + $0x1b4] sm:$0xf]
  %v160 = vld [vmem:[%s1 + $0x1b8] sm:$0xf]
  %v161 = vld [vmem:[%s1 + $0x1bc] sm:$0xf]
  %v162 = vld [vmem:[%s1 + $0x1c0] sm:$0xf]
  %v163 = vld [vmem:[%s1 + $0x1c4] sm:$0xf]
  %v164 = vld [vmem:[%s1 + $0x1c8] sm:$0xf]
  %v165 = vld [vmem:[%s1 + $0x1cc] sm:$0xf]
  %v166 = vld [vmem:[%s1 + $0x1d0] sm:$0xf]
  %v167 = vld [vmem:[%s1 + $0x1d4] sm:$0xf]
  %v168 = vld [vmem:[%s1 + $0x1d8] sm:$0xf]
  %v169 = vld [vmem:[%s1 + $0x1dc] sm:$0xf]
  %v170 = vld [vmem:[%s1 + $0x1e0] sm:$0xf]
  %v171 = vld [vmem:[%s1 + $0x1e4] sm:$0xf]
  %v172 = vld [vmem:[%s1 + $0x1e8] sm:$0xf]
  %v173 = vld [vmem:[%s1 + $0x1ec] sm:$0xf]
  %v174 = vld [vmem:[%s1 + $0x1f0] sm:$0xf]
  %v175 = vld [vmem:[%s1 + $0x1f4] sm:$0xf]
  %v176 = vld [vmem:[%s1 + $0x1f8] sm:$0xf]
  %v177 = vld [vmem:[%s1 + $0x1fc] sm:$0xf]
  %v178 = vld [vmem:[%s1 + $0x200] sm:$0xf]
  %v179 = vld [vmem:[%s1 + $0x204] sm:$0xf]
  %v180 = vld [vmem:[%s1 + $0x208] sm:$0xf]
  %v181 = vld [vmem:[%s1 + $0x20c] sm:$0xf]
  %v182 = vld [vmem:[%s1 + $0x210] sm:$0xf]
  %v183 = vld [vmem:[%s1 + $0x214] sm:$0xf]
  %v184 = vld [vmem:[%s1 + $0x218] sm:$0xf]
  %v185 = vld [vmem:[%s1 + $0x21c] sm:$0xf]
  %v186 = vld [vmem:[%s1 + $0x220] sm:$0xf]
  %v187 = vld [vmem:[%s1 + $0x224] sm:$0xf]
  %v188 = vld [vmem:[%s1 + $0x228] sm:$0xf]
  %v189 = vld [vmem:[%s1 + $0x22c] sm:$0xf]
  %v190 = vld [vmem:[%s1 + $0x230] sm:$0xf]
  %v191 = vld [vmem:[%s1 + $0x234] sm:$0xf]
  %v192 = vld [vmem:[%s1 + $0x238] sm:$0xf]
  %v193 = vld [vmem:[%s1 + $0x23c] sm:$0xf]
  %v194 = vld [vmem:[%s1 + $0x240] sm:$0xf]
  %v195 = vld [vmem:[%s1 + $0x244] sm:$0xf]
  %v196 = vld [vmem:[%s1 + $0x248] sm:$0xf]
  %v197 = vld [vmem:[%s1 + $0x24c] sm:$0xf]
  %v198 = vld [vmem:[%s1 + $0x250] sm:$0xf]
  %v199 = vld [vmem:[%s1 + $0x254] sm:$0xf]
  %v200 = vld [vmem:[%s1 + $0x258] sm:$0xf]
  %v201 = vld [vmem:[%s1 + $0x25c] sm:$0xf]
  %v202 = vld [vmem:[%s1 + $0x260] sm:$0xf]
  %v203 = vld [vmem:[%s1 + $0x264] sm:$0xf]
  %v204 = vld [vmem:[%s1 + $0x268] sm:$0xf]
  %v205 = vld [vmem:[%s1 + $0x26c] sm:$0xf]
  %v206 = vld [vmem:[%s1 + $0x270] sm:$0xf]
  %v207 = vld [vmem:[%s1 + $0x274] sm:$0xf]
  %v208 = vld [vmem:[%s1 + $0x278] sm:$0xf]
  %v209 = vld [vmem:[%s1 + $0x27c] sm:$0xf]
  %v210 = vld [vmem:[%s1 + $0x280] sm:$0xf]
  %v211 = vld [vmem:[%s1 + $0x284] sm:$0xf]
  %v212 = vld [vmem:[%s1 + $0x288] sm:$0xf]
  %v213 = vld [vmem:[%s1 + $0x28c] sm:$0xf]
  %v214 = vld [vmem:[%s1 + $0x290] sm:$0xf]
  %v215 = vld [vmem:[%s1 + $0x294] sm:$0xf]
  %v216 = vld [vmem:[%s1 + $0x298] sm:$0xf]
  %v217 = vld [vmem:[%s1 + $0x29c] sm:$0xf]
  %v218 = vld [vmem:[%s1 + $0x2a0] sm:$0xf]
  %v219 = vld [vmem:[%s1 + $0x2a4] sm:$0xf]
  %v220 = vld [vmem:[%s1 + $0x2a8] sm:$0xf]
  %v221 = vld [vmem:[%s1 + $0x2ac] sm:$0xf]
  %v222 = vld [vmem:[%s1 + $0x2b0] sm:$0xf]
  %v223 = vld [vmem:[%s1 + $0x2b4] sm:$0xf]
  %v224 = vld [vmem:[%s1 + $0x2b8] sm:$0xf]
  %v225 = vld [vmem:[%s1 + $0x2bc] sm:$0xf]
  %v226 = vld [vmem:[%s1 + $0x2c0] sm:$0xf]
  %v227 = vld [vmem:[%s1 + $0x2c4] sm:$0xf]
  %v228 = vld [vmem:[%s1 + $0x2c8] sm:$0xf]
  %v229 = vld [vmem:[%s1 + $0x2cc] sm:$0xf]
  %v230 = vld [vmem:[%s1 + $0x2d0] sm:$0xf]
  %v231 = vld [vmem:[%s1 + $0x2d4] sm:$0xf]
  %v232 = vld [vmem:[%s1 + $0x2d8] sm:$0xf]
  %v233 = vld [vmem:[%s1 + $0x2dc] sm:$0xf]
  %v234 = vld [vmem:[%s1 + $0x2e0] sm:$0xf]
  %v235 = vld [vmem:[%s1 + $0x2e4] sm:$0xf]
  %v236 = vld [vmem:[%s1 + $0x2e8] sm:$0xf]
  %v237 = vld [vmem:[%s1 + $0x2ec] sm:$0xf]
  %v238 = vld [vmem:[%s1 + $0x2f0] sm:$0xf]
  %v239 = vld [vmem:[%s1 + $0x2f4] sm:$0xf]
  %v240 = vld [vmem:[%s1 + $0x2f8] sm:$0xf]
  %v241 = vld [vmem:[%s1 + $0x2fc] sm:$0xf]
  %v242 = vld [vmem:[%s1 + $0x300] sm:$0xf]
  %v243 = vld [vmem:[%s1 + $0x304] sm:$0xf]
  %v244 = vld [vmem:[%s1 + $0x308] sm:$0xf]
  %v245 = vld [vmem:[%s1 + $0x30c] sm:$0xf]
  %v246 = vld [vmem:[%s1 + $0x310] sm:$0xf]
  %v247 = vld [vmem:[%s1 + $0x314] sm:$0xf]
  %v248 = vld [vmem:[%s1 + $0x318] sm:$0xf]
  %v249 = vld [vmem:[%s1 + $0x31c] sm:$0xf]
  %v250 = vld [vmem:[%s1 + $0x320] sm:$0xf]
  %v251 = vld [vmem:[%s1 + $0x324] sm:$0xf]
  %v252 = vld [vmem:[%s1 + $0x328] sm:$0xf]
  %v253 = vld [vmem:[%s1 + $0x32c] sm:$0xf]
  %v254 = vld [vmem:[%s1 + $0x330] sm:$0xf]
  %v255 = vld [vmem:[%s1 + $0x334] sm:$0xf]
  %v256 = vld [vmem:[%s1 + $0x338] sm:$0xf]
  %v257 = vld [vmem:[%s1 + $0x33c] sm:$0xf]
  %v258 = vld [vmem:[%s1 + $0x340] sm:$0xf]
  %v259 = vld [vmem:[%s1 + $0x344] sm:$0xf]
  %v260 = vld [vmem:[%s1 + $0x348] sm:$0xf]
  %v261 = vld [vmem:[%s1 + $0x34c] sm:$0xf]
  %v262 = vld [vmem:[%s1 + $0x350] sm:$0xf]
  %v263 = vld [vmem:[%s1 + $0x354] sm:$0xf]
  %v264 = vld [vmem:[%s1 + $0x358] sm:$0xf]
  %v265 = vld [vmem:[%s1 + $0x35c] sm:$0xf]
  %v266 = vld [vmem:[%s1 + $0x360] sm:$0xf]
  %v267 = vld [vmem:[%s1 + $0x364] sm:$0xf]
  %v268 = vld [vmem:[%s1 + $0x368] sm:$0xf]
  %v269 = vld [vmem:[%s1 + $0x36c] sm:$0xf]
  %v270 = vld [vmem:[%s1 + $0x370] sm:$0xf]
  %v271 = vld [vmem:[%s1 + $0x374] sm:$0xf]
  %v272 = vld [vmem:[%s1 + $0x378] sm:$0xf]
  %v273 = vld [vmem:[%s1 + $0x37c] sm:$0xf]
  %v274 = vld [vmem:[%s1 + $0x380] sm:$0xf]
  %v275 = vld [vmem:[%s1 + $0x384] sm:$0xf]
  %v276 = vld [vmem:[%s1 + $0x388] sm:$0xf]
  %v277 = vld [vmem:[%s1 + $0x38c] sm:$0xf]
  %v278 = vld [vmem:[%s1 + $0x390] sm:$0xf]
  %v279 = vld [vmem:[%s1 + $0x394] sm:$0xf]
  %v280 = vld [vmem:[%s1 + $0x398] sm:$0xf]
  %v281 = vld [vmem:[%s1 + $0x39c] sm:$0xf]
  %v282 = vld [vmem:[%s1 + $0x3a0] sm:$0xf]
  %v283 = vld [vmem:[%s1 + $0x3a4] sm:$0xf]
  %v284 = vld [vmem:[%s1 + $0x3a8] sm:$0xf]
  %v285 = vld [vmem:[%s1 + $0x3ac] sm:$0xf]
  %v286 = vld [vmem:[%s1 + $0x3b0] sm:$0xf]
  %v287 = vld [vmem:[%s1 + $0x3b4] sm:$0xf]
  %v288 = vld [vmem:[%s1 + $0x3b8] sm:$0xf]
  %v289 = vld [vmem:[%s1 + $0x3bc] sm:$0xf]
  %v290 = vld [vmem:[%s1 + $0x3c0] sm:$0xf]
  %v291 = vld [vmem:[%s1 + $0x3c4] sm:$0xf]
  %v292 = vld [vmem:[%s1 + $0x3c8] sm:$0xf]
  %v293 = vld [vmem:[%s1 + $0x3cc] sm:$0xf]
  %v294 = vld [vmem:[%s1 + $0x3d0] sm:$0xf]
  %v295 = vld [vmem:[%s1 + $0x3d4] sm:$0xf]
  %v296 = vld [vmem:[%s1 + $0x3d8] sm:$0xf]
  %v297 = vld [vmem:[%s1 + $0x3dc] sm:$0xf]
  %v298 = vld [vmem:[%s1 + $0x3e0] sm:$0xf]
  %v299 = vld [vmem:[%s1 + $0x3e4] sm:$0xf]
  %v300 = vld [vmem:[%s1 + $0x3e8] sm:$0xf]
  %v301 = vld [vmem:[%s1 + $0x3ec] sm:$0xf]
  %v302 = vld [vmem:[%s1 + $0x3f0] sm:$0xf]
  %v303 = vld [vmem:[%s1 + $0x3f4] sm:$0xf]
  %v304 = vld [vmem:[%s1 + $0x3f8] sm:$0xf]
  %v305 = vld [vmem:[%s1 + $0x3fc] sm:$0xf]
  %v338 = vunpack.c.l.b16 %v18
  %v339 = vunpack.c.h.b16 %v18
  %v340 = vunpack.c.l.b16 %v19
  %v341 = vunpack.c.h.b16 %v19
  %v342 = vunpack.c.l.b16 %v20
  %v343 = vunpack.c.h.b16 %v20
  %v344 = vunpack.c.l.b16 %v21
  %v345 = vunpack.c.h.b16 %v21
  %v346 = vunpack.c.l.b16 %v22
  %v347 = vunpack.c.h.b16 %v22
  %v348 = vunpack.c.l.b16 %v23
  %v349 = vunpack.c.h.b16 %v23
  %v350 = vunpack.c.l.b16 %v24
  %v351 = vunpack.c.h.b16 %v24
  %v352 = vunpack.c.l.b16 %v25
  %v353 = vunpack.c.h.b16 %v25
  %v354 = vunpack.c.l.b16 %v26
  %v355 = vunpack.c.h.b16 %v26
  %v356 = vunpack.c.l.b16 %v27
  %v357 = vunpack.c.h.b16 %v27
  %v358 = vunpack.c.l.b16 %v28
  %v359 = vunpack.c.h.b16 %v28
  %v360 = vunpack.c.l.b16 %v29
  %v361 = vunpack.c.h.b16 %v29
  %v362 = vunpack.c.l.b16 %v30
  %v363 = vunpack.c.h.b16 %v30
  %v364 = vunpack.c.l.b16 %v31
  %v365 = vunpack.c.h.b16 %v31
  %v366 = vunpack.c.l.b16 %v32
  %v367 = vunpack.c.h.b16 %v32
  %v368 = vunpack.c.l.b16 %v33
  %v369 = vunpack.c.h.b16 %v33
  %v370 = vunpack.c.l.b16 %v34
  %v371 = vunpack.c.h.b16 %v34
  %v372 = vunpack.c.l.b16 %v35
  %v373 = vunpack.c.h.b16 %v35
  %v374 = vunpack.c.l.b16 %v36
  %v375 = vunpack.c.h.b16 %v36
  %v376 = vunpack.c.l.b16 %v37
  %v377 = vunpack.c.h.b16 %v37
  %v378 = vunpack.c.l.b16 %v38
  %v379 = vunpack.c.h.b16 %v38
  %v380 = vunpack.c.l.b16 %v39
  %v381 = vunpack.c.h.b16 %v39
  %v382 = vunpack.c.l.b16 %v40
  %v383 = vunpack.c.h.b16 %v40
  %v384 = vunpack.c.l.b16 %v41
  %v385 = vunpack.c.h.b16 %v41
  %v386 = vunpack.c.l.b16 %v42
  %v387 = vunpack.c.h.b16 %v42
  %v388 = vunpack.c.l.b16 %v43
  %v389 = vunpack.c.h.b16 %v43
  %v390 = vunpack.c.l.b16 %v44
  %v391 = vunpack.c.h.b16 %v44
  %v392 = vunpack.c.l.b16 %v45
  %v393 = vunpack.c.h.b16 %v45
  %v394 = vunpack.c.l.b16 %v46
  %v395 = vunpack.c.h.b16 %v46
  %v396 = vunpack.c.l.b16 %v47
  %v397 = vunpack.c.h.b16 %v47
  %v398 = vunpack.c.l.b16 %v48
  %v399 = vunpack.c.h.b16 %v48
  %v400 = vunpack.c.l.b16 %v49
  %v401 = vunpack.c.h.b16 %v49
  %v402 = vpack.c.b16 %v354, %v338
  %v403 = vpack.c.b16 %v355, %v339
  %v404 = vpack.c.b16 %v356, %v340
  %v405 = vpack.c.b16 %v357, %v341
  %v406 = vpack.c.b16 %v358, %v342
  %v407 = vpack.c.b16 %v359, %v343
  %v408 = vpack.c.b16 %v360, %v344
  %v409 = vpack.c.b16 %v361, %v345
  %v410 = vpack.c.b16 %v362, %v346
  %v411 = vpack.c.b16 %v363, %v347
  %v412 = vpack.c.b16 %v364, %v348
  %v413 = vpack.c.b16 %v365, %v349
  %v414 = vpack.c.b16 %v366, %v350
  %v415 = vpack.c.b16 %v367, %v351
  %v416 = vpack.c.b16 %v368, %v352
  %v417 = vpack.c.b16 %v369, %v353
  %v418 = vpack.c.b16 %v386, %v370
  %v419 = vpack.c.b16 %v387, %v371
  %v420 = vpack.c.b16 %v388, %v372
  %v421 = vpack.c.b16 %v389, %v373
  %v422 = vpack.c.b16 %v390, %v374
  %v423 = vpack.c.b16 %v391, %v375
  %v424 = vpack.c.b16 %v392, %v376
  %v425 = vpack.c.b16 %v393, %v377
  %v426 = vpack.c.b16 %v394, %v378
  %v427 = vpack.c.b16 %v395, %v379
  %v428 = vpack.c.b16 %v396, %v380
  %v429 = vpack.c.b16 %v397, %v381
  %v430 = vpack.c.b16 %v398, %v382
  %v431 = vpack.c.b16 %v399, %v383
  %v432 = vpack.c.b16 %v400, %v384
  %v433 = vpack.c.b16 %v401, %v385
  %v722 = vunpack.c.l.b16 %v50
  %v723 = vunpack.c.l.b16 %v51
  %v724 = vunpack.c.l.b16 %v52
  %v725 = vunpack.c.l.b16 %v53
  %v726 = vunpack.c.l.b16 %v54
  %v727 = vunpack.c.l.b16 %v55
  %v728 = vunpack.c.l.b16 %v56
  %v729 = vunpack.c.l.b16 %v57
  %v730 = vunpack.c.l.b16 %v58
  %v731 = vunpack.c.l.b16 %v59
  %v732 = vunpack.c.l.b16 %v60
  %v733 = vunpack.c.l.b16 %v61
  %v734 = vunpack.c.l.b16 %v62
  %v735 = vunpack.c.l.b16 %v63
  %v736 = vunpack.c.l.b16 %v64
  %v737 = vunpack.c.l.b16 %v65
  %v738 = vunpack.c.l.b16 %v66
  %v739 = vunpack.c.l.b16 %v67
  %v740 = vunpack.c.l.b16 %v68
  %v741 = vunpack.c.l.b16 %v69
  %v742 = vunpack.c.l.b16 %v70
  %v743 = vunpack.c.l.b16 %v71
  %v744 = vunpack.c.l.b16 %v72
  %v745 = vunpack.c.l.b16 %v73
  %v746 = vunpack.c.l.b16 %v74
  %v747 = vunpack.c.l.b16 %v75
  %v748 = vunpack.c.l.b16 %v76
  %v749 = vunpack.c.l.b16 %v77
  %v750 = vunpack.c.l.b16 %v78
  %v751 = vunpack.c.l.b16 %v79
  %v752 = vunpack.c.l.b16 %v80
  %v753 = vunpack.c.l.b16 %v81
  %v754 = vunpack.c.l.b16 %v82
  %v755 = vunpack.c.l.b16 %v83
  %v756 = vunpack.c.l.b16 %v84
  %v757 = vunpack.c.l.b16 %v85
  %v758 = vunpack.c.l.b16 %v86
  %v759 = vunpack.c.l.b16 %v87
  %v760 = vunpack.c.l.b16 %v88
  %v761 = vunpack.c.l.b16 %v89
  %v762 = vunpack.c.l.b16 %v90
  %v763 = vunpack.c.l.b16 %v91
  %v764 = vunpack.c.l.b16 %v92
  %v765 = vunpack.c.l.b16 %v93
  %v766 = vunpack.c.l.b16 %v94
  %v767 = vunpack.c.l.b16 %v95
  %v768 = vunpack.c.l.b16 %v96
  %v769 = vunpack.c.l.b16 %v97
  %v770 = vunpack.c.l.b16 %v98
  %v771 = vunpack.c.l.b16 %v99
  %v772 = vunpack.c.l.b16 %v100
  %v773 = vunpack.c.l.b16 %v101
  %v774 = vunpack.c.l.b16 %v102
  %v775 = vunpack.c.l.b16 %v103
  %v776 = vunpack.c.l.b16 %v104
  %v777 = vunpack.c.l.b16 %v105
  %v778 = vunpack.c.l.b16 %v106
  %v779 = vunpack.c.l.b16 %v107
  %v780 = vunpack.c.l.b16 %v108
  %v781 = vunpack.c.l.b16 %v109
  %v782 = vunpack.c.l.b16 %v110
  %v783 = vunpack.c.l.b16 %v111
  %v784 = vunpack.c.l.b16 %v112
  %v785 = vunpack.c.l.b16 %v113
  %v786 = vunpack.c.l.b16 %v114
  %v787 = vunpack.c.l.b16 %v115
  %v788 = vunpack.c.l.b16 %v116
  %v789 = vunpack.c.l.b16 %v117
  %v790 = vunpack.c.l.b16 %v118
  %v791 = vunpack.c.l.b16 %v119
  %v792 = vunpack.c.l.b16 %v120
  %v793 = vunpack.c.l.b16 %v121
  %v794 = vunpack.c.l.b16 %v122
  %v795 = vunpack.c.l.b16 %v123
  %v796 = vunpack.c.l.b16 %v124
  %v797 = vunpack.c.l.b16 %v125
  %v798 = vunpack.c.l.b16 %v126
  %v799 = vunpack.c.l.b16 %v127
  %v800 = vunpack.c.l.b16 %v128
  %v801 = vunpack.c.l.b16 %v129
  %v802 = vunpack.c.l.b16 %v130
  %v803 = vunpack.c.l.b16 %v131
  %v804 = vunpack.c.l.b16 %v132
  %v805 = vunpack.c.l.b16 %v133
  %v806 = vunpack.c.l.b16 %v134
  %v807 = vunpack.c.l.b16 %v135
  %v808 = vunpack.c.l.b16 %v136
  %v809 = vunpack.c.l.b16 %v137
  %v810 = vunpack.c.l.b16 %v138
  %v811 = vunpack.c.l.b16 %v139
  %v812 = vunpack.c.l.b16 %v140
  %v813 = vunpack.c.l.b16 %v141
  %v814 = vunpack.c.l.b16 %v142
  %v815 = vunpack.c.l.b16 %v143
  %v816 = vunpack.c.l.b16 %v144
  %v817 = vunpack.c.l.b16 %v145
  %v818 = vunpack.c.l.b16 %v146
  %v819 = vunpack.c.l.b16 %v147
  %v820 = vunpack.c.l.b16 %v148
  %v821 = vunpack.c.l.b16 %v149
  %v822 = vunpack.c.l.b16 %v150
  %v823 = vunpack.c.l.b16 %v151
  %v824 = vunpack.c.l.b16 %v152
  %v825 = vunpack.c.l.b16 %v153
  %v826 = vunpack.c.l.b16 %v154
  %v827 = vunpack.c.l.b16 %v155
  %v828 = vunpack.c.l.b16 %v156
  %v829 = vunpack.c.l.b16 %v157
  %v830 = vunpack.c.l.b16 %v158
  %v831 = vunpack.c.l.b16 %v159
  %v832 = vunpack.c.l.b16 %v160
  %v833 = vunpack.c.l.b16 %v161
  %v834 = vunpack.c.l.b16 %v162
  %v835 = vunpack.c.l.b16 %v163
  %v836 = vunpack.c.l.b16 %v164
  %v837 = vunpack.c.l.b16 %v165
  %v838 = vunpack.c.l.b16 %v166
  %v839 = vunpack.c.l.b16 %v167
  %v840 = vunpack.c.l.b16 %v168
  %v841 = vunpack.c.l.b16 %v169
  %v842 = vunpack.c.l.b16 %v170
  %v843 = vunpack.c.l.b16 %v171
  %v844 = vunpack.c.l.b16 %v172
  %v845 = vunpack.c.l.b16 %v173
  %v846 = vunpack.c.l.b16 %v174
  %v847 = vunpack.c.l.b16 %v175
  %v848 = vunpack.c.l.b16 %v176
  %v849 = vunpack.c.l.b16 %v177
  %v850 = vunpack.c.l.b16 %v178
  %v851 = vunpack.c.l.b16 %v179
  %v852 = vunpack.c.l.b16 %v180
  %v853 = vunpack.c.l.b16 %v181
  %v854 = vunpack.c.l.b16 %v182
  %v855 = vunpack.c.l.b16 %v183
  %v856 = vunpack.c.l.b16 %v184
  %v857 = vunpack.c.l.b16 %v185
  %v858 = vunpack.c.l.b16 %v186
  %v859 = vunpack.c.l.b16 %v187
  %v860 = vunpack.c.l.b16 %v188
  %v861 = vunpack.c.l.b16 %v189
  %v862 = vunpack.c.l.b16 %v190
  %v863 = vunpack.c.l.b16 %v191
  %v864 = vunpack.c.l.b16 %v192
  %v865 = vunpack.c.l.b16 %v193
  %v866 = vunpack.c.l.b16 %v194
  %v867 = vunpack.c.l.b16 %v195
  %v868 = vunpack.c.l.b16 %v196
  %v869 = vunpack.c.l.b16 %v197
  %v870 = vunpack.c.l.b16 %v198
  %v871 = vunpack.c.l.b16 %v199
  %v872 = vunpack.c.l.b16 %v200
  %v873 = vunpack.c.l.b16 %v201
  %v874 = vunpack.c.l.b16 %v202
  %v875 = vunpack.c.l.b16 %v203
  %v876 = vunpack.c.l.b16 %v204
  %v877 = vunpack.c.l.b16 %v205
  %v878 = vunpack.c.l.b16 %v206
  %v879 = vunpack.c.l.b16 %v207
  %v880 = vunpack.c.l.b16 %v208
  %v881 = vunpack.c.l.b16 %v209
  %v882 = vunpack.c.l.b16 %v210
  %v883 = vunpack.c.l.b16 %v211
  %v884 = vunpack.c.l.b16 %v212
  %v885 = vunpack.c.l.b16 %v213
  %v886 = vunpack.c.l.b16 %v214
  %v887 = vunpack.c.l.b16 %v215
  %v888 = vunpack.c.l.b16 %v216
  %v889 = vunpack.c.l.b16 %v217
  %v890 = vunpack.c.l.b16 %v218
  %v891 = vunpack.c.l.b16 %v219
  %v892 = vunpack.c.l.b16 %v220
  %v893 = vunpack.c.l.b16 %v221
  %v894 = vunpack.c.l.b16 %v222
  %v895 = vunpack.c.l.b16 %v223
  %v896 = vunpack.c.l.b16 %v224
  %v897 = vunpack.c.l.b16 %v225
  %v898 = vunpack.c.l.b16 %v226
  %v899 = vunpack.c.l.b16 %v227
  %v900 = vunpack.c.l.b16 %v228
  %v901 = vunpack.c.l.b16 %v229
  %v902 = vunpack.c.l.b16 %v230
  %v903 = vunpack.c.l.b16 %v231
  %v904 = vunpack.c.l.b16 %v232
  %v905 = vunpack.c.l.b16 %v233
  %v906 = vunpack.c.l.b16 %v234
  %v907 = vunpack.c.l.b16 %v235
  %v908 = vunpack.c.l.b16 %v236
  %v909 = vunpack.c.l.b16 %v237
  %v910 = vunpack.c.l.b16 %v238
  %v911 = vunpack.c.l.b16 %v239
  %v912 = vunpack.c.l.b16 %v240
  %v913 = vunpack.c.l.b16 %v241
  %v914 = vunpack.c.l.b16 %v242
  %v915 = vunpack.c.l.b16 %v243
  %v916 = vunpack.c.l.b16 %v244
  %v917 = vunpack.c.l.b16 %v245
  %v918 = vunpack.c.l.b16 %v246
  %v919 = vunpack.c.l.b16 %v247
  %v920 = vunpack.c.l.b16 %v248
  %v921 = vunpack.c.l.b16 %v249
  %v922 = vunpack.c.l.b16 %v250
  %v923 = vunpack.c.l.b16 %v251
  %v924 = vunpack.c.l.b16 %v252
  %v925 = vunpack.c.l.b16 %v253
  %v926 = vunpack.c.l.b16 %v254
  %v927 = vunpack.c.l.b16 %v255
  %v928 = vunpack.c.l.b16 %v256
  %v929 = vunpack.c.l.b16 %v257
  %v930 = vunpack.c.l.b16 %v258
  %v931 = vunpack.c.l.b16 %v259
  %v932 = vunpack.c.l.b16 %v260
  %v933 = vunpack.c.l.b16 %v261
  %v934 = vunpack.c.l.b16 %v262
  %v935 = vunpack.c.l.b16 %v263
  %v936 = vunpack.c.l.b16 %v264
  %v937 = vunpack.c.l.b16 %v265
  %v938 = vunpack.c.l.b16 %v266
  %v939 = vunpack.c.l.b16 %v267
  %v940 = vunpack.c.l.b16 %v268
  %v941 = vunpack.c.l.b16 %v269
  %v942 = vunpack.c.l.b16 %v270
  %v943 = vunpack.c.l.b16 %v271
  %v944 = vunpack.c.l.b16 %v272
  %v945 = vunpack.c.l.b16 %v273
  %v946 = vunpack.c.l.b16 %v274
  %v947 = vunpack.c.l.b16 %v275
  %v948 = vunpack.c.l.b16 %v276
  %v949 = vunpack.c.l.b16 %v277
  %v950 = vunpack.c.l.b16 %v278
  %v951 = vunpack.c.l.b16 %v279
  %v952 = vunpack.c.l.b16 %v280
  %v953 = vunpack.c.l.b16 %v281
  %v954 = vunpack.c.l.b16 %v282
  %v955 = vunpack.c.l.b16 %v283
  %v956 = vunpack.c.l.b16 %v284
  %v957 = vunpack.c.l.b16 %v285
  %v958 = vunpack.c.l.b16 %v286
  %v959 = vunpack.c.l.b16 %v287
  %v960 = vunpack.c.l.b16 %v288
  %v961 = vunpack.c.l.b16 %v289
  %v962 = vunpack.c.l.b16 %v290
  %v963 = vunpack.c.l.b16 %v291
  %v964 = vunpack.c.l.b16 %v292
  %v965 = vunpack.c.l.b16 %v293
  %v966 = vunpack.c.l.b16 %v294
  %v967 = vunpack.c.l.b16 %v295
  %v968 = vunpack.c.l.b16 %v296
  %v969 = vunpack.c.l.b16 %v297
  %v970 = vunpack.c.l.b16 %v298
  %v971 = vunpack.c.l.b16 %v299
  %v972 = vunpack.c.l.b16 %v300
  %v973 = vunpack.c.l.b16 %v301
  %v974 = vunpack.c.l.b16 %v302
  %v975 = vunpack.c.l.b16 %v303
  %v976 = vunpack.c.l.b16 %v304
  %v977 = vunpack.c.l.b16 %v305
  %v978 = vpack.c.b16 %v723, %v722
  %v979 = vpack.c.b16 %v725, %v724
  %v980 = vpack.c.b16 %v727, %v726
  %v981 = vpack.c.b16 %v729, %v728
  %v982 = vpack.c.b16 %v731, %v730
  %v983 = vpack.c.b16 %v733, %v732
  %v984 = vpack.c.b16 %v735, %v734
  %v985 = vpack.c.b16 %v737, %v736
  %v986 = vpack.c.b16 %v739, %v738
  %v987 = vpack.c.b16 %v741, %v740
  %v988 = vpack.c.b16 %v743, %v742
  %v989 = vpack.c.b16 %v745, %v744
  %v990 = vpack.c.b16 %v747, %v746
  %v991 = vpack.c.b16 %v749, %v748
  %v992 = vpack.c.b16 %v751, %v750
  %v993 = vpack.c.b16 %v753, %v752
  %v994 = vpack.c.b16 %v755, %v754
  %v995 = vpack.c.b16 %v757, %v756
  %v996 = vpack.c.b16 %v759, %v758
  %v997 = vpack.c.b16 %v761, %v760
  %v998 = vpack.c.b16 %v763, %v762
  %v999 = vpack.c.b16 %v765, %v764
  %v1000 = vpack.c.b16 %v767, %v766
  %v1001 = vpack.c.b16 %v769, %v768
  %v1002 = vpack.c.b16 %v771, %v770
  %v1003 = vpack.c.b16 %v773, %v772
  %v1004 = vpack.c.b16 %v775, %v774
  %v1005 = vpack.c.b16 %v777, %v776
  %v1006 = vpack.c.b16 %v779, %v778
  %v1007 = vpack.c.b16 %v781, %v780
  %v1008 = vpack.c.b16 %v783, %v782
  %v1009 = vpack.c.b16 %v785, %v784
  %v1010 = vpack.c.b16 %v787, %v786
  %v1011 = vpack.c.b16 %v789, %v788
  %v1012 = vpack.c.b16 %v791, %v790
  %v1013 = vpack.c.b16 %v793, %v792
  %v1014 = vpack.c.b16 %v795, %v794
  %v1015 = vpack.c.b16 %v797, %v796
  %v1016 = vpack.c.b16 %v799, %v798
  %v1017 = vpack.c.b16 %v801, %v800
  %v1018 = vpack.c.b16 %v803, %v802
  %v1019 = vpack.c.b16 %v805, %v804
  %v1020 = vpack.c.b16 %v807, %v806
  %v1021 = vpack.c.b16 %v809, %v808
  %v1022 = vpack.c.b16 %v811, %v810
  %v1023 = vpack.c.b16 %v813, %v812
  %v1024 = vpack.c.b16 %v815, %v814
  %v1025 = vpack.c.b16 %v817, %v816
  %v1026 = vpack.c.b16 %v819, %v818
  %v1027 = vpack.c.b16 %v821, %v820
  %v1028 = vpack.c.b16 %v823, %v822
  %v1029 = vpack.c.b16 %v825, %v824
  %v1030 = vpack.c.b16 %v827, %v826
  %v1031 = vpack.c.b16 %v829, %v828
  %v1032 = vpack.c.b16 %v831, %v830
  %v1033 = vpack.c.b16 %v833, %v832
  %v1034 = vpack.c.b16 %v835, %v834
  %v1035 = vpack.c.b16 %v837, %v836
  %v1036 = vpack.c.b16 %v839, %v838
  %v1037 = vpack.c.b16 %v841, %v840
  %v1038 = vpack.c.b16 %v843, %v842
  %v1039 = vpack.c.b16 %v845, %v844
  %v1040 = vpack.c.b16 %v847, %v846
  %v1041 = vpack.c.b16 %v849, %v848
  %v1042 = vpack.c.b16 %v851, %v850
  %v1043 = vpack.c.b16 %v853, %v852
  %v1044 = vpack.c.b16 %v855, %v854
  %v1045 = vpack.c.b16 %v857, %v856
  %v1046 = vpack.c.b16 %v859, %v858
  %v1047 = vpack.c.b16 %v861, %v860
  %v1048 = vpack.c.b16 %v863, %v862
  %v1049 = vpack.c.b16 %v865, %v864
  %v1050 = vpack.c.b16 %v867, %v866
  %v1051 = vpack.c.b16 %v869, %v868
  %v1052 = vpack.c.b16 %v871, %v870
  %v1053 = vpack.c.b16 %v873, %v872
  %v1054 = vpack.c.b16 %v875, %v874
  %v1055 = vpack.c.b16 %v877, %v876
  %v1056 = vpack.c.b16 %v879, %v878
  %v1057 = vpack.c.b16 %v881, %v880
  %v1058 = vpack.c.b16 %v883, %v882
  %v1059 = vpack.c.b16 %v885, %v884
  %v1060 = vpack.c.b16 %v887, %v886
  %v1061 = vpack.c.b16 %v889, %v888
  %v1062 = vpack.c.b16 %v891, %v890
  %v1063 = vpack.c.b16 %v893, %v892
  %v1064 = vpack.c.b16 %v895, %v894
  %v1065 = vpack.c.b16 %v897, %v896
  %v1066 = vpack.c.b16 %v899, %v898
  %v1067 = vpack.c.b16 %v901, %v900
  %v1068 = vpack.c.b16 %v903, %v902
  %v1069 = vpack.c.b16 %v905, %v904
  %v1070 = vpack.c.b16 %v907, %v906
  %v1071 = vpack.c.b16 %v909, %v908
  %v1072 = vpack.c.b16 %v911, %v910
  %v1073 = vpack.c.b16 %v913, %v912
  %v1074 = vpack.c.b16 %v915, %v914
  %v1075 = vpack.c.b16 %v917, %v916
  %v1076 = vpack.c.b16 %v919, %v918
  %v1077 = vpack.c.b16 %v921, %v920
  %v1078 = vpack.c.b16 %v923, %v922
  %v1079 = vpack.c.b16 %v925, %v924
  %v1080 = vpack.c.b16 %v927, %v926
  %v1081 = vpack.c.b16 %v929, %v928
  %v1082 = vpack.c.b16 %v931, %v930
  %v1083 = vpack.c.b16 %v933, %v932
  %v1084 = vpack.c.b16 %v935, %v934
  %v1085 = vpack.c.b16 %v937, %v936
  %v1086 = vpack.c.b16 %v939, %v938
  %v1087 = vpack.c.b16 %v941, %v940
  %v1088 = vpack.c.b16 %v943, %v942
  %v1089 = vpack.c.b16 %v945, %v944
  %v1090 = vpack.c.b16 %v947, %v946
  %v1091 = vpack.c.b16 %v949, %v948
  %v1092 = vpack.c.b16 %v951, %v950
  %v1093 = vpack.c.b16 %v953, %v952
  %v1094 = vpack.c.b16 %v955, %v954
  %v1095 = vpack.c.b16 %v957, %v956
  %v1096 = vpack.c.b16 %v959, %v958
  %v1097 = vpack.c.b16 %v961, %v960
  %v1098 = vpack.c.b16 %v963, %v962
  %v1099 = vpack.c.b16 %v965, %v964
  %v1100 = vpack.c.b16 %v967, %v966
  %v1101 = vpack.c.b16 %v969, %v968
  %v1102 = vpack.c.b16 %v971, %v970
  %v1103 = vpack.c.b16 %v973, %v972
  %v1104 = vpack.c.b16 %v975, %v974
  %v1105 = vpack.c.b16 %v977, %v976
  %1234 = vmatprep.subr.bf16.mxu0 0
  %1235 = vmatpush1.bf16.msra.mxu0 %v978
  %1236 = vmatprep.subr.bf16.mxu0 0
  %1237 = vmatpush1.bf16.msra.mxu0 %v979
  %1238 = vmatprep.subr.bf16.mxu0 0
  %1239 = vmatpush1.bf16.msra.mxu0 %v980
  %1240 = vmatprep.subr.bf16.mxu0 0
  %1241 = vmatpush1.bf16.msra.mxu0 %v981
  %1242 = vmatprep.subr.bf16.mxu0 0
  %1243 = vmatpush1.bf16.msra.mxu0 %v982
  %1244 = vmatprep.subr.bf16.mxu0 0
  %1245 = vmatpush1.bf16.msra.mxu0 %v983
  %1246 = vmatprep.subr.bf16.mxu0 0
  %1247 = vmatpush1.bf16.msra.mxu0 %v984
  %1248 = vmatprep.subr.bf16.mxu0 0
  %1249 = vmatpush1.bf16.msra.mxu0 %v985
  %1250 = vmatprep.subr.bf16.mxu0 0
  %1251 = vmatpush1.bf16.msra.mxu0 %v986
  %1252 = vmatprep.subr.bf16.mxu0 0
  %1253 = vmatpush1.bf16.msra.mxu0 %v987
  %1254 = vmatprep.subr.bf16.mxu0 0
  %1255 = vmatpush1.bf16.msra.mxu0 %v988
  %1256 = vmatprep.subr.bf16.mxu0 0
  %1257 = vmatpush1.bf16.msra.mxu0 %v989
  %1258 = vmatprep.subr.bf16.mxu0 0
  %1259 = vmatpush1.bf16.msra.mxu0 %v990
  %1260 = vmatprep.subr.bf16.mxu0 0
  %1261 = vmatpush1.bf16.msra.mxu0 %v991
  %1262 = vmatprep.subr.bf16.mxu0 0
  %1263 = vmatpush1.bf16.msra.mxu0 %v992
  %1264 = vmatprep.subr.bf16.mxu0 0
  %1265 = vmatpush1.bf16.msra.mxu0 %v993
  %1266 = vmatprep.mubr.bf16.mxu0 %v403
  %1267 = vmatmul.mubr.bf16.gmra.mrb[0].mxu0 %v402
  %v1268 = vpop.f32.mrb[0].mxu0
  %v1269 = vadd.f32 0.0, %v1268
  %v1270 = vpop.f32.mrb[0].mxu0
  %v1271 = vpop.f32.mrb[0].mxu0
  %v1272 = vadd.f32 0.0, %v1271
  %v1273 = vpop.f32.mrb[0].mxu0
  %1274 = vmatprep.mubr.bf16.mxu0 %v419
  %1275 = vmatmul.mubr.bf16.gmra.mrb[0].mxu0 %v418
  %v1276 = vpop.f32.mrb[0].mxu0
  %v1277 = vadd.f32 0.0, %v1276
  %v1278 = vpop.f32.mrb[0].mxu0
  %v1279 = vpop.f32.mrb[0].mxu0
  %v1280 = vadd.f32 0.0, %v1279
  %v1281 = vpop.f32.mrb[0].mxu0
  %1282 = vdwg.mxu0
  %1283 = vmatprep.subr.bf16.mxu0 0
  %1284 = vmatpush1.bf16.msra.mxu0 %v994
  %1285 = vmatprep.subr.bf16.mxu0 0
  %1286 = vmatpush1.bf16.msra.mxu0 %v995
  %1287 = vmatprep.subr.bf16.mxu0 0
  %1288 = vmatpush1.bf16.msra.mxu0 %v996
  %1289 = vmatprep.subr.bf16.mxu0 0
  %1290 = vmatpush1.bf16.msra.mxu0 %v997
  %1291 = vmatprep.subr.bf16.mxu0 0
  %1292 = vmatpush1.bf16.msra.mxu0 %v998
  %1293 = vmatprep.subr.bf16.mxu0 0
  %1294 = vmatpush1.bf16.msra.mxu0 %v999
  %1295 = vmatprep.subr.bf16.mxu0 0
  %1296 = vmatpush1.bf16.msra.mxu0 %v1000
  %1297 = vmatprep.subr.bf16.mxu0 0
  %1298 = vmatpush1.bf16.msra.mxu0 %v1001
  %1299 = vmatprep.subr.bf16.mxu0 0
  %1300 = vmatpush1.bf16.msra.mxu0 %v1002
  %1301 = vmatprep.subr.bf16.mxu0 0
  %1302 = vmatpush1.bf16.msra.mxu0 %v1003
  %1303 = vmatprep.subr.bf16.mxu0 0
  %1304 = vmatpush1.bf16.msra.mxu0 %v1004
  %1305 = vmatprep.subr.bf16.mxu0 0
  %1306 = vmatpush1.bf16.msra.mxu0 %v1005
  %1307 = vmatprep.subr.bf16.mxu0 0
  %1308 = vmatpush1.bf16.msra.mxu0 %v1006
  %1309 = vmatprep.subr.bf16.mxu0 0
  %1310 = vmatpush1.bf16.msra.mxu0 %v1007
  %1311 = vmatprep.subr.bf16.mxu0 0
  %1312 = vmatpush1.bf16.msra.mxu0 %v1008
  %1313 = vmatprep.subr.bf16.mxu0 0
  %1314 = vmatpush1.bf16.msra.mxu0 %v1009
  %1315 = vmatprep.mubr.bf16.mxu0 %v405
  %1316 = vmatmul.mubr.bf16.gmra.mrb[0].mxu0 %v404
  %v1317 = vpop.f32.mrb[0].mxu0
  %v1318 = vadd.f32 %v1269, %v1317
  %v1319 = vpop.f32.mrb[0].mxu0
  %v1320 = vpop.f32.mrb[0].mxu0
  %v1321 = vadd.f32 %v1272, %v1320
  %v1322 = vpop.f32.mrb[0].mxu0
  %1323 = vmatprep.mubr.bf16.mxu0 %v421
  %1324 = vmatmul.mubr.bf16.gmra.mrb[0].mxu0 %v420
  %v1325 = vpop.f32.mrb[0].mxu0
  %v1326 = vadd.f32 %v1277, %v1325
  %v1327 = vpop.f32.mrb[0].mxu0
  %v1328 = vpop.f32.mrb[0].mxu0
  %v1329 = vadd.f32 %v1280, %v1328
  %v1330 = vpop.f32.mrb[0].mxu0
  %1331 = vdwg.mxu0
  %1332 = vmatprep.subr.bf16.mxu0 0
  %1333 = vmatpush1.bf16.msra.mxu0 %v1010
  %1334 = vmatprep.subr.bf16.mxu0 0
  %1335 = vmatpush1.bf16.msra.mxu0 %v1011
  %1336 = vmatprep.subr.bf16.mxu0 0
  %1337 = vmatpush1.bf16.msra.mxu0 %v1012
  %1338 = vmatprep.subr.bf16.mxu0 0
  %1339 = vmatpush1.bf16.msra.mxu0 %v1013
  %1340 = vmatprep.subr.bf16.mxu0 0
  %1341 = vmatpush1.bf16.msra.mxu0 %v1014
  %1342 = vmatprep.subr.bf16.mxu0 0
  %1343 = vmatpush1.bf16.msra.mxu0 %v1015
  %1344 = vmatprep.subr.bf16.mxu0 0
  %1345 = vmatpush1.bf16.msra.mxu0 %v1016
  %1346 = vmatprep.subr.bf16.mxu0 0
  %1347 = vmatpush1.bf16.msra.mxu0 %v1017
  %1348 = vmatprep.subr.bf16.mxu0 0
  %1349 = vmatpush1.bf16.msra.mxu0 %v1018
  %1350 = vmatprep.subr.bf16.mxu0 0
  %1351 = vmatpush1.bf16.msra.mxu0 %v1019
  %1352 = vmatprep.subr.bf16.mxu0 0
  %1353 = vmatpush1.bf16.msra.mxu0 %v1020
  %1354 = vmatprep.subr.bf16.mxu0 0
  %1355 = vmatpush1.bf16.msra.mxu0 %v1021
  %1356 = vmatprep.subr.bf16.mxu0 0
  %1357 = vmatpush1.bf16.msra.mxu0 %v1022
  %1358 = vmatprep.subr.bf16.mxu0 0
  %1359 = vmatpush1.bf16.msra.mxu0 %v1023
  %1360 = vmatprep.subr.bf16.mxu0 0
  %1361 = vmatpush1.bf16.msra.mxu0 %v1024
  %1362 = vmatprep.subr.bf16.mxu0 0
  %1363 = vmatpush1.bf16.msra.mxu0 %v1025
  %1364 = vmatprep.mubr.bf16.mxu0 %v407
  %1365 = vmatmul.mubr.bf16.gmra.mrb[0].mxu0 %v406
  %v1366 = vpop.f32.mrb[0].mxu0
  %v1367 = vadd.f32 %v1318, %v1366
  %v1368 = vpop.f32.mrb[0].mxu0
  %v1369 = vpop.f32.mrb[0].mxu0
  %v1370 = vadd.f32 %v1321, %v1369
  %v1371 = vpop.f32.mrb[0].mxu0
  %1372 = vmatprep.mubr.bf16.mxu0 %v423
  %1373 = vmatmul.mubr.bf16.gmra.mrb[0].mxu0 %v422
  %v1374 = vpop.f32.mrb[0].mxu0
  %v1375 = vadd.f32 %v1326, %v1374
  %v1376 = vpop.f32.mrb[0].mxu0
  %v1377 = vpop.f32.mrb[0].mxu0
  %v1378 = vadd.f32 %v1329, %v1377
  %v1379 = vpop.f32.mrb[0].mxu0
  %1380 = vdwg.mxu0
  %1381 = vmatprep.subr.bf16.mxu0 0
  %1382 = vmatpush1.bf16.msra.mxu0 %v1026
  %1383 = vmatprep.subr.bf16.mxu0 0
  %1384 = vmatpush1.bf16.msra.mxu0 %v1027
  %1385 = vmatprep.subr.bf16.mxu0 0
  %1386 = vmatpush1.bf16.msra.mxu0 %v1028
  %1387 = vmatprep.subr.bf16.mxu0 0
  %1388 = vmatpush1.bf16.msra.mxu0 %v1029
  %1389 = vmatprep.subr.bf16.mxu0 0
  %1390 = vmatpush1.bf16.msra.mxu0 %v1030
  %1391 = vmatprep.subr.bf16.mxu0 0
  %1392 = vmatpush1.bf16.msra.mxu0 %v1031
  %1393 = vmatprep.subr.bf16.mxu0 0
  %1394 = vmatpush1.bf16.msra.mxu0 %v1032
  %1395 = vmatprep.subr.bf16.mxu0 0
  %1396 = vmatpush1.bf16.msra.mxu0 %v1033
  %1397 = vmatprep.subr.bf16.mxu0 0
  %1398 = vmatpush1.bf16.msra.mxu0 %v1034
  %1399 = vmatprep.subr.bf16.mxu0 0
  %1400 = vmatpush1.bf16.msra.mxu0 %v1035
  %1401 = vmatprep.subr.bf16.mxu0 0
  %1402 = vmatpush1.bf16.msra.mxu0 %v1036
  %1403 = vmatprep.subr.bf16.mxu0 0
  %1404 = vmatpush1.bf16.msra.mxu0 %v1037
  %1405 = vmatprep.subr.bf16.mxu0 0
  %1406 = vmatpush1.bf16.msra.mxu0 %v1038
  %1407 = vmatprep.subr.bf16.mxu0 0
  %1408 = vmatpush1.bf16.msra.mxu0 %v1039
  %1409 = vmatprep.subr.bf16.mxu0 0
  %1410 = vmatpush1.bf16.msra.mxu0 %v1040
  %1411 = vmatprep.subr.bf16.mxu0 0
  %1412 = vmatpush1.bf16.msra.mxu0 %v1041
  %1413 = vmatprep.mubr.bf16.mxu0 %v409
  %1414 = vmatmul.mubr.bf16.gmra.mrb[0].mxu0 %v408
  %v1415 = vpop.f32.mrb[0].mxu0
  %v1416 = vadd.f32 %v1367, %v1415
  %v1417 = vpop.f32.mrb[0].mxu0
  %v1418 = vpop.f32.mrb[0].mxu0
  %v1419 = vadd.f32 %v1370, %v1418
  %v1420 = vpop.f32.mrb[0].mxu0
  %1421 = vmatprep.mubr.bf16.mxu0 %v425
  %1422 = vmatmul.mubr.bf16.gmra.mrb[0].mxu0 %v424
  %v1423 = vpop.f32.mrb[0].mxu0
  %v1424 = vadd.f32 %v1375, %v1423
  %v1425 = vpop.f32.mrb[0].mxu0
  %v1426 = vpop.f32.mrb[0].mxu0
  %v1427 = vadd.f32 %v1378, %v1426
  %v1428 = vpop.f32.mrb[0].mxu0
  %1429 = vdwg.mxu0
  %1430 = vmatprep.subr.bf16.mxu0 0
  %1431 = vmatpush1.bf16.msra.mxu0 %v1042
  %1432 = vmatprep.subr.bf16.mxu0 0
  %1433 = vmatpush1.bf16.msra.mxu0 %v1043
  %1434 = vmatprep.subr.bf16.mxu0 0
  %1435 = vmatpush1.bf16.msra.mxu0 %v1044
  %1436 = vmatprep.subr.bf16.mxu0 0
  %1437 = vmatpush1.bf16.msra.mxu0 %v1045
  %1438 = vmatprep.subr.bf16.mxu0 0
  %1439 = vmatpush1.bf16.msra.mxu0 %v1046
  %1440 = vmatprep.subr.bf16.mxu0 0
  %1441 = vmatpush1.bf16.msra.mxu0 %v1047
  %1442 = vmatprep.subr.bf16.mxu0 0
  %1443 = vmatpush1.bf16.msra.mxu0 %v1048
  %1444 = vmatprep.subr.bf16.mxu0 0
  %1445 = vmatpush1.bf16.msra.mxu0 %v1049
  %1446 = vmatprep.subr.bf16.mxu0 0
  %1447 = vmatpush1.bf16.msra.mxu0 %v1050
  %1448 = vmatprep.subr.bf16.mxu0 0
  %1449 = vmatpush1.bf16.msra.mxu0 %v1051
  %1450 = vmatprep.subr.bf16.mxu0 0
  %1451 = vmatpush1.bf16.msra.mxu0 %v1052
  %1452 = vmatprep.subr.bf16.mxu0 0
  %1453 = vmatpush1.bf16.msra.mxu0 %v1053
  %1454 = vmatprep.subr.bf16.mxu0 0
  %1455 = vmatpush1.bf16.msra.mxu0 %v1054
  %1456 = vmatprep.subr.bf16.mxu0 0
  %1457 = vmatpush1.bf16.msra.mxu0 %v1055
  %1458 = vmatprep.subr.bf16.mxu0 0
  %1459 = vmatpush1.bf16.msra.mxu0 %v1056
  %1460 = vmatprep.subr.bf16.mxu0 0
  %1461 = vmatpush1.bf16.msra.mxu0 %v1057
  %1462 = vmatprep.mubr.bf16.mxu0 %v411
  %1463 = vmatmul.mubr.bf16.gmra.mrb[0].mxu0 %v410
  %v1464 = vpop.f32.mrb[0].mxu0
  %v1465 = vadd.f32 %v1416, %v1464
  %v1466 = vpop.f32.mrb[0].mxu0
  %v1467 = vpop.f32.mrb[0].mxu0
  %v1468 = vadd.f32 %v1419, %v1467
  %v1469 = vpop.f32.mrb[0].mxu0
  %1470 = vmatprep.mubr.bf16.mxu0 %v427
  %1471 = vmatmul.mubr.bf16.gmra.mrb[0].mxu0 %v426
  %v1472 = vpop.f32.mrb[0].mxu0
  %v1473 = vadd.f32 %v1424, %v1472
  %v1474 = vpop.f32.mrb[0].mxu0
  %v1475 = vpop.f32.mrb[0].mxu0
  %v1476 = vadd.f32 %v1427, %v1475
  %v1477 = vpop.f32.mrb[0].mxu0
  %1478 = vdwg.mxu0
  %1479 = vmatprep.subr.bf16.mxu0 0
  %1480 = vmatpush1.bf16.msra.mxu0 %v1058
  %1481 = vmatprep.subr.bf16.mxu0 0
  %1482 = vmatpush1.bf16.msra.mxu0 %v1059
  %1483 = vmatprep.subr.bf16.mxu0 0
  %1484 = vmatpush1.bf16.msra.mxu0 %v1060
  %1485 = vmatprep.subr.bf16.mxu0 0
  %1486 = vmatpush1.bf16.msra.mxu0 %v1061
  %1487 = vmatprep.subr.bf16.mxu0 0
  %1488 = vmatpush1.bf16.msra.mxu0 %v1062
  %1489 = vmatprep.subr.bf16.mxu0 0
  %1490 = vmatpush1.bf16.msra.mxu0 %v1063
  %1491 = vmatprep.subr.bf16.mxu0 0
  %1492 = vmatpush1.bf16.msra.mxu0 %v1064
  %1493 = vmatprep.subr.bf16.mxu0 0
  %1494 = vmatpush1.bf16.msra.mxu0 %v1065
  %1495 = vmatprep.subr.bf16.mxu0 0
  %1496 = vmatpush1.bf16.msra.mxu0 %v1066
  %1497 = vmatprep.subr.bf16.mxu0 0
  %1498 = vmatpush1.bf16.msra.mxu0 %v1067
  %1499 = vmatprep.subr.bf16.mxu0 0
  %1500 = vmatpush1.bf16.msra.mxu0 %v1068
  %1501 = vmatprep.subr.bf16.mxu0 0
  %1502 = vmatpush1.bf16.msra.mxu0 %v1069
  %1503 = vmatprep.subr.bf16.mxu0 0
  %1504 = vmatpush1.bf16.msra.mxu0 %v1070
  %1505 = vmatprep.subr.bf16.mxu0 0
  %1506 = vmatpush1.bf16.msra.mxu0 %v1071
  %1507 = vmatprep.subr.bf16.mxu0 0
  %1508 = vmatpush1.bf16.msra.mxu0 %v1072
  %1509 = vmatprep.subr.bf16.mxu0 0
  %1510 = vmatpush1.bf16.msra.mxu0 %v1073
  %1511 = vmatprep.mubr.bf16.mxu0 %v413
  %1512 = vmatmul.mubr.bf16.gmra.mrb[0].mxu0 %v412
  %v1513 = vpop.f32.mrb[0].mxu0
  %v1514 = vadd.f32 %v1465, %v1513
  %v1515 = vpop.f32.mrb[0].mxu0
  %v1516 = vpop.f32.mrb[0].mxu0
  %v1517 = vadd.f32 %v1468, %v1516
  %v1518 = vpop.f32.mrb[0].mxu0
  %1519 = vmatprep.mubr.bf16.mxu0 %v429
  %1520 = vmatmul.mubr.bf16.gmra.mrb[0].mxu0 %v428
  %v1521 = vpop.f32.mrb[0].mxu0
  %v1522 = vadd.f32 %v1473, %v1521
  %v1523 = vpop.f32.mrb[0].mxu0
  %v1524 = vpop.f32.mrb[0].mxu0
  %v1525 = vadd.f32 %v1476, %v1524
  %v1526 = vpop.f32.mrb[0].mxu0
  %1527 = vdwg.mxu0
  %1528 = vmatprep.subr.bf16.mxu0 0
  %1529 = vmatpush1.bf16.msra.mxu0 %v1074
  %1530 = vmatprep.subr.bf16.mxu0 0
  %1531 = vmatpush1.bf16.msra.mxu0 %v1075
  %1532 = vmatprep.subr.bf16.mxu0 0
  %1533 = vmatpush1.bf16.msra.mxu0 %v1076
  %1534 = vmatprep.subr.bf16.mxu0 0
  %1535 = vmatpush1.bf16.msra.mxu0 %v1077
  %1536 = vmatprep.subr.bf16.mxu0 0
  %1537 = vmatpush1.bf16.msra.mxu0 %v1078
  %1538 = vmatprep.subr.bf16.mxu0 0
  %1539 = vmatpush1.bf16.msra.mxu0 %v1079
  %1540 = vmatprep.subr.bf16.mxu0 0
  %1541 = vmatpush1.bf16.msra.mxu0 %v1080
  %1542 = vmatprep.subr.bf16.mxu0 0
  %1543 = vmatpush1.bf16.msra.mxu0 %v1081
  %1544 = vmatprep.subr.bf16.mxu0 0
  %1545 = vmatpush1.bf16.msra.mxu0 %v1082
  %1546 = vmatprep.subr.bf16.mxu0 0
  %1547 = vmatpush1.bf16.msra.mxu0 %v1083
  %1548 = vmatprep.subr.bf16.mxu0 0
  %1549 = vmatpush1.bf16.msra.mxu0 %v1084
  %1550 = vmatprep.subr.bf16.mxu0 0
  %1551 = vmatpush1.bf16.msra.mxu0 %v1085
  %1552 = vmatprep.subr.bf16.mxu0 0
  %1553 = vmatpush1.bf16.msra.mxu0 %v1086
  %1554 = vmatprep.subr.bf16.mxu0 0
  %1555 = vmatpush1.bf16.msra.mxu0 %v1087
  %1556 = vmatprep.subr.bf16.mxu0 0
  %1557 = vmatpush1.bf16.msra.mxu0 %v1088
  %1558 = vmatprep.subr.bf16.mxu0 0
  %1559 = vmatpush1.bf16.msra.mxu0 %v1089
  %1560 = vmatprep.mubr.bf16.mxu0 %v415
  %1561 = vmatmul.mubr.bf16.gmra.mrb[0].mxu0 %v414
  %v1562 = vpop.f32.mrb[0].mxu0
  %v1563 = vadd.f32 %v1514, %v1562
  %v1564 = vpop.f32.mrb[0].mxu0
  %v1565 = vpop.f32.mrb[0].mxu0
  %v1566 = vadd.f32 %v1517, %v1565
  %v1567 = vpop.f32.mrb[0].mxu0
  %1568 = vmatprep.mubr.bf16.mxu0 %v431
  %1569 = vmatmul.mubr.bf16.gmra.mrb[0].mxu0 %v430
  %v1570 = vpop.f32.mrb[0].mxu0
  %v1571 = vadd.f32 %v1522, %v1570
  %v1572 = vpop.f32.mrb[0].mxu0
  %v1573 = vpop.f32.mrb[0].mxu0
  %v1574 = vadd.f32 %v1525, %v1573
  %v1575 = vpop.f32.mrb[0].mxu0
  %1576 = vdwg.mxu0
  %1577 = vmatprep.subr.bf16.mxu0 0
  %1578 = vmatpush1.bf16.msra.mxu0 %v1090
  %1579 = vmatprep.subr.bf16.mxu0 0
  %1580 = vmatpush1.bf16.msra.mxu0 %v1091
  %1581 = vmatprep.subr.bf16.mxu0 0
  %1582 = vmatpush1.bf16.msra.mxu0 %v1092
  %1583 = vmatprep.subr.bf16.mxu0 0
  %1584 = vmatpush1.bf16.msra.mxu0 %v1093
  %1585 = vmatprep.subr.bf16.mxu0 0
  %1586 = vmatpush1.bf16.msra.mxu0 %v1094
  %1587 = vmatprep.subr.bf16.mxu0 0
  %1588 = vmatpush1.bf16.msra.mxu0 %v1095
  %1589 = vmatprep.subr.bf16.mxu0 0
  %1590 = vmatpush1.bf16.msra.mxu0 %v1096
  %1591 = vmatprep.subr.bf16.mxu0 0
  %1592 = vmatpush1.bf16.msra.mxu0 %v1097
  %1593 = vmatprep.subr.bf16.mxu0 0
  %1594 = vmatpush1.bf16.msra.mxu0 %v1098
  %1595 = vmatprep.subr.bf16.mxu0 0
  %1596 = vmatpush1.bf16.msra.mxu0 %v1099
  %1597 = vmatprep.subr.bf16.mxu0 0
  %1598 = vmatpush1.bf16.msra.mxu0 %v1100
  %1599 = vmatprep.subr.bf16.mxu0 0
  %1600 = vmatpush1.bf16.msra.mxu0 %v1101
  %1601 = vmatprep.subr.bf16.mxu0 0
  %1602 = vmatpush1.bf16.msra.mxu0 %v1102
  %1603 = vmatprep.subr.bf16.mxu0 0
  %1604 = vmatpush1.bf16.msra.mxu0 %v1103
  %1605 = vmatprep.subr.bf16.mxu0 0
  %1606 = vmatpush1.bf16.msra.mxu0 %v1104
  %1607 = vmatprep.subr.bf16.mxu0 0
  %1608 = vmatpush1.bf16.msra.mxu0 %v1105
  %1609 = vmatprep.mubr.bf16.mxu0 %v417
  %1610 = vmatmul.mubr.bf16.gmra.mrb[0].mxu0 %v416
  %v1611 = vpop.f32.mrb[0].mxu0
  %v1612 = vadd.f32 %v1563, %v1611
  %v1613 = vpop.f32.mrb[0].mxu0
  %v1614 = vpop.f32.mrb[0].mxu0
  %v1615 = vadd.f32 %v1566, %v1614
  %v1616 = vpop.f32.mrb[0].mxu0
  %1617 = vmatprep.mubr.bf16.mxu0 %v433
  %1618 = vmatmul.mubr.bf16.gmra.mrb[0].mxu0 %v432
  %v1619 = vpop.f32.mrb[0].mxu0
  %v1620 = vadd.f32 %v1571, %v1619
  %v1621 = vpop.f32.mrb[0].mxu0
  %v1622 = vpop.f32.mrb[0].mxu0
  %v1623 = vadd.f32 %v1574, %v1622
  %v1624 = vpop.f32.mrb[0].mxu0
  %1625 = vdwg.mxu0
  %v1626 = vadd.f32 %v1612, %v1615
  %v1627 = vadd.f32 %v1626, %v1620
  %v1628 = vadd.f32 %v1627, %v1623
  %v1629 = vrot.slane %v1628, 4
  %v1630 = vadd.f32 %v1628, %v1629
  %v1631 = vrot.slane %v1630, 2
  %v1632 = vadd.f32 %v1630, %v1631
  %v1633 = vrot.slane %v1632, 1
  %v1634 = vadd.f32 %v1632, %v1633
  %v1635 = vmul.f32 %v1634, 0.03125
  %v1636 = vmul.f32 %v1612, %v1612
  %v1637 = vmul.f32 %v1615, %v1615
  %v1638 = vmul.f32 %v1620, %v1620
  %v1639 = vmul.f32 %v1623, %v1623
  %v1640 = vadd.f32 %v1636, %v1637
  %v1641 = vadd.f32 %v1640, %v1638
  %v1642 = vadd.f32 %v1641, %v1639
  %v1643 = vrot.slane %v1642, 4
  %v1644 = vadd.f32 %v1642, %v1643
  %v1645 = vrot.slane %v1644, 2
  %v1646 = vadd.f32 %v1644, %v1645
  %v1647 = vrot.slane %v1646, 1
  %v1648 = vadd.f32 %v1646, %v1647
  %v1649 = vmul.f32 %v1648, 0.03125
  %v1650 = vmul.f32 %v1635, %v1635
  %v1651 = vsub.f32 %v1649, %v1650
  %v1652 = vmax.f32 %v1651, 0.0
  %v1653 = vld [vmem:[%s2] sm:$0x1]
  %v1654 = vadd.f32 %v1652, 1e-05
  %v1655 = vrsqrt.pop %v1654
  %v1656 = vmul.f32 %v1653, %v1655
  %v1657 = vld [vmem:[%s3] sm:$0x1]
  %v1658 = vmul.f32 %v1635, %v1656
  %v1659 = vsub.f32 %v1657, %v1658
  %v1661 = vlaneseq
  %v1662 = vshrl.u32 %v1661, 7
  %v1663 = vsub.s32 0, %v1662
  %v1664 = vrot.slane %v1656, %v1663
  %v1666 = vmul.f32 %v1612, %v1664
  %v1667 = vmul.f32 %v1615, %v1664
  %v1668 = vmul.f32 %v1620, %v1664
  %v1669 = vmul.f32 %v1623, %v1664
  %v1671 = vlaneseq
  %v1672 = vshrl.u32 %v1671, 7
  %v1673 = vsub.s32 0, %v1672
  %v1674 = vrot.slane %v1659, %v1673
  %v1676 = vadd.f32 %v1666, %v1674
  %v1677 = vadd.f32 %v1667, %v1674
  %v1678 = vadd.f32 %v1668, %v1674
  %v1679 = vadd.f32 %v1669, %v1674
  %v1680 = vmax.f32 %v1676, 0.0
  %v1681 = vmax.f32 %v1677, 0.0
  %v1682 = vmax.f32 %v1678, 0.0
  %v1683 = vmax.f32 %v1679, 0.0
  %v1684 = vpack.c.bf16 %v1681, %v1680
  %v1685 = vpack.c.bf16 %v1683, %v1682
  %v1688 = vunpack.c.l.b16 %v1684
  %v1689 = vunpack.c.h.b16 %v1684
  %v1690 = vunpack.c.l.b16 %v1685
  %v1691 = vunpack.c.h.b16 %v1685
  %v1692 = vpack.c.b16 %v1688, %v1688
  %v1693 = vpack.c.b16 %v1689, %v1689
  %v1694 = vpack.c.b16 %v1690, %v1690
  %v1695 = vpack.c.b16 %v1691, %v1691
  %1700 = vst [vmem:[%s4] sm:$0xf] %v1692
  %1701 = vst [vmem:[%s4 + $0x4] sm:$0xf] %v1693
  %1702 = vst [vmem:[%s4 + $0x8] sm:$0xf] %v1694
  %1703 = vst [vmem:[%s4 + $0xc] sm:$0xf] %v1695
  // Predicated region
  $region18: #{discriminator_forward.8} parent=0 // pred_check
    _
  $region19: #{discriminator_forward.8} parent=0 // pred_check_branch
    %1705 = sbr.rel (0) target = $region21
  $region20: #{discriminator_forward.8} parent=0 // pred_region
    _
  $region21: #{discriminator_forward.8} parent=0 // pred_fallthru
    _
  // Predicated region
  $region22: #{discriminator_forward.8} parent=0 // pred_check
    _
  $region23: #{discriminator_forward.8} parent=0 // pred_check_branch
    %1707 = sbr.rel (0) target = $region25
  $region24: #{discriminator_forward.8} parent=0 // pred_region
    _
  $region25: #{discriminator_forward.8} parent=0 // pred_fallthru
    _

// kernel: discriminator_forward.9
$region0: #{discriminator_forward.9}
  #allocation0 [shape = 'u32[]', space=smem, size = 0x4, offset = 0x4, fixed_abs, tag = 'smem constant byte address 0x4 - core index']
  #allocation1 [shape = 'u32[144,128]{1,0:T(1,128)}', space=vmem, size = 0x12000, scoped, tag = 'internal scratch']
  #allocation2 [shape = 'f32[2,512]{1,0:T(2,128)}', space=vmem, size = 0x1000, scoped, tag = 'scratch operand']
  #allocation3 [shape = 'f32[1,1]{1,0:T(1,128)S(1)}', space=vmem, size = 0x200, scoped, tag = 'scoped memory for discriminator_forward.9']
  %s0 = inlined_call_operand.vmem [shape: bf16[2,2048], index: 0, kind: input, shape index: {}]
  %s1 = inlined_call_operand.vmem [shape: bf16[2048,512], index: 1, kind: input, shape index: {}]
  %s2 = inlined_call_operand.vmem [shape: bf16[2,16], index: 2, kind: input, shape index: {}]
  %s3 = inlined_call_operand.vmem [shape: bf16[16,512], index: 3, kind: input, shape index: {}]
  %s4 = inlined_call_operand.vmem [shape: f32[1,512], index: 4, kind: input, shape index: {}]
  %s5 = inlined_call_operand.vmem [shape: f32[1,512], index: 5, kind: input, shape index: {}]
  %s6 = inlined_call_operand.<no memory space> [shape: f32[1,1], index: 6, kind: input, shape index: {}]
  %s7 = inlined_call_operand.vmem [shape: f32[2,1], index: 7, kind: output, shape index: {}]
  %s8 = sld [smem:[#allocation0]]
  $region69: #{discriminator_forward.9} parent=0
    _
  %s10 = ssub.s32 1, %s8
  %s11 = scalar_select 0, %s10, %s8
  %v12 = vstv %s6
  %13 = vst [vmem:[#allocation3] sm:$0x1] %v12
  loop: start=0, step=1, limit=6
  $region2: #{discriminator_forward.9} parent=0 // loop_pre_header
    _
  $region3: #{discriminator_forward.9} parent=0 // loop_header
    %s15 = sphi 0, %s19
    %p16 = scmp.ge.s32.totalorder %s15, 6
    %s25 = sphi 0, %s27
    %s28 = sphi 0, %s25
    %s29 = sphi 0, %s28
    %s45 = sphi 0, %s29
    %s51 = sphi 0, %s53
    %s54 = sphi 0, %s51
    %s55 = sphi 0, %s54
    %s71 = sphi 0, %s55
    %s75 = sphi 0, %s75
    %s77 = sphi 0, %s75
    %s78 = sphi 0, %s77
    %s92 = sphi 0, %s78
    %s96 = sphi 0, %s96
    %s98 = sphi 0, %s96
    %s99 = sphi 0, %s98
    %s113 = sphi 0, %s99
    %s117 = sphi 0, %s117
    %s119 = sphi 0, %s117
    %s120 = sphi 0, %s119
    %s134 = sphi 0, %s120
    %s138 = sphi 0, %s138
    %s140 = sphi 0, %s138
    %s141 = sphi 0, %s140
    %s155 = sphi 0, %s141
    %s159 = sphi 0, %s159
    %s161 = sphi 0, %s159
    %s162 = sphi 0, %s161
    %s176 = sphi 0, %s162
    %s180 = sphi 0, %s180
    %s182 = sphi 0, %s180
    %s183 = sphi 0, %s182
    %s197 = sphi 0, %s183
  $region4: #{discriminator_forward.9} parent=0 // loop_header_branch
    %18 = sbr.rel (%p16) target = $region8
  $region5: #{discriminator_forward.9} parent=0 // loop_body
    %s20 = ssub.s32 %s15, 1
    %s21 = ssub.s32 %s15, 2
    %s22 = sadd.s32 %s15, 1
    %s23 = ssub.s32 %s15, %s22
    %p24 = scmp.eq.s32.totalorder %s23, 0
    %s26 = sadd.s32 %s25, 1
    %s27 = scalar_select %p24, %s25, %s26
    %p30 = pneg %p24
    %p31 = scmp.eq.s32.totalorder %s15, 3
    %p32 = por %p30, %p31
    %p33 = scmp.ne.s32.totalorder %s25, %s28
    %p34 = scmp.eq.s32.totalorder %s15, 0
    %p35 = por %p33, %p34
    %p36 = scmp.ne.s32.totalorder %s25, %s28
    %p37 = scmp.eq.s32.totalorder %s20, 3
    %p38 = por %p36, %p37
    %p39 = scmp.ne.s32.totalorder %s28, %s29
    %p40 = scmp.eq.s32.totalorder %s20, 0
    %p41 = por %p39, %p40
    %p42 = scmp.ne.s32.totalorder %s28, %s29
    %p43 = scmp.eq.s32.totalorder %s21, 3
    %p44 = por %p42, %p43
    %p46 = scmp.ne.s32.totalorder %s29, %s45
    %p47 = scmp.eq.s32.totalorder %s21, 0
    %p48 = por %p46, %p47
    %s49 = ssub.s32 %s15, %s22
    %p50 = scmp.eq.s32.totalorder %s49, 0
    %s52 = sadd.s32 %s51, 1
    %s53 = scalar_select %p50, %s51, %s52
    %p56 = pneg %p50
    %p57 = scmp.eq.s32.totalorder %s15, 3
    %p58 = por %p56, %p57
    %p59 = scmp.ne.s32.totalorder %s51, %s54
    %p60 = scmp.eq.s32.totalorder %s15, 0
    %p61 = por %p59, %p60
    %p62 = scmp.ne.s32.totalorder %s51, %s54
    %p63 = scmp.eq.s32.totalorder %s20, 3
    %p64 = por %p62, %p63
    %p65 = scmp.ne.s32.totalorder %s54, %s55
    %p66 = scmp.eq.s32.totalorder %s20, 0
    %p67 = por %p65, %p66
    %p68 = scmp.ne.s32.totalorder %s54, %s55
    %p69 = scmp.eq.s32.totalorder %s21, 3
    %p70 = por %p68, %p69
    %p72 = scmp.ne.s32.totalorder %s55, %s71
    %p73 = scmp.eq.s32.totalorder %s21, 0
    %p74 = por %p72, %p73
    %s76 = sadd.s32 %s75, 1
    %p79 = scmp.eq.s32.totalorder %s15, 3
    %p80 = scmp.ne.s32.totalorder %s75, %s77
    %p81 = scmp.eq.s32.totalorder %s15, 0
    %p82 = por %p80, %p81
    %p83 = scmp.ne.s32.totalorder %s75, %s77
    %p84 = scmp.eq.s32.totalorder %s20, 3
    %p85 = por %p83, %p84
    %p86 = scmp.ne.s32.totalorder %s77, %s78
    %p87 = scmp.eq.s32.totalorder %s20, 0
    %p88 = por %p86, %p87
    %p89 = scmp.ne.s32.totalorder %s77, %s78
    %p90 = scmp.eq.s32.totalorder %s21, 3
    %p91 = por %p89, %p90
    %p93 = scmp.ne.s32.totalorder %s78, %s92
    %p94 = scmp.eq.s32.totalorder %s21, 0
    %p95 = por %p93, %p94
    %s97 = sadd.s32 %s96, 1
    %p100 = scmp.eq.s32.totalorder %s15, 3
    %p101 = scmp.ne.s32.totalorder %s96, %s98
    %p102 = scmp.eq.s32.totalorder %s15, 0
    %p103 = por %p101, %p102
    %p104 = scmp.ne.s32.totalorder %s96, %s98
    %p105 = scmp.eq.s32.totalorder %s20, 3
    %p106 = por %p104, %p105
    %p107 = scmp.ne.s32.totalorder %s98, %s99
    %p108 = scmp.eq.s32.totalorder %s20, 0
    %p109 = por %p107, %p108
    %p110 = scmp.ne.s32.totalorder %s98, %s99
    %p111 = scmp.eq.s32.totalorder %s21, 3
    %p112 = por %p110, %p111
    %p114 = scmp.ne.s32.totalorder %s99, %s113
    %p115 = scmp.eq.s32.totalorder %s21, 0
    %p116 = por %p114, %p115
    %s118 = sadd.s32 %s117, 1
    %p121 = scmp.eq.s32.totalorder %s15, 3
    %p122 = scmp.ne.s32.totalorder %s117, %s119
    %p123 = scmp.eq.s32.totalorder %s15, 0
    %p124 = por %p122, %p123
    %p125 = scmp.ne.s32.totalorder %s117, %s119
    %p126 = scmp.eq.s32.totalorder %s20, 3
    %p127 = por %p125, %p126
    %p128 = scmp.ne.s32.totalorder %s119, %s120
    %p129 = scmp.eq.s32.totalorder %s20, 0
    %p130 = por %p128, %p129
    %p131 = scmp.ne.s32.totalorder %s119, %s120
    %p132 = scmp.eq.s32.totalorder %s21, 3
    %p133 = por %p131, %p132
    %p135 = scmp.ne.s32.totalorder %s120, %s134
    %p136 = scmp.eq.s32.totalorder %s21, 0
    %p137 = por %p135, %p136
    %s139 = sadd.s32 %s138, 1
    %p142 = scmp.eq.s32.totalorder %s15, 3
    %p143 = scmp.ne.s32.totalorder %s138, %s140
    %p144 = scmp.eq.s32.totalorder %s15, 0
    %p145 = por %p143, %p144
    %p146 = scmp.ne.s32.totalorder %s138, %s140
    %p147 = scmp.eq.s32.totalorder %s20, 3
    %p148 = por %p146, %p147
    %p149 = scmp.ne.s32.totalorder %s140, %s141
    %p150 = scmp.eq.s32.totalorder %s20, 0
    %p151 = por %p149, %p150
    %p152 = scmp.ne.s32.totalorder %s140, %s141
    %p153 = scmp.eq.s32.totalorder %s21, 3
    %p154 = por %p152, %p153
    %p156 = scmp.ne.s32.totalorder %s141, %s155
    %p157 = scmp.eq.s32.totalorder %s21, 0
    %p158 = por %p156, %p157
    %s160 = sadd.s32 %s159, 1
    %p163 = scmp.eq.s32.totalorder %s15, 3
    %p164 = scmp.ne.s32.totalorder %s159, %s161
    %p165 = scmp.eq.s32.totalorder %s15, 0
    %p166 = por %p164, %p165
    %p167 = scmp.ne.s32.totalorder %s159, %s161
    %p168 = scmp.eq.s32.totalorder %s20, 3
    %p169 = por %p167, %p168
    %p170 = scmp.ne.s32.totalorder %s161, %s162
    %p171 = scmp.eq.s32.totalorder %s20, 0
    %p172 = por %p170, %p171
    %p173 = scmp.ne.s32.totalorder %s161, %s162
    %p174 = scmp.eq.s32.totalorder %s21, 3
    %p175 = por %p173, %p174
    %p177 = scmp.ne.s32.totalorder %s162, %s176
    %p178 = scmp.eq.s32.totalorder %s21, 0
    %p179 = por %p177, %p178
    %s181 = sadd.s32 %s180, 1
    %p184 = scmp.eq.s32.totalorder %s15, 3
    %p185 = scmp.ne.s32.totalorder %s180, %s182
    %p186 = scmp.eq.s32.totalorder %s15, 0
    %p187 = por %p185, %p186
    %p188 = scmp.ne.s32.totalorder %s180, %s182
    %p189 = scmp.eq.s32.totalorder %s20, 3
    %p190 = por %p188, %p189
    %p191 = scmp.ne.s32.totalorder %s182, %s183
    %p192 = scmp.eq.s32.totalorder %s20, 0
    %p193 = por %p191, %p192
    %p194 = scmp.ne.s32.totalorder %s182, %s183
    %p195 = scmp.eq.s32.totalorder %s21, 3
    %p196 = por %p194, %p195
    %p198 = scmp.ne.s32.totalorder %s183, %s197
    %p199 = scmp.eq.s32.totalorder %s21, 0
    %p200 = por %p198, %p199
    %p201 = scmp.le.s32.totalorder 1, %s15
    %p202 = scmp.lt.s32.totalorder %s15, 5
    %p203 = pnand %p201, %p202
    %p204 = pneg %p203
    // Predicated region
    $region9: #{discriminator_forward.9} parent=5 // pred_check
      _
    $region10: #{discriminator_forward.9} parent=5 // pred_check_branch
      %206 = sbr.rel (%p203) target = $region12
    $region11: #{discriminator_forward.9} parent=5 // pred_region
      %s207 = ssub.s32 %s15, 1
      // Predicated region
      $region13: #{discriminator_forward.9} parent=11 // pred_check
        %p208 = pneg %p88
      $region14: #{discriminator_forward.9} parent=11 // pred_check_branch
        %210 = sbr.rel (%p208) target = $region16
      $region15: #{discriminator_forward.9} parent=11 // pred_region
        _
      $region16: #{discriminator_forward.9} parent=11 // pred_fallthru
        _
      // Predicated region
      $region17: #{discriminator_forward.9} parent=11 // pred_check
        %p211 = pneg %p109
      $region18: #{discriminator_forward.9} parent=11 // pred_check_branch
        %213 = sbr.rel (%p211) target = $region20
      $region19: #{discriminator_forward.9} parent=11 // pred_region
        _
      $region20: #{discriminator_forward.9} parent=11 // pred_fallthru
        _
      // Predicated region
      $region21: #{discriminator_forward.9} parent=11 // pred_check
        %p214 = pneg %p130
      $region22: #{discriminator_forward.9} parent=11 // pred_check_branch
        %216 = sbr.rel (%p214) target = $region24
      $region23: #{discriminator_forward.9} parent=11 // pred_region
        _
      $region24: #{discriminator_forward.9} parent=11 // pred_fallthru
        _
      // Predicated region
      $region25: #{discriminator_forward.9} parent=11 // pred_check
        %p217 = pneg %p151
      $region26: #{discriminator_forward.9} parent=11 // pred_check_branch
        %219 = sbr.rel (%p217) target = $region28
      $region27: #{discriminator_forward.9} parent=11 // pred_region
        _
      $region28: #{discriminator_forward.9} parent=11 // pred_fallthru
        _
      // Predicated region
      $region29: #{discriminator_forward.9} parent=11 // pred_check
        %p220 = pneg %p172
      $region30: #{discriminator_forward.9} parent=11 // pred_check_branch
        %222 = sbr.rel (%p220) target = $region32
      $region31: #{discriminator_forward.9} parent=11 // pred_region
        _
      $region32: #{discriminator_forward.9} parent=11 // pred_fallthru
        _
    $region12: #{discriminator_forward.9} parent=5 // pred_fallthru
      _
    %p223 = scmp.lt.s32.totalorder %s15, 4
    // Predicated region
    $region33: #{discriminator_forward.9} parent=5 // pred_check
      %p224 = pneg %p223
    $region34: #{discriminator_forward.9} parent=5 // pred_check_branch
      %226 = sbr.rel (%p224) target = $region36
    $region35: #{discriminator_forward.9} parent=5 // pred_region
      // Predicated region
      $region37: #{discriminator_forward.9} parent=35 // pred_check
        %p227 = pneg %p35
      $region38: #{discriminator_forward.9} parent=35 // pred_check_branch
        %229 = sbr.rel (%p227) target = $region40
      $region39: #{discriminator_forward.9} parent=35 // pred_region
        %s230 = smul.u32 4, %s15
        %p231 = scmp.lt.s32.totalorder %s230, 15
        %s232 = scalar_select %p231, %s230, 15
        %s233 = scalar_lea.vmem %s0, %s232
        %s234 = smul.u32 4, %s15
      $region40: #{discriminator_forward.9} parent=35 // pred_fallthru
        _
      // Predicated region
      $region41: #{discriminator_forward.9} parent=35 // pred_check
        %p235 = pneg %p61
      $region42: #{discriminator_forward.9} parent=35 // pred_check_branch
        %237 = sbr.rel (%p235) target = $region44
      $region43: #{discriminator_forward.9} parent=35 // pred_region
        %s238 = smul.u32 64, %s15
        %p239 = scmp.lt.s32.totalorder %s238, 255
        %s240 = scalar_select %p239, %s238, 255
        %s241 = smul.addr %s240, 4
        %s242 = smul.addr %s241, 4
        %s243 = scalar_lea.vmem %s1, %s242
        %s244 = smul.u32 64, %s15
      $region44: #{discriminator_forward.9} parent=35 // pred_fallthru
        _
    $region36: #{discriminator_forward.9} parent=5 // pred_fallthru
      _
    %p245 = scmp.le.s32.totalorder 1, %s15
    %p246 = scmp.lt.s32.totalorder %s15, 5
    %p247 = pnand %p245, %p246
    %p248 = pneg %p247
    // Predicated region
    $region45: #{discriminator_forward.9} parent=5 // pred_check
      _
    $region46: #{discriminator_forward.9} parent=5 // pred_check_branch
      %250 = sbr.rel (%p247) target = $region48
    $region47: #{discriminator_forward.9} parent=5 // pred_region
      %s251 = ssub.s32 %s15, 1
      %s252 = smul.u32 4, %s20
      %p253 = scmp.lt.s32.totalorder %s252, 15
      %s254 = scalar_select %p253, %s252, 15
      %s255 = scalar_lea.vmem %s0, %s254
      %p256 = pneg %p41
      %p257 = pneg %p38
      %s258 = smul.u32 64, %s20
      %p259 = scmp.lt.s32.totalorder %s258, 255
      %s260 = scalar_select %p259, %s258, 255
      %s261 = smul.addr %s260, 4
      %s262 = smul.addr %s261, 4
      %s263 = scalar_lea.vmem %s1, %s262
      %p264 = pneg %p67
      %p265 = pneg %p64
      %p266 = pneg %p88
      %p267 = pneg %p85
      %p268 = pneg %p109
      %p269 = pneg %p106
      %p270 = pneg %p130
      %p271 = pneg %p127
      %p272 = pneg %p151
      %p273 = pneg %p148
      %p274 = pneg %p172
      %p275 = pneg %p169
      %p276 = pneg %p193
      %p277 = pneg %p190
      %s278 = smul.u32 4, %s20
      %p279 = scmp.lt.s32.totalorder %s278, 15
      %s280 = scalar_select %p279, %s278, 15
      %s281 = scalar_lea.vmem %s0, %s280
      %s282 = smul.u32 4, %s20
      %s283 = smul.u32 64, %s20
      %p284 = scmp.lt.s32.totalorder %s283, 255
      %s285 = scalar_select %p284, %s283, 255
      %s286 = smul.addr %s285, 4
      %s287 = smul.addr %s286, 4
      %s288 = scalar_lea.vmem %s1, %s287
      %s289 = smul.u32 64, %s20
      %p291 = scmp.eq.s32.totalorder %s20, 0
      // Predicated region
      $region49: #{discriminator_forward.9} parent=47 // pred_check
        %p292 = pneg %p291
      $region50: #{discriminator_forward.9} parent=47 // pred_check_branch
        %294 = sbr.rel (%p292) target = $region52
      $region51: #{discriminator_forward.9} parent=47 // pred_region
        %v295 = vld [vmem:[%s2] sm:$0x1]
        %v296 = vld [vmem:[%s3] sm:$0xff]
        %v297 = vld [vmem:[%s3 + $0x8] sm:$0xff]
        %v298 = vld [vmem:[%s3 + $0x10] sm:$0xff]
        %v299 = vld [vmem:[%s3 + $0x18] sm:$0xff]
        %v300 = vld [vmem:[%s4] sm:$0xf]
        %v302 = vlaneseq
        %v303 = vshrl.u32 %v302, 7
        %v304 = vsub.s32 0, %v303
        %v305 = vrot.slane %v300, %v304
        %v306 = vlaneseq
        %v307 = vshrl.u32 %v306, 7
        %v308 = vsub.s32 1, %v307
        %v309 = vrot.slane %v300, %v308
        %v310 = vlaneseq
        %v311 = vshrl.u32 %v310, 7
        %v312 = vsub.s32 2, %v311
        %v313 = vrot.slane %v300, %v312
        %v314 = vlaneseq
        %v315 = vshrl.u32 %v314, 7
        %v316 = vsub.s32 3, %v315
        %v317 = vrot.slane %v300, %v316
        %v326 = vunpack.c.l.b16 %v296
        %v327 = vunpack.c.h.b16 %v296
        %v328 = vunpack.c.l.b16 %v297
        %v329 = vunpack.c.h.b16 %v297
        %v330 = vunpack.c.l.b16 %v298
        %v331 = vunpack.c.h.b16 %v298
        %v332 = vunpack.c.l.b16 %v299
        %v333 = vunpack.c.h.b16 %v299
        %v334 = vpack.c.b16 %v330, %v326
        %v335 = vpack.c.b16 %v331, %v327
        %v336 = vpack.c.b16 %v332, %v328
        %v337 = vpack.c.b16 %v333, %v329
        %vm342 = vcmask 130048
        %v344 = vsel %vm342, %v295, 0
        %346 = vmatprep.subr.bf16.mxu0 %v335
        %347 = vmatpush1.bf16.msra.mxu0 %v334
        %348 = vmatprep.subr.bf16.mxu0 0
        %349 = vmatpush1.bf16.msra.mxu0 0
        %350 = vmatprep.subr.bf16.mxu0 0
        %351 = vmatpush1.bf16.msra.mxu0 0
        %352 = vmatprep.subr.bf16.mxu0 0
        %353 = vmatpush1.bf16.msra.mxu0 0
        %354 = vmatprep.subr.bf16.mxu0 0
        %355 = vmatpush1.bf16.msra.mxu0 0
        %356 = vmatprep.subr.bf16.mxu0 0
        %357 = vmatpush1.bf16.msra.mxu0 0
        %358 = vmatprep.subr.bf16.mxu0 0
        %359 = vmatpush1.bf16.msra.mxu0 0
        %360 = vmatprep.subr.bf16.mxu0 0
        %361 = vmatpush1.bf16.msra.mxu0 0
        %362 = vmatprep.subr.bf16.mxu0 0
        %363 = vmatpush1.bf16.msra.mxu0 0
        %364 = vmatprep.subr.bf16.mxu0 0
        %365 = vmatpush1.bf16.msra.mxu0 0
        %366 = vmatprep.subr.bf16.mxu0 0
        %367 = vmatpush1.bf16.msra.mxu0 0
        %368 = vmatprep.subr.bf16.mxu0 0
        %369 = vmatpush1.bf16.msra.mxu0 0
        %370 = vmatprep.subr.bf16.mxu0 0
        %371 = vmatpush1.bf16.msra.mxu0 0
        %372 = vmatprep.subr.bf16.mxu0 0
        %373 = vmatpush1.bf16.msra.mxu0 0
        %374 = vmatprep.subr.bf16.mxu0 0
        %375 = vmatpush1.bf16.msra.mxu0 0
        %376 = vmatprep.subr.bf16.mxu0 0
        %377 = vmatpush1.bf16.msra.mxu0 0
        %378 = vmatprep.mubr.bf16.mxu0 0
        %379 = vmatmul.mubr.bf16.gmra.mrb[0].mxu0 %v344
        %v380 = vpop.f32.mrb[0].mxu0
        %v381 = vadd.f32 %v305, %v380
        %v382 = vpop.f32.mrb[0].mxu0
        %v383 = vadd.f32 %v309, %v382
        %v384 = vpop.f32.mrb[0].mxu0
        %v385 = vpop.f32.mrb[0].mxu0
        %386 = vdwg.mxu0
        %387 = vmatprep.subr.bf16.mxu0 %v337
        %388 = vmatpush1.bf16.msra.mxu0 %v336
        %389 = vmatprep.subr.bf16.mxu0 0
        %390 = vmatpush1.bf16.msra.mxu0 0
        %391 = vmatprep.subr.bf16.mxu0 0
        %392 = vmatpush1.bf16.msra.mxu0 0
        %393 = vmatprep.subr.bf16.mxu0 0
        %394 = vmatpush1.bf16.msra.mxu0 0
        %395 = vmatprep.subr.bf16.mxu0 0
        %396 = vmatpush1.bf16.msra.mxu0 0
        %397 = vmatprep.subr.bf16.mxu0 0
        %398 = vmatpush1.bf16.msra.mxu0 0
        %399 = vmatprep.subr.bf16.mxu0 0
        %400 = vmatpush1.bf16.msra.mxu0 0
        %401 = vmatprep.subr.bf16.mxu0 0
        %402 = vmatpush1.bf16.msra.mxu0 0
        %403 = vmatprep.subr.bf16.mxu0 0
        %404 = vmatpush1.bf16.msra.mxu0 0
        %405 = vmatprep.subr.bf16.mxu0 0
        %406 = vmatpush1.bf16.msra.mxu0 0
        %407 = vmatprep.subr.bf16.mxu0 0
        %408 = vmatpush1.bf16.msra.mxu0 0
        %409 = vmatprep.subr.bf16.mxu0 0
        %410 = vmatpush1.bf16.msra.mxu0 0
        %411 = vmatprep.subr.bf16.mxu0 0
        %412 = vmatpush1.bf16.msra.mxu0 0
        %413 = vmatprep.subr.bf16.mxu0 0
        %414 = vmatpush1.bf16.msra.mxu0 0
        %415 = vmatprep.subr.bf16.mxu0 0
        %416 = vmatpush1.bf16.msra.mxu0 0
        %417 = vmatprep.subr.bf16.mxu0 0
        %418 = vmatpush1.bf16.msra.mxu0 0
        %419 = vmatprep.mubr.bf16.mxu0 0
        %420 = vmatmul.mubr.bf16.gmra.mrb[0].mxu0 %v344
        %v421 = vpop.f32.mrb[0].mxu0
        %v422 = vadd.f32 %v313, %v421
        %v423 = vpop.f32.mrb[0].mxu0
        %v424 = vadd.f32 %v317, %v423
        %v425 = vpop.f32.mrb[0].mxu0
        %v426 = vpop.f32.mrb[0].mxu0
        %427 = vdwg.mxu0
        %v432 = vcombine.low %v381, %v383
        %v433 = vcombine.low %v422, %v424
        %v435 = vunpack.c.l.s4 1983009808
        %v436 = vunpack.c.0.s8 %v435
        %v437 = vlaneseq
        %v438 = vshrl.u32 %v437, 7
        %v439 = vsub.s32 %v436, %v438
        %v440 = vrot.slane %v432, %v439
        %v442 = vunpack.c.l.s4 1983009808
        %v443 = vunpack.c.0.s8 %v442
        %v444 = vlaneseq
        %v445 = vshrl.u32 %v444, 7
        %v446 = vsub.s32 %v443, %v445
        %v447 = vrot.slane %v433, %v446
        %v448 = vcombine.low %v440, %v447
        %450 = vst [vmem:[#allocation2] sm:$0xff] %v448
      $region52: #{discriminator_forward.9} parent=47 // pred_fallthru
        _
      %v451 = vld [vmem:[#allocation2] sm:$0xff]
      %v452 = vld [vmem:[%s281] sm:$0xf]
      %v453 = vld [vmem:[%s288] sm:$0xff]
      %v454 = vld [vmem:[%s288 + $0x8] sm:$0xff]
      %v455 = vld [vmem:[%s288 + $0x10] sm:$0xff]
      %v456 = vld [vmem:[%s288 + $0x18] sm:$0xff]
      %v457 = vld [vmem:[%s288 + $0x20] sm:$0xff]
      %v458 = vld [vmem:[%s288 + $0x28] sm:$0xff]
      %v459 = vld [vmem:[%s288 + $0x30] sm:$0xff]
      %v460 = vld [vmem:[%s288 + $0x38] sm:$0xff]
      %v461 = vld [vmem:[%s288 + $0x40] sm:$0xff]
      %v462 = vld [vmem:[%s288 + $0x48] sm:$0xff]
      %v463 = vld [vmem:[%s288 + $0x50] sm:$0xff]
      %v464 = vld [vmem:[%s288 + $0x58] sm:$0xff]
      %v465 = vld [vmem:[%s288 + $0x60] sm:$0xff]
      %v466 = vld [vmem:[%s288 + $0x68] sm:$0xff]
      %v467 = vld [vmem:[%s288 + $0x70] sm:$0xff]
      %v468 = vld [vmem:[%s288 + $0x78] sm:$0xff]
      %v469 = vld [vmem:[%s288 + $0x80] sm:$0xff]
      %v470 = vld [vmem:[%s288 + $0x88] sm:$0xff]
      %v471 = vld [vmem:[%s288 + $0x90] sm:$0xff]
      %v472 = vld [vmem:[%s288 + $0x98] sm:$0xff]
      %v473 = vld [vmem:[%s288 + $0xa0] sm:$0xff]
      %v474 = vld [vmem:[%s288 + $0xa8] sm:$0xff]
      %v475 = vld [vmem:[%s288 + $0xb0] sm:$0xff]
      %v476 = vld [vmem:[%s288 + $0xb8] sm:$0xff]
      %v477 = vld [vmem:[%s288 + $0xc0] sm:$0xff]
      %v478 = vld [vmem:[%s288 + $0xc8] sm:$0xff]
      %v479 = vld [vmem:[%s288 + $0xd0] sm:$0xff]
      %v480 = vld [vmem:[%s288 + $0xd8] sm:$0xff]
      %v481 = vld [vmem:[%s288 + $0xe0] sm:$0xff]
      %v482 = vld [vmem:[%s288 + $0xe8] sm:$0xff]
      %v483 = vld [vmem:[%s288 + $0xf0] sm:$0xff]
      %v484 = vld [vmem:[%s288 + $0xf8] sm:$0xff]
      %v485 = vld [vmem:[%s288 + $0x100] sm:$0xff]
      %v486 = vld [vmem:[%s288 + $0x108] sm:$0xff]
      %v487 = vld [vmem:[%s288 + $0x110] sm:$0xff]
      %v488 = vld [vmem:[%s288 + $0x118] sm:$0xff]
      %v489 = vld [vmem:[%s288 + $0x120] sm:$0xff]
      %v490 = vld [vmem:[%s288 + $0x128] sm:$0xff]
      %v491 = vld [vmem:[%s288 + $0x130] sm:$0xff]
      %v492 = vld [vmem:[%s288 + $0x138] sm:$0xff]
      %v493 = vld [vmem:[%s288 + $0x140] sm:$0xff]
      %v494 = vld [vmem:[%s288 + $0x148] sm:$0xff]
      %v495 = vld [vmem:[%s288 + $0x150] sm:$0xff]
      %v496 = vld [vmem:[%s288 + $0x158] sm:$0xff]
      %v497 = vld [vmem:[%s288 + $0x160] sm:$0xff]
      %v498 = vld [vmem:[%s288 + $0x168] sm:$0xff]
      %v499 = vld [vmem:[%s288 + $0x170] sm:$0xff]
      %v500 = vld [vmem:[%s288 + $0x178] sm:$0xff]
      %v501 = vld [vmem:[%s288 + $0x180] sm:$0xff]
      %v502 = vld [vmem:[%s288 + $0x188] sm:$0xff]
      %v503 = vld [vmem:[%s288 + $0x190] sm:$0xff]
      %v504 = vld [vmem:[%s288 + $0x198] sm:$0xff]
      %v505 = vld [vmem:[%s288 + $0x1a0] sm:$0xff]
      %v506 = vld [vmem:[%s288 + $0x1a8] sm:$0xff]
      %v507 = vld [vmem:[%s288 + $0x1b0] sm:$0xff]
      %v508 = vld [vmem:[%s288 + $0x1b8] sm:$0xff]
      %v509 = vld [vmem:[%s288 + $0x1c0] sm:$0xff]
      %v510 = vld [vmem:[%s288 + $0x1c8] sm:$0xff]
      %v511 = vld [vmem:[%s288 + $0x1d0] sm:$0xff]
      %v512 = vld [vmem:[%s288 + $0x1d8] sm:$0xff]
      %v513 = vld [vmem:[%s288 + $0x1e0] sm:$0xff]
      %v514 = vld [vmem:[%s288 + $0x1e8] sm:$0xff]
      %v515 = vld [vmem:[%s288 + $0x1f0] sm:$0xff]
      %v516 = vld [vmem:[%s288 + $0x1f8] sm:$0xff]
      %v517 = vld [vmem:[%s288 + $0x200] sm:$0xff]
      %v518 = vld [vmem:[%s288 + $0x208] sm:$0xff]
      %v519 = vld [vmem:[%s288 + $0x210] sm:$0xff]
      %v520 = vld [vmem:[%s288 + $0x218] sm:$0xff]
      %v521 = vld [vmem:[%s288 + $0x220] sm:$0xff]
      %v522 = vld [vmem:[%s288 + $0x228] sm:$0xff]
      %v523 = vld [vmem:[%s288 + $0x230] sm:$0xff]
      %v524 = vld [vmem:[%s288 + $0x238] sm:$0xff]
      %v525 = vld [vmem:[%s288 + $0x240] sm:$0xff]
      %v526 = vld [vmem:[%s288 + $0x248] sm:$0xff]
      %v527 = vld [vmem:[%s288 + $0x250] sm:$0xff]
      %v528 = vld [vmem:[%s288 + $0x258] sm:$0xff]
      %v529 = vld [vmem:[%s288 + $0x260] sm:$0xff]
      %v530 = vld [vmem:[%s288 + $0x268] sm:$0xff]
      %v531 = vld [vmem:[%s288 + $0x270] sm:$0xff]
      %v532 = vld [vmem:[%s288 + $0x278] sm:$0xff]
      %v533 = vld [vmem:[%s288 + $0x280] sm:$0xff]
      %v534 = vld [vmem:[%s288 + $0x288] sm:$0xff]
      %v535 = vld [vmem:[%s288 + $0x290] sm:$0xff]
      %v536 = vld [vmem:[%s288 + $0x298] sm:$0xff]
      %v537 = vld [vmem:[%s288 + $0x2a0] sm:$0xff]
      %v538 = vld [vmem:[%s288 + $0x2a8] sm:$0xff]
      %v539 = vld [vmem:[%s288 + $0x2b0] sm:$0xff]
      %v540 = vld [vmem:[%s288 + $0x2b8] sm:$0xff]
      %v541 = vld [vmem:[%s288 + $0x2c0] sm:$0xff]
      %v542 = vld [vmem:[%s288 + $0x2c8] sm:$0xff]
      %v543 = vld [vmem:[%s288 + $0x2d0] sm:$0xff]
      %v544 = vld [vmem:[%s288 + $0x2d8] sm:$0xff]
      %v545 = vld [vmem:[%s288 + $0x2e0] sm:$0xff]
      %v546 = vld [vmem:[%s288 + $0x2e8] sm:$0xff]
      %v547 = vld [vmem:[%s288 + $0x2f0] sm:$0xff]
      %v548 = vld [vmem:[%s288 + $0x2f8] sm:$0xff]
      %v549 = vld [vmem:[%s288 + $0x300] sm:$0xff]
      %v550 = vld [vmem:[%s288 + $0x308] sm:$0xff]
      %v551 = vld [vmem:[%s288 + $0x310] sm:$0xff]
      %v552 = vld [vmem:[%s288 + $0x318] sm:$0xff]
      %v553 = vld [vmem:[%s288 + $0x320] sm:$0xff]
      %v554 = vld [vmem:[%s288 + $0x328] sm:$0xff]
      %v555 = vld [vmem:[%s288 + $0x330] sm:$0xff]
      %v556 = vld [vmem:[%s288 + $0x338] sm:$0xff]
      %v557 = vld [vmem:[%s288 + $0x340] sm:$0xff]
      %v558 = vld [vmem:[%s288 + $0x348] sm:$0xff]
      %v559 = vld [vmem:[%s288 + $0x350] sm:$0xff]
      %v560 = vld [vmem:[%s288 + $0x358] sm:$0xff]
      %v561 = vld [vmem:[%s288 + $0x360] sm:$0xff]
      %v562 = vld [vmem:[%s288 + $0x368] sm:$0xff]
      %v563 = vld [vmem:[%s288 + $0x370] sm:$0xff]
      %v564 = vld [vmem:[%s288 + $0x378] sm:$0xff]
      %v565 = vld [vmem:[%s288 + $0x380] sm:$0xff]
      %v566 = vld [vmem:[%s288 + $0x388] sm:$0xff]
      %v567 = vld [vmem:[%s288 + $0x390] sm:$0xff]
      %v568 = vld [vmem:[%s288 + $0x398] sm:$0xff]
      %v569 = vld [vmem:[%s288 + $0x3a0] sm:$0xff]
      %v570 = vld [vmem:[%s288 + $0x3a8] sm:$0xff]
      %v571 = vld [vmem:[%s288 + $0x3b0] sm:$0xff]
      %v572 = vld [vmem:[%s288 + $0x3b8] sm:$0xff]
      %v573 = vld [vmem:[%s288 + $0x3c0] sm:$0xff]
      %v574 = vld [vmem:[%s288 + $0x3c8] sm:$0xff]
      %v575 = vld [vmem:[%s288 + $0x3d0] sm:$0xff]
      %v576 = vld [vmem:[%s288 + $0x3d8] sm:$0xff]
      %v577 = vld [vmem:[%s288 + $0x3e0] sm:$0xff]
      %v578 = vld [vmem:[%s288 + $0x3e8] sm:$0xff]
      %v579 = vld [vmem:[%s288 + $0x3f0] sm:$0xff]
      %v580 = vld [vmem:[%s288 + $0x3f8] sm:$0xff]
      %v583 = vunpack.c.l.s4 1966171168
      %v584 = vunpack.c.0.s8 %v583
      %v585 = vlaneseq
      %v586 = vshrl.u32 %v585, 7
      %v587 = vsub.s32 %v584, %v586
      %v588 = vrot.slane %v452, %v587
      %v589 = vcombine.high %v588, %v588
      %v591 = vunpack.c.l.s4 1966171168
      %v592 = vunpack.c.0.s8 %v591
      %v593 = vlaneseq
      %v594 = vshrl.u32 %v593, 7
      %v595 = vsub.s32 %v592, %v594
      %v596 = vrot.slane %v588, %v595
      %v598 = vunpack.c.l.s4 1966171168
      %v599 = vunpack.c.0.s8 %v598
      %v600 = vlaneseq
      %v601 = vshrl.u32 %v600, 7
      %v602 = vsub.s32 %v599, %v601
      %v603 = vrot.slane %v589, %v602
      %v604 = vcombine.high %v596, %v596
      %v605 = vcombine.high %v603, %v603
      %v738 = vunpack.c.l.b16 %v453
      %v739 = vunpack.c.h.b16 %v453
      %v740 = vunpack.c.l.b16 %v454
      %v741 = vunpack.c.h.b16 %v454
      %v742 = vunpack.c.l.b16 %v455
      %v743 = vunpack.c.h.b16 %v455
      %v744 = vunpack.c.l.b16 %v456
      %v745 = vunpack.c.h.b16 %v456
      %v746 = vunpack.c.l.b16 %v457
      %v747 = vunpack.c.h.b16 %v457
      %v748 = vunpack.c.l.b16 %v458
      %v749 = vunpack.c.h.b16 %v458
      %v750 = vunpack.c.l.b16 %v459
      %v751 = vunpack.c.h.b16 %v459
      %v752 = vunpack.c.l.b16 %v460
      %v753 = vunpack.c.h.b16 %v460
      %v754 = vunpack.c.l.b16 %v461
      %v755 = vunpack.c.h.b16 %v461
      %v756 = vunpack.c.l.b16 %v462
      %v757 = vunpack.c.h.b16 %v462
      %v758 = vunpack.c.l.b16 %v463
      %v759 = vunpack.c.h.b16 %v463
      %v760 = vunpack.c.l.b16 %v464
      %v761 = vunpack.c.h.b16 %v464
      %v762 = vunpack.c.l.b16 %v465
      %v763 = vunpack.c.h.b16 %v465
      %v764 = vunpack.c.l.b16 %v466
      %v765 = vunpack.c.h.b16 %v466
      %v766 = vunpack.c.l.b16 %v467
      %v767 = vunpack.c.h.b16 %v467
      %v768 = vunpack.c.l.b16 %v468
      %v769 = vunpack.c.h.b16 %v468
      %v770 = vunpack.c.l.b16 %v469
      %v771 = vunpack.c.h.b16 %v469
      %v772 = vunpack.c.l.b16 %v470
      %v773 = vunpack.c.h.b16 %v470
      %v774 = vunpack.c.l.b16 %v471
      %v775 = vunpack.c.h.b16 %v471
      %v776 = vunpack.c.l.b16 %v472
      %v777 = vunpack.c.h.b16 %v472
      %v778 = vunpack.c.l.b16 %v473
      %v779 = vunpack.c.h.b16 %v473
      %v780 = vunpack.c.l.b16 %v474
      %v781 = vunpack.c.h.b16 %v474
      %v782 = vunpack.c.l.b16 %v475
      %v783 = vunpack.c.h.b16 %v475
      %v784 = vunpack.c.l.b16 %v476
      %v785 = vunpack.c.h.b16 %v476
      %v786 = vunpack.c.l.b16 %v477
      %v787 = vunpack.c.h.b16 %v477
      %v788 = vunpack.c.l.b16 %v478
      %v789 = vunpack.c.h.b16 %v478
      %v790 = vunpack.c.l.b16 %v479
      %v791 = vunpack.c.h.b16 %v479
      %v792 = vunpack.c.l.b16 %v480
      %v793 = vunpack.c.h.b16 %v480
      %v794 = vunpack.c.l.b16 %v481
      %v795 = vunpack.c.h.b16 %v481
      %v796 = vunpack.c.l.b16 %v482
      %v797 = vunpack.c.h.b16 %v482
      %v798 = vunpack.c.l.b16 %v483
      %v799 = vunpack.c.h.b16 %v483
      %v800 = vunpack.c.l.b16 %v484
      %v801 = vunpack.c.h.b16 %v484
      %v802 = vunpack.c.l.b16 %v485
      %v803 = vunpack.c.h.b16 %v485
      %v804 = vunpack.c.l.b16 %v486
      %v805 = vunpack.c.h.b16 %v486
      %v806 = vunpack.c.l.b16 %v487
      %v807 = vunpack.c.h.b16 %v487
      %v808 = vunpack.c.l.b16 %v488
      %v809 = vunpack.c.h.b16 %v488
      %v810 = vunpack.c.l.b16 %v489
      %v811 = vunpack.c.h.b16 %v489
      %v812 = vunpack.c.l.b16 %v490
      %v813 = vunpack.c.h.b16 %v490
      %v814 = vunpack.c.l.b16 %v491
      %v815 = vunpack.c.h.b16 %v491
      %v816 = vunpack.c.l.b16 %v492
      %v817 = vunpack.c.h.b16 %v492
      %v818 = vunpack.c.l.b16 %v493
      %v819 = vunpack.c.h.b16 %v493
      %v820 = vunpack.c.l.b16 %v494
      %v821 = vunpack.c.h.b16 %v494
      %v822 = vunpack.c.l.b16 %v495
      %v823 = vunpack.c.h.b16 %v495
      %v824 = vunpack.c.l.b16 %v496
      %v825 = vunpack.c.h.b16 %v496
      %v826 = vunpack.c.l.b16 %v497
      %v827 = vunpack.c.h.b16 %v497
      %v828 = vunpack.c.l.b16 %v498
      %v829 = vunpack.c.h.b16 %v498
      %v830 = vunpack.c.l.b16 %v499
      %v831 = vunpack.c.h.b16 %v499
      %v832 = vunpack.c.l.b16 %v500
      %v833 = vunpack.c.h.b16 %v500
      %v834 = vunpack.c.l.b16 %v501
      %v835 = vunpack.c.h.b16 %v501
      %v836 = vunpack.c.l.b16 %v502
      %v837 = vunpack.c.h.b16 %v502
      %v838 = vunpack.c.l.b16 %v503
      %v839 = vunpack.c.h.b16 %v503
      %v840 = vunpack.c.l.b16 %v504
      %v841 = vunpack.c.h.b16 %v504
      %v842 = vunpack.c.l.b16 %v505
      %v843 = vunpack.c.h.b16 %v505
      %v844 = vunpack.c.l.b16 %v506
      %v845 = vunpack.c.h.b16 %v506
      %v846 = vunpack.c.l.b16 %v507
      %v847 = vunpack.c.h.b16 %v507
      %v848 = vunpack.c.l.b16 %v508
      %v849 = vunpack.c.h.b16 %v508
      %v850 = vunpack.c.l.b16 %v509
      %v851 = vunpack.c.h.b16 %v509
      %v852 = vunpack.c.l.b16 %v510
      %v853 = vunpack.c.h.b16 %v510
      %v854 = vunpack.c.l.b16 %v511
      %v855 = vunpack.c.h.b16 %v511
      %v856 = vunpack.c.l.b16 %v512
      %v857 = vunpack.c.h.b16 %v512
      %v858 = vunpack.c.l.b16 %v513
      %v859 = vunpack.c.h.b16 %v513
      %v860 = vunpack.c.l.b16 %v514
      %v861 = vunpack.c.h.b16 %v514
      %v862 = vunpack.c.l.b16 %v515
      %v863 = vunpack.c.h.b16 %v515
      %v864 = vunpack.c.l.b16 %v516
      %v865 = vunpack.c.h.b16 %v516
      %v866 = vunpack.c.l.b16 %v517
      %v867 = vunpack.c.h.b16 %v517
      %v868 = vunpack.c.l.b16 %v518
      %v869 = vunpack.c.h.b16 %v518
      %v870 = vunpack.c.l.b16 %v519
      %v871 = vunpack.c.h.b16 %v519
      %v872 = vunpack.c.l.b16 %v520
      %v873 = vunpack.c.h.b16 %v520
      %v874 = vunpack.c.l.b16 %v521
      %v875 = vunpack.c.h.b16 %v521
      %v876 = vunpack.c.l.b16 %v522
      %v877 = vunpack.c.h.b16 %v522
      %v878 = vunpack.c.l.b16 %v523
      %v879 = vunpack.c.h.b16 %v523
      %v880 = vunpack.c.l.b16 %v524
      %v881 = vunpack.c.h.b16 %v524
      %v882 = vunpack.c.l.b16 %v525
      %v883 = vunpack.c.h.b16 %v525
      %v884 = vunpack.c.l.b16 %v526
      %v885 = vunpack.c.h.b16 %v526
      %v886 = vunpack.c.l.b16 %v527
      %v887 = vunpack.c.h.b16 %v527
      %v888 = vunpack.c.l.b16 %v528
      %v889 = vunpack.c.h.b16 %v528
      %v890 = vunpack.c.l.b16 %v529
      %v891 = vunpack.c.h.b16 %v529
      %v892 = vunpack.c.l.b16 %v530
      %v893 = vunpack.c.h.b16 %v530
      %v894 = vunpack.c.l.b16 %v531
      %v895 = vunpack.c.h.b16 %v531
      %v896 = vunpack.c.l.b16 %v532
      %v897 = vunpack.c.h.b16 %v532
      %v898 = vunpack.c.l.b16 %v533
      %v899 = vunpack.c.h.b16 %v533
      %v900 = vunpack.c.l.b16 %v534
      %v901 = vunpack.c.h.b16 %v534
      %v902 = vunpack.c.l.b16 %v535
      %v903 = vunpack.c.h.b16 %v535
      %v904 = vunpack.c.l.b16 %v536
      %v905 = vunpack.c.h.b16 %v536
      %v906 = vunpack.c.l.b16 %v537
      %v907 = vunpack.c.h.b16 %v537
      %v908 = vunpack.c.l.b16 %v538
      %v909 = vunpack.c.h.b16 %v538
      %v910 = vunpack.c.l.b16 %v539
      %v911 = vunpack.c.h.b16 %v539
      %v912 = vunpack.c.l.b16 %v540
      %v913 = vunpack.c.h.b16 %v540
      %v914 = vunpack.c.l.b16 %v541
      %v915 = vunpack.c.h.b16 %v541
      %v916 = vunpack.c.l.b16 %v542
      %v917 = vunpack.c.h.b16 %v542
      %v918 = vunpack.c.l.b16 %v543
      %v919 = vunpack.c.h.b16 %v543
      %v920 = vunpack.c.l.b16 %v544
      %v921 = vunpack.c.h.b16 %v544
      %v922 = vunpack.c.l.b16 %v545
      %v923 = vunpack.c.h.b16 %v545
      %v924 = vunpack.c.l.b16 %v546
      %v925 = vunpack.c.h.b16 %v546
      %v926 = vunpack.c.l.b16 %v547
      %v927 = vunpack.c.h.b16 %v547
      %v928 = vunpack.c.l.b16 %v548
      %v929 = vunpack.c.h.b16 %v548
      %v930 = vunpack.c.l.b16 %v549
      %v931 = vunpack.c.h.b16 %v549
      %v932 = vunpack.c.l.b16 %v550
      %v933 = vunpack.c.h.b16 %v550
      %v934 = vunpack.c.l.b16 %v551
      %v935 = vunpack.c.h.b16 %v551
      %v936 = vunpack.c.l.b16 %v552
      %v937 = vunpack.c.h.b16 %v552
      %v938 = vunpack.c.l.b16 %v553
      %v939 = vunpack.c.h.b16 %v553
      %v940 = vunpack.c.l.b16 %v554
      %v941 = vunpack.c.h.b16 %v554
      %v942 = vunpack.c.l.b16 %v555
      %v943 = vunpack.c.h.b16 %v555
      %v944 = vunpack.c.l.b16 %v556
      %v945 = vunpack.c.h.b16 %v556
      %v946 = vunpack.c.l.b16 %v557
      %v947 = vunpack.c.h.b16 %v557
      %v948 = vunpack.c.l.b16 %v558
      %v949 = vunpack.c.h.b16 %v558
      %v950 = vunpack.c.l.b16 %v559
      %v951 = vunpack.c.h.b16 %v559
      %v952 = vunpack.c.l.b16 %v560
      %v953 = vunpack.c.h.b16 %v560
      %v954 = vunpack.c.l.b16 %v561
      %v955 = vunpack.c.h.b16 %v561
      %v956 = vunpack.c.l.b16 %v562
      %v957 = vunpack.c.h.b16 %v562
      %v958 = vunpack.c.l.b16 %v563
      %v959 = vunpack.c.h.b16 %v563
      %v960 = vunpack.c.l.b16 %v564
      %v961 = vunpack.c.h.b16 %v564
      %v962 = vunpack.c.l.b16 %v565
      %v963 = vunpack.c.h.b16 %v565
      %v964 = vunpack.c.l.b16 %v566
      %v965 = vunpack.c.h.b16 %v566
      %v966 = vunpack.c.l.b16 %v567
      %v967 = vunpack.c.h.b16 %v567
      %v968 = vunpack.c.l.b16 %v568
      %v969 = vunpack.c.h.b16 %v568
      %v970 = vunpack.c.l.b16 %v569
      %v971 = vunpack.c.h.b16 %v569
      %v972 = vunpack.c.l.b16 %v570
      %v973 = vunpack.c.h.b16 %v570
      %v974 = vunpack.c.l.b16 %v571
      %v975 = vunpack.c.h.b16 %v571
      %v976 = vunpack.c.l.b16 %v572
      %v977 = vunpack.c.h.b16 %v572
      %v978 = vunpack.c.l.b16 %v573
      %v979 = vunpack.c.h.b16 %v573
      %v980 = vunpack.c.l.b16 %v574
      %v981 = vunpack.c.h.b16 %v574
      %v982 = vunpack.c.l.b16 %v575
      %v983 = vunpack.c.h.b16 %v575
      %v984 = vunpack.c.l.b16 %v576
      %v985 = vunpack.c.h.b16 %v576
      %v986 = vunpack.c.l.b16 %v577
      %v987 = vunpack.c.h.b16 %v577
      %v988 = vunpack.c.l.b16 %v578
      %v989 = vunpack.c.h.b16 %v578
      %v990 = vunpack.c.l.b16 %v579
      %v991 = vunpack.c.h.b16 %v579
      %v992 = vunpack.c.l.b16 %v580
      %v993 = vunpack.c.h.b16 %v580
      %v994 = vpack.c.b16 %v742, %v738
      %v995 = vpack.c.b16 %v743, %v739
      %v996 = vpack.c.b16 %v744, %v740
      %v997 = vpack.c.b16 %v745, %v741
      %v998 = vpack.c.b16 %v750, %v746
      %v999 = vpack.c.b16 %v751, %v747
      %v1000 = vpack.c.b16 %v752, %v748
      %v1001 = vpack.c.b16 %v753, %v749
      %v1002 = vpack.c.b16 %v758, %v754
      %v1003 = vpack.c.b16 %v759, %v755
      %v1004 = vpack.c.b16 %v760, %v756
      %v1005 = vpack.c.b16 %v761, %v757
      %v1006 = vpack.c.b16 %v766, %v762
      %v1007 = vpack.c.b16 %v767, %v763
      %v1008 = vpack.c.b16 %v768, %v764
      %v1009 = vpack.c.b16 %v769, %v765
      %v1010 = vpack.c.b16 %v774, %v770
      %v1011 = vpack.c.b16 %v775, %v771
      %v1012 = vpack.c.b16 %v776, %v772
      %v1013 = vpack.c.b16 %v777, %v773
      %v1014 = vpack.c.b16 %v782, %v778
      %v1015 = vpack.c.b16 %v783, %v779
      %v1016 = vpack.c.b16 %v784, %v780
      %v1017 = vpack.c.b16 %v785, %v781
      %v1018 = vpack.c.b16 %v790, %v786
      %v1019 = vpack.c.b16 %v791, %v787
      %v1020 = vpack.c.b16 %v792, %v788
      %v1021 = vpack.c.b16 %v793, %v789
      %v1022 = vpack.c.b16 %v798, %v794
      %v1023 = vpack.c.b16 %v799, %v795
      %v1024 = vpack.c.b16 %v800, %v796
      %v1025 = vpack.c.b16 %v801, %v797
      %v1026 = vpack.c.b16 %v806, %v802
      %v1027 = vpack.c.b16 %v807, %v803
      %v1028 = vpack.c.b16 %v808, %v804
      %v1029 = vpack.c.b16 %v809, %v805
      %v1030 = vpack.c.b16 %v814, %v810
      %v1031 = vpack.c.b16 %v815, %v811
      %v1032 = vpack.c.b16 %v816, %v812
      %v1033 = vpack.c.b16 %v817, %v813
      %v1034 = vpack.c.b16 %v822, %v818
      %v1035 = vpack.c.b16 %v823, %v819
      %v1036 = vpack.c.b16 %v824, %v820
      %v1037 = vpack.c.b16 %v825, %v821
      %v1038 = vpack.c.b16 %v830, %v826
      %v1039 = vpack.c.b16 %v831, %v827
      %v1040 = vpack.c.b16 %v832, %v828
      %v1041 = vpack.c.b16 %v833, %v829
      %v1042 = vpack.c.b16 %v838, %v834
      %v1043 = vpack.c.b16 %v839, %v835
      %v1044 = vpack.c.b16 %v840, %v836
      %v1045 = vpack.c.b16 %v841, %v837
      %v1046 = vpack.c.b16 %v846, %v842
      %v1047 = vpack.c.b16 %v847, %v843
      %v1048 = vpack.c.b16 %v848, %v844
      %v1049 = vpack.c.b16 %v849, %v845
      %v1050 = vpack.c.b16 %v854, %v850
      %v1051 = vpack.c.b16 %v855, %v851
      %v1052 = vpack.c.b16 %v856, %v852
      %v1053 = vpack.c.b16 %v857, %v853
      %v1054 = vpack.c.b16 %v862, %v858
      %v1055 = vpack.c.b16 %v863, %v859
      %v1056 = vpack.c.b16 %v864, %v860
      %v1057 = vpack.c.b16 %v865, %v861
      %v1058 = vpack.c.b16 %v870, %v866
      %v1059 = vpack.c.b16 %v871, %v867
      %v1060 = vpack.c.b16 %v872, %v868
      %v1061 = vpack.c.b16 %v873, %v869
      %v1062 = vpack.c.b16 %v878, %v874
      %v1063 = vpack.c.b16 %v879, %v875
      %v1064 = vpack.c.b16 %v880, %v876
      %v1065 = vpack.c.b16 %v881, %v877
      %v1066 = vpack.c.b16 %v886, %v882
      %v1067 = vpack.c.b16 %v887, %v883
      %v1068 = vpack.c.b16 %v888, %v884
      %v1069 = vpack.c.b16 %v889, %v885
      %v1070 = vpack.c.b16 %v894, %v890
      %v1071 = vpack.c.b16 %v895, %v891
      %v1072 = vpack.c.b16 %v896, %v892
      %v1073 = vpack.c.b16 %v897, %v893
      %v1074 = vpack.c.b16 %v902, %v898
      %v1075 = vpack.c.b16 %v903, %v899
      %v1076 = vpack.c.b16 %v904, %v900
      %v1077 = vpack.c.b16 %v905, %v901
      %v1078 = vpack.c.b16 %v910, %v906
      %v1079 = vpack.c.b16 %v911, %v907
      %v1080 = vpack.c.b16 %v912, %v908
      %v1081 = vpack.c.b16 %v913, %v909
      %v1082 = vpack.c.b16 %v918, %v914
      %v1083 = vpack.c.b16 %v919, %v915
      %v1084 = vpack.c.b16 %v920, %v916
      %v1085 = vpack.c.b16 %v921, %v917
      %v1086 = vpack.c.b16 %v926, %v922
      %v1087 = vpack.c.b16 %v927, %v923
      %v1088 = vpack.c.b16 %v928, %v924
      %v1089 = vpack.c.b16 %v929, %v925
      %v1090 = vpack.c.b16 %v934, %v930
      %v1091 = vpack.c.b16 %v935, %v931
      %v1092 = vpack.c.b16 %v936, %v932
      %v1093 = vpack.c.b16 %v937, %v933
      %v1094 = vpack.c.b16 %v942, %v938
      %v1095 = vpack.c.b16 %v943, %v939
      %v1096 = vpack.c.b16 %v944, %v940
      %v1097 = vpack.c.b16 %v945, %v941
      %v1098 = vpack.c.b16 %v950, %v946
      %v1099 = vpack.c.b16 %v951, %v947
      %v1100 = vpack.c.b16 %v952, %v948
      %v1101 = vpack.c.b16 %v953, %v949
      %v1102 = vpack.c.b16 %v958, %v954
      %v1103 = vpack.c.b16 %v959, %v955
      %v1104 = vpack.c.b16 %v960, %v956
      %v1105 = vpack.c.b16 %v961, %v957
      %v1106 = vpack.c.b16 %v966, %v962
      %v1107 = vpack.c.b16 %v967, %v963
      %v1108 = vpack.c.b16 %v968, %v964
      %v1109 = vpack.c.b16 %v969, %v965
      %v1110 = vpack.c.b16 %v974, %v970
      %v1111 = vpack.c.b16 %v975, %v971
      %v1112 = vpack.c.b16 %v976, %v972
      %v1113 = vpack.c.b16 %v977, %v973
      %v1114 = vpack.c.b16 %v982, %v978
      %v1115 = vpack.c.b16 %v983, %v979
      %v1116 = vpack.c.b16 %v984, %v980
      %v1117 = vpack.c.b16 %v985, %v981
      %v1118 = vpack.c.b16 %v990, %v986
      %v1119 = vpack.c.b16 %v991, %v987
      %v1120 = vpack.c.b16 %v992, %v988
      %v1121 = vpack.c.b16 %v993, %v989
      %1250 = vmatprep.subr.bf16.mxu0 %v995
      %1251 = vmatpush1.bf16.msra.mxu0 %v994
      %1252 = vmatprep.subr.bf16.mxu0 %v999
      %1253 = vmatpush1.bf16.msra.mxu0 %v998
      %1254 = vmatprep.subr.bf16.mxu0 %v1003
      %1255 = vmatpush1.bf16.msra.mxu0 %v1002
      %1256 = vmatprep.subr.bf16.mxu0 %v1007
      %1257 = vmatpush1.bf16.msra.mxu0 %v1006
      %1258 = vmatprep.subr.bf16.mxu0 %v1011
      %1259 = vmatpush1.bf16.msra.mxu0 %v1010
      %1260 = vmatprep.subr.bf16.mxu0 %v1015
      %1261 = vmatpush1.bf16.msra.mxu0 %v1014
      %1262 = vmatprep.subr.bf16.mxu0 %v1019
      %1263 = vmatpush1.bf16.msra.mxu0 %v1018
      %1264 = vmatprep.subr.bf16.mxu0 %v1023
      %1265 = vmatpush1.bf16.msra.mxu0 %v1022
      %1266 = vmatprep.subr.bf16.mxu0 %v1027
      %1267 = vmatpush1.bf16.msra.mxu0 %v1026
      %1268 = vmatprep.subr.bf16.mxu0 %v1031
      %1269 = vmatpush1.bf16.msra.mxu0 %v1030
      %1270 = vmatprep.subr.bf16.mxu0 %v1035
      %1271 = vmatpush1.bf16.msra.mxu0 %v1034
      %1272 = vmatprep.subr.bf16.mxu0 %v1039
      %1273 = vmatpush1.bf16.msra.mxu0 %v1038
      %1274 = vmatprep.subr.bf16.mxu0 %v1043
      %1275 = vmatpush1.bf16.msra.mxu0 %v1042
      %1276 = vmatprep.subr.bf16.mxu0 %v1047
      %1277 = vmatpush1.bf16.msra.mxu0 %v1046
      %1278 = vmatprep.subr.bf16.mxu0 %v1051
      %1279 = vmatpush1.bf16.msra.mxu0 %v1050
      %1280 = vmatprep.subr.bf16.mxu0 %v1055
      %1281 = vmatpush1.bf16.msra.mxu0 %v1054
      %1282 = vmatprep.mubr.bf16.mxu0 %v603
      %1283 = vmatmul.mubr.bf16.gmra.mrb[0].mxu0 %v596
      %v1284 = vpop.f32.mrb[0].mxu0
      %v1285 = vadd.f32 0.0, %v1284
      %v1286 = vpop.f32.mrb[0].mxu0
      %v1287 = vadd.f32 0.0, %v1286
      %v1288 = vpop.f32.mrb[0].mxu0
      %v1289 = vpop.f32.mrb[0].mxu0
      %1290 = vdwg.mxu0
      %1291 = vmatprep.subr.bf16.mxu0 %v1059
      %1292 = vmatpush1.bf16.msra.mxu0 %v1058
      %1293 = vmatprep.subr.bf16.mxu0 %v1063
      %1294 = vmatpush1.bf16.msra.mxu0 %v1062
      %1295 = vmatprep.subr.bf16.mxu0 %v1067
      %1296 = vmatpush1.bf16.msra.mxu0 %v1066
      %1297 = vmatprep.subr.bf16.mxu0 %v1071
      %1298 = vmatpush1.bf16.msra.mxu0 %v1070
      %1299 = vmatprep.subr.bf16.mxu0 %v1075
      %1300 = vmatpush1.bf16.msra.mxu0 %v1074
      %1301 = vmatprep.subr.bf16.mxu0 %v1079
      %1302 = vmatpush1.bf16.msra.mxu0 %v1078
      %1303 = vmatprep.subr.bf16.mxu0 %v1083
      %1304 = vmatpush1.bf16.msra.mxu0 %v1082
      %1305 = vmatprep.subr.bf16.mxu0 %v1087
      %1306 = vmatpush1.bf16.msra.mxu0 %v1086
      %1307 = vmatprep.subr.bf16.mxu0 %v1091
      %1308 = vmatpush1.bf16.msra.mxu0 %v1090
      %1309 = vmatprep.subr.bf16.mxu0 %v1095
      %1310 = vmatpush1.bf16.msra.mxu0 %v1094
      %1311 = vmatprep.subr.bf16.mxu0 %v1099
      %1312 = vmatpush1.bf16.msra.mxu0 %v1098
      %1313 = vmatprep.subr.bf16.mxu0 %v1103
      %1314 = vmatpush1.bf16.msra.mxu0 %v1102
      %1315 = vmatprep.subr.bf16.mxu0 %v1107
      %1316 = vmatpush1.bf16.msra.mxu0 %v1106
      %1317 = vmatprep.subr.bf16.mxu0 %v1111
      %1318 = vmatpush1.bf16.msra.mxu0 %v1110
      %1319 = vmatprep.subr.bf16.mxu0 %v1115
      %1320 = vmatpush1.bf16.msra.mxu0 %v1114
      %1321 = vmatprep.subr.bf16.mxu0 %v1119
      %1322 = vmatpush1.bf16.msra.mxu0 %v1118
      %1323 = vmatprep.mubr.bf16.mxu0 %v605
      %1324 = vmatmul.mubr.bf16.gmra.mrb[0].mxu0 %v604
      %v1325 = vpop.f32.mrb[0].mxu0
      %v1326 = vadd.f32 %v1285, %v1325
      %v1327 = vpop.f32.mrb[0].mxu0
      %v1328 = vadd.f32 %v1287, %v1327
      %v1329 = vpop.f32.mrb[0].mxu0
      %v1330 = vpop.f32.mrb[0].mxu0
      %1331 = vdwg.mxu0
      %1332 = vmatprep.subr.bf16.mxu0 %v997
      %1333 = vmatpush1.bf16.msra.mxu0 %v996
      %1334 = vmatprep.subr.bf16.mxu0 %v1001
      %1335 = vmatpush1.bf16.msra.mxu0 %v1000
      %1336 = vmatprep.subr.bf16.mxu0 %v1005
      %1337 = vmatpush1.bf16.msra.mxu0 %v1004
      %1338 = vmatprep.subr.bf16.mxu0 %v1009
      %1339 = vmatpush1.bf16.msra.mxu0 %v1008
      %1340 = vmatprep.subr.bf16.mxu0 %v1013
      %1341 = vmatpush1.bf16.msra.mxu0 %v1012
      %1342 = vmatprep.subr.bf16.mxu0 %v1017
      %1343 = vmatpush1.bf16.msra.mxu0 %v1016
      %1344 = vmatprep.subr.bf16.mxu0 %v1021
      %1345 = vmatpush1.bf16.msra.mxu0 %v1020
      %1346 = vmatprep.subr.bf16.mxu0 %v1025
      %1347 = vmatpush1.bf16.msra.mxu0 %v1024
      %1348 = vmatprep.subr.bf16.mxu0 %v1029
      %1349 = vmatpush1.bf16.msra.mxu0 %v1028
      %1350 = vmatprep.subr.bf16.mxu0 %v1033
      %1351 = vmatpush1.bf16.msra.mxu0 %v1032
      %1352 = vmatprep.subr.bf16.mxu0 %v1037
      %1353 = vmatpush1.bf16.msra.mxu0 %v1036
      %1354 = vmatprep.subr.bf16.mxu0 %v1041
      %1355 = vmatpush1.bf16.msra.mxu0 %v1040
      %1356 = vmatprep.subr.bf16.mxu0 %v1045
      %1357 = vmatpush1.bf16.msra.mxu0 %v1044
      %1358 = vmatprep.subr.bf16.mxu0 %v1049
      %1359 = vmatpush1.bf16.msra.mxu0 %v1048
      %1360 = vmatprep.subr.bf16.mxu0 %v1053
      %1361 = vmatpush1.bf16.msra.mxu0 %v1052
      %1362 = vmatprep.subr.bf16.mxu0 %v1057
      %1363 = vmatpush1.bf16.msra.mxu0 %v1056
      %1364 = vmatprep.mubr.bf16.mxu0 %v603
      %1365 = vmatmul.mubr.bf16.gmra.mrb[0].mxu0 %v596
      %v1366 = vpop.f32.mrb[0].mxu0
      %v1367 = vadd.f32 0.0, %v1366
      %v1368 = vpop.f32.mrb[0].mxu0
      %v1369 = vadd.f32 0.0, %v1368
      %v1370 = vpop.f32.mrb[0].mxu0
      %v1371 = vpop.f32.mrb[0].mxu0
      %1372 = vdwg.mxu0
      %1373 = vmatprep.subr.bf16.mxu0 %v1061
      %1374 = vmatpush1.bf16.msra.mxu0 %v1060
      %1375 = vmatprep.subr.bf16.mxu0 %v1065
      %1376 = vmatpush1.bf16.msra.mxu0 %v1064
      %1377 = vmatprep.subr.bf16.mxu0 %v1069
      %1378 = vmatpush1.bf16.msra.mxu0 %v1068
      %1379 = vmatprep.subr.bf16.mxu0 %v1073
      %1380 = vmatpush1.bf16.msra.mxu0 %v1072
      %1381 = vmatprep.subr.bf16.mxu0 %v1077
      %1382 = vmatpush1.bf16.msra.mxu0 %v1076
      %1383 = vmatprep.subr.bf16.mxu0 %v1081
      %1384 = vmatpush1.bf16.msra.mxu0 %v1080
      %1385 = vmatprep.subr.bf16.mxu0 %v1085
      %1386 = vmatpush1.bf16.msra.mxu0 %v1084
      %1387 = vmatprep.subr.bf16.mxu0 %v1089
      %1388 = vmatpush1.bf16.msra.mxu0 %v1088
      %1389 = vmatprep.subr.bf16.mxu0 %v1093
      %1390 = vmatpush1.bf16.msra.mxu0 %v1092
      %1391 = vmatprep.subr.bf16.mxu0 %v1097
      %1392 = vmatpush1.bf16.msra.mxu0 %v1096
      %1393 = vmatprep.subr.bf16.mxu0 %v1101
      %1394 = vmatpush1.bf16.msra.mxu0 %v1100
      %1395 = vmatprep.subr.bf16.mxu0 %v1105
      %1396 = vmatpush1.bf16.msra.mxu0 %v1104
      %1397 = vmatprep.subr.bf16.mxu0 %v1109
      %1398 = vmatpush1.bf16.msra.mxu0 %v1108
      %1399 = vmatprep.subr.bf16.mxu0 %v1113
      %1400 = vmatpush1.bf16.msra.mxu0 %v1112
      %1401 = vmatprep.subr.bf16.mxu0 %v1117
      %1402 = vmatpush1.bf16.msra.mxu0 %v1116
      %1403 = vmatprep.subr.bf16.mxu0 %v1121
      %1404 = vmatpush1.bf16.msra.mxu0 %v1120
      %1405 = vmatprep.mubr.bf16.mxu0 %v605
      %1406 = vmatmul.mubr.bf16.gmra.mrb[0].mxu0 %v604
      %v1407 = vpop.f32.mrb[0].mxu0
      %v1408 = vadd.f32 %v1367, %v1407
      %v1409 = vpop.f32.mrb[0].mxu0
      %v1410 = vadd.f32 %v1369, %v1409
      %v1411 = vpop.f32.mrb[0].mxu0
      %v1412 = vpop.f32.mrb[0].mxu0
      %1413 = vdwg.mxu0
      %v1418 = vcombine.low %v1326, %v1328
      %v1419 = vcombine.low %v1408, %v1410
      %v1421 = vunpack.c.l.s4 1983009808
      %v1422 = vunpack.c.0.s8 %v1421
      %v1423 = vlaneseq
      %v1424 = vshrl.u32 %v1423, 7
      %v1425 = vsub.s32 %v1422, %v1424
      %v1426 = vrot.slane %v1418, %v1425
      %v1428 = vunpack.c.l.s4 1983009808
      %v1429 = vunpack.c.0.s8 %v1428
      %v1430 = vlaneseq
      %v1431 = vshrl.u32 %v1430, 7
      %v1432 = vsub.s32 %v1429, %v1431
      %v1433 = vrot.slane %v1419, %v1432
      %v1434 = vcombine.low %v1426, %v1433
      %v1436 = vadd.f32 %v451, %v1434
      %1437 = vst [vmem:[#allocation2] sm:$0xff] %v1436
      %p1438 = scmp.eq.s32.totalorder %s20, 3
      // Predicated region
      $region53: #{discriminator_forward.9} parent=47 // pred_check
        %p1439 = pneg %p1438
      $region54: #{discriminator_forward.9} parent=47 // pred_check_branch
        %1441 = sbr.rel (%p1439) target = $region56
      $region55: #{discriminator_forward.9} parent=47 // pred_region
        %v1442 = vld [vmem:[#allocation2] sm:$0xff]
        %v1443 = vmax.f32 %v1442, 0.0
        %v1444 = vld [vmem:[%s5] sm:$0xf]
        %v1446 = vlaneseq
        %v1447 = vshrl.u32 %v1446, 7
        %v1448 = vsub.s32 0, %v1447
        %v1449 = vrot.slane %v1444, %v1448
        %v1450 = vlaneseq
        %v1451 = vshrl.u32 %v1450, 7
        %v1452 = vsub.s32 1, %v1451
        %v1453 = vrot.slane %v1444, %v1452
        %v1454 = vlaneseq
        %v1455 = vshrl.u32 %v1454, 7
        %v1456 = vsub.s32 2, %v1455
        %v1457 = vrot.slane %v1444, %v1456
        %v1458 = vlaneseq
        %v1459 = vshrl.u32 %v1458, 7
        %v1460 = vsub.s32 3, %v1459
        %v1461 = vrot.slane %v1444, %v1460
        %v1462 = vcombine.low %v1449, %v1453
        %v1463 = vcombine.low %v1457, %v1461
        %v1465 = vunpack.c.l.s4 1983009808
        %v1466 = vunpack.c.0.s8 %v1465
        %v1467 = vlaneseq
        %v1468 = vshrl.u32 %v1467, 7
        %v1469 = vsub.s32 %v1466, %v1468
        %v1470 = vrot.slane %v1462, %v1469
        %v1472 = vunpack.c.l.s4 1983009808
        %v1473 = vunpack.c.0.s8 %v1472
        %v1474 = vlaneseq
        %v1475 = vshrl.u32 %v1474, 7
        %v1476 = vsub.s32 %v1473, %v1475
        %v1477 = vrot.slane %v1463, %v1476
        %v1478 = vcombine.low %v1470, %v1477
        %v1480 = vmul.f32 %v1443, %v1478
        %v1482 = vcombine.high %v1480, %v1480
        %v1484 = vunpack.c.l.s4 1983009808
        %v1485 = vunpack.c.0.s8 %v1484
        %v1486 = vlaneseq
        %v1487 = vshrl.u32 %v1486, 7
        %v1488 = vsub.s32 %v1485, %v1487
        %v1489 = vrot.slane %v1480, %v1488
        %v1491 = vunpack.c.l.s4 1983009808
        %v1492 = vunpack.c.0.s8 %v1491
        %v1493 = vlaneseq
        %v1494 = vshrl.u32 %v1493, 7
        %v1495 = vsub.s32 %v1492, %v1494
        %v1496 = vrot.slane %v1482, %v1495
        %v1497 = vcombine.high %v1489, %v1489
        %v1498 = vcombine.high %v1496, %v1496
        %vm1503 = vcmask 1041408
        %v1504 = vsel %vm1503, %v1489, 0.0
        %v1505 = vsel %vm1503, %v1497, 0.0
        %v1506 = vadd.f32 %v1504, %v1505
        %v1507 = vsel %vm1503, %v1496, 0.0
        %v1508 = vadd.f32 %v1506, %v1507
        %v1509 = vsel %vm1503, %v1498, 0.0
        %v1510 = vadd.f32 %v1508, %v1509
        %1511 = vadd.xlane.f32.xlu0 %v1510
        %v1512 = vpop.xlane.xlu0 %1511
        %v1513 = vld [vmem:[#allocation3] sm:$0x1]
        %v1515 = vlaneseq
        %v1516 = vshrl.u32 %v1515, 7
        %v1517 = vsub.s32 0, %v1516
        %v1518 = vrot.slane %v1513, %v1517
        %v1520 = vadd.f32 %v1512, %v1518
        %v1521 = vxor.u32 %v1520, 2147483648
        %v1522 = vmul.f32 %v1521, 1.442695
        %v1523 = vpow.pop %v1522
        %v1524 = vadd.f32 %v1523, 1.0
        %v1525 = vrcp.pop %v1524
        %v1526 = vmul.f32 1.0, %v1525
        %vm1527 = vcmask 1024
        %1528 = vst.msk [vmem:[%s7] sm:$0x3] %vm1527, %v1526
      $region56: #{discriminator_forward.9} parent=47 // pred_fallthru
        _
      // Predicated region
      $region57: #{discriminator_forward.9} parent=47 // pred_check
        %p1529 = pneg %p190
      $region58: #{discriminator_forward.9} parent=47 // pred_check_branch
        %1531 = sbr.rel (%p1529) target = $region60
      $region59: #{discriminator_forward.9} parent=47 // pred_region
        _
      $region60: #{discriminator_forward.9} parent=47 // pred_fallthru
        _
      // Predicated region
      $region61: #{discriminator_forward.9} parent=47 // pred_check
        %p1532 = pneg %p190
      $region62: #{discriminator_forward.9} parent=47 // pred_check_branch
        %1534 = sbr.rel (%p1532) target = $region64
      $region63: #{discriminator_forward.9} parent=47 // pred_region
        _
      $region64: #{discriminator_forward.9} parent=47 // pred_fallthru
        _
    $region48: #{discriminator_forward.9} parent=5 // pred_fallthru
      _
    %p1535 = scmp.le.s32.totalorder 2, %s15
    // Predicated region
    $region65: #{discriminator_forward.9} parent=5 // pred_check
      %p1536 = pneg %p1535
    $region66: #{discriminator_forward.9} parent=5 // pred_check_branch
      %1538 = sbr.rel (%p1536) target = $region68
    $region67: #{discriminator_forward.9} parent=5 // pred_region
      %s1539 = ssub.s32 %s15, 2
    $region68: #{discriminator_forward.9} parent=5 // pred_fallthru
      _
  $region6: #{discriminator_forward.9} parent=0 // loop_footer
    %s19 = sadd.s32 1, %s15
  $region7: #{discriminator_forward.9} parent=0 // loop_footer_branch
    %14 = sbr.rel target = $region3
  $region8: #{discriminator_forward.9} parent=0 // loop_exit
    _

</llo_original>
